<compile_context>
chip_gen: v7x
topology: tpu7x:2x2x1
jax: 0.10.0
libtpu: 0.0.40
codegen_flags: <defaults>
</compile_context>

<pallas_src>
import math
import jax
import jax.numpy as jnp
import numpy as np
from jax import lax
from jax.experimental import pallas as pl
from jax.experimental.pallas import tpu as pltpu  # noqa: F401  (TPU backend)

EPS = 1e-6

# small, shape-consistent configuration (d_model divisible by head count)
B, S, D = 2, 8, 32     # batch, seq, d_model
H = 4                  # heads
DK = D // H            # 8
DFF = 64               # feed-forward hidden
NLAYERS = 2            # N
BS = B * S


# ------------------------- in-kernel helpers -------------------------

def _mm(a, b):        # a @ b,   f32 accumulation on the MXU
    return lax.dot_general(a, b, (((1,), (0,)), ((), ())),
                           preferred_element_type=jnp.float32)


def _mm_t(a, b):      # a @ b.T  (contract last dims, no explicit transpose)
    return lax.dot_general(a, b, (((1,), (1,)), ((), ())),
                           preferred_element_type=jnp.float32)


def _layer_norm(v, g, b):
    # custom LayerNorm: unbiased std (D-1), eps added to std
    mean = jnp.mean(v, axis=-1, keepdims=True)
    diff = v - mean
    var = jnp.sum(diff * diff, axis=-1, keepdims=True) / (D - 1)
    return g * diff / (jnp.sqrt(var) + EPS) + b


# ------------------------- fused Pallas kernel -------------------------

def encoder_stack_kernel(x_ref, mask_ref,
                         g1_ref, b1_ref,
                         wq_ref, bq_ref, wk_ref, bk_ref, wv_ref, bv_ref,
                         wo_ref, bo_ref,
                         g2_ref, b2_ref,
                         w1_ref, bf1_ref, w2_ref, bf2_ref,
                         gf_ref, bf_ref,
                         o_ref):
    x = x_ref[...]                                              # (BS, D) f32
    # mask bias hoisted: computed once for all layers / batches / heads
    bias = jnp.where(mask_ref[...] == 0.0,
                     jnp.float32(-1e9), jnp.float32(0.0))       # (B, S, S) f32
    scale = jnp.float32(1.0 / math.sqrt(DK))

    for l in range(NLAYERS):                 # static unroll: fully fused layer stack
        # ---- sublayer 0:  x + SelfAttn(LayerNorm(x)) ----
        y = _layer_norm(x, g1_ref[l], b1_ref[l])                # (BS, D)
        attn = jnp.zeros((BS, D), jnp.float32)
        for h in range(H):                   # static unroll over heads
            # per-head projections: contraction over full D, no lane slicing
            qh = _mm(y, wq_ref[l, h]) + bq_ref[l, h]            # (BS, DK)
            kh = _mm(y, wk_ref[l, h]) + bk_ref[l, h]
            vh = _mm(y, wv_ref[l, h]) + bv_ref[l, h]
            rows = []
            for b in range(B):               # static unroll over batch (sublane slices)
                r0 = b * S
                s = _mm_t(qh[r0:r0 + S], kh[r0:r0 + S]) * scale + bias[b]   # (S, S)
                s = s - jnp.max(s, axis=-1, keepdims=True)
                e = jnp.exp(s)
                p = e * pl.reciprocal(jnp.sum(e, axis=-1, keepdims=True), approx=True)
                rows.append(_mm(p, vh[r0:r0 + S]))              # (S, DK)
            head = jnp.concatenate(rows, axis=0)                # (BS, DK)
            # fold the output projection into the head loop -> no head concat
            attn = attn + _mm(head, wo_ref[l, h])               # (BS, D)
        x = x + attn + bo_ref[l]

        # ---- sublayer 1:  x + FFN(LayerNorm(x)) ----
        y2 = _layer_norm(x, g2_ref[l], b2_ref[l])
        hdn = jnp.maximum(_mm(y2, w1_ref[l]) + bf1_ref[l], 0.0)  # (BS, DFF)
        x = x + _mm(hdn, w2_ref[l]) + bf2_ref[l]

    # ---- final LayerNorm, single output store ----
    o_ref[...] = _layer_norm(x, gf_ref[...], bf_ref[...])


# ------------------------- wrapper -------------------------

@jax.jit
def encoder_forward(x, mask, stacked_params, final_g, final_b):
    (g1, b1, wq, bq, wk, bk, wv, bv, wo, bo,
     g2, b2, w1, bf1, w2, bf2) = stacked_params

    # Host-side (XLA) re-layout of the per-head weights so the kernel never needs
    # sub-128 lane slicing: column-blocks of Wq/Wk/Wv become per-head (D, DK) slabs,
    # row-blocks of Wo become per-head (DK, D) slabs.  These reshapes are free.
    wq_h = wq.reshape(NLAYERS, D, H, DK).transpose(0, 2, 1, 3)   # (L, H, D, DK)
    wk_h = wk.reshape(NLAYERS, D, H, DK).transpose(0, 2, 1, 3)
    wv_h = wv.reshape(NLAYERS, D, H, DK).transpose(0, 2, 1, 3)
    bq_h = bq.reshape(NLAYERS, 1, H, DK).transpose(0, 2, 1, 3)   # (L, H, 1, DK)
    bk_h = bk.reshape(NLAYERS, 1, H, DK).transpose(0, 2, 1, 3)
    bv_h = bv.reshape(NLAYERS, 1, H, DK).transpose(0, 2, 1, 3)
    wo_h = wo.reshape(NLAYERS, H, DK, D)                         # (L, H, DK, D)

    # one gridless pallas_call for the whole encoder stack: activations, mask and
    # ~70 KiB of stacked weights all fit in VMEM with huge margin on v5e/v6e/v7x.
    out = pl.pallas_call(
        encoder_stack_kernel,
        out_shape=jax.ShapeDtypeStruct((BS, D), jnp.float32),
    )(x.reshape(BS, D), mask,
      g1, b1, wq_h, bq_h, wk_h, bk_h, wv_h, bv_h, wo_h, bo,
      g2, b2, w1, bf1, w2, bf2, final_g, final_b)
    return out.reshape(B, S, D)


def stack_layer_params(layer_params):
    # per-layer tuples -> tuple of arrays stacked along a leading NLAYERS axis
    n = len(layer_params[0])
    return tuple(jnp.stack([lp[i] for lp in layer_params], axis=0) for i in range(n))


# ------------------------- pure-JAX reference -------------------------

def _ref_ln(x, g, b):
    mean = jnp.mean(x, axis=-1, keepdims=True)
    diff = x - mean
    var = jnp.sum(diff * diff, axis=-1, keepdims=True) / (D - 1)
    return g * diff / (jnp.sqrt(var) + EPS) + b


def ref_encoder(x, mask, layer_params, final_g, final_b):
    for p in layer_params:
        (g1, b1, wq, bq, wk, bk, wv, bv, wo, bo, g2, b2, w1, bf1, w2, bf2) = p
        y = _ref_ln(x, g1, b1)
        q = (y @ wq + bq).reshape(B, S, H, DK).transpose(0, 2, 1, 3)
        k = (y @ wk + bk).reshape(B, S, H, DK).transpose(0, 2, 1, 3)
        v = (y @ wv + bv).reshape(B, S, H, DK).transpose(0, 2, 1, 3)
        s = jnp.einsum("bhqd,bhkd->bhqk", q, k) / math.sqrt(DK)
        s = jnp.where(mask[:, None] == 0, -1e9, s)
        p_attn = jax.nn.softmax(s, axis=-1)
        o = jnp.einsum("bhqk,bhkd->bhqd", p_attn, v)
        o = o.transpose(0, 2, 1, 3).reshape(B, S, D)
        x = x + (o @ wo + bo)
        y2 = _ref_ln(x, g2, b2)
        x = x + (jnp.maximum(y2 @ w1 + bf1, 0.0) @ w2 + bf2)
    return _ref_ln(x, final_g, final_b)


# ------------------------- param init -------------------------

def init_layer_params(key):
    ks = jax.random.split(key, 8)
    def w(k, shape, scale):
        return (scale * jax.random.normal(k, shape)).astype(jnp.float32)
    g1 = jnp.ones((1, D), jnp.float32); b1 = jnp.zeros((1, D), jnp.float32)
    g2 = jnp.ones((1, D), jnp.float32); b2 = jnp.zeros((1, D), jnp.float32)
    wq = w(ks[0], (D, D), 0.1);  bq = jnp.zeros((1, D), jnp.float32)
    wk = w(ks[1], (D, D), 0.1);  bk = jnp.zeros((1, D), jnp.float32)
    wv = w(ks[2], (D, D), 0.1);  bv = jnp.zeros((1, D), jnp.float32)
    wo = w(ks[3], (D, D), 0.1);  bo = w(ks[4], (1, D), 0.02)
    w1 = w(ks[5], (D, DFF), 0.1); bf1 = jnp.zeros((1, DFF), jnp.float32)
    w2 = w(ks[6], (DFF, D), 0.1); bf2 = w(ks[7], (1, D), 0.02)
    return (g1, b1, wq, bq, wk, bk, wv, bv, wo, bo, g2, b2, w1, bf1, w2, bf2)


if __name__ == "__main__":
    root = jax.random.PRNGKey(0)
    k_x, k_mask, k_layers = jax.random.split(root, 3)

    x = jax.random.normal(k_x, (B, S, D), dtype=jnp.float32)
    # mask with zeros and ones to exercise both masked_fill branches
    mask = (jax.random.uniform(k_mask, (B, S, S)) > 0.2).astype(jnp.float32)

    layer_keys = jax.random.split(k_layers, NLAYERS)
    layer_params = [init_layer_params(k) for k in layer_keys]
    final_g = jnp.ones((1, D), jnp.float32)
    final_b = jnp.zeros((1, D), jnp.float32)

    stacked = stack_layer_params(layer_params)

    out = encoder_forward(x, mask, stacked, final_g, final_b)
    out = jax.block_until_ready(out)

    ref = jax.block_until_ready(ref_encoder(x, mask, layer_params, final_g, final_b))
    np.testing.assert_allclose(np.asarray(out), np.asarray(ref), rtol=2e-2, atol=2e-2)

    print("KERNEL_OK")
</pallas_src>

<mosaic_0001>
module attributes {stable_mosaic.version = 11 : i64} {
  func.func @encoder_stack_kernel(%arg0: memref<16x32xf32, #tpu.memory_space<vmem>>, %arg1: memref<2x8x8xf32, #tpu.memory_space<vmem>>, %arg2: memref<2x1x32xf32, #tpu.memory_space<vmem>>, %arg3: memref<2x1x32xf32, #tpu.memory_space<vmem>>, %arg4: memref<2x4x32x8xf32, #tpu.memory_space<vmem>>, %arg5: memref<2x4x1x8xf32, #tpu.memory_space<vmem>>, %arg6: memref<2x4x32x8xf32, #tpu.memory_space<vmem>>, %arg7: memref<2x4x1x8xf32, #tpu.memory_space<vmem>>, %arg8: memref<2x4x32x8xf32, #tpu.memory_space<vmem>>, %arg9: memref<2x4x1x8xf32, #tpu.memory_space<vmem>>, %arg10: memref<2x4x8x32xf32, #tpu.memory_space<vmem>>, %arg11: memref<2x1x32xf32, #tpu.memory_space<vmem>>, %arg12: memref<2x1x32xf32, #tpu.memory_space<vmem>>, %arg13: memref<2x1x32xf32, #tpu.memory_space<vmem>>, %arg14: memref<2x32x64xf32, #tpu.memory_space<vmem>>, %arg15: memref<2x1x64xf32, #tpu.memory_space<vmem>>, %arg16: memref<2x64x32xf32, #tpu.memory_space<vmem>>, %arg17: memref<2x1x32xf32, #tpu.memory_space<vmem>>, %arg18: memref<1x32xf32, #tpu.memory_space<vmem>>, %arg19: memref<1x32xf32, #tpu.memory_space<vmem>>, %arg20: memref<16x32xf32, #tpu.memory_space<vmem>>) attributes {dimension_semantics = [], scalar_prefetch = 0 : i64, scratch_operands = 0 : i64, tpu.core_type = #tpu.core_type<tc>} {
    %c0 = arith.constant 0 : index
    %c0_0 = arith.constant 0 : index
    %0 = vector.load %arg0[%c0, %c0_0] : memref<16x32xf32, #tpu.memory_space<vmem>>, vector<16x32xf32>
    %c0_1 = arith.constant 0 : index
    %c0_2 = arith.constant 0 : index
    %c0_3 = arith.constant 0 : index
    %1 = vector.load %arg1[%c0_1, %c0_2, %c0_3] : memref<2x8x8xf32, #tpu.memory_space<vmem>>, vector<2x8x8xf32>
    %cst = arith.constant 0.000000e+00 : f32
    %2 = vector.broadcast %cst : f32 to vector<2x8x8xf32>
    %3 = arith.cmpf oeq, %1, %2 : vector<2x8x8xf32>
    %cst_4 = arith.constant -1.000000e+09 : f32
    %cst_5 = arith.constant 0.000000e+00 : f32
    %4 = vector.broadcast %cst_4 : f32 to vector<2x8x8xf32>
    %5 = vector.broadcast %cst_5 : f32 to vector<2x8x8xf32>
    %6 = arith.select %3, %4, %5 : vector<2x8x8xi1>, vector<2x8x8xf32>
    %c0_6 = arith.constant 0 : index
    %c0_7 = arith.constant 0 : index
    %c0_8 = arith.constant 0 : index
    %7 = vector.load %arg2[%c0_6, %c0_7, %c0_8] : memref<2x1x32xf32, #tpu.memory_space<vmem>>, vector<1x1x32xf32>
    %8 = vector.shape_cast %7 : vector<1x1x32xf32> to vector<1x32xf32>
    %c0_9 = arith.constant 0 : index
    %c0_10 = arith.constant 0 : index
    %c0_11 = arith.constant 0 : index
    %9 = vector.load %arg3[%c0_9, %c0_10, %c0_11] : memref<2x1x32xf32, #tpu.memory_space<vmem>>, vector<1x1x32xf32>
    %10 = vector.shape_cast %9 : vector<1x1x32xf32> to vector<1x32xf32>
    %cst_12 = arith.constant dense<0.000000e+00> : vector<16xf32>
    %11 = vector.multi_reduction <add>, %0, %cst_12 [1] : vector<16x32xf32> to vector<16xf32>
    %12 = vector.shape_cast %11 : vector<16xf32> to vector<16x1xf32>
    %cst_13 = arith.constant 3.200000e+01 : f32
    %13 = vector.broadcast %cst_13 : f32 to vector<16x1xf32>
    %14 = arith.divf %12, %13 : vector<16x1xf32>
    %15 = vector.broadcast %14 : vector<16x1xf32> to vector<16x32xf32>
    %16 = arith.subf %0, %15 : vector<16x32xf32>
    %17 = arith.mulf %16, %16 : vector<16x32xf32>
    %cst_14 = arith.constant dense<0.000000e+00> : vector<16xf32>
    %18 = vector.multi_reduction <add>, %17, %cst_14 [1] : vector<16x32xf32> to vector<16xf32>
    %19 = vector.shape_cast %18 : vector<16xf32> to vector<16x1xf32>
    %cst_15 = arith.constant 3.100000e+01 : f32
    %20 = vector.broadcast %cst_15 : f32 to vector<16x1xf32>
    %21 = arith.divf %19, %20 : vector<16x1xf32>
    %22 = vector.broadcast %8 : vector<1x32xf32> to vector<16x32xf32>
    %23 = arith.mulf %22, %16 : vector<16x32xf32>
    %24 = math.sqrt %21 : vector<16x1xf32>
    %cst_16 = arith.constant 9.99999997E-7 : f32
    %25 = vector.broadcast %cst_16 : f32 to vector<16x1xf32>
    %26 = arith.addf %24, %25 : vector<16x1xf32>
    %27 = vector.broadcast %26 : vector<16x1xf32> to vector<16x32xf32>
    %28 = arith.divf %23, %27 : vector<16x32xf32>
    %29 = vector.broadcast %10 : vector<1x32xf32> to vector<16x32xf32>
    %30 = arith.addf %28, %29 : vector<16x32xf32>
    %cst_17 = arith.constant 0.000000e+00 : f32
    %31 = vector.broadcast %cst_17 : f32 to vector<16x32xf32>
    %c0_18 = arith.constant 0 : index
    %c0_19 = arith.constant 0 : index
    %c0_20 = arith.constant 0 : index
    %c0_21 = arith.constant 0 : index
    %32 = vector.load %arg4[%c0_18, %c0_19, %c0_20, %c0_21] : memref<2x4x32x8xf32, #tpu.memory_space<vmem>>, vector<1x1x32x8xf32>
    %33 = vector.shape_cast %32 : vector<1x1x32x8xf32> to vector<32x8xf32>
    %cst_22 = arith.constant dense<0.000000e+00> : vector<16x8xf32>
    %34 = tpu.matmul %30, %33, %cst_22 {dimension_numbers = #tpu.dot_dimension_numbers<[1], [0], [0], [1], [0, 0, 1, 1], [], []>} : vector<16x32xf32>, vector<32x8xf32>, vector<16x8xf32> -> vector<16x8xf32>
    %c0_23 = arith.constant 0 : index
    %c0_24 = arith.constant 0 : index
    %c0_25 = arith.constant 0 : index
    %c0_26 = arith.constant 0 : index
    %35 = vector.load %arg5[%c0_23, %c0_24, %c0_25, %c0_26] : memref<2x4x1x8xf32, #tpu.memory_space<vmem>>, vector<1x1x1x8xf32>
    %36 = vector.shape_cast %35 : vector<1x1x1x8xf32> to vector<1x8xf32>
    %37 = vector.broadcast %36 : vector<1x8xf32> to vector<16x8xf32>
    %38 = arith.addf %34, %37 : vector<16x8xf32>
    %c0_27 = arith.constant 0 : index
    %c0_28 = arith.constant 0 : index
    %c0_29 = arith.constant 0 : index
    %c0_30 = arith.constant 0 : index
    %39 = vector.load %arg6[%c0_27, %c0_28, %c0_29, %c0_30] : memref<2x4x32x8xf32, #tpu.memory_space<vmem>>, vector<1x1x32x8xf32>
    %40 = vector.shape_cast %39 : vector<1x1x32x8xf32> to vector<32x8xf32>
    %cst_31 = arith.constant dense<0.000000e+00> : vector<16x8xf32>
    %41 = tpu.matmul %30, %40, %cst_31 {dimension_numbers = #tpu.dot_dimension_numbers<[1], [0], [0], [1], [0, 0, 1, 1], [], []>} : vector<16x32xf32>, vector<32x8xf32>, vector<16x8xf32> -> vector<16x8xf32>
    %c0_32 = arith.constant 0 : index
    %c0_33 = arith.constant 0 : index
    %c0_34 = arith.constant 0 : index
    %c0_35 = arith.constant 0 : index
    %42 = vector.load %arg7[%c0_32, %c0_33, %c0_34, %c0_35] : memref<2x4x1x8xf32, #tpu.memory_space<vmem>>, vector<1x1x1x8xf32>
    %43 = vector.shape_cast %42 : vector<1x1x1x8xf32> to vector<1x8xf32>
    %44 = vector.broadcast %43 : vector<1x8xf32> to vector<16x8xf32>
    %45 = arith.addf %41, %44 : vector<16x8xf32>
    %c0_36 = arith.constant 0 : index
    %c0_37 = arith.constant 0 : index
    %c0_38 = arith.constant 0 : index
    %c0_39 = arith.constant 0 : index
    %46 = vector.load %arg8[%c0_36, %c0_37, %c0_38, %c0_39] : memref<2x4x32x8xf32, #tpu.memory_space<vmem>>, vector<1x1x32x8xf32>
    %47 = vector.shape_cast %46 : vector<1x1x32x8xf32> to vector<32x8xf32>
    %cst_40 = arith.constant dense<0.000000e+00> : vector<16x8xf32>
    %48 = tpu.matmul %30, %47, %cst_40 {dimension_numbers = #tpu.dot_dimension_numbers<[1], [0], [0], [1], [0, 0, 1, 1], [], []>} : vector<16x32xf32>, vector<32x8xf32>, vector<16x8xf32> -> vector<16x8xf32>
    %c0_41 = arith.constant 0 : index
    %c0_42 = arith.constant 0 : index
    %c0_43 = arith.constant 0 : index
    %c0_44 = arith.constant 0 : index
    %49 = vector.load %arg9[%c0_41, %c0_42, %c0_43, %c0_44] : memref<2x4x1x8xf32, #tpu.memory_space<vmem>>, vector<1x1x1x8xf32>
    %50 = vector.shape_cast %49 : vector<1x1x1x8xf32> to vector<1x8xf32>
    %51 = vector.broadcast %50 : vector<1x8xf32> to vector<16x8xf32>
    %52 = arith.addf %48, %51 : vector<16x8xf32>
    %53 = vector.extract_strided_slice %38 {offsets = [0, 0], sizes = [8, 8], strides = [1, 1]} : vector<16x8xf32> to vector<8x8xf32>
    %54 = vector.extract_strided_slice %45 {offsets = [0, 0], sizes = [8, 8], strides = [1, 1]} : vector<16x8xf32> to vector<8x8xf32>
    %cst_45 = arith.constant dense<0.000000e+00> : vector<8x8xf32>
    %55 = tpu.matmul %53, %54, %cst_45 {dimension_numbers = #tpu.dot_dimension_numbers<[1], [1], [0], [0], [0, 0, 1, 0], [], []>} : vector<8x8xf32>, vector<8x8xf32>, vector<8x8xf32> -> vector<8x8xf32>
    %cst_46 = arith.constant 0.353553385 : f32
    %56 = vector.broadcast %cst_46 : f32 to vector<8x8xf32>
    %57 = arith.mulf %55, %56 : vector<8x8xf32>
    %58 = vector.extract_strided_slice %6 {offsets = [0, 0, 0], sizes = [1, 8, 8], strides = [1, 1, 1]} : vector<2x8x8xf32> to vector<1x8x8xf32>
    %59 = vector.shape_cast %58 : vector<1x8x8xf32> to vector<8x8xf32>
    %60 = arith.addf %57, %59 : vector<8x8xf32>
    %cst_47 = arith.constant dense<0xFF800000> : vector<8xf32>
    %61 = vector.multi_reduction <maximumf>, %60, %cst_47 [1] : vector<8x8xf32> to vector<8xf32>
    %62 = vector.shape_cast %61 : vector<8xf32> to vector<8x1xf32>
    %63 = vector.broadcast %62 : vector<8x1xf32> to vector<8x8xf32>
    %64 = arith.subf %60, %63 : vector<8x8xf32>
    %65 = math.exp %64 : vector<8x8xf32>
    %cst_48 = arith.constant dense<0.000000e+00> : vector<8xf32>
    %66 = vector.multi_reduction <add>, %65, %cst_48 [1] : vector<8x8xf32> to vector<8xf32>
    %67 = vector.shape_cast %66 : vector<8xf32> to vector<8x1xf32>
    %68 = tpu.reciprocal %67 {approx = true} : vector<8x1xf32> -> vector<8x1xf32>
    %69 = vector.broadcast %68 : vector<8x1xf32> to vector<8x8xf32>
    %70 = arith.mulf %65, %69 : vector<8x8xf32>
    %71 = vector.extract_strided_slice %52 {offsets = [0, 0], sizes = [8, 8], strides = [1, 1]} : vector<16x8xf32> to vector<8x8xf32>
    %cst_49 = arith.constant dense<0.000000e+00> : vector<8x8xf32>
    %72 = tpu.matmul %70, %71, %cst_49 {dimension_numbers = #tpu.dot_dimension_numbers<[1], [0], [0], [1], [0, 0, 1, 1], [], []>} : vector<8x8xf32>, vector<8x8xf32>, vector<8x8xf32> -> vector<8x8xf32>
    %73 = vector.extract_strided_slice %38 {offsets = [8, 0], sizes = [8, 8], strides = [1, 1]} : vector<16x8xf32> to vector<8x8xf32>
    %74 = vector.extract_strided_slice %45 {offsets = [8, 0], sizes = [8, 8], strides = [1, 1]} : vector<16x8xf32> to vector<8x8xf32>
    %cst_50 = arith.constant dense<0.000000e+00> : vector<8x8xf32>
    %75 = tpu.matmul %73, %74, %cst_50 {dimension_numbers = #tpu.dot_dimension_numbers<[1], [1], [0], [0], [0, 0, 1, 0], [], []>} : vector<8x8xf32>, vector<8x8xf32>, vector<8x8xf32> -> vector<8x8xf32>
    %cst_51 = arith.constant 0.353553385 : f32
    %76 = vector.broadcast %cst_51 : f32 to vector<8x8xf32>
    %77 = arith.mulf %75, %76 : vector<8x8xf32>
    %78 = vector.extract_strided_slice %6 {offsets = [1, 0, 0], sizes = [1, 8, 8], strides = [1, 1, 1]} : vector<2x8x8xf32> to vector<1x8x8xf32>
    %79 = vector.shape_cast %78 : vector<1x8x8xf32> to vector<8x8xf32>
    %80 = arith.addf %77, %79 : vector<8x8xf32>
    %cst_52 = arith.constant dense<0xFF800000> : vector<8xf32>
    %81 = vector.multi_reduction <maximumf>, %80, %cst_52 [1] : vector<8x8xf32> to vector<8xf32>
    %82 = vector.shape_cast %81 : vector<8xf32> to vector<8x1xf32>
    %83 = vector.broadcast %82 : vector<8x1xf32> to vector<8x8xf32>
    %84 = arith.subf %80, %83 : vector<8x8xf32>
    %85 = math.exp %84 : vector<8x8xf32>
    %cst_53 = arith.constant dense<0.000000e+00> : vector<8xf32>
    %86 = vector.multi_reduction <add>, %85, %cst_53 [1] : vector<8x8xf32> to vector<8xf32>
    %87 = vector.shape_cast %86 : vector<8xf32> to vector<8x1xf32>
    %88 = tpu.reciprocal %87 {approx = true} : vector<8x1xf32> -> vector<8x1xf32>
    %89 = vector.broadcast %88 : vector<8x1xf32> to vector<8x8xf32>
    %90 = arith.mulf %85, %89 : vector<8x8xf32>
    %91 = vector.extract_strided_slice %52 {offsets = [8, 0], sizes = [8, 8], strides = [1, 1]} : vector<16x8xf32> to vector<8x8xf32>
    %cst_54 = arith.constant dense<0.000000e+00> : vector<8x8xf32>
    %92 = tpu.matmul %90, %91, %cst_54 {dimension_numbers = #tpu.dot_dimension_numbers<[1], [0], [0], [1], [0, 0, 1, 1], [], []>} : vector<8x8xf32>, vector<8x8xf32>, vector<8x8xf32> -> vector<8x8xf32>
    %93 = tpu.concatenate %72, %92 in 0 : vector<8x8xf32>, vector<8x8xf32> -> vector<16x8xf32>
    %c0_55 = arith.constant 0 : index
    %c0_56 = arith.constant 0 : index
    %c0_57 = arith.constant 0 : index
    %c0_58 = arith.constant 0 : index
    %94 = vector.load %arg10[%c0_55, %c0_56, %c0_57, %c0_58] : memref<2x4x8x32xf32, #tpu.memory_space<vmem>>, vector<1x1x8x32xf32>
    %95 = vector.shape_cast %94 : vector<1x1x8x32xf32> to vector<8x32xf32>
    %cst_59 = arith.constant dense<0.000000e+00> : vector<16x32xf32>
    %96 = tpu.matmul %93, %95, %cst_59 {dimension_numbers = #tpu.dot_dimension_numbers<[1], [0], [0], [1], [0, 0, 1, 1], [], []>} : vector<16x8xf32>, vector<8x32xf32>, vector<16x32xf32> -> vector<16x32xf32>
    %97 = arith.addf %31, %96 : vector<16x32xf32>
    %c0_60 = arith.constant 0 : index
    %c1 = arith.constant 1 : index
    %c0_61 = arith.constant 0 : index
    %c0_62 = arith.constant 0 : index
    %98 = vector.load %arg4[%c0_60, %c1, %c0_61, %c0_62] : memref<2x4x32x8xf32, #tpu.memory_space<vmem>>, vector<1x1x32x8xf32>
    %99 = vector.shape_cast %98 : vector<1x1x32x8xf32> to vector<32x8xf32>
    %cst_63 = arith.constant dense<0.000000e+00> : vector<16x8xf32>
    %100 = tpu.matmul %30, %99, %cst_63 {dimension_numbers = #tpu.dot_dimension_numbers<[1], [0], [0], [1], [0, 0, 1, 1], [], []>} : vector<16x32xf32>, vector<32x8xf32>, vector<16x8xf32> -> vector<16x8xf32>
    %c0_64 = arith.constant 0 : index
    %c1_65 = arith.constant 1 : index
    %c0_66 = arith.constant 0 : index
    %c0_67 = arith.constant 0 : index
    %101 = vector.load %arg5[%c0_64, %c1_65, %c0_66, %c0_67] : memref<2x4x1x8xf32, #tpu.memory_space<vmem>>, vector<1x1x1x8xf32>
    %102 = vector.shape_cast %101 : vector<1x1x1x8xf32> to vector<1x8xf32>
    %103 = vector.broadcast %102 : vector<1x8xf32> to vector<16x8xf32>
    %104 = arith.addf %100, %103 : vector<16x8xf32>
    %c0_68 = arith.constant 0 : index
    %c1_69 = arith.constant 1 : index
    %c0_70 = arith.constant 0 : index
    %c0_71 = arith.constant 0 : index
    %105 = vector.load %arg6[%c0_68, %c1_69, %c0_70, %c0_71] : memref<2x4x32x8xf32, #tpu.memory_space<vmem>>, vector<1x1x32x8xf32>
    %106 = vector.shape_cast %105 : vector<1x1x32x8xf32> to vector<32x8xf32>
    %cst_72 = arith.constant dense<0.000000e+00> : vector<16x8xf32>
    %107 = tpu.matmul %30, %106, %cst_72 {dimension_numbers = #tpu.dot_dimension_numbers<[1], [0], [0], [1], [0, 0, 1, 1], [], []>} : vector<16x32xf32>, vector<32x8xf32>, vector<16x8xf32> -> vector<16x8xf32>
    %c0_73 = arith.constant 0 : index
    %c1_74 = arith.constant 1 : index
    %c0_75 = arith.constant 0 : index
    %c0_76 = arith.constant 0 : index
    %108 = vector.load %arg7[%c0_73, %c1_74, %c0_75, %c0_76] : memref<2x4x1x8xf32, #tpu.memory_space<vmem>>, vector<1x1x1x8xf32>
    %109 = vector.shape_cast %108 : vector<1x1x1x8xf32> to vector<1x8xf32>
    %110 = vector.broadcast %109 : vector<1x8xf32> to vector<16x8xf32>
    %111 = arith.addf %107, %110 : vector<16x8xf32>
    %c0_77 = arith.constant 0 : index
    %c1_78 = arith.constant 1 : index
    %c0_79 = arith.constant 0 : index
    %c0_80 = arith.constant 0 : index
    %112 = vector.load %arg8[%c0_77, %c1_78, %c0_79, %c0_80] : memref<2x4x32x8xf32, #tpu.memory_space<vmem>>, vector<1x1x32x8xf32>
    %113 = vector.shape_cast %112 : vector<1x1x32x8xf32> to vector<32x8xf32>
    %cst_81 = arith.constant dense<0.000000e+00> : vector<16x8xf32>
    %114 = tpu.matmul %30, %113, %cst_81 {dimension_numbers = #tpu.dot_dimension_numbers<[1], [0], [0], [1], [0, 0, 1, 1], [], []>} : vector<16x32xf32>, vector<32x8xf32>, vector<16x8xf32> -> vector<16x8xf32>
    %c0_82 = arith.constant 0 : index
    %c1_83 = arith.constant 1 : index
    %c0_84 = arith.constant 0 : index
    %c0_85 = arith.constant 0 : index
    %115 = vector.load %arg9[%c0_82, %c1_83, %c0_84, %c0_85] : memref<2x4x1x8xf32, #tpu.memory_space<vmem>>, vector<1x1x1x8xf32>
    %116 = vector.shape_cast %115 : vector<1x1x1x8xf32> to vector<1x8xf32>
    %117 = vector.broadcast %116 : vector<1x8xf32> to vector<16x8xf32>
    %118 = arith.addf %114, %117 : vector<16x8xf32>
    %119 = vector.extract_strided_slice %104 {offsets = [0, 0], sizes = [8, 8], strides = [1, 1]} : vector<16x8xf32> to vector<8x8xf32>
    %120 = vector.extract_strided_slice %111 {offsets = [0, 0], sizes = [8, 8], strides = [1, 1]} : vector<16x8xf32> to vector<8x8xf32>
    %cst_86 = arith.constant dense<0.000000e+00> : vector<8x8xf32>
    %121 = tpu.matmul %119, %120, %cst_86 {dimension_numbers = #tpu.dot_dimension_numbers<[1], [1], [0], [0], [0, 0, 1, 0], [], []>} : vector<8x8xf32>, vector<8x8xf32>, vector<8x8xf32> -> vector<8x8xf32>
    %cst_87 = arith.constant 0.353553385 : f32
    %122 = vector.broadcast %cst_87 : f32 to vector<8x8xf32>
    %123 = arith.mulf %121, %122 : vector<8x8xf32>
    %124 = vector.extract_strided_slice %6 {offsets = [0, 0, 0], sizes = [1, 8, 8], strides = [1, 1, 1]} : vector<2x8x8xf32> to vector<1x8x8xf32>
    %125 = vector.shape_cast %124 : vector<1x8x8xf32> to vector<8x8xf32>
    %126 = arith.addf %123, %125 : vector<8x8xf32>
    %cst_88 = arith.constant dense<0xFF800000> : vector<8xf32>
    %127 = vector.multi_reduction <maximumf>, %126, %cst_88 [1] : vector<8x8xf32> to vector<8xf32>
    %128 = vector.shape_cast %127 : vector<8xf32> to vector<8x1xf32>
    %129 = vector.broadcast %128 : vector<8x1xf32> to vector<8x8xf32>
    %130 = arith.subf %126, %129 : vector<8x8xf32>
    %131 = math.exp %130 : vector<8x8xf32>
    %cst_89 = arith.constant dense<0.000000e+00> : vector<8xf32>
    %132 = vector.multi_reduction <add>, %131, %cst_89 [1] : vector<8x8xf32> to vector<8xf32>
    %133 = vector.shape_cast %132 : vector<8xf32> to vector<8x1xf32>
    %134 = tpu.reciprocal %133 {approx = true} : vector<8x1xf32> -> vector<8x1xf32>
    %135 = vector.broadcast %134 : vector<8x1xf32> to vector<8x8xf32>
    %136 = arith.mulf %131, %135 : vector<8x8xf32>
    %137 = vector.extract_strided_slice %118 {offsets = [0, 0], sizes = [8, 8], strides = [1, 1]} : vector<16x8xf32> to vector<8x8xf32>
    %cst_90 = arith.constant dense<0.000000e+00> : vector<8x8xf32>
    %138 = tpu.matmul %136, %137, %cst_90 {dimension_numbers = #tpu.dot_dimension_numbers<[1], [0], [0], [1], [0, 0, 1, 1], [], []>} : vector<8x8xf32>, vector<8x8xf32>, vector<8x8xf32> -> vector<8x8xf32>
    %139 = vector.extract_strided_slice %104 {offsets = [8, 0], sizes = [8, 8], strides = [1, 1]} : vector<16x8xf32> to vector<8x8xf32>
    %140 = vector.extract_strided_slice %111 {offsets = [8, 0], sizes = [8, 8], strides = [1, 1]} : vector<16x8xf32> to vector<8x8xf32>
    %cst_91 = arith.constant dense<0.000000e+00> : vector<8x8xf32>
    %141 = tpu.matmul %139, %140, %cst_91 {dimension_numbers = #tpu.dot_dimension_numbers<[1], [1], [0], [0], [0, 0, 1, 0], [], []>} : vector<8x8xf32>, vector<8x8xf32>, vector<8x8xf32> -> vector<8x8xf32>
    %cst_92 = arith.constant 0.353553385 : f32
    %142 = vector.broadcast %cst_92 : f32 to vector<8x8xf32>
    %143 = arith.mulf %141, %142 : vector<8x8xf32>
    %144 = vector.extract_strided_slice %6 {offsets = [1, 0, 0], sizes = [1, 8, 8], strides = [1, 1, 1]} : vector<2x8x8xf32> to vector<1x8x8xf32>
    %145 = vector.shape_cast %144 : vector<1x8x8xf32> to vector<8x8xf32>
    %146 = arith.addf %143, %145 : vector<8x8xf32>
    %cst_93 = arith.constant dense<0xFF800000> : vector<8xf32>
    %147 = vector.multi_reduction <maximumf>, %146, %cst_93 [1] : vector<8x8xf32> to vector<8xf32>
    %148 = vector.shape_cast %147 : vector<8xf32> to vector<8x1xf32>
    %149 = vector.broadcast %148 : vector<8x1xf32> to vector<8x8xf32>
    %150 = arith.subf %146, %149 : vector<8x8xf32>
    %151 = math.exp %150 : vector<8x8xf32>
    %cst_94 = arith.constant dense<0.000000e+00> : vector<8xf32>
    %152 = vector.multi_reduction <add>, %151, %cst_94 [1] : vector<8x8xf32> to vector<8xf32>
    %153 = vector.shape_cast %152 : vector<8xf32> to vector<8x1xf32>
    %154 = tpu.reciprocal %153 {approx = true} : vector<8x1xf32> -> vector<8x1xf32>
    %155 = vector.broadcast %154 : vector<8x1xf32> to vector<8x8xf32>
    %156 = arith.mulf %151, %155 : vector<8x8xf32>
    %157 = vector.extract_strided_slice %118 {offsets = [8, 0], sizes = [8, 8], strides = [1, 1]} : vector<16x8xf32> to vector<8x8xf32>
    %cst_95 = arith.constant dense<0.000000e+00> : vector<8x8xf32>
    %158 = tpu.matmul %156, %157, %cst_95 {dimension_numbers = #tpu.dot_dimension_numbers<[1], [0], [0], [1], [0, 0, 1, 1], [], []>} : vector<8x8xf32>, vector<8x8xf32>, vector<8x8xf32> -> vector<8x8xf32>
    %159 = tpu.concatenate %138, %158 in 0 : vector<8x8xf32>, vector<8x8xf32> -> vector<16x8xf32>
    %c0_96 = arith.constant 0 : index
    %c1_97 = arith.constant 1 : index
    %c0_98 = arith.constant 0 : index
    %c0_99 = arith.constant 0 : index
    %160 = vector.load %arg10[%c0_96, %c1_97, %c0_98, %c0_99] : memref<2x4x8x32xf32, #tpu.memory_space<vmem>>, vector<1x1x8x32xf32>
    %161 = vector.shape_cast %160 : vector<1x1x8x32xf32> to vector<8x32xf32>
    %cst_100 = arith.constant dense<0.000000e+00> : vector<16x32xf32>
    %162 = tpu.matmul %159, %161, %cst_100 {dimension_numbers = #tpu.dot_dimension_numbers<[1], [0], [0], [1], [0, 0, 1, 1], [], []>} : vector<16x8xf32>, vector<8x32xf32>, vector<16x32xf32> -> vector<16x32xf32>
    %163 = arith.addf %97, %162 : vector<16x32xf32>
    %c0_101 = arith.constant 0 : index
    %c2 = arith.constant 2 : index
    %c0_102 = arith.constant 0 : index
    %c0_103 = arith.constant 0 : index
    %164 = vector.load %arg4[%c0_101, %c2, %c0_102, %c0_103] : memref<2x4x32x8xf32, #tpu.memory_space<vmem>>, vector<1x1x32x8xf32>
    %165 = vector.shape_cast %164 : vector<1x1x32x8xf32> to vector<32x8xf32>
    %cst_104 = arith.constant dense<0.000000e+00> : vector<16x8xf32>
    %166 = tpu.matmul %30, %165, %cst_104 {dimension_numbers = #tpu.dot_dimension_numbers<[1], [0], [0], [1], [0, 0, 1, 1], [], []>} : vector<16x32xf32>, vector<32x8xf32>, vector<16x8xf32> -> vector<16x8xf32>
    %c0_105 = arith.constant 0 : index
    %c2_106 = arith.constant 2 : index
    %c0_107 = arith.constant 0 : index
    %c0_108 = arith.constant 0 : index
    %167 = vector.load %arg5[%c0_105, %c2_106, %c0_107, %c0_108] : memref<2x4x1x8xf32, #tpu.memory_space<vmem>>, vector<1x1x1x8xf32>
    %168 = vector.shape_cast %167 : vector<1x1x1x8xf32> to vector<1x8xf32>
    %169 = vector.broadcast %168 : vector<1x8xf32> to vector<16x8xf32>
    %170 = arith.addf %166, %169 : vector<16x8xf32>
    %c0_109 = arith.constant 0 : index
    %c2_110 = arith.constant 2 : index
    %c0_111 = arith.constant 0 : index
    %c0_112 = arith.constant 0 : index
    %171 = vector.load %arg6[%c0_109, %c2_110, %c0_111, %c0_112] : memref<2x4x32x8xf32, #tpu.memory_space<vmem>>, vector<1x1x32x8xf32>
    %172 = vector.shape_cast %171 : vector<1x1x32x8xf32> to vector<32x8xf32>
    %cst_113 = arith.constant dense<0.000000e+00> : vector<16x8xf32>
    %173 = tpu.matmul %30, %172, %cst_113 {dimension_numbers = #tpu.dot_dimension_numbers<[1], [0], [0], [1], [0, 0, 1, 1], [], []>} : vector<16x32xf32>, vector<32x8xf32>, vector<16x8xf32> -> vector<16x8xf32>
    %c0_114 = arith.constant 0 : index
    %c2_115 = arith.constant 2 : index
    %c0_116 = arith.constant 0 : index
    %c0_117 = arith.constant 0 : index
    %174 = vector.load %arg7[%c0_114, %c2_115, %c0_116, %c0_117] : memref<2x4x1x8xf32, #tpu.memory_space<vmem>>, vector<1x1x1x8xf32>
    %175 = vector.shape_cast %174 : vector<1x1x1x8xf32> to vector<1x8xf32>
    %176 = vector.broadcast %175 : vector<1x8xf32> to vector<16x8xf32>
    %177 = arith.addf %173, %176 : vector<16x8xf32>
    %c0_118 = arith.constant 0 : index
    %c2_119 = arith.constant 2 : index
    %c0_120 = arith.constant 0 : index
    %c0_121 = arith.constant 0 : index
    %178 = vector.load %arg8[%c0_118, %c2_119, %c0_120, %c0_121] : memref<2x4x32x8xf32, #tpu.memory_space<vmem>>, vector<1x1x32x8xf32>
    %179 = vector.shape_cast %178 : vector<1x1x32x8xf32> to vector<32x8xf32>
    %cst_122 = arith.constant dense<0.000000e+00> : vector<16x8xf32>
    %180 = tpu.matmul %30, %179, %cst_122 {dimension_numbers = #tpu.dot_dimension_numbers<[1], [0], [0], [1], [0, 0, 1, 1], [], []>} : vector<16x32xf32>, vector<32x8xf32>, vector<16x8xf32> -> vector<16x8xf32>
    %c0_123 = arith.constant 0 : index
    %c2_124 = arith.constant 2 : index
    %c0_125 = arith.constant 0 : index
    %c0_126 = arith.constant 0 : index
    %181 = vector.load %arg9[%c0_123, %c2_124, %c0_125, %c0_126] : memref<2x4x1x8xf32, #tpu.memory_space<vmem>>, vector<1x1x1x8xf32>
    %182 = vector.shape_cast %181 : vector<1x1x1x8xf32> to vector<1x8xf32>
    %183 = vector.broadcast %182 : vector<1x8xf32> to vector<16x8xf32>
    %184 = arith.addf %180, %183 : vector<16x8xf32>
    %185 = vector.extract_strided_slice %170 {offsets = [0, 0], sizes = [8, 8], strides = [1, 1]} : vector<16x8xf32> to vector<8x8xf32>
    %186 = vector.extract_strided_slice %177 {offsets = [0, 0], sizes = [8, 8], strides = [1, 1]} : vector<16x8xf32> to vector<8x8xf32>
    %cst_127 = arith.constant dense<0.000000e+00> : vector<8x8xf32>
    %187 = tpu.matmul %185, %186, %cst_127 {dimension_numbers = #tpu.dot_dimension_numbers<[1], [1], [0], [0], [0, 0, 1, 0], [], []>} : vector<8x8xf32>, vector<8x8xf32>, vector<8x8xf32> -> vector<8x8xf32>
    %cst_128 = arith.constant 0.353553385 : f32
    %188 = vector.broadcast %cst_128 : f32 to vector<8x8xf32>
    %189 = arith.mulf %187, %188 : vector<8x8xf32>
    %190 = vector.extract_strided_slice %6 {offsets = [0, 0, 0], sizes = [1, 8, 8], strides = [1, 1, 1]} : vector<2x8x8xf32> to vector<1x8x8xf32>
    %191 = vector.shape_cast %190 : vector<1x8x8xf32> to vector<8x8xf32>
    %192 = arith.addf %189, %191 : vector<8x8xf32>
    %cst_129 = arith.constant dense<0xFF800000> : vector<8xf32>
    %193 = vector.multi_reduction <maximumf>, %192, %cst_129 [1] : vector<8x8xf32> to vector<8xf32>
    %194 = vector.shape_cast %193 : vector<8xf32> to vector<8x1xf32>
    %195 = vector.broadcast %194 : vector<8x1xf32> to vector<8x8xf32>
    %196 = arith.subf %192, %195 : vector<8x8xf32>
    %197 = math.exp %196 : vector<8x8xf32>
    %cst_130 = arith.constant dense<0.000000e+00> : vector<8xf32>
    %198 = vector.multi_reduction <add>, %197, %cst_130 [1] : vector<8x8xf32> to vector<8xf32>
    %199 = vector.shape_cast %198 : vector<8xf32> to vector<8x1xf32>
    %200 = tpu.reciprocal %199 {approx = true} : vector<8x1xf32> -> vector<8x1xf32>
    %201 = vector.broadcast %200 : vector<8x1xf32> to vector<8x8xf32>
    %202 = arith.mulf %197, %201 : vector<8x8xf32>
    %203 = vector.extract_strided_slice %184 {offsets = [0, 0], sizes = [8, 8], strides = [1, 1]} : vector<16x8xf32> to vector<8x8xf32>
    %cst_131 = arith.constant dense<0.000000e+00> : vector<8x8xf32>
    %204 = tpu.matmul %202, %203, %cst_131 {dimension_numbers = #tpu.dot_dimension_numbers<[1], [0], [0], [1], [0, 0, 1, 1], [], []>} : vector<8x8xf32>, vector<8x8xf32>, vector<8x8xf32> -> vector<8x8xf32>
    %205 = vector.extract_strided_slice %170 {offsets = [8, 0], sizes = [8, 8], strides = [1, 1]} : vector<16x8xf32> to vector<8x8xf32>
    %206 = vector.extract_strided_slice %177 {offsets = [8, 0], sizes = [8, 8], strides = [1, 1]} : vector<16x8xf32> to vector<8x8xf32>
    %cst_132 = arith.constant dense<0.000000e+00> : vector<8x8xf32>
    %207 = tpu.matmul %205, %206, %cst_132 {dimension_numbers = #tpu.dot_dimension_numbers<[1], [1], [0], [0], [0, 0, 1, 0], [], []>} : vector<8x8xf32>, vector<8x8xf32>, vector<8x8xf32> -> vector<8x8xf32>
    %cst_133 = arith.constant 0.353553385 : f32
    %208 = vector.broadcast %cst_133 : f32 to vector<8x8xf32>
    %209 = arith.mulf %207, %208 : vector<8x8xf32>
    %210 = vector.extract_strided_slice %6 {offsets = [1, 0, 0], sizes = [1, 8, 8], strides = [1, 1, 1]} : vector<2x8x8xf32> to vector<1x8x8xf32>
    %211 = vector.shape_cast %210 : vector<1x8x8xf32> to vector<8x8xf32>
    %212 = arith.addf %209, %211 : vector<8x8xf32>
    %cst_134 = arith.constant dense<0xFF800000> : vector<8xf32>
    %213 = vector.multi_reduction <maximumf>, %212, %cst_134 [1] : vector<8x8xf32> to vector<8xf32>
    %214 = vector.shape_cast %213 : vector<8xf32> to vector<8x1xf32>
    %215 = vector.broadcast %214 : vector<8x1xf32> to vector<8x8xf32>
    %216 = arith.subf %212, %215 : vector<8x8xf32>
    %217 = math.exp %216 : vector<8x8xf32>
    %cst_135 = arith.constant dense<0.000000e+00> : vector<8xf32>
    %218 = vector.multi_reduction <add>, %217, %cst_135 [1] : vector<8x8xf32> to vector<8xf32>
    %219 = vector.shape_cast %218 : vector<8xf32> to vector<8x1xf32>
    %220 = tpu.reciprocal %219 {approx = true} : vector<8x1xf32> -> vector<8x1xf32>
    %221 = vector.broadcast %220 : vector<8x1xf32> to vector<8x8xf32>
    %222 = arith.mulf %217, %221 : vector<8x8xf32>
    %223 = vector.extract_strided_slice %184 {offsets = [8, 0], sizes = [8, 8], strides = [1, 1]} : vector<16x8xf32> to vector<8x8xf32>
    %cst_136 = arith.constant dense<0.000000e+00> : vector<8x8xf32>
    %224 = tpu.matmul %222, %223, %cst_136 {dimension_numbers = #tpu.dot_dimension_numbers<[1], [0], [0], [1], [0, 0, 1, 1], [], []>} : vector<8x8xf32>, vector<8x8xf32>, vector<8x8xf32> -> vector<8x8xf32>
    %225 = tpu.concatenate %204, %224 in 0 : vector<8x8xf32>, vector<8x8xf32> -> vector<16x8xf32>
    %c0_137 = arith.constant 0 : index
    %c2_138 = arith.constant 2 : index
    %c0_139 = arith.constant 0 : index
    %c0_140 = arith.constant 0 : index
    %226 = vector.load %arg10[%c0_137, %c2_138, %c0_139, %c0_140] : memref<2x4x8x32xf32, #tpu.memory_space<vmem>>, vector<1x1x8x32xf32>
    %227 = vector.shape_cast %226 : vector<1x1x8x32xf32> to vector<8x32xf32>
    %cst_141 = arith.constant dense<0.000000e+00> : vector<16x32xf32>
    %228 = tpu.matmul %225, %227, %cst_141 {dimension_numbers = #tpu.dot_dimension_numbers<[1], [0], [0], [1], [0, 0, 1, 1], [], []>} : vector<16x8xf32>, vector<8x32xf32>, vector<16x32xf32> -> vector<16x32xf32>
    %229 = arith.addf %163, %228 : vector<16x32xf32>
    %c0_142 = arith.constant 0 : index
    %c3 = arith.constant 3 : index
    %c0_143 = arith.constant 0 : index
    %c0_144 = arith.constant 0 : index
    %230 = vector.load %arg4[%c0_142, %c3, %c0_143, %c0_144] : memref<2x4x32x8xf32, #tpu.memory_space<vmem>>, vector<1x1x32x8xf32>
    %231 = vector.shape_cast %230 : vector<1x1x32x8xf32> to vector<32x8xf32>
    %cst_145 = arith.constant dense<0.000000e+00> : vector<16x8xf32>
    %232 = tpu.matmul %30, %231, %cst_145 {dimension_numbers = #tpu.dot_dimension_numbers<[1], [0], [0], [1], [0, 0, 1, 1], [], []>} : vector<16x32xf32>, vector<32x8xf32>, vector<16x8xf32> -> vector<16x8xf32>
    %c0_146 = arith.constant 0 : index
    %c3_147 = arith.constant 3 : index
    %c0_148 = arith.constant 0 : index
    %c0_149 = arith.constant 0 : index
    %233 = vector.load %arg5[%c0_146, %c3_147, %c0_148, %c0_149] : memref<2x4x1x8xf32, #tpu.memory_space<vmem>>, vector<1x1x1x8xf32>
    %234 = vector.shape_cast %233 : vector<1x1x1x8xf32> to vector<1x8xf32>
    %235 = vector.broadcast %234 : vector<1x8xf32> to vector<16x8xf32>
    %236 = arith.addf %232, %235 : vector<16x8xf32>
    %c0_150 = arith.constant 0 : index
    %c3_151 = arith.constant 3 : index
    %c0_152 = arith.constant 0 : index
    %c0_153 = arith.constant 0 : index
    %237 = vector.load %arg6[%c0_150, %c3_151, %c0_152, %c0_153] : memref<2x4x32x8xf32, #tpu.memory_space<vmem>>, vector<1x1x32x8xf32>
    %238 = vector.shape_cast %237 : vector<1x1x32x8xf32> to vector<32x8xf32>
    %cst_154 = arith.constant dense<0.000000e+00> : vector<16x8xf32>
    %239 = tpu.matmul %30, %238, %cst_154 {dimension_numbers = #tpu.dot_dimension_numbers<[1], [0], [0], [1], [0, 0, 1, 1], [], []>} : vector<16x32xf32>, vector<32x8xf32>, vector<16x8xf32> -> vector<16x8xf32>
    %c0_155 = arith.constant 0 : index
    %c3_156 = arith.constant 3 : index
    %c0_157 = arith.constant 0 : index
    %c0_158 = arith.constant 0 : index
    %240 = vector.load %arg7[%c0_155, %c3_156, %c0_157, %c0_158] : memref<2x4x1x8xf32, #tpu.memory_space<vmem>>, vector<1x1x1x8xf32>
    %241 = vector.shape_cast %240 : vector<1x1x1x8xf32> to vector<1x8xf32>
    %242 = vector.broadcast %241 : vector<1x8xf32> to vector<16x8xf32>
    %243 = arith.addf %239, %242 : vector<16x8xf32>
    %c0_159 = arith.constant 0 : index
    %c3_160 = arith.constant 3 : index
    %c0_161 = arith.constant 0 : index
    %c0_162 = arith.constant 0 : index
    %244 = vector.load %arg8[%c0_159, %c3_160, %c0_161, %c0_162] : memref<2x4x32x8xf32, #tpu.memory_space<vmem>>, vector<1x1x32x8xf32>
    %245 = vector.shape_cast %244 : vector<1x1x32x8xf32> to vector<32x8xf32>
    %cst_163 = arith.constant dense<0.000000e+00> : vector<16x8xf32>
    %246 = tpu.matmul %30, %245, %cst_163 {dimension_numbers = #tpu.dot_dimension_numbers<[1], [0], [0], [1], [0, 0, 1, 1], [], []>} : vector<16x32xf32>, vector<32x8xf32>, vector<16x8xf32> -> vector<16x8xf32>
    %c0_164 = arith.constant 0 : index
    %c3_165 = arith.constant 3 : index
    %c0_166 = arith.constant 0 : index
    %c0_167 = arith.constant 0 : index
    %247 = vector.load %arg9[%c0_164, %c3_165, %c0_166, %c0_167] : memref<2x4x1x8xf32, #tpu.memory_space<vmem>>, vector<1x1x1x8xf32>
    %248 = vector.shape_cast %247 : vector<1x1x1x8xf32> to vector<1x8xf32>
    %249 = vector.broadcast %248 : vector<1x8xf32> to vector<16x8xf32>
    %250 = arith.addf %246, %249 : vector<16x8xf32>
    %251 = vector.extract_strided_slice %236 {offsets = [0, 0], sizes = [8, 8], strides = [1, 1]} : vector<16x8xf32> to vector<8x8xf32>
    %252 = vector.extract_strided_slice %243 {offsets = [0, 0], sizes = [8, 8], strides = [1, 1]} : vector<16x8xf32> to vector<8x8xf32>
    %cst_168 = arith.constant dense<0.000000e+00> : vector<8x8xf32>
    %253 = tpu.matmul %251, %252, %cst_168 {dimension_numbers = #tpu.dot_dimension_numbers<[1], [1], [0], [0], [0, 0, 1, 0], [], []>} : vector<8x8xf32>, vector<8x8xf32>, vector<8x8xf32> -> vector<8x8xf32>
    %cst_169 = arith.constant 0.353553385 : f32
    %254 = vector.broadcast %cst_169 : f32 to vector<8x8xf32>
    %255 = arith.mulf %253, %254 : vector<8x8xf32>
    %256 = vector.extract_strided_slice %6 {offsets = [0, 0, 0], sizes = [1, 8, 8], strides = [1, 1, 1]} : vector<2x8x8xf32> to vector<1x8x8xf32>
    %257 = vector.shape_cast %256 : vector<1x8x8xf32> to vector<8x8xf32>
    %258 = arith.addf %255, %257 : vector<8x8xf32>
    %cst_170 = arith.constant dense<0xFF800000> : vector<8xf32>
    %259 = vector.multi_reduction <maximumf>, %258, %cst_170 [1] : vector<8x8xf32> to vector<8xf32>
    %260 = vector.shape_cast %259 : vector<8xf32> to vector<8x1xf32>
    %261 = vector.broadcast %260 : vector<8x1xf32> to vector<8x8xf32>
    %262 = arith.subf %258, %261 : vector<8x8xf32>
    %263 = math.exp %262 : vector<8x8xf32>
    %cst_171 = arith.constant dense<0.000000e+00> : vector<8xf32>
    %264 = vector.multi_reduction <add>, %263, %cst_171 [1] : vector<8x8xf32> to vector<8xf32>
    %265 = vector.shape_cast %264 : vector<8xf32> to vector<8x1xf32>
    %266 = tpu.reciprocal %265 {approx = true} : vector<8x1xf32> -> vector<8x1xf32>
    %267 = vector.broadcast %266 : vector<8x1xf32> to vector<8x8xf32>
    %268 = arith.mulf %263, %267 : vector<8x8xf32>
    %269 = vector.extract_strided_slice %250 {offsets = [0, 0], sizes = [8, 8], strides = [1, 1]} : vector<16x8xf32> to vector<8x8xf32>
    %cst_172 = arith.constant dense<0.000000e+00> : vector<8x8xf32>
    %270 = tpu.matmul %268, %269, %cst_172 {dimension_numbers = #tpu.dot_dimension_numbers<[1], [0], [0], [1], [0, 0, 1, 1], [], []>} : vector<8x8xf32>, vector<8x8xf32>, vector<8x8xf32> -> vector<8x8xf32>
    %271 = vector.extract_strided_slice %236 {offsets = [8, 0], sizes = [8, 8], strides = [1, 1]} : vector<16x8xf32> to vector<8x8xf32>
    %272 = vector.extract_strided_slice %243 {offsets = [8, 0], sizes = [8, 8], strides = [1, 1]} : vector<16x8xf32> to vector<8x8xf32>
    %cst_173 = arith.constant dense<0.000000e+00> : vector<8x8xf32>
    %273 = tpu.matmul %271, %272, %cst_173 {dimension_numbers = #tpu.dot_dimension_numbers<[1], [1], [0], [0], [0, 0, 1, 0], [], []>} : vector<8x8xf32>, vector<8x8xf32>, vector<8x8xf32> -> vector<8x8xf32>
    %cst_174 = arith.constant 0.353553385 : f32
    %274 = vector.broadcast %cst_174 : f32 to vector<8x8xf32>
    %275 = arith.mulf %273, %274 : vector<8x8xf32>
    %276 = vector.extract_strided_slice %6 {offsets = [1, 0, 0], sizes = [1, 8, 8], strides = [1, 1, 1]} : vector<2x8x8xf32> to vector<1x8x8xf32>
    %277 = vector.shape_cast %276 : vector<1x8x8xf32> to vector<8x8xf32>
    %278 = arith.addf %275, %277 : vector<8x8xf32>
    %cst_175 = arith.constant dense<0xFF800000> : vector<8xf32>
    %279 = vector.multi_reduction <maximumf>, %278, %cst_175 [1] : vector<8x8xf32> to vector<8xf32>
    %280 = vector.shape_cast %279 : vector<8xf32> to vector<8x1xf32>
    %281 = vector.broadcast %280 : vector<8x1xf32> to vector<8x8xf32>
    %282 = arith.subf %278, %281 : vector<8x8xf32>
    %283 = math.exp %282 : vector<8x8xf32>
    %cst_176 = arith.constant dense<0.000000e+00> : vector<8xf32>
    %284 = vector.multi_reduction <add>, %283, %cst_176 [1] : vector<8x8xf32> to vector<8xf32>
    %285 = vector.shape_cast %284 : vector<8xf32> to vector<8x1xf32>
    %286 = tpu.reciprocal %285 {approx = true} : vector<8x1xf32> -> vector<8x1xf32>
    %287 = vector.broadcast %286 : vector<8x1xf32> to vector<8x8xf32>
    %288 = arith.mulf %283, %287 : vector<8x8xf32>
    %289 = vector.extract_strided_slice %250 {offsets = [8, 0], sizes = [8, 8], strides = [1, 1]} : vector<16x8xf32> to vector<8x8xf32>
    %cst_177 = arith.constant dense<0.000000e+00> : vector<8x8xf32>
    %290 = tpu.matmul %288, %289, %cst_177 {dimension_numbers = #tpu.dot_dimension_numbers<[1], [0], [0], [1], [0, 0, 1, 1], [], []>} : vector<8x8xf32>, vector<8x8xf32>, vector<8x8xf32> -> vector<8x8xf32>
    %291 = tpu.concatenate %270, %290 in 0 : vector<8x8xf32>, vector<8x8xf32> -> vector<16x8xf32>
    %c0_178 = arith.constant 0 : index
    %c3_179 = arith.constant 3 : index
    %c0_180 = arith.constant 0 : index
    %c0_181 = arith.constant 0 : index
    %292 = vector.load %arg10[%c0_178, %c3_179, %c0_180, %c0_181] : memref<2x4x8x32xf32, #tpu.memory_space<vmem>>, vector<1x1x8x32xf32>
    %293 = vector.shape_cast %292 : vector<1x1x8x32xf32> to vector<8x32xf32>
    %cst_182 = arith.constant dense<0.000000e+00> : vector<16x32xf32>
    %294 = tpu.matmul %291, %293, %cst_182 {dimension_numbers = #tpu.dot_dimension_numbers<[1], [0], [0], [1], [0, 0, 1, 1], [], []>} : vector<16x8xf32>, vector<8x32xf32>, vector<16x32xf32> -> vector<16x32xf32>
    %295 = arith.addf %229, %294 : vector<16x32xf32>
    %296 = arith.addf %0, %295 : vector<16x32xf32>
    %c0_183 = arith.constant 0 : index
    %c0_184 = arith.constant 0 : index
    %c0_185 = arith.constant 0 : index
    %297 = vector.load %arg11[%c0_183, %c0_184, %c0_185] : memref<2x1x32xf32, #tpu.memory_space<vmem>>, vector<1x1x32xf32>
    %298 = vector.shape_cast %297 : vector<1x1x32xf32> to vector<1x32xf32>
    %299 = vector.broadcast %298 : vector<1x32xf32> to vector<16x32xf32>
    %300 = arith.addf %296, %299 : vector<16x32xf32>
    %c0_186 = arith.constant 0 : index
    %c0_187 = arith.constant 0 : index
    %c0_188 = arith.constant 0 : index
    %301 = vector.load %arg12[%c0_186, %c0_187, %c0_188] : memref<2x1x32xf32, #tpu.memory_space<vmem>>, vector<1x1x32xf32>
    %302 = vector.shape_cast %301 : vector<1x1x32xf32> to vector<1x32xf32>
    %c0_189 = arith.constant 0 : index
    %c0_190 = arith.constant 0 : index
    %c0_191 = arith.constant 0 : index
    %303 = vector.load %arg13[%c0_189, %c0_190, %c0_191] : memref<2x1x32xf32, #tpu.memory_space<vmem>>, vector<1x1x32xf32>
    %304 = vector.shape_cast %303 : vector<1x1x32xf32> to vector<1x32xf32>
    %cst_192 = arith.constant dense<0.000000e+00> : vector<16xf32>
    %305 = vector.multi_reduction <add>, %300, %cst_192 [1] : vector<16x32xf32> to vector<16xf32>
    %306 = vector.shape_cast %305 : vector<16xf32> to vector<16x1xf32>
    %cst_193 = arith.constant 3.200000e+01 : f32
    %307 = vector.broadcast %cst_193 : f32 to vector<16x1xf32>
    %308 = arith.divf %306, %307 : vector<16x1xf32>
    %309 = vector.broadcast %308 : vector<16x1xf32> to vector<16x32xf32>
    %310 = arith.subf %300, %309 : vector<16x32xf32>
    %311 = arith.mulf %310, %310 : vector<16x32xf32>
    %cst_194 = arith.constant dense<0.000000e+00> : vector<16xf32>
    %312 = vector.multi_reduction <add>, %311, %cst_194 [1] : vector<16x32xf32> to vector<16xf32>
    %313 = vector.shape_cast %312 : vector<16xf32> to vector<16x1xf32>
    %cst_195 = arith.constant 3.100000e+01 : f32
    %314 = vector.broadcast %cst_195 : f32 to vector<16x1xf32>
    %315 = arith.divf %313, %314 : vector<16x1xf32>
    %316 = vector.broadcast %302 : vector<1x32xf32> to vector<16x32xf32>
    %317 = arith.mulf %316, %310 : vector<16x32xf32>
    %318 = math.sqrt %315 : vector<16x1xf32>
    %cst_196 = arith.constant 9.99999997E-7 : f32
    %319 = vector.broadcast %cst_196 : f32 to vector<16x1xf32>
    %320 = arith.addf %318, %319 : vector<16x1xf32>
    %321 = vector.broadcast %320 : vector<16x1xf32> to vector<16x32xf32>
    %322 = arith.divf %317, %321 : vector<16x32xf32>
    %323 = vector.broadcast %304 : vector<1x32xf32> to vector<16x32xf32>
    %324 = arith.addf %322, %323 : vector<16x32xf32>
    %c0_197 = arith.constant 0 : index
    %c0_198 = arith.constant 0 : index
    %c0_199 = arith.constant 0 : index
    %325 = vector.load %arg14[%c0_197, %c0_198, %c0_199] : memref<2x32x64xf32, #tpu.memory_space<vmem>>, vector<1x32x64xf32>
    %326 = vector.shape_cast %325 : vector<1x32x64xf32> to vector<32x64xf32>
    %cst_200 = arith.constant dense<0.000000e+00> : vector<16x64xf32>
    %327 = tpu.matmul %324, %326, %cst_200 {dimension_numbers = #tpu.dot_dimension_numbers<[1], [0], [0], [1], [0, 0, 1, 1], [], []>} : vector<16x32xf32>, vector<32x64xf32>, vector<16x64xf32> -> vector<16x64xf32>
    %c0_201 = arith.constant 0 : index
    %c0_202 = arith.constant 0 : index
    %c0_203 = arith.constant 0 : index
    %328 = vector.load %arg15[%c0_201, %c0_202, %c0_203] : memref<2x1x64xf32, #tpu.memory_space<vmem>>, vector<1x1x64xf32>
    %329 = vector.shape_cast %328 : vector<1x1x64xf32> to vector<1x64xf32>
    %330 = vector.broadcast %329 : vector<1x64xf32> to vector<16x64xf32>
    %331 = arith.addf %327, %330 : vector<16x64xf32>
    %cst_204 = arith.constant 0.000000e+00 : f32
    %332 = vector.broadcast %cst_204 : f32 to vector<16x64xf32>
    %333 = arith.maximumf %331, %332 : vector<16x64xf32>
    %c0_205 = arith.constant 0 : index
    %c0_206 = arith.constant 0 : index
    %c0_207 = arith.constant 0 : index
    %334 = vector.load %arg16[%c0_205, %c0_206, %c0_207] : memref<2x64x32xf32, #tpu.memory_space<vmem>>, vector<1x64x32xf32>
    %335 = vector.shape_cast %334 : vector<1x64x32xf32> to vector<64x32xf32>
    %cst_208 = arith.constant dense<0.000000e+00> : vector<16x32xf32>
    %336 = tpu.matmul %333, %335, %cst_208 {dimension_numbers = #tpu.dot_dimension_numbers<[1], [0], [0], [1], [0, 0, 1, 1], [], []>} : vector<16x64xf32>, vector<64x32xf32>, vector<16x32xf32> -> vector<16x32xf32>
    %337 = arith.addf %300, %336 : vector<16x32xf32>
    %c0_209 = arith.constant 0 : index
    %c0_210 = arith.constant 0 : index
    %c0_211 = arith.constant 0 : index
    %338 = vector.load %arg17[%c0_209, %c0_210, %c0_211] : memref<2x1x32xf32, #tpu.memory_space<vmem>>, vector<1x1x32xf32>
    %339 = vector.shape_cast %338 : vector<1x1x32xf32> to vector<1x32xf32>
    %340 = vector.broadcast %339 : vector<1x32xf32> to vector<16x32xf32>
    %341 = arith.addf %337, %340 : vector<16x32xf32>
    %c1_212 = arith.constant 1 : index
    %c0_213 = arith.constant 0 : index
    %c0_214 = arith.constant 0 : index
    %342 = vector.load %arg2[%c1_212, %c0_213, %c0_214] : memref<2x1x32xf32, #tpu.memory_space<vmem>>, vector<1x1x32xf32>
    %343 = vector.shape_cast %342 : vector<1x1x32xf32> to vector<1x32xf32>
    %c1_215 = arith.constant 1 : index
    %c0_216 = arith.constant 0 : index
    %c0_217 = arith.constant 0 : index
    %344 = vector.load %arg3[%c1_215, %c0_216, %c0_217] : memref<2x1x32xf32, #tpu.memory_space<vmem>>, vector<1x1x32xf32>
    %345 = vector.shape_cast %344 : vector<1x1x32xf32> to vector<1x32xf32>
    %cst_218 = arith.constant dense<0.000000e+00> : vector<16xf32>
    %346 = vector.multi_reduction <add>, %341, %cst_218 [1] : vector<16x32xf32> to vector<16xf32>
    %347 = vector.shape_cast %346 : vector<16xf32> to vector<16x1xf32>
    %cst_219 = arith.constant 3.200000e+01 : f32
    %348 = vector.broadcast %cst_219 : f32 to vector<16x1xf32>
    %349 = arith.divf %347, %348 : vector<16x1xf32>
    %350 = vector.broadcast %349 : vector<16x1xf32> to vector<16x32xf32>
    %351 = arith.subf %341, %350 : vector<16x32xf32>
    %352 = arith.mulf %351, %351 : vector<16x32xf32>
    %cst_220 = arith.constant dense<0.000000e+00> : vector<16xf32>
    %353 = vector.multi_reduction <add>, %352, %cst_220 [1] : vector<16x32xf32> to vector<16xf32>
    %354 = vector.shape_cast %353 : vector<16xf32> to vector<16x1xf32>
    %cst_221 = arith.constant 3.100000e+01 : f32
    %355 = vector.broadcast %cst_221 : f32 to vector<16x1xf32>
    %356 = arith.divf %354, %355 : vector<16x1xf32>
    %357 = vector.broadcast %343 : vector<1x32xf32> to vector<16x32xf32>
    %358 = arith.mulf %357, %351 : vector<16x32xf32>
    %359 = math.sqrt %356 : vector<16x1xf32>
    %cst_222 = arith.constant 9.99999997E-7 : f32
    %360 = vector.broadcast %cst_222 : f32 to vector<16x1xf32>
    %361 = arith.addf %359, %360 : vector<16x1xf32>
    %362 = vector.broadcast %361 : vector<16x1xf32> to vector<16x32xf32>
    %363 = arith.divf %358, %362 : vector<16x32xf32>
    %364 = vector.broadcast %345 : vector<1x32xf32> to vector<16x32xf32>
    %365 = arith.addf %363, %364 : vector<16x32xf32>
    %cst_223 = arith.constant 0.000000e+00 : f32
    %366 = vector.broadcast %cst_223 : f32 to vector<16x32xf32>
    %c1_224 = arith.constant 1 : index
    %c0_225 = arith.constant 0 : index
    %c0_226 = arith.constant 0 : index
    %c0_227 = arith.constant 0 : index
    %367 = vector.load %arg4[%c1_224, %c0_225, %c0_226, %c0_227] : memref<2x4x32x8xf32, #tpu.memory_space<vmem>>, vector<1x1x32x8xf32>
    %368 = vector.shape_cast %367 : vector<1x1x32x8xf32> to vector<32x8xf32>
    %cst_228 = arith.constant dense<0.000000e+00> : vector<16x8xf32>
    %369 = tpu.matmul %365, %368, %cst_228 {dimension_numbers = #tpu.dot_dimension_numbers<[1], [0], [0], [1], [0, 0, 1, 1], [], []>} : vector<16x32xf32>, vector<32x8xf32>, vector<16x8xf32> -> vector<16x8xf32>
    %c1_229 = arith.constant 1 : index
    %c0_230 = arith.constant 0 : index
    %c0_231 = arith.constant 0 : index
    %c0_232 = arith.constant 0 : index
    %370 = vector.load %arg5[%c1_229, %c0_230, %c0_231, %c0_232] : memref<2x4x1x8xf32, #tpu.memory_space<vmem>>, vector<1x1x1x8xf32>
    %371 = vector.shape_cast %370 : vector<1x1x1x8xf32> to vector<1x8xf32>
    %372 = vector.broadcast %371 : vector<1x8xf32> to vector<16x8xf32>
    %373 = arith.addf %369, %372 : vector<16x8xf32>
    %c1_233 = arith.constant 1 : index
    %c0_234 = arith.constant 0 : index
    %c0_235 = arith.constant 0 : index
    %c0_236 = arith.constant 0 : index
    %374 = vector.load %arg6[%c1_233, %c0_234, %c0_235, %c0_236] : memref<2x4x32x8xf32, #tpu.memory_space<vmem>>, vector<1x1x32x8xf32>
    %375 = vector.shape_cast %374 : vector<1x1x32x8xf32> to vector<32x8xf32>
    %cst_237 = arith.constant dense<0.000000e+00> : vector<16x8xf32>
    %376 = tpu.matmul %365, %375, %cst_237 {dimension_numbers = #tpu.dot_dimension_numbers<[1], [0], [0], [1], [0, 0, 1, 1], [], []>} : vector<16x32xf32>, vector<32x8xf32>, vector<16x8xf32> -> vector<16x8xf32>
    %c1_238 = arith.constant 1 : index
    %c0_239 = arith.constant 0 : index
    %c0_240 = arith.constant 0 : index
    %c0_241 = arith.constant 0 : index
    %377 = vector.load %arg7[%c1_238, %c0_239, %c0_240, %c0_241] : memref<2x4x1x8xf32, #tpu.memory_space<vmem>>, vector<1x1x1x8xf32>
    %378 = vector.shape_cast %377 : vector<1x1x1x8xf32> to vector<1x8xf32>
    %379 = vector.broadcast %378 : vector<1x8xf32> to vector<16x8xf32>
    %380 = arith.addf %376, %379 : vector<16x8xf32>
    %c1_242 = arith.constant 1 : index
    %c0_243 = arith.constant 0 : index
    %c0_244 = arith.constant 0 : index
    %c0_245 = arith.constant 0 : index
    %381 = vector.load %arg8[%c1_242, %c0_243, %c0_244, %c0_245] : memref<2x4x32x8xf32, #tpu.memory_space<vmem>>, vector<1x1x32x8xf32>
    %382 = vector.shape_cast %381 : vector<1x1x32x8xf32> to vector<32x8xf32>
    %cst_246 = arith.constant dense<0.000000e+00> : vector<16x8xf32>
    %383 = tpu.matmul %365, %382, %cst_246 {dimension_numbers = #tpu.dot_dimension_numbers<[1], [0], [0], [1], [0, 0, 1, 1], [], []>} : vector<16x32xf32>, vector<32x8xf32>, vector<16x8xf32> -> vector<16x8xf32>
    %c1_247 = arith.constant 1 : index
    %c0_248 = arith.constant 0 : index
    %c0_249 = arith.constant 0 : index
    %c0_250 = arith.constant 0 : index
    %384 = vector.load %arg9[%c1_247, %c0_248, %c0_249, %c0_250] : memref<2x4x1x8xf32, #tpu.memory_space<vmem>>, vector<1x1x1x8xf32>
    %385 = vector.shape_cast %384 : vector<1x1x1x8xf32> to vector<1x8xf32>
    %386 = vector.broadcast %385 : vector<1x8xf32> to vector<16x8xf32>
    %387 = arith.addf %383, %386 : vector<16x8xf32>
    %388 = vector.extract_strided_slice %373 {offsets = [0, 0], sizes = [8, 8], strides = [1, 1]} : vector<16x8xf32> to vector<8x8xf32>
    %389 = vector.extract_strided_slice %380 {offsets = [0, 0], sizes = [8, 8], strides = [1, 1]} : vector<16x8xf32> to vector<8x8xf32>
    %cst_251 = arith.constant dense<0.000000e+00> : vector<8x8xf32>
    %390 = tpu.matmul %388, %389, %cst_251 {dimension_numbers = #tpu.dot_dimension_numbers<[1], [1], [0], [0], [0, 0, 1, 0], [], []>} : vector<8x8xf32>, vector<8x8xf32>, vector<8x8xf32> -> vector<8x8xf32>
    %cst_252 = arith.constant 0.353553385 : f32
    %391 = vector.broadcast %cst_252 : f32 to vector<8x8xf32>
    %392 = arith.mulf %390, %391 : vector<8x8xf32>
    %393 = vector.extract_strided_slice %6 {offsets = [0, 0, 0], sizes = [1, 8, 8], strides = [1, 1, 1]} : vector<2x8x8xf32> to vector<1x8x8xf32>
    %394 = vector.shape_cast %393 : vector<1x8x8xf32> to vector<8x8xf32>
    %395 = arith.addf %392, %394 : vector<8x8xf32>
    %cst_253 = arith.constant dense<0xFF800000> : vector<8xf32>
    %396 = vector.multi_reduction <maximumf>, %395, %cst_253 [1] : vector<8x8xf32> to vector<8xf32>
    %397 = vector.shape_cast %396 : vector<8xf32> to vector<8x1xf32>
    %398 = vector.broadcast %397 : vector<8x1xf32> to vector<8x8xf32>
    %399 = arith.subf %395, %398 : vector<8x8xf32>
    %400 = math.exp %399 : vector<8x8xf32>
    %cst_254 = arith.constant dense<0.000000e+00> : vector<8xf32>
    %401 = vector.multi_reduction <add>, %400, %cst_254 [1] : vector<8x8xf32> to vector<8xf32>
    %402 = vector.shape_cast %401 : vector<8xf32> to vector<8x1xf32>
    %403 = tpu.reciprocal %402 {approx = true} : vector<8x1xf32> -> vector<8x1xf32>
    %404 = vector.broadcast %403 : vector<8x1xf32> to vector<8x8xf32>
    %405 = arith.mulf %400, %404 : vector<8x8xf32>
    %406 = vector.extract_strided_slice %387 {offsets = [0, 0], sizes = [8, 8], strides = [1, 1]} : vector<16x8xf32> to vector<8x8xf32>
    %cst_255 = arith.constant dense<0.000000e+00> : vector<8x8xf32>
    %407 = tpu.matmul %405, %406, %cst_255 {dimension_numbers = #tpu.dot_dimension_numbers<[1], [0], [0], [1], [0, 0, 1, 1], [], []>} : vector<8x8xf32>, vector<8x8xf32>, vector<8x8xf32> -> vector<8x8xf32>
    %408 = vector.extract_strided_slice %373 {offsets = [8, 0], sizes = [8, 8], strides = [1, 1]} : vector<16x8xf32> to vector<8x8xf32>
    %409 = vector.extract_strided_slice %380 {offsets = [8, 0], sizes = [8, 8], strides = [1, 1]} : vector<16x8xf32> to vector<8x8xf32>
    %cst_256 = arith.constant dense<0.000000e+00> : vector<8x8xf32>
    %410 = tpu.matmul %408, %409, %cst_256 {dimension_numbers = #tpu.dot_dimension_numbers<[1], [1], [0], [0], [0, 0, 1, 0], [], []>} : vector<8x8xf32>, vector<8x8xf32>, vector<8x8xf32> -> vector<8x8xf32>
    %cst_257 = arith.constant 0.353553385 : f32
    %411 = vector.broadcast %cst_257 : f32 to vector<8x8xf32>
    %412 = arith.mulf %410, %411 : vector<8x8xf32>
    %413 = vector.extract_strided_slice %6 {offsets = [1, 0, 0], sizes = [1, 8, 8], strides = [1, 1, 1]} : vector<2x8x8xf32> to vector<1x8x8xf32>
    %414 = vector.shape_cast %413 : vector<1x8x8xf32> to vector<8x8xf32>
    %415 = arith.addf %412, %414 : vector<8x8xf32>
    %cst_258 = arith.constant dense<0xFF800000> : vector<8xf32>
    %416 = vector.multi_reduction <maximumf>, %415, %cst_258 [1] : vector<8x8xf32> to vector<8xf32>
    %417 = vector.shape_cast %416 : vector<8xf32> to vector<8x1xf32>
    %418 = vector.broadcast %417 : vector<8x1xf32> to vector<8x8xf32>
    %419 = arith.subf %415, %418 : vector<8x8xf32>
    %420 = math.exp %419 : vector<8x8xf32>
    %cst_259 = arith.constant dense<0.000000e+00> : vector<8xf32>
    %421 = vector.multi_reduction <add>, %420, %cst_259 [1] : vector<8x8xf32> to vector<8xf32>
    %422 = vector.shape_cast %421 : vector<8xf32> to vector<8x1xf32>
    %423 = tpu.reciprocal %422 {approx = true} : vector<8x1xf32> -> vector<8x1xf32>
    %424 = vector.broadcast %423 : vector<8x1xf32> to vector<8x8xf32>
    %425 = arith.mulf %420, %424 : vector<8x8xf32>
    %426 = vector.extract_strided_slice %387 {offsets = [8, 0], sizes = [8, 8], strides = [1, 1]} : vector<16x8xf32> to vector<8x8xf32>
    %cst_260 = arith.constant dense<0.000000e+00> : vector<8x8xf32>
    %427 = tpu.matmul %425, %426, %cst_260 {dimension_numbers = #tpu.dot_dimension_numbers<[1], [0], [0], [1], [0, 0, 1, 1], [], []>} : vector<8x8xf32>, vector<8x8xf32>, vector<8x8xf32> -> vector<8x8xf32>
    %428 = tpu.concatenate %407, %427 in 0 : vector<8x8xf32>, vector<8x8xf32> -> vector<16x8xf32>
    %c1_261 = arith.constant 1 : index
    %c0_262 = arith.constant 0 : index
    %c0_263 = arith.constant 0 : index
    %c0_264 = arith.constant 0 : index
    %429 = vector.load %arg10[%c1_261, %c0_262, %c0_263, %c0_264] : memref<2x4x8x32xf32, #tpu.memory_space<vmem>>, vector<1x1x8x32xf32>
    %430 = vector.shape_cast %429 : vector<1x1x8x32xf32> to vector<8x32xf32>
    %cst_265 = arith.constant dense<0.000000e+00> : vector<16x32xf32>
    %431 = tpu.matmul %428, %430, %cst_265 {dimension_numbers = #tpu.dot_dimension_numbers<[1], [0], [0], [1], [0, 0, 1, 1], [], []>} : vector<16x8xf32>, vector<8x32xf32>, vector<16x32xf32> -> vector<16x32xf32>
    %432 = arith.addf %366, %431 : vector<16x32xf32>
    %c1_266 = arith.constant 1 : index
    %c1_267 = arith.constant 1 : index
    %c0_268 = arith.constant 0 : index
    %c0_269 = arith.constant 0 : index
    %433 = vector.load %arg4[%c1_266, %c1_267, %c0_268, %c0_269] : memref<2x4x32x8xf32, #tpu.memory_space<vmem>>, vector<1x1x32x8xf32>
    %434 = vector.shape_cast %433 : vector<1x1x32x8xf32> to vector<32x8xf32>
    %cst_270 = arith.constant dense<0.000000e+00> : vector<16x8xf32>
    %435 = tpu.matmul %365, %434, %cst_270 {dimension_numbers = #tpu.dot_dimension_numbers<[1], [0], [0], [1], [0, 0, 1, 1], [], []>} : vector<16x32xf32>, vector<32x8xf32>, vector<16x8xf32> -> vector<16x8xf32>
    %c1_271 = arith.constant 1 : index
    %c1_272 = arith.constant 1 : index
    %c0_273 = arith.constant 0 : index
    %c0_274 = arith.constant 0 : index
    %436 = vector.load %arg5[%c1_271, %c1_272, %c0_273, %c0_274] : memref<2x4x1x8xf32, #tpu.memory_space<vmem>>, vector<1x1x1x8xf32>
    %437 = vector.shape_cast %436 : vector<1x1x1x8xf32> to vector<1x8xf32>
    %438 = vector.broadcast %437 : vector<1x8xf32> to vector<16x8xf32>
    %439 = arith.addf %435, %438 : vector<16x8xf32>
    %c1_275 = arith.constant 1 : index
    %c1_276 = arith.constant 1 : index
    %c0_277 = arith.constant 0 : index
    %c0_278 = arith.constant 0 : index
    %440 = vector.load %arg6[%c1_275, %c1_276, %c0_277, %c0_278] : memref<2x4x32x8xf32, #tpu.memory_space<vmem>>, vector<1x1x32x8xf32>
    %441 = vector.shape_cast %440 : vector<1x1x32x8xf32> to vector<32x8xf32>
    %cst_279 = arith.constant dense<0.000000e+00> : vector<16x8xf32>
    %442 = tpu.matmul %365, %441, %cst_279 {dimension_numbers = #tpu.dot_dimension_numbers<[1], [0], [0], [1], [0, 0, 1, 1], [], []>} : vector<16x32xf32>, vector<32x8xf32>, vector<16x8xf32> -> vector<16x8xf32>
    %c1_280 = arith.constant 1 : index
    %c1_281 = arith.constant 1 : index
    %c0_282 = arith.constant 0 : index
    %c0_283 = arith.constant 0 : index
    %443 = vector.load %arg7[%c1_280, %c1_281, %c0_282, %c0_283] : memref<2x4x1x8xf32, #tpu.memory_space<vmem>>, vector<1x1x1x8xf32>
    %444 = vector.shape_cast %443 : vector<1x1x1x8xf32> to vector<1x8xf32>
    %445 = vector.broadcast %444 : vector<1x8xf32> to vector<16x8xf32>
    %446 = arith.addf %442, %445 : vector<16x8xf32>
    %c1_284 = arith.constant 1 : index
    %c1_285 = arith.constant 1 : index
    %c0_286 = arith.constant 0 : index
    %c0_287 = arith.constant 0 : index
    %447 = vector.load %arg8[%c1_284, %c1_285, %c0_286, %c0_287] : memref<2x4x32x8xf32, #tpu.memory_space<vmem>>, vector<1x1x32x8xf32>
    %448 = vector.shape_cast %447 : vector<1x1x32x8xf32> to vector<32x8xf32>
    %cst_288 = arith.constant dense<0.000000e+00> : vector<16x8xf32>
    %449 = tpu.matmul %365, %448, %cst_288 {dimension_numbers = #tpu.dot_dimension_numbers<[1], [0], [0], [1], [0, 0, 1, 1], [], []>} : vector<16x32xf32>, vector<32x8xf32>, vector<16x8xf32> -> vector<16x8xf32>
    %c1_289 = arith.constant 1 : index
    %c1_290 = arith.constant 1 : index
    %c0_291 = arith.constant 0 : index
    %c0_292 = arith.constant 0 : index
    %450 = vector.load %arg9[%c1_289, %c1_290, %c0_291, %c0_292] : memref<2x4x1x8xf32, #tpu.memory_space<vmem>>, vector<1x1x1x8xf32>
    %451 = vector.shape_cast %450 : vector<1x1x1x8xf32> to vector<1x8xf32>
    %452 = vector.broadcast %451 : vector<1x8xf32> to vector<16x8xf32>
    %453 = arith.addf %449, %452 : vector<16x8xf32>
    %454 = vector.extract_strided_slice %439 {offsets = [0, 0], sizes = [8, 8], strides = [1, 1]} : vector<16x8xf32> to vector<8x8xf32>
    %455 = vector.extract_strided_slice %446 {offsets = [0, 0], sizes = [8, 8], strides = [1, 1]} : vector<16x8xf32> to vector<8x8xf32>
    %cst_293 = arith.constant dense<0.000000e+00> : vector<8x8xf32>
    %456 = tpu.matmul %454, %455, %cst_293 {dimension_numbers = #tpu.dot_dimension_numbers<[1], [1], [0], [0], [0, 0, 1, 0], [], []>} : vector<8x8xf32>, vector<8x8xf32>, vector<8x8xf32> -> vector<8x8xf32>
    %cst_294 = arith.constant 0.353553385 : f32
    %457 = vector.broadcast %cst_294 : f32 to vector<8x8xf32>
    %458 = arith.mulf %456, %457 : vector<8x8xf32>
    %459 = vector.extract_strided_slice %6 {offsets = [0, 0, 0], sizes = [1, 8, 8], strides = [1, 1, 1]} : vector<2x8x8xf32> to vector<1x8x8xf32>
    %460 = vector.shape_cast %459 : vector<1x8x8xf32> to vector<8x8xf32>
    %461 = arith.addf %458, %460 : vector<8x8xf32>
    %cst_295 = arith.constant dense<0xFF800000> : vector<8xf32>
    %462 = vector.multi_reduction <maximumf>, %461, %cst_295 [1] : vector<8x8xf32> to vector<8xf32>
    %463 = vector.shape_cast %462 : vector<8xf32> to vector<8x1xf32>
    %464 = vector.broadcast %463 : vector<8x1xf32> to vector<8x8xf32>
    %465 = arith.subf %461, %464 : vector<8x8xf32>
    %466 = math.exp %465 : vector<8x8xf32>
    %cst_296 = arith.constant dense<0.000000e+00> : vector<8xf32>
    %467 = vector.multi_reduction <add>, %466, %cst_296 [1] : vector<8x8xf32> to vector<8xf32>
    %468 = vector.shape_cast %467 : vector<8xf32> to vector<8x1xf32>
    %469 = tpu.reciprocal %468 {approx = true} : vector<8x1xf32> -> vector<8x1xf32>
    %470 = vector.broadcast %469 : vector<8x1xf32> to vector<8x8xf32>
    %471 = arith.mulf %466, %470 : vector<8x8xf32>
    %472 = vector.extract_strided_slice %453 {offsets = [0, 0], sizes = [8, 8], strides = [1, 1]} : vector<16x8xf32> to vector<8x8xf32>
    %cst_297 = arith.constant dense<0.000000e+00> : vector<8x8xf32>
    %473 = tpu.matmul %471, %472, %cst_297 {dimension_numbers = #tpu.dot_dimension_numbers<[1], [0], [0], [1], [0, 0, 1, 1], [], []>} : vector<8x8xf32>, vector<8x8xf32>, vector<8x8xf32> -> vector<8x8xf32>
    %474 = vector.extract_strided_slice %439 {offsets = [8, 0], sizes = [8, 8], strides = [1, 1]} : vector<16x8xf32> to vector<8x8xf32>
    %475 = vector.extract_strided_slice %446 {offsets = [8, 0], sizes = [8, 8], strides = [1, 1]} : vector<16x8xf32> to vector<8x8xf32>
    %cst_298 = arith.constant dense<0.000000e+00> : vector<8x8xf32>
    %476 = tpu.matmul %474, %475, %cst_298 {dimension_numbers = #tpu.dot_dimension_numbers<[1], [1], [0], [0], [0, 0, 1, 0], [], []>} : vector<8x8xf32>, vector<8x8xf32>, vector<8x8xf32> -> vector<8x8xf32>
    %cst_299 = arith.constant 0.353553385 : f32
    %477 = vector.broadcast %cst_299 : f32 to vector<8x8xf32>
    %478 = arith.mulf %476, %477 : vector<8x8xf32>
    %479 = vector.extract_strided_slice %6 {offsets = [1, 0, 0], sizes = [1, 8, 8], strides = [1, 1, 1]} : vector<2x8x8xf32> to vector<1x8x8xf32>
    %480 = vector.shape_cast %479 : vector<1x8x8xf32> to vector<8x8xf32>
    %481 = arith.addf %478, %480 : vector<8x8xf32>
    %cst_300 = arith.constant dense<0xFF800000> : vector<8xf32>
    %482 = vector.multi_reduction <maximumf>, %481, %cst_300 [1] : vector<8x8xf32> to vector<8xf32>
    %483 = vector.shape_cast %482 : vector<8xf32> to vector<8x1xf32>
    %484 = vector.broadcast %483 : vector<8x1xf32> to vector<8x8xf32>
    %485 = arith.subf %481, %484 : vector<8x8xf32>
    %486 = math.exp %485 : vector<8x8xf32>
    %cst_301 = arith.constant dense<0.000000e+00> : vector<8xf32>
    %487 = vector.multi_reduction <add>, %486, %cst_301 [1] : vector<8x8xf32> to vector<8xf32>
    %488 = vector.shape_cast %487 : vector<8xf32> to vector<8x1xf32>
    %489 = tpu.reciprocal %488 {approx = true} : vector<8x1xf32> -> vector<8x1xf32>
    %490 = vector.broadcast %489 : vector<8x1xf32> to vector<8x8xf32>
    %491 = arith.mulf %486, %490 : vector<8x8xf32>
    %492 = vector.extract_strided_slice %453 {offsets = [8, 0], sizes = [8, 8], strides = [1, 1]} : vector<16x8xf32> to vector<8x8xf32>
    %cst_302 = arith.constant dense<0.000000e+00> : vector<8x8xf32>
    %493 = tpu.matmul %491, %492, %cst_302 {dimension_numbers = #tpu.dot_dimension_numbers<[1], [0], [0], [1], [0, 0, 1, 1], [], []>} : vector<8x8xf32>, vector<8x8xf32>, vector<8x8xf32> -> vector<8x8xf32>
    %494 = tpu.concatenate %473, %493 in 0 : vector<8x8xf32>, vector<8x8xf32> -> vector<16x8xf32>
    %c1_303 = arith.constant 1 : index
    %c1_304 = arith.constant 1 : index
    %c0_305 = arith.constant 0 : index
    %c0_306 = arith.constant 0 : index
    %495 = vector.load %arg10[%c1_303, %c1_304, %c0_305, %c0_306] : memref<2x4x8x32xf32, #tpu.memory_space<vmem>>, vector<1x1x8x32xf32>
    %496 = vector.shape_cast %495 : vector<1x1x8x32xf32> to vector<8x32xf32>
    %cst_307 = arith.constant dense<0.000000e+00> : vector<16x32xf32>
    %497 = tpu.matmul %494, %496, %cst_307 {dimension_numbers = #tpu.dot_dimension_numbers<[1], [0], [0], [1], [0, 0, 1, 1], [], []>} : vector<16x8xf32>, vector<8x32xf32>, vector<16x32xf32> -> vector<16x32xf32>
    %498 = arith.addf %432, %497 : vector<16x32xf32>
    %c1_308 = arith.constant 1 : index
    %c2_309 = arith.constant 2 : index
    %c0_310 = arith.constant 0 : index
    %c0_311 = arith.constant 0 : index
    %499 = vector.load %arg4[%c1_308, %c2_309, %c0_310, %c0_311] : memref<2x4x32x8xf32, #tpu.memory_space<vmem>>, vector<1x1x32x8xf32>
    %500 = vector.shape_cast %499 : vector<1x1x32x8xf32> to vector<32x8xf32>
    %cst_312 = arith.constant dense<0.000000e+00> : vector<16x8xf32>
    %501 = tpu.matmul %365, %500, %cst_312 {dimension_numbers = #tpu.dot_dimension_numbers<[1], [0], [0], [1], [0, 0, 1, 1], [], []>} : vector<16x32xf32>, vector<32x8xf32>, vector<16x8xf32> -> vector<16x8xf32>
    %c1_313 = arith.constant 1 : index
    %c2_314 = arith.constant 2 : index
    %c0_315 = arith.constant 0 : index
    %c0_316 = arith.constant 0 : index
    %502 = vector.load %arg5[%c1_313, %c2_314, %c0_315, %c0_316] : memref<2x4x1x8xf32, #tpu.memory_space<vmem>>, vector<1x1x1x8xf32>
    %503 = vector.shape_cast %502 : vector<1x1x1x8xf32> to vector<1x8xf32>
    %504 = vector.broadcast %503 : vector<1x8xf32> to vector<16x8xf32>
    %505 = arith.addf %501, %504 : vector<16x8xf32>
    %c1_317 = arith.constant 1 : index
    %c2_318 = arith.constant 2 : index
    %c0_319 = arith.constant 0 : index
    %c0_320 = arith.constant 0 : index
    %506 = vector.load %arg6[%c1_317, %c2_318, %c0_319, %c0_320] : memref<2x4x32x8xf32, #tpu.memory_space<vmem>>, vector<1x1x32x8xf32>
    %507 = vector.shape_cast %506 : vector<1x1x32x8xf32> to vector<32x8xf32>
    %cst_321 = arith.constant dense<0.000000e+00> : vector<16x8xf32>
    %508 = tpu.matmul %365, %507, %cst_321 {dimension_numbers = #tpu.dot_dimension_numbers<[1], [0], [0], [1], [0, 0, 1, 1], [], []>} : vector<16x32xf32>, vector<32x8xf32>, vector<16x8xf32> -> vector<16x8xf32>
    %c1_322 = arith.constant 1 : index
    %c2_323 = arith.constant 2 : index
    %c0_324 = arith.constant 0 : index
    %c0_325 = arith.constant 0 : index
    %509 = vector.load %arg7[%c1_322, %c2_323, %c0_324, %c0_325] : memref<2x4x1x8xf32, #tpu.memory_space<vmem>>, vector<1x1x1x8xf32>
    %510 = vector.shape_cast %509 : vector<1x1x1x8xf32> to vector<1x8xf32>
    %511 = vector.broadcast %510 : vector<1x8xf32> to vector<16x8xf32>
    %512 = arith.addf %508, %511 : vector<16x8xf32>
    %c1_326 = arith.constant 1 : index
    %c2_327 = arith.constant 2 : index
    %c0_328 = arith.constant 0 : index
    %c0_329 = arith.constant 0 : index
    %513 = vector.load %arg8[%c1_326, %c2_327, %c0_328, %c0_329] : memref<2x4x32x8xf32, #tpu.memory_space<vmem>>, vector<1x1x32x8xf32>
    %514 = vector.shape_cast %513 : vector<1x1x32x8xf32> to vector<32x8xf32>
    %cst_330 = arith.constant dense<0.000000e+00> : vector<16x8xf32>
    %515 = tpu.matmul %365, %514, %cst_330 {dimension_numbers = #tpu.dot_dimension_numbers<[1], [0], [0], [1], [0, 0, 1, 1], [], []>} : vector<16x32xf32>, vector<32x8xf32>, vector<16x8xf32> -> vector<16x8xf32>
    %c1_331 = arith.constant 1 : index
    %c2_332 = arith.constant 2 : index
    %c0_333 = arith.constant 0 : index
    %c0_334 = arith.constant 0 : index
    %516 = vector.load %arg9[%c1_331, %c2_332, %c0_333, %c0_334] : memref<2x4x1x8xf32, #tpu.memory_space<vmem>>, vector<1x1x1x8xf32>
    %517 = vector.shape_cast %516 : vector<1x1x1x8xf32> to vector<1x8xf32>
    %518 = vector.broadcast %517 : vector<1x8xf32> to vector<16x8xf32>
    %519 = arith.addf %515, %518 : vector<16x8xf32>
    %520 = vector.extract_strided_slice %505 {offsets = [0, 0], sizes = [8, 8], strides = [1, 1]} : vector<16x8xf32> to vector<8x8xf32>
    %521 = vector.extract_strided_slice %512 {offsets = [0, 0], sizes = [8, 8], strides = [1, 1]} : vector<16x8xf32> to vector<8x8xf32>
    %cst_335 = arith.constant dense<0.000000e+00> : vector<8x8xf32>
    %522 = tpu.matmul %520, %521, %cst_335 {dimension_numbers = #tpu.dot_dimension_numbers<[1], [1], [0], [0], [0, 0, 1, 0], [], []>} : vector<8x8xf32>, vector<8x8xf32>, vector<8x8xf32> -> vector<8x8xf32>
    %cst_336 = arith.constant 0.353553385 : f32
    %523 = vector.broadcast %cst_336 : f32 to vector<8x8xf32>
    %524 = arith.mulf %522, %523 : vector<8x8xf32>
    %525 = vector.extract_strided_slice %6 {offsets = [0, 0, 0], sizes = [1, 8, 8], strides = [1, 1, 1]} : vector<2x8x8xf32> to vector<1x8x8xf32>
    %526 = vector.shape_cast %525 : vector<1x8x8xf32> to vector<8x8xf32>
    %527 = arith.addf %524, %526 : vector<8x8xf32>
    %cst_337 = arith.constant dense<0xFF800000> : vector<8xf32>
    %528 = vector.multi_reduction <maximumf>, %527, %cst_337 [1] : vector<8x8xf32> to vector<8xf32>
    %529 = vector.shape_cast %528 : vector<8xf32> to vector<8x1xf32>
    %530 = vector.broadcast %529 : vector<8x1xf32> to vector<8x8xf32>
    %531 = arith.subf %527, %530 : vector<8x8xf32>
    %532 = math.exp %531 : vector<8x8xf32>
    %cst_338 = arith.constant dense<0.000000e+00> : vector<8xf32>
    %533 = vector.multi_reduction <add>, %532, %cst_338 [1] : vector<8x8xf32> to vector<8xf32>
    %534 = vector.shape_cast %533 : vector<8xf32> to vector<8x1xf32>
    %535 = tpu.reciprocal %534 {approx = true} : vector<8x1xf32> -> vector<8x1xf32>
    %536 = vector.broadcast %535 : vector<8x1xf32> to vector<8x8xf32>
    %537 = arith.mulf %532, %536 : vector<8x8xf32>
    %538 = vector.extract_strided_slice %519 {offsets = [0, 0], sizes = [8, 8], strides = [1, 1]} : vector<16x8xf32> to vector<8x8xf32>
    %cst_339 = arith.constant dense<0.000000e+00> : vector<8x8xf32>
    %539 = tpu.matmul %537, %538, %cst_339 {dimension_numbers = #tpu.dot_dimension_numbers<[1], [0], [0], [1], [0, 0, 1, 1], [], []>} : vector<8x8xf32>, vector<8x8xf32>, vector<8x8xf32> -> vector<8x8xf32>
    %540 = vector.extract_strided_slice %505 {offsets = [8, 0], sizes = [8, 8], strides = [1, 1]} : vector<16x8xf32> to vector<8x8xf32>
    %541 = vector.extract_strided_slice %512 {offsets = [8, 0], sizes = [8, 8], strides = [1, 1]} : vector<16x8xf32> to vector<8x8xf32>
    %cst_340 = arith.constant dense<0.000000e+00> : vector<8x8xf32>
    %542 = tpu.matmul %540, %541, %cst_340 {dimension_numbers = #tpu.dot_dimension_numbers<[1], [1], [0], [0], [0, 0, 1, 0], [], []>} : vector<8x8xf32>, vector<8x8xf32>, vector<8x8xf32> -> vector<8x8xf32>
    %cst_341 = arith.constant 0.353553385 : f32
    %543 = vector.broadcast %cst_341 : f32 to vector<8x8xf32>
    %544 = arith.mulf %542, %543 : vector<8x8xf32>
    %545 = vector.extract_strided_slice %6 {offsets = [1, 0, 0], sizes = [1, 8, 8], strides = [1, 1, 1]} : vector<2x8x8xf32> to vector<1x8x8xf32>
    %546 = vector.shape_cast %545 : vector<1x8x8xf32> to vector<8x8xf32>
    %547 = arith.addf %544, %546 : vector<8x8xf32>
    %cst_342 = arith.constant dense<0xFF800000> : vector<8xf32>
    %548 = vector.multi_reduction <maximumf>, %547, %cst_342 [1] : vector<8x8xf32> to vector<8xf32>
    %549 = vector.shape_cast %548 : vector<8xf32> to vector<8x1xf32>
    %550 = vector.broadcast %549 : vector<8x1xf32> to vector<8x8xf32>
    %551 = arith.subf %547, %550 : vector<8x8xf32>
    %552 = math.exp %551 : vector<8x8xf32>
    %cst_343 = arith.constant dense<0.000000e+00> : vector<8xf32>
    %553 = vector.multi_reduction <add>, %552, %cst_343 [1] : vector<8x8xf32> to vector<8xf32>
    %554 = vector.shape_cast %553 : vector<8xf32> to vector<8x1xf32>
    %555 = tpu.reciprocal %554 {approx = true} : vector<8x1xf32> -> vector<8x1xf32>
    %556 = vector.broadcast %555 : vector<8x1xf32> to vector<8x8xf32>
    %557 = arith.mulf %552, %556 : vector<8x8xf32>
    %558 = vector.extract_strided_slice %519 {offsets = [8, 0], sizes = [8, 8], strides = [1, 1]} : vector<16x8xf32> to vector<8x8xf32>
    %cst_344 = arith.constant dense<0.000000e+00> : vector<8x8xf32>
    %559 = tpu.matmul %557, %558, %cst_344 {dimension_numbers = #tpu.dot_dimension_numbers<[1], [0], [0], [1], [0, 0, 1, 1], [], []>} : vector<8x8xf32>, vector<8x8xf32>, vector<8x8xf32> -> vector<8x8xf32>
    %560 = tpu.concatenate %539, %559 in 0 : vector<8x8xf32>, vector<8x8xf32> -> vector<16x8xf32>
    %c1_345 = arith.constant 1 : index
    %c2_346 = arith.constant 2 : index
    %c0_347 = arith.constant 0 : index
    %c0_348 = arith.constant 0 : index
    %561 = vector.load %arg10[%c1_345, %c2_346, %c0_347, %c0_348] : memref<2x4x8x32xf32, #tpu.memory_space<vmem>>, vector<1x1x8x32xf32>
    %562 = vector.shape_cast %561 : vector<1x1x8x32xf32> to vector<8x32xf32>
    %cst_349 = arith.constant dense<0.000000e+00> : vector<16x32xf32>
    %563 = tpu.matmul %560, %562, %cst_349 {dimension_numbers = #tpu.dot_dimension_numbers<[1], [0], [0], [1], [0, 0, 1, 1], [], []>} : vector<16x8xf32>, vector<8x32xf32>, vector<16x32xf32> -> vector<16x32xf32>
    %564 = arith.addf %498, %563 : vector<16x32xf32>
    %c1_350 = arith.constant 1 : index
    %c3_351 = arith.constant 3 : index
    %c0_352 = arith.constant 0 : index
    %c0_353 = arith.constant 0 : index
    %565 = vector.load %arg4[%c1_350, %c3_351, %c0_352, %c0_353] : memref<2x4x32x8xf32, #tpu.memory_space<vmem>>, vector<1x1x32x8xf32>
    %566 = vector.shape_cast %565 : vector<1x1x32x8xf32> to vector<32x8xf32>
    %cst_354 = arith.constant dense<0.000000e+00> : vector<16x8xf32>
    %567 = tpu.matmul %365, %566, %cst_354 {dimension_numbers = #tpu.dot_dimension_numbers<[1], [0], [0], [1], [0, 0, 1, 1], [], []>} : vector<16x32xf32>, vector<32x8xf32>, vector<16x8xf32> -> vector<16x8xf32>
    %c1_355 = arith.constant 1 : index
    %c3_356 = arith.constant 3 : index
    %c0_357 = arith.constant 0 : index
    %c0_358 = arith.constant 0 : index
    %568 = vector.load %arg5[%c1_355, %c3_356, %c0_357, %c0_358] : memref<2x4x1x8xf32, #tpu.memory_space<vmem>>, vector<1x1x1x8xf32>
    %569 = vector.shape_cast %568 : vector<1x1x1x8xf32> to vector<1x8xf32>
    %570 = vector.broadcast %569 : vector<1x8xf32> to vector<16x8xf32>
    %571 = arith.addf %567, %570 : vector<16x8xf32>
    %c1_359 = arith.constant 1 : index
    %c3_360 = arith.constant 3 : index
    %c0_361 = arith.constant 0 : index
    %c0_362 = arith.constant 0 : index
    %572 = vector.load %arg6[%c1_359, %c3_360, %c0_361, %c0_362] : memref<2x4x32x8xf32, #tpu.memory_space<vmem>>, vector<1x1x32x8xf32>
    %573 = vector.shape_cast %572 : vector<1x1x32x8xf32> to vector<32x8xf32>
    %cst_363 = arith.constant dense<0.000000e+00> : vector<16x8xf32>
    %574 = tpu.matmul %365, %573, %cst_363 {dimension_numbers = #tpu.dot_dimension_numbers<[1], [0], [0], [1], [0, 0, 1, 1], [], []>} : vector<16x32xf32>, vector<32x8xf32>, vector<16x8xf32> -> vector<16x8xf32>
    %c1_364 = arith.constant 1 : index
    %c3_365 = arith.constant 3 : index
    %c0_366 = arith.constant 0 : index
    %c0_367 = arith.constant 0 : index
    %575 = vector.load %arg7[%c1_364, %c3_365, %c0_366, %c0_367] : memref<2x4x1x8xf32, #tpu.memory_space<vmem>>, vector<1x1x1x8xf32>
    %576 = vector.shape_cast %575 : vector<1x1x1x8xf32> to vector<1x8xf32>
    %577 = vector.broadcast %576 : vector<1x8xf32> to vector<16x8xf32>
    %578 = arith.addf %574, %577 : vector<16x8xf32>
    %c1_368 = arith.constant 1 : index
    %c3_369 = arith.constant 3 : index
    %c0_370 = arith.constant 0 : index
    %c0_371 = arith.constant 0 : index
    %579 = vector.load %arg8[%c1_368, %c3_369, %c0_370, %c0_371] : memref<2x4x32x8xf32, #tpu.memory_space<vmem>>, vector<1x1x32x8xf32>
    %580 = vector.shape_cast %579 : vector<1x1x32x8xf32> to vector<32x8xf32>
    %cst_372 = arith.constant dense<0.000000e+00> : vector<16x8xf32>
    %581 = tpu.matmul %365, %580, %cst_372 {dimension_numbers = #tpu.dot_dimension_numbers<[1], [0], [0], [1], [0, 0, 1, 1], [], []>} : vector<16x32xf32>, vector<32x8xf32>, vector<16x8xf32> -> vector<16x8xf32>
    %c1_373 = arith.constant 1 : index
    %c3_374 = arith.constant 3 : index
    %c0_375 = arith.constant 0 : index
    %c0_376 = arith.constant 0 : index
    %582 = vector.load %arg9[%c1_373, %c3_374, %c0_375, %c0_376] : memref<2x4x1x8xf32, #tpu.memory_space<vmem>>, vector<1x1x1x8xf32>
    %583 = vector.shape_cast %582 : vector<1x1x1x8xf32> to vector<1x8xf32>
    %584 = vector.broadcast %583 : vector<1x8xf32> to vector<16x8xf32>
    %585 = arith.addf %581, %584 : vector<16x8xf32>
    %586 = vector.extract_strided_slice %571 {offsets = [0, 0], sizes = [8, 8], strides = [1, 1]} : vector<16x8xf32> to vector<8x8xf32>
    %587 = vector.extract_strided_slice %578 {offsets = [0, 0], sizes = [8, 8], strides = [1, 1]} : vector<16x8xf32> to vector<8x8xf32>
    %cst_377 = arith.constant dense<0.000000e+00> : vector<8x8xf32>
    %588 = tpu.matmul %586, %587, %cst_377 {dimension_numbers = #tpu.dot_dimension_numbers<[1], [1], [0], [0], [0, 0, 1, 0], [], []>} : vector<8x8xf32>, vector<8x8xf32>, vector<8x8xf32> -> vector<8x8xf32>
    %cst_378 = arith.constant 0.353553385 : f32
    %589 = vector.broadcast %cst_378 : f32 to vector<8x8xf32>
    %590 = arith.mulf %588, %589 : vector<8x8xf32>
    %591 = vector.extract_strided_slice %6 {offsets = [0, 0, 0], sizes = [1, 8, 8], strides = [1, 1, 1]} : vector<2x8x8xf32> to vector<1x8x8xf32>
    %592 = vector.shape_cast %591 : vector<1x8x8xf32> to vector<8x8xf32>
    %593 = arith.addf %590, %592 : vector<8x8xf32>
    %cst_379 = arith.constant dense<0xFF800000> : vector<8xf32>
    %594 = vector.multi_reduction <maximumf>, %593, %cst_379 [1] : vector<8x8xf32> to vector<8xf32>
    %595 = vector.shape_cast %594 : vector<8xf32> to vector<8x1xf32>
    %596 = vector.broadcast %595 : vector<8x1xf32> to vector<8x8xf32>
    %597 = arith.subf %593, %596 : vector<8x8xf32>
    %598 = math.exp %597 : vector<8x8xf32>
    %cst_380 = arith.constant dense<0.000000e+00> : vector<8xf32>
    %599 = vector.multi_reduction <add>, %598, %cst_380 [1] : vector<8x8xf32> to vector<8xf32>
    %600 = vector.shape_cast %599 : vector<8xf32> to vector<8x1xf32>
    %601 = tpu.reciprocal %600 {approx = true} : vector<8x1xf32> -> vector<8x1xf32>
    %602 = vector.broadcast %601 : vector<8x1xf32> to vector<8x8xf32>
    %603 = arith.mulf %598, %602 : vector<8x8xf32>
    %604 = vector.extract_strided_slice %585 {offsets = [0, 0], sizes = [8, 8], strides = [1, 1]} : vector<16x8xf32> to vector<8x8xf32>
    %cst_381 = arith.constant dense<0.000000e+00> : vector<8x8xf32>
    %605 = tpu.matmul %603, %604, %cst_381 {dimension_numbers = #tpu.dot_dimension_numbers<[1], [0], [0], [1], [0, 0, 1, 1], [], []>} : vector<8x8xf32>, vector<8x8xf32>, vector<8x8xf32> -> vector<8x8xf32>
    %606 = vector.extract_strided_slice %571 {offsets = [8, 0], sizes = [8, 8], strides = [1, 1]} : vector<16x8xf32> to vector<8x8xf32>
    %607 = vector.extract_strided_slice %578 {offsets = [8, 0], sizes = [8, 8], strides = [1, 1]} : vector<16x8xf32> to vector<8x8xf32>
    %cst_382 = arith.constant dense<0.000000e+00> : vector<8x8xf32>
    %608 = tpu.matmul %606, %607, %cst_382 {dimension_numbers = #tpu.dot_dimension_numbers<[1], [1], [0], [0], [0, 0, 1, 0], [], []>} : vector<8x8xf32>, vector<8x8xf32>, vector<8x8xf32> -> vector<8x8xf32>
    %cst_383 = arith.constant 0.353553385 : f32
    %609 = vector.broadcast %cst_383 : f32 to vector<8x8xf32>
    %610 = arith.mulf %608, %609 : vector<8x8xf32>
    %611 = vector.extract_strided_slice %6 {offsets = [1, 0, 0], sizes = [1, 8, 8], strides = [1, 1, 1]} : vector<2x8x8xf32> to vector<1x8x8xf32>
    %612 = vector.shape_cast %611 : vector<1x8x8xf32> to vector<8x8xf32>
    %613 = arith.addf %610, %612 : vector<8x8xf32>
    %cst_384 = arith.constant dense<0xFF800000> : vector<8xf32>
    %614 = vector.multi_reduction <maximumf>, %613, %cst_384 [1] : vector<8x8xf32> to vector<8xf32>
    %615 = vector.shape_cast %614 : vector<8xf32> to vector<8x1xf32>
    %616 = vector.broadcast %615 : vector<8x1xf32> to vector<8x8xf32>
    %617 = arith.subf %613, %616 : vector<8x8xf32>
    %618 = math.exp %617 : vector<8x8xf32>
    %cst_385 = arith.constant dense<0.000000e+00> : vector<8xf32>
    %619 = vector.multi_reduction <add>, %618, %cst_385 [1] : vector<8x8xf32> to vector<8xf32>
    %620 = vector.shape_cast %619 : vector<8xf32> to vector<8x1xf32>
    %621 = tpu.reciprocal %620 {approx = true} : vector<8x1xf32> -> vector<8x1xf32>
    %622 = vector.broadcast %621 : vector<8x1xf32> to vector<8x8xf32>
    %623 = arith.mulf %618, %622 : vector<8x8xf32>
    %624 = vector.extract_strided_slice %585 {offsets = [8, 0], sizes = [8, 8], strides = [1, 1]} : vector<16x8xf32> to vector<8x8xf32>
    %cst_386 = arith.constant dense<0.000000e+00> : vector<8x8xf32>
    %625 = tpu.matmul %623, %624, %cst_386 {dimension_numbers = #tpu.dot_dimension_numbers<[1], [0], [0], [1], [0, 0, 1, 1], [], []>} : vector<8x8xf32>, vector<8x8xf32>, vector<8x8xf32> -> vector<8x8xf32>
    %626 = tpu.concatenate %605, %625 in 0 : vector<8x8xf32>, vector<8x8xf32> -> vector<16x8xf32>
    %c1_387 = arith.constant 1 : index
    %c3_388 = arith.constant 3 : index
    %c0_389 = arith.constant 0 : index
    %c0_390 = arith.constant 0 : index
    %627 = vector.load %arg10[%c1_387, %c3_388, %c0_389, %c0_390] : memref<2x4x8x32xf32, #tpu.memory_space<vmem>>, vector<1x1x8x32xf32>
    %628 = vector.shape_cast %627 : vector<1x1x8x32xf32> to vector<8x32xf32>
    %cst_391 = arith.constant dense<0.000000e+00> : vector<16x32xf32>
    %629 = tpu.matmul %626, %628, %cst_391 {dimension_numbers = #tpu.dot_dimension_numbers<[1], [0], [0], [1], [0, 0, 1, 1], [], []>} : vector<16x8xf32>, vector<8x32xf32>, vector<16x32xf32> -> vector<16x32xf32>
    %630 = arith.addf %564, %629 : vector<16x32xf32>
    %631 = arith.addf %341, %630 : vector<16x32xf32>
    %c1_392 = arith.constant 1 : index
    %c0_393 = arith.constant 0 : index
    %c0_394 = arith.constant 0 : index
    %632 = vector.load %arg11[%c1_392, %c0_393, %c0_394] : memref<2x1x32xf32, #tpu.memory_space<vmem>>, vector<1x1x32xf32>
    %633 = vector.shape_cast %632 : vector<1x1x32xf32> to vector<1x32xf32>
    %634 = vector.broadcast %633 : vector<1x32xf32> to vector<16x32xf32>
    %635 = arith.addf %631, %634 : vector<16x32xf32>
    %c1_395 = arith.constant 1 : index
    %c0_396 = arith.constant 0 : index
    %c0_397 = arith.constant 0 : index
    %636 = vector.load %arg12[%c1_395, %c0_396, %c0_397] : memref<2x1x32xf32, #tpu.memory_space<vmem>>, vector<1x1x32xf32>
    %637 = vector.shape_cast %636 : vector<1x1x32xf32> to vector<1x32xf32>
    %c1_398 = arith.constant 1 : index
    %c0_399 = arith.constant 0 : index
    %c0_400 = arith.constant 0 : index
    %638 = vector.load %arg13[%c1_398, %c0_399, %c0_400] : memref<2x1x32xf32, #tpu.memory_space<vmem>>, vector<1x1x32xf32>
    %639 = vector.shape_cast %638 : vector<1x1x32xf32> to vector<1x32xf32>
    %cst_401 = arith.constant dense<0.000000e+00> : vector<16xf32>
    %640 = vector.multi_reduction <add>, %635, %cst_401 [1] : vector<16x32xf32> to vector<16xf32>
    %641 = vector.shape_cast %640 : vector<16xf32> to vector<16x1xf32>
    %cst_402 = arith.constant 3.200000e+01 : f32
    %642 = vector.broadcast %cst_402 : f32 to vector<16x1xf32>
    %643 = arith.divf %641, %642 : vector<16x1xf32>
    %644 = vector.broadcast %643 : vector<16x1xf32> to vector<16x32xf32>
    %645 = arith.subf %635, %644 : vector<16x32xf32>
    %646 = arith.mulf %645, %645 : vector<16x32xf32>
    %cst_403 = arith.constant dense<0.000000e+00> : vector<16xf32>
    %647 = vector.multi_reduction <add>, %646, %cst_403 [1] : vector<16x32xf32> to vector<16xf32>
    %648 = vector.shape_cast %647 : vector<16xf32> to vector<16x1xf32>
    %cst_404 = arith.constant 3.100000e+01 : f32
    %649 = vector.broadcast %cst_404 : f32 to vector<16x1xf32>
    %650 = arith.divf %648, %649 : vector<16x1xf32>
    %651 = vector.broadcast %637 : vector<1x32xf32> to vector<16x32xf32>
    %652 = arith.mulf %651, %645 : vector<16x32xf32>
    %653 = math.sqrt %650 : vector<16x1xf32>
    %cst_405 = arith.constant 9.99999997E-7 : f32
    %654 = vector.broadcast %cst_405 : f32 to vector<16x1xf32>
    %655 = arith.addf %653, %654 : vector<16x1xf32>
    %656 = vector.broadcast %655 : vector<16x1xf32> to vector<16x32xf32>
    %657 = arith.divf %652, %656 : vector<16x32xf32>
    %658 = vector.broadcast %639 : vector<1x32xf32> to vector<16x32xf32>
    %659 = arith.addf %657, %658 : vector<16x32xf32>
    %c1_406 = arith.constant 1 : index
    %c0_407 = arith.constant 0 : index
    %c0_408 = arith.constant 0 : index
    %660 = vector.load %arg14[%c1_406, %c0_407, %c0_408] : memref<2x32x64xf32, #tpu.memory_space<vmem>>, vector<1x32x64xf32>
    %661 = vector.shape_cast %660 : vector<1x32x64xf32> to vector<32x64xf32>
    %cst_409 = arith.constant dense<0.000000e+00> : vector<16x64xf32>
    %662 = tpu.matmul %659, %661, %cst_409 {dimension_numbers = #tpu.dot_dimension_numbers<[1], [0], [0], [1], [0, 0, 1, 1], [], []>} : vector<16x32xf32>, vector<32x64xf32>, vector<16x64xf32> -> vector<16x64xf32>
    %c1_410 = arith.constant 1 : index
    %c0_411 = arith.constant 0 : index
    %c0_412 = arith.constant 0 : index
    %663 = vector.load %arg15[%c1_410, %c0_411, %c0_412] : memref<2x1x64xf32, #tpu.memory_space<vmem>>, vector<1x1x64xf32>
    %664 = vector.shape_cast %663 : vector<1x1x64xf32> to vector<1x64xf32>
    %665 = vector.broadcast %664 : vector<1x64xf32> to vector<16x64xf32>
    %666 = arith.addf %662, %665 : vector<16x64xf32>
    %cst_413 = arith.constant 0.000000e+00 : f32
    %667 = vector.broadcast %cst_413 : f32 to vector<16x64xf32>
    %668 = arith.maximumf %666, %667 : vector<16x64xf32>
    %c1_414 = arith.constant 1 : index
    %c0_415 = arith.constant 0 : index
    %c0_416 = arith.constant 0 : index
    %669 = vector.load %arg16[%c1_414, %c0_415, %c0_416] : memref<2x64x32xf32, #tpu.memory_space<vmem>>, vector<1x64x32xf32>
    %670 = vector.shape_cast %669 : vector<1x64x32xf32> to vector<64x32xf32>
    %cst_417 = arith.constant dense<0.000000e+00> : vector<16x32xf32>
    %671 = tpu.matmul %668, %670, %cst_417 {dimension_numbers = #tpu.dot_dimension_numbers<[1], [0], [0], [1], [0, 0, 1, 1], [], []>} : vector<16x64xf32>, vector<64x32xf32>, vector<16x32xf32> -> vector<16x32xf32>
    %672 = arith.addf %635, %671 : vector<16x32xf32>
    %c1_418 = arith.constant 1 : index
    %c0_419 = arith.constant 0 : index
    %c0_420 = arith.constant 0 : index
    %673 = vector.load %arg17[%c1_418, %c0_419, %c0_420] : memref<2x1x32xf32, #tpu.memory_space<vmem>>, vector<1x1x32xf32>
    %674 = vector.shape_cast %673 : vector<1x1x32xf32> to vector<1x32xf32>
    %675 = vector.broadcast %674 : vector<1x32xf32> to vector<16x32xf32>
    %676 = arith.addf %672, %675 : vector<16x32xf32>
    %c0_421 = arith.constant 0 : index
    %c0_422 = arith.constant 0 : index
    %677 = vector.load %arg18[%c0_421, %c0_422] : memref<1x32xf32, #tpu.memory_space<vmem>>, vector<1x32xf32>
    %c0_423 = arith.constant 0 : index
    %c0_424 = arith.constant 0 : index
    %678 = vector.load %arg19[%c0_423, %c0_424] : memref<1x32xf32, #tpu.memory_space<vmem>>, vector<1x32xf32>
    %cst_425 = arith.constant dense<0.000000e+00> : vector<16xf32>
    %679 = vector.multi_reduction <add>, %676, %cst_425 [1] : vector<16x32xf32> to vector<16xf32>
    %680 = vector.shape_cast %679 : vector<16xf32> to vector<16x1xf32>
    %cst_426 = arith.constant 3.200000e+01 : f32
    %681 = vector.broadcast %cst_426 : f32 to vector<16x1xf32>
    %682 = arith.divf %680, %681 : vector<16x1xf32>
    %683 = vector.broadcast %682 : vector<16x1xf32> to vector<16x32xf32>
    %684 = arith.subf %676, %683 : vector<16x32xf32>
    %685 = arith.mulf %684, %684 : vector<16x32xf32>
    %cst_427 = arith.constant dense<0.000000e+00> : vector<16xf32>
    %686 = vector.multi_reduction <add>, %685, %cst_427 [1] : vector<16x32xf32> to vector<16xf32>
    %687 = vector.shape_cast %686 : vector<16xf32> to vector<16x1xf32>
    %cst_428 = arith.constant 3.100000e+01 : f32
    %688 = vector.broadcast %cst_428 : f32 to vector<16x1xf32>
    %689 = arith.divf %687, %688 : vector<16x1xf32>
    %690 = vector.broadcast %677 : vector<1x32xf32> to vector<16x32xf32>
    %691 = arith.mulf %690, %684 : vector<16x32xf32>
    %692 = math.sqrt %689 : vector<16x1xf32>
    %cst_429 = arith.constant 9.99999997E-7 : f32
    %693 = vector.broadcast %cst_429 : f32 to vector<16x1xf32>
    %694 = arith.addf %692, %693 : vector<16x1xf32>
    %695 = vector.broadcast %694 : vector<16x1xf32> to vector<16x32xf32>
    %696 = arith.divf %691, %695 : vector<16x32xf32>
    %697 = vector.broadcast %678 : vector<1x32xf32> to vector<16x32xf32>
    %698 = arith.addf %696, %697 : vector<16x32xf32>
    %c0_430 = arith.constant 0 : index
    %c0_431 = arith.constant 0 : index
    %699 = vector.load %arg20[%c0_430, %c0_431] : memref<16x32xf32, #tpu.memory_space<vmem>>, vector<16x32xf32>
    tpu.vector_store %arg20[%c0_430, %c0_431], %698 {strides = array<i32>} : memref<16x32xf32, #tpu.memory_space<vmem>>, vector<16x32xf32>,
    return
  }
}

</mosaic_0001>

<llo_original>
// kernel: encoder_forward.1
$region0: #{encoder_forward.1}
  #allocation0 [shape = 'u32[]', space=smem, size = 0x4, offset = 0x4, fixed_abs, tag = 'smem constant byte address 0x4 - core index']
  #allocation1 [shape = 'u32[144,128]{1,0:T(1,128)}', space=vmem, size = 0x12000, scoped, tag = 'internal scratch']
  %s0 = inlined_call_operand.vmem [shape: f32[16,32], index: 0, kind: input, shape index: {}]
  %s1 = inlined_call_operand.vmem [shape: f32[2,8,8], index: 1, kind: input, shape index: {}]
  %s2 = inlined_call_operand.vmem [shape: f32[2,1,32], index: 2, kind: input, shape index: {}]
  %s3 = inlined_call_operand.vmem [shape: f32[2,1,32], index: 3, kind: input, shape index: {}]
  %s4 = inlined_call_operand.vmem [shape: f32[2,4,32,8], index: 4, kind: input, shape index: {}]
  %s5 = inlined_call_operand.vmem [shape: f32[2,4,1,8], index: 5, kind: input, shape index: {}]
  %s6 = inlined_call_operand.vmem [shape: f32[2,4,32,8], index: 6, kind: input, shape index: {}]
  %s7 = inlined_call_operand.vmem [shape: f32[2,4,1,8], index: 7, kind: input, shape index: {}]
  %s8 = inlined_call_operand.vmem [shape: f32[2,4,32,8], index: 8, kind: input, shape index: {}]
  %s9 = inlined_call_operand.vmem [shape: f32[2,4,1,8], index: 9, kind: input, shape index: {}]
  %s10 = inlined_call_operand.vmem [shape: f32[2,4,8,32], index: 10, kind: input, shape index: {}]
  %s11 = inlined_call_operand.vmem [shape: f32[2,1,32], index: 11, kind: input, shape index: {}]
  %s12 = inlined_call_operand.vmem [shape: f32[2,1,32], index: 12, kind: input, shape index: {}]
  %s13 = inlined_call_operand.vmem [shape: f32[2,1,32], index: 13, kind: input, shape index: {}]
  %s14 = inlined_call_operand.vmem [shape: f32[2,32,64], index: 14, kind: input, shape index: {}]
  %s15 = inlined_call_operand.vmem [shape: f32[2,1,64], index: 15, kind: input, shape index: {}]
  %s16 = inlined_call_operand.vmem [shape: f32[2,64,32], index: 16, kind: input, shape index: {}]
  %s17 = inlined_call_operand.vmem [shape: f32[2,1,32], index: 17, kind: input, shape index: {}]
  %s18 = inlined_call_operand.vmem [shape: f32[1,32], index: 18, kind: input, shape index: {}]
  %s19 = inlined_call_operand.vmem [shape: f32[1,32], index: 19, kind: input, shape index: {}]
  %s20 = inlined_call_operand.hbm [shape: f32[16,32], index: 20, kind: output, shape index: {}]
  %s21 = sld [smem:[#allocation0]]
  $region90: #{encoder_forward.1} parent=0
    _
  %s23 = ssub.s32 1, %s21
  %s24 = scalar_select 0, %s23, %s21
  $region1: #{encoder_forward.1} parent=0
    #allocation2 [shape = 'u8[8192]{0}', space=vmem, size = 0x2000, scoped, tag = 'output window, operand 0, single buffered']
    #allocation3 [shape = 's32[1]{0}', space=sflag, size = 0x4, scoped, tag = 'scoped memory for encoder_forward.1']
    %25 = vsyncpa [#allocation3], 0
    // Predicated region
    $region2: #{encoder_forward.1} parent=1 // pred_check
      _
    $region3: #{encoder_forward.1} parent=1 // pred_check_branch
      %27 = sbr.rel (0) target = $region5
    $region4: #{encoder_forward.1} parent=1 // pred_region
      _
    $region5: #{encoder_forward.1} parent=1 // pred_fallthru
      _
    // Predicated region
    $region6: #{encoder_forward.1} parent=1 // pred_check
      _
    $region7: #{encoder_forward.1} parent=1 // pred_check_branch
      %29 = sbr.rel (0) target = $region9
    $region8: #{encoder_forward.1} parent=1 // pred_region
      _
    $region9: #{encoder_forward.1} parent=1 // pred_fallthru
      _
    // Predicated region
    $region10: #{encoder_forward.1} parent=1 // pred_check
      _
    $region11: #{encoder_forward.1} parent=1 // pred_check_branch
      %31 = sbr.rel (0) target = $region13
    $region12: #{encoder_forward.1} parent=1 // pred_region
      _
    $region13: #{encoder_forward.1} parent=1 // pred_fallthru
      _
    // Predicated region
    $region14: #{encoder_forward.1} parent=1 // pred_check
      _
    $region15: #{encoder_forward.1} parent=1 // pred_check_branch
      %33 = sbr.rel (0) target = $region17
    $region16: #{encoder_forward.1} parent=1 // pred_region
      _
    $region17: #{encoder_forward.1} parent=1 // pred_fallthru
      _
    // Predicated region
    $region18: #{encoder_forward.1} parent=1 // pred_check
      _
    $region19: #{encoder_forward.1} parent=1 // pred_check_branch
      %35 = sbr.rel (0) target = $region21
    $region20: #{encoder_forward.1} parent=1 // pred_region
      _
    $region21: #{encoder_forward.1} parent=1 // pred_fallthru
      _
    // Predicated region
    $region22: #{encoder_forward.1} parent=1 // pred_check
      _
    $region23: #{encoder_forward.1} parent=1 // pred_check_branch
      %37 = sbr.rel (0) target = $region25
    $region24: #{encoder_forward.1} parent=1 // pred_region
      _
    $region25: #{encoder_forward.1} parent=1 // pred_fallthru
      _
    // Predicated region
    $region26: #{encoder_forward.1} parent=1 // pred_check
      _
    $region27: #{encoder_forward.1} parent=1 // pred_check_branch
      %39 = sbr.rel (0) target = $region29
    $region28: #{encoder_forward.1} parent=1 // pred_region
      _
    $region29: #{encoder_forward.1} parent=1 // pred_fallthru
      _
    // Predicated region
    $region30: #{encoder_forward.1} parent=1 // pred_check
      _
    $region31: #{encoder_forward.1} parent=1 // pred_check_branch
      %41 = sbr.rel (0) target = $region33
    $region32: #{encoder_forward.1} parent=1 // pred_region
      _
    $region33: #{encoder_forward.1} parent=1 // pred_fallthru
      _
    // Predicated region
    $region34: #{encoder_forward.1} parent=1 // pred_check
      _
    $region35: #{encoder_forward.1} parent=1 // pred_check_branch
      %43 = sbr.rel (0) target = $region37
    $region36: #{encoder_forward.1} parent=1 // pred_region
      _
    $region37: #{encoder_forward.1} parent=1 // pred_fallthru
      _
    // Predicated region
    $region38: #{encoder_forward.1} parent=1 // pred_check
      _
    $region39: #{encoder_forward.1} parent=1 // pred_check_branch
      %45 = sbr.rel (0) target = $region41
    $region40: #{encoder_forward.1} parent=1 // pred_region
      _
    $region41: #{encoder_forward.1} parent=1 // pred_fallthru
      _
    // Predicated region
    $region42: #{encoder_forward.1} parent=1 // pred_check
      _
    $region43: #{encoder_forward.1} parent=1 // pred_check_branch
      %47 = sbr.rel (0) target = $region45
    $region44: #{encoder_forward.1} parent=1 // pred_region
      _
    $region45: #{encoder_forward.1} parent=1 // pred_fallthru
      _
    // Predicated region
    $region46: #{encoder_forward.1} parent=1 // pred_check
      _
    $region47: #{encoder_forward.1} parent=1 // pred_check_branch
      %49 = sbr.rel (0) target = $region49
    $region48: #{encoder_forward.1} parent=1 // pred_region
      _
    $region49: #{encoder_forward.1} parent=1 // pred_fallthru
      _
    // Predicated region
    $region50: #{encoder_forward.1} parent=1 // pred_check
      _
    $region51: #{encoder_forward.1} parent=1 // pred_check_branch
      %51 = sbr.rel (0) target = $region53
    $region52: #{encoder_forward.1} parent=1 // pred_region
      _
    $region53: #{encoder_forward.1} parent=1 // pred_fallthru
      _
    // Predicated region
    $region54: #{encoder_forward.1} parent=1 // pred_check
      _
    $region55: #{encoder_forward.1} parent=1 // pred_check_branch
      %53 = sbr.rel (0) target = $region57
    $region56: #{encoder_forward.1} parent=1 // pred_region
      _
    $region57: #{encoder_forward.1} parent=1 // pred_fallthru
      _
    // Predicated region
    $region58: #{encoder_forward.1} parent=1 // pred_check
      _
    $region59: #{encoder_forward.1} parent=1 // pred_check_branch
      %55 = sbr.rel (0) target = $region61
    $region60: #{encoder_forward.1} parent=1 // pred_region
      _
    $region61: #{encoder_forward.1} parent=1 // pred_fallthru
      _
    // Predicated region
    $region62: #{encoder_forward.1} parent=1 // pred_check
      _
    $region63: #{encoder_forward.1} parent=1 // pred_check_branch
      %57 = sbr.rel (0) target = $region65
    $region64: #{encoder_forward.1} parent=1 // pred_region
      _
    $region65: #{encoder_forward.1} parent=1 // pred_fallthru
      _
    // Predicated region
    $region66: #{encoder_forward.1} parent=1 // pred_check
      _
    $region67: #{encoder_forward.1} parent=1 // pred_check_branch
      %59 = sbr.rel (0) target = $region69
    $region68: #{encoder_forward.1} parent=1 // pred_region
      _
    $region69: #{encoder_forward.1} parent=1 // pred_fallthru
      _
    // Predicated region
    $region70: #{encoder_forward.1} parent=1 // pred_check
      _
    $region71: #{encoder_forward.1} parent=1 // pred_check_branch
      %61 = sbr.rel (0) target = $region73
    $region72: #{encoder_forward.1} parent=1 // pred_region
      _
    $region73: #{encoder_forward.1} parent=1 // pred_fallthru
      _
    // Predicated region
    $region74: #{encoder_forward.1} parent=1 // pred_check
      _
    $region75: #{encoder_forward.1} parent=1 // pred_check_branch
      %63 = sbr.rel (0) target = $region77
    $region76: #{encoder_forward.1} parent=1 // pred_region
      _
    $region77: #{encoder_forward.1} parent=1 // pred_fallthru
      _
    // Predicated region
    $region78: #{encoder_forward.1} parent=1 // pred_check
      _
    $region79: #{encoder_forward.1} parent=1 // pred_check_branch
      %65 = sbr.rel (0) target = $region81
    $region80: #{encoder_forward.1} parent=1 // pred_region
      _
    $region81: #{encoder_forward.1} parent=1 // pred_fallthru
      _
    %v66 = vld [vmem:[%s0] sm:$0xff]
    %v67 = vld [vmem:[%s0 + $0x8] sm:$0xff]
    %v68 = vld [vmem:[%s1] sm:$0xff]
    %v69 = vld [vmem:[%s1 + $0x8] sm:$0xff]
    %vm70 = vcmp.eq.f32.partialorder %v68, 0.0
    %vm71 = vcmp.eq.f32.partialorder %v69, 0.0
    %v72 = vsel %vm70, -1e+09, 0.0
    %v73 = vsel %vm71, -1e+09, 0.0
    %v74 = vld [vmem:[%s2] sm:$0x1]
    %v75 = vld [vmem:[%s3] sm:$0x1]
    %vm76 = vcmask 261120
    %v77 = vsel %vm76, %v66, 0.0
    %78 = vadd.xlane.f32.xlu0 %v77
    %v79 = vpop.xlane.xlu0 %78
    %v80 = vsel %vm76, %v67, 0.0
    %81 = vadd.xlane.f32.xlu0 %v80
    %v82 = vpop.xlane.xlu0 %81
    %v83 = vrcp.pop 32.0
    %v84 = vmul.f32 %v79, %v83
    %v85 = vmul.f32 %v82, %v83
    %v86 = vsub.f32 %v66, %v84
    %v87 = vsub.f32 %v67, %v85
    %v88 = vmul.f32 %v86, %v86
    %v89 = vmul.f32 %v87, %v87
    %v90 = vsel %vm76, %v88, 0.0
    %91 = vadd.xlane.f32.xlu0 %v90
    %v92 = vpop.xlane.xlu0 %91
    %v93 = vsel %vm76, %v89, 0.0
    %94 = vadd.xlane.f32.xlu0 %v93
    %v95 = vpop.xlane.xlu0 %94
    %v96 = vrcp.pop 31.0
    %v97 = vmul.f32 %v92, %v96
    %v98 = vmul.f32 %v95, %v96
    %v100 = vlaneseq
    %v101 = vshrl.u32 %v100, 7
    %v102 = vsub.s32 0, %v101
    %v103 = vrot.slane %v74, %v102
    %v105 = vmul.f32 %v103, %v86
    %v106 = vmul.f32 %v103, %v87
    %v107 = vrsqrt.pop %v97
    %v108 = vmul.f32 %v97, %v107
    %vm109 = vcmp.eq.f32.partialorder %v97, inf
    %v110 = vsel %vm109, %v97, %v108
    %vm111 = vcmp.eq.f32.partialorder %v97, 0.0
    %v112 = vand.u32 %v97, 2147483648
    %v113 = vsel %vm111, %v112, %v110
    %v114 = vrsqrt.pop %v98
    %v115 = vmul.f32 %v98, %v114
    %vm116 = vcmp.eq.f32.partialorder %v98, inf
    %v117 = vsel %vm116, %v98, %v115
    %vm118 = vcmp.eq.f32.partialorder %v98, 0.0
    %v119 = vand.u32 %v98, 2147483648
    %v120 = vsel %vm118, %v119, %v117
    %v121 = vadd.f32 %v113, 1e-06
    %v122 = vadd.f32 %v120, 1e-06
    %v123 = vrcp.pop %v121
    %v124 = vmul.f32 %v105, %v123
    %v125 = vrcp.pop %v122
    %v126 = vmul.f32 %v106, %v125
    %v128 = vlaneseq
    %v129 = vshrl.u32 %v128, 7
    %v130 = vsub.s32 0, %v129
    %v131 = vrot.slane %v75, %v130
    %v133 = vadd.f32 %v124, %v131
    %v134 = vadd.f32 %v126, %v131
    %v135 = vld [vmem:[%s4] sm:$0xff]
    %v136 = vld [vmem:[%s4 + $0x8] sm:$0xff]
    %v137 = vld [vmem:[%s4 + $0x10] sm:$0xff]
    %v138 = vld [vmem:[%s4 + $0x18] sm:$0xff]
    %v139 = vld [vmem:[%s5] sm:$0x1]
    %v141 = vlaneseq
    %v142 = vshrl.u32 %v141, 7
    %v143 = vsub.s32 0, %v142
    %v144 = vrot.slane %v139, %v143
    %v147 = vsel %vm76, %v133, 0
    %v150 = vsel %vm76, %v134, 0
    %152 = vmatprep.subr.mxu0 0.0
    %153 = vmatpush1.msra.mxu0 %v135
    %154 = vmatprep.subr.mxu0 0.0
    %155 = vmatpush1.msra.mxu0 %v136
    %156 = vmatprep.subr.mxu0 0.0
    %157 = vmatpush1.msra.mxu0 %v137
    %158 = vmatprep.subr.mxu0 0.0
    %159 = vmatpush1.msra.mxu0 %v138
    %160 = vmatprep.subr.mxu0 0.0
    %161 = vmatpush1.msra.mxu0 0.0
    %162 = vmatprep.subr.mxu0 0.0
    %163 = vmatpush1.msra.mxu0 0.0
    %164 = vmatprep.subr.mxu0 0.0
    %165 = vmatpush1.msra.mxu0 0.0
    %166 = vmatprep.subr.mxu0 0.0
    %167 = vmatpush1.msra.mxu0 0.0
    %168 = vmatprep.subr.mxu0 0.0
    %169 = vmatpush1.msra.mxu0 0.0
    %170 = vmatprep.subr.mxu0 0.0
    %171 = vmatpush1.msra.mxu0 0.0
    %172 = vmatprep.subr.mxu0 0.0
    %173 = vmatpush1.msra.mxu0 0.0
    %174 = vmatprep.subr.mxu0 0.0
    %175 = vmatpush1.msra.mxu0 0.0
    %176 = vmatprep.subr.mxu0 0.0
    %177 = vmatpush1.msra.mxu0 0.0
    %178 = vmatprep.subr.mxu0 0.0
    %179 = vmatpush1.msra.mxu0 0.0
    %180 = vmatprep.subr.mxu0 0.0
    %181 = vmatpush1.msra.mxu0 0.0
    %182 = vmatprep.subr.mxu0 0.0
    %183 = vmatpush1.msra.mxu0 0.0
    %184 = vmatprep.subr.mxu0 0.0
    %185 = vmatpush1.msra.mxu0 0.0
    %186 = vmatprep.subr.mxu0 0.0
    %187 = vmatpush1.msra.mxu0 0.0
    %188 = vmatprep.subr.mxu0 0.0
    %189 = vmatpush1.msra.mxu0 0.0
    %190 = vmatprep.subr.mxu0 0.0
    %191 = vmatpush1.msra.mxu0 0.0
    %192 = vmatprep.subr.mxu0 0.0
    %193 = vmatpush1.msra.mxu0 0.0
    %194 = vmatprep.subr.mxu0 0.0
    %195 = vmatpush1.msra.mxu0 0.0
    %196 = vmatprep.subr.mxu0 0.0
    %197 = vmatpush1.msra.mxu0 0.0
    %198 = vmatprep.subr.mxu0 0.0
    %199 = vmatpush1.msra.mxu0 0.0
    %200 = vmatprep.subr.mxu0 0.0
    %201 = vmatpush1.msra.mxu0 0.0
    %202 = vmatprep.subr.mxu0 0.0
    %203 = vmatpush1.msra.mxu0 0.0
    %204 = vmatprep.subr.mxu0 0.0
    %205 = vmatpush1.msra.mxu0 0.0
    %206 = vmatprep.subr.mxu0 0.0
    %207 = vmatpush1.msra.mxu0 0.0
    %208 = vmatprep.subr.mxu0 0.0
    %209 = vmatpush1.msra.mxu0 0.0
    %210 = vmatprep.subr.mxu0 0.0
    %211 = vmatpush1.msra.mxu0 0.0
    %212 = vmatprep.subr.mxu0 0.0
    %213 = vmatpush1.msra.mxu0 0.0
    %214 = vmatprep.subr.mxu0 0.0
    %215 = vmatpush1.msra.mxu0 0.0
    %216 = vmatprep.mubr.f32.mxu0 0.0
    %217 = vmatmul.mubr.f32.gmra.mrb[0].mxu0 %v147
    %v218 = vpop.f32.mrb[0].mxu0
    %v219 = vadd.f32 %v144, %v218
    %v220 = vpop.f32.mrb[0].mxu0
    %221 = vmatprep.mubr.f32.mxu0 0.0
    %222 = vmatmul.mubr.f32.gmra.mrb[0].mxu0 %v150
    %v223 = vpop.f32.mrb[0].mxu0
    %v224 = vadd.f32 %v144, %v223
    %v225 = vpop.f32.mrb[0].mxu0
    %226 = vdwg.mxu0
    %v227 = vld [vmem:[%s6] sm:$0xff]
    %v228 = vld [vmem:[%s6 + $0x8] sm:$0xff]
    %v229 = vld [vmem:[%s6 + $0x10] sm:$0xff]
    %v230 = vld [vmem:[%s6 + $0x18] sm:$0xff]
    %v231 = vld [vmem:[%s7] sm:$0x1]
    %v233 = vlaneseq
    %v234 = vshrl.u32 %v233, 7
    %v235 = vsub.s32 0, %v234
    %v236 = vrot.slane %v231, %v235
    %238 = vmatprep.subr.mxu0 0.0
    %239 = vmatpush1.msra.mxu0 %v227
    %240 = vmatprep.subr.mxu0 0.0
    %241 = vmatpush1.msra.mxu0 %v228
    %242 = vmatprep.subr.mxu0 0.0
    %243 = vmatpush1.msra.mxu0 %v229
    %244 = vmatprep.subr.mxu0 0.0
    %245 = vmatpush1.msra.mxu0 %v230
    %246 = vmatprep.subr.mxu0 0.0
    %247 = vmatpush1.msra.mxu0 0.0
    %248 = vmatprep.subr.mxu0 0.0
    %249 = vmatpush1.msra.mxu0 0.0
    %250 = vmatprep.subr.mxu0 0.0
    %251 = vmatpush1.msra.mxu0 0.0
    %252 = vmatprep.subr.mxu0 0.0
    %253 = vmatpush1.msra.mxu0 0.0
    %254 = vmatprep.subr.mxu0 0.0
    %255 = vmatpush1.msra.mxu0 0.0
    %256 = vmatprep.subr.mxu0 0.0
    %257 = vmatpush1.msra.mxu0 0.0
    %258 = vmatprep.subr.mxu0 0.0
    %259 = vmatpush1.msra.mxu0 0.0
    %260 = vmatprep.subr.mxu0 0.0
    %261 = vmatpush1.msra.mxu0 0.0
    %262 = vmatprep.subr.mxu0 0.0
    %263 = vmatpush1.msra.mxu0 0.0
    %264 = vmatprep.subr.mxu0 0.0
    %265 = vmatpush1.msra.mxu0 0.0
    %266 = vmatprep.subr.mxu0 0.0
    %267 = vmatpush1.msra.mxu0 0.0
    %268 = vmatprep.subr.mxu0 0.0
    %269 = vmatpush1.msra.mxu0 0.0
    %270 = vmatprep.subr.mxu0 0.0
    %271 = vmatpush1.msra.mxu0 0.0
    %272 = vmatprep.subr.mxu0 0.0
    %273 = vmatpush1.msra.mxu0 0.0
    %274 = vmatprep.subr.mxu0 0.0
    %275 = vmatpush1.msra.mxu0 0.0
    %276 = vmatprep.subr.mxu0 0.0
    %277 = vmatpush1.msra.mxu0 0.0
    %278 = vmatprep.subr.mxu0 0.0
    %279 = vmatpush1.msra.mxu0 0.0
    %280 = vmatprep.subr.mxu0 0.0
    %281 = vmatpush1.msra.mxu0 0.0
    %282 = vmatprep.subr.mxu0 0.0
    %283 = vmatpush1.msra.mxu0 0.0
    %284 = vmatprep.subr.mxu0 0.0
    %285 = vmatpush1.msra.mxu0 0.0
    %286 = vmatprep.subr.mxu0 0.0
    %287 = vmatpush1.msra.mxu0 0.0
    %288 = vmatprep.subr.mxu0 0.0
    %289 = vmatpush1.msra.mxu0 0.0
    %290 = vmatprep.subr.mxu0 0.0
    %291 = vmatpush1.msra.mxu0 0.0
    %292 = vmatprep.subr.mxu0 0.0
    %293 = vmatpush1.msra.mxu0 0.0
    %294 = vmatprep.subr.mxu0 0.0
    %295 = vmatpush1.msra.mxu0 0.0
    %296 = vmatprep.subr.mxu0 0.0
    %297 = vmatpush1.msra.mxu0 0.0
    %298 = vmatprep.subr.mxu0 0.0
    %299 = vmatpush1.msra.mxu0 0.0
    %300 = vmatprep.subr.mxu0 0.0
    %301 = vmatpush1.msra.mxu0 0.0
    %302 = vmatprep.mubr.f32.mxu0 0.0
    %303 = vmatmul.mubr.f32.gmra.mrb[0].mxu0 %v147
    %v304 = vpop.f32.mrb[0].mxu0
    %v305 = vadd.f32 %v236, %v304
    %v306 = vpop.f32.mrb[0].mxu0
    %307 = vmatprep.mubr.f32.mxu0 0.0
    %308 = vmatmul.mubr.f32.gmra.mrb[0].mxu0 %v150
    %v309 = vpop.f32.mrb[0].mxu0
    %v310 = vadd.f32 %v236, %v309
    %v311 = vpop.f32.mrb[0].mxu0
    %312 = vdwg.mxu0
    %v313 = vld [vmem:[%s8] sm:$0xff]
    %v314 = vld [vmem:[%s8 + $0x8] sm:$0xff]
    %v315 = vld [vmem:[%s8 + $0x10] sm:$0xff]
    %v316 = vld [vmem:[%s8 + $0x18] sm:$0xff]
    %v317 = vld [vmem:[%s9] sm:$0x1]
    %v319 = vlaneseq
    %v320 = vshrl.u32 %v319, 7
    %v321 = vsub.s32 0, %v320
    %v322 = vrot.slane %v317, %v321
    %324 = vmatprep.subr.mxu0 0.0
    %325 = vmatpush1.msra.mxu0 %v313
    %326 = vmatprep.subr.mxu0 0.0
    %327 = vmatpush1.msra.mxu0 %v314
    %328 = vmatprep.subr.mxu0 0.0
    %329 = vmatpush1.msra.mxu0 %v315
    %330 = vmatprep.subr.mxu0 0.0
    %331 = vmatpush1.msra.mxu0 %v316
    %332 = vmatprep.subr.mxu0 0.0
    %333 = vmatpush1.msra.mxu0 0.0
    %334 = vmatprep.subr.mxu0 0.0
    %335 = vmatpush1.msra.mxu0 0.0
    %336 = vmatprep.subr.mxu0 0.0
    %337 = vmatpush1.msra.mxu0 0.0
    %338 = vmatprep.subr.mxu0 0.0
    %339 = vmatpush1.msra.mxu0 0.0
    %340 = vmatprep.subr.mxu0 0.0
    %341 = vmatpush1.msra.mxu0 0.0
    %342 = vmatprep.subr.mxu0 0.0
    %343 = vmatpush1.msra.mxu0 0.0
    %344 = vmatprep.subr.mxu0 0.0
    %345 = vmatpush1.msra.mxu0 0.0
    %346 = vmatprep.subr.mxu0 0.0
    %347 = vmatpush1.msra.mxu0 0.0
    %348 = vmatprep.subr.mxu0 0.0
    %349 = vmatpush1.msra.mxu0 0.0
    %350 = vmatprep.subr.mxu0 0.0
    %351 = vmatpush1.msra.mxu0 0.0
    %352 = vmatprep.subr.mxu0 0.0
    %353 = vmatpush1.msra.mxu0 0.0
    %354 = vmatprep.subr.mxu0 0.0
    %355 = vmatpush1.msra.mxu0 0.0
    %356 = vmatprep.subr.mxu0 0.0
    %357 = vmatpush1.msra.mxu0 0.0
    %358 = vmatprep.subr.mxu0 0.0
    %359 = vmatpush1.msra.mxu0 0.0
    %360 = vmatprep.subr.mxu0 0.0
    %361 = vmatpush1.msra.mxu0 0.0
    %362 = vmatprep.subr.mxu0 0.0
    %363 = vmatpush1.msra.mxu0 0.0
    %364 = vmatprep.subr.mxu0 0.0
    %365 = vmatpush1.msra.mxu0 0.0
    %366 = vmatprep.subr.mxu0 0.0
    %367 = vmatpush1.msra.mxu0 0.0
    %368 = vmatprep.subr.mxu0 0.0
    %369 = vmatpush1.msra.mxu0 0.0
    %370 = vmatprep.subr.mxu0 0.0
    %371 = vmatpush1.msra.mxu0 0.0
    %372 = vmatprep.subr.mxu0 0.0
    %373 = vmatpush1.msra.mxu0 0.0
    %374 = vmatprep.subr.mxu0 0.0
    %375 = vmatpush1.msra.mxu0 0.0
    %376 = vmatprep.subr.mxu0 0.0
    %377 = vmatpush1.msra.mxu0 0.0
    %378 = vmatprep.subr.mxu0 0.0
    %379 = vmatpush1.msra.mxu0 0.0
    %380 = vmatprep.subr.mxu0 0.0
    %381 = vmatpush1.msra.mxu0 0.0
    %382 = vmatprep.subr.mxu0 0.0
    %383 = vmatpush1.msra.mxu0 0.0
    %384 = vmatprep.subr.mxu0 0.0
    %385 = vmatpush1.msra.mxu0 0.0
    %386 = vmatprep.subr.mxu0 0.0
    %387 = vmatpush1.msra.mxu0 0.0
    %388 = vmatprep.mubr.f32.mxu0 0.0
    %389 = vmatmul.mubr.f32.gmra.mrb[0].mxu0 %v147
    %v390 = vpop.f32.mrb[0].mxu0
    %v391 = vadd.f32 %v322, %v390
    %v392 = vpop.f32.mrb[0].mxu0
    %393 = vmatprep.mubr.f32.mxu0 0.0
    %394 = vmatmul.mubr.f32.gmra.mrb[0].mxu0 %v150
    %v395 = vpop.f32.mrb[0].mxu0
    %v396 = vadd.f32 %v322, %v395
    %v397 = vpop.f32.mrb[0].mxu0
    %398 = vdwg.mxu0
    %vm399 = vcmask 64512
    %v401 = vsel %vm399, %v219, 0
    %v404 = vsel %vm399, %v305, 0
    %406 = vmatprep.subr.mxu0 0.0
    %407 = vmatpush1.xpose.msra.mxu0 %v404
    %408 = vmatprep.subr.mxu0 0.0
    %409 = vmatpush1.xpose.msra.mxu0 0.0
    %410 = vmatprep.subr.mxu0 0.0
    %411 = vmatpush1.xpose.msra.mxu0 0.0
    %412 = vmatprep.subr.mxu0 0.0
    %413 = vmatpush1.xpose.msra.mxu0 0.0
    %414 = vmatprep.subr.mxu0 0.0
    %415 = vmatpush1.xpose.msra.mxu0 0.0
    %416 = vmatprep.subr.mxu0 0.0
    %417 = vmatpush1.xpose.msra.mxu0 0.0
    %418 = vmatprep.subr.mxu0 0.0
    %419 = vmatpush1.xpose.msra.mxu0 0.0
    %420 = vmatprep.subr.mxu0 0.0
    %421 = vmatpush1.xpose.msra.mxu0 0.0
    %422 = vmatprep.subr.mxu0 0.0
    %423 = vmatpush1.xpose.msra.mxu0 0.0
    %424 = vmatprep.subr.mxu0 0.0
    %425 = vmatpush1.xpose.msra.mxu0 0.0
    %426 = vmatprep.subr.mxu0 0.0
    %427 = vmatpush1.xpose.msra.mxu0 0.0
    %428 = vmatprep.subr.mxu0 0.0
    %429 = vmatpush1.xpose.msra.mxu0 0.0
    %430 = vmatprep.subr.mxu0 0.0
    %431 = vmatpush1.xpose.msra.mxu0 0.0
    %432 = vmatprep.subr.mxu0 0.0
    %433 = vmatpush1.xpose.msra.mxu0 0.0
    %434 = vmatprep.subr.mxu0 0.0
    %435 = vmatpush1.xpose.msra.mxu0 0.0
    %436 = vmatprep.subr.mxu0 0.0
    %437 = vmatpush1.xpose.msra.mxu0 0.0
    %438 = vmatprep.subr.mxu0 0.0
    %439 = vmatpush1.xpose.msra.mxu0 0.0
    %440 = vmatprep.subr.mxu0 0.0
    %441 = vmatpush1.xpose.msra.mxu0 0.0
    %442 = vmatprep.subr.mxu0 0.0
    %443 = vmatpush1.xpose.msra.mxu0 0.0
    %444 = vmatprep.subr.mxu0 0.0
    %445 = vmatpush1.xpose.msra.mxu0 0.0
    %446 = vmatprep.subr.mxu0 0.0
    %447 = vmatpush1.xpose.msra.mxu0 0.0
    %448 = vmatprep.subr.mxu0 0.0
    %449 = vmatpush1.xpose.msra.mxu0 0.0
    %450 = vmatprep.subr.mxu0 0.0
    %451 = vmatpush1.xpose.msra.mxu0 0.0
    %452 = vmatprep.subr.mxu0 0.0
    %453 = vmatpush1.xpose.msra.mxu0 0.0
    %454 = vmatprep.subr.mxu0 0.0
    %455 = vmatpush1.xpose.msra.mxu0 0.0
    %456 = vmatprep.subr.mxu0 0.0
    %457 = vmatpush1.xpose.msra.mxu0 0.0
    %458 = vmatprep.subr.mxu0 0.0
    %459 = vmatpush1.xpose.msra.mxu0 0.0
    %460 = vmatprep.subr.mxu0 0.0
    %461 = vmatpush1.xpose.msra.mxu0 0.0
    %462 = vmatprep.subr.mxu0 0.0
    %463 = vmatpush1.xpose.msra.mxu0 0.0
    %464 = vmatprep.subr.mxu0 0.0
    %465 = vmatpush1.xpose.msra.mxu0 0.0
    %466 = vmatprep.subr.mxu0 0.0
    %467 = vmatpush1.xpose.msra.mxu0 0.0
    %468 = vmatprep.subr.mxu0 0.0
    %469 = vmatpush1.xpose.msra.mxu0 0.0
    %470 = vmatprep.mubr.f32.mxu0 0.0
    %471 = vmatmul.mubr.f32.gmra.mrb[0].mxu0 %v401
    %v472 = vpop.f32.mrb[0].mxu0
    %v473 = vadd.f32 0.0, %v472
    %v474 = vpop.f32.mrb[0].mxu0
    %475 = vdwg.mxu0
    %v476 = vmul.f32 %v473, 0.35355338
    %v477 = vadd.f32 %v476, %v72
    %v478 = vsel %vm399, %v477, -inf
    %479 = vmax.xlane.f32.xlu0 %v478
    %v480 = vpop.xlane.xlu0 %479
    %v481 = vsub.f32 %v477, %v480
    %v482 = vmul.f32 %v481, 1.442695
    %v483 = vpow.pop %v482
    %v484 = vsel %vm399, %v483, 0.0
    %485 = vadd.xlane.f32.xlu0 %v484
    %v486 = vpop.xlane.xlu0 %485
    %v487 = vrcp.pop %v486
    %v488 = vmul.f32 %v483, %v487
    %v490 = vsel %vm399, %v488, 0
    %492 = vmatprep.subr.mxu0 0.0
    %493 = vmatpush1.msra.mxu0 %v391
    %494 = vmatprep.subr.mxu0 0.0
    %495 = vmatpush1.msra.mxu0 0.0
    %496 = vmatprep.subr.mxu0 0.0
    %497 = vmatpush1.msra.mxu0 0.0
    %498 = vmatprep.subr.mxu0 0.0
    %499 = vmatpush1.msra.mxu0 0.0
    %500 = vmatprep.subr.mxu0 0.0
    %501 = vmatpush1.msra.mxu0 0.0
    %502 = vmatprep.subr.mxu0 0.0
    %503 = vmatpush1.msra.mxu0 0.0
    %504 = vmatprep.subr.mxu0 0.0
    %505 = vmatpush1.msra.mxu0 0.0
    %506 = vmatprep.subr.mxu0 0.0
    %507 = vmatpush1.msra.mxu0 0.0
    %508 = vmatprep.subr.mxu0 0.0
    %509 = vmatpush1.msra.mxu0 0.0
    %510 = vmatprep.subr.mxu0 0.0
    %511 = vmatpush1.msra.mxu0 0.0
    %512 = vmatprep.subr.mxu0 0.0
    %513 = vmatpush1.msra.mxu0 0.0
    %514 = vmatprep.subr.mxu0 0.0
    %515 = vmatpush1.msra.mxu0 0.0
    %516 = vmatprep.subr.mxu0 0.0
    %517 = vmatpush1.msra.mxu0 0.0
    %518 = vmatprep.subr.mxu0 0.0
    %519 = vmatpush1.msra.mxu0 0.0
    %520 = vmatprep.subr.mxu0 0.0
    %521 = vmatpush1.msra.mxu0 0.0
    %522 = vmatprep.subr.mxu0 0.0
    %523 = vmatpush1.msra.mxu0 0.0
    %524 = vmatprep.subr.mxu0 0.0
    %525 = vmatpush1.msra.mxu0 0.0
    %526 = vmatprep.subr.mxu0 0.0
    %527 = vmatpush1.msra.mxu0 0.0
    %528 = vmatprep.subr.mxu0 0.0
    %529 = vmatpush1.msra.mxu0 0.0
    %530 = vmatprep.subr.mxu0 0.0
    %531 = vmatpush1.msra.mxu0 0.0
    %532 = vmatprep.subr.mxu0 0.0
    %533 = vmatpush1.msra.mxu0 0.0
    %534 = vmatprep.subr.mxu0 0.0
    %535 = vmatpush1.msra.mxu0 0.0
    %536 = vmatprep.subr.mxu0 0.0
    %537 = vmatpush1.msra.mxu0 0.0
    %538 = vmatprep.subr.mxu0 0.0
    %539 = vmatpush1.msra.mxu0 0.0
    %540 = vmatprep.subr.mxu0 0.0
    %541 = vmatpush1.msra.mxu0 0.0
    %542 = vmatprep.subr.mxu0 0.0
    %543 = vmatpush1.msra.mxu0 0.0
    %544 = vmatprep.subr.mxu0 0.0
    %545 = vmatpush1.msra.mxu0 0.0
    %546 = vmatprep.subr.mxu0 0.0
    %547 = vmatpush1.msra.mxu0 0.0
    %548 = vmatprep.subr.mxu0 0.0
    %549 = vmatpush1.msra.mxu0 0.0
    %550 = vmatprep.subr.mxu0 0.0
    %551 = vmatpush1.msra.mxu0 0.0
    %552 = vmatprep.subr.mxu0 0.0
    %553 = vmatpush1.msra.mxu0 0.0
    %554 = vmatprep.subr.mxu0 0.0
    %555 = vmatpush1.msra.mxu0 0.0
    %556 = vmatprep.mubr.f32.mxu0 0.0
    %557 = vmatmul.mubr.f32.gmra.mrb[0].mxu0 %v490
    %v558 = vpop.f32.mrb[0].mxu0
    %v559 = vadd.f32 0.0, %v558
    %v560 = vpop.f32.mrb[0].mxu0
    %561 = vdwg.mxu0
    %v563 = vsel %vm399, %v224, 0
    %v566 = vsel %vm399, %v310, 0
    %568 = vmatprep.subr.mxu0 0.0
    %569 = vmatpush1.xpose.msra.mxu0 %v566
    %570 = vmatprep.subr.mxu0 0.0
    %571 = vmatpush1.xpose.msra.mxu0 0.0
    %572 = vmatprep.subr.mxu0 0.0
    %573 = vmatpush1.xpose.msra.mxu0 0.0
    %574 = vmatprep.subr.mxu0 0.0
    %575 = vmatpush1.xpose.msra.mxu0 0.0
    %576 = vmatprep.subr.mxu0 0.0
    %577 = vmatpush1.xpose.msra.mxu0 0.0
    %578 = vmatprep.subr.mxu0 0.0
    %579 = vmatpush1.xpose.msra.mxu0 0.0
    %580 = vmatprep.subr.mxu0 0.0
    %581 = vmatpush1.xpose.msra.mxu0 0.0
    %582 = vmatprep.subr.mxu0 0.0
    %583 = vmatpush1.xpose.msra.mxu0 0.0
    %584 = vmatprep.subr.mxu0 0.0
    %585 = vmatpush1.xpose.msra.mxu0 0.0
    %586 = vmatprep.subr.mxu0 0.0
    %587 = vmatpush1.xpose.msra.mxu0 0.0
    %588 = vmatprep.subr.mxu0 0.0
    %589 = vmatpush1.xpose.msra.mxu0 0.0
    %590 = vmatprep.subr.mxu0 0.0
    %591 = vmatpush1.xpose.msra.mxu0 0.0
    %592 = vmatprep.subr.mxu0 0.0
    %593 = vmatpush1.xpose.msra.mxu0 0.0
    %594 = vmatprep.subr.mxu0 0.0
    %595 = vmatpush1.xpose.msra.mxu0 0.0
    %596 = vmatprep.subr.mxu0 0.0
    %597 = vmatpush1.xpose.msra.mxu0 0.0
    %598 = vmatprep.subr.mxu0 0.0
    %599 = vmatpush1.xpose.msra.mxu0 0.0
    %600 = vmatprep.subr.mxu0 0.0
    %601 = vmatpush1.xpose.msra.mxu0 0.0
    %602 = vmatprep.subr.mxu0 0.0
    %603 = vmatpush1.xpose.msra.mxu0 0.0
    %604 = vmatprep.subr.mxu0 0.0
    %605 = vmatpush1.xpose.msra.mxu0 0.0
    %606 = vmatprep.subr.mxu0 0.0
    %607 = vmatpush1.xpose.msra.mxu0 0.0
    %608 = vmatprep.subr.mxu0 0.0
    %609 = vmatpush1.xpose.msra.mxu0 0.0
    %610 = vmatprep.subr.mxu0 0.0
    %611 = vmatpush1.xpose.msra.mxu0 0.0
    %612 = vmatprep.subr.mxu0 0.0
    %613 = vmatpush1.xpose.msra.mxu0 0.0
    %614 = vmatprep.subr.mxu0 0.0
    %615 = vmatpush1.xpose.msra.mxu0 0.0
    %616 = vmatprep.subr.mxu0 0.0
    %617 = vmatpush1.xpose.msra.mxu0 0.0
    %618 = vmatprep.subr.mxu0 0.0
    %619 = vmatpush1.xpose.msra.mxu0 0.0
    %620 = vmatprep.subr.mxu0 0.0
    %621 = vmatpush1.xpose.msra.mxu0 0.0
    %622 = vmatprep.subr.mxu0 0.0
    %623 = vmatpush1.xpose.msra.mxu0 0.0
    %624 = vmatprep.subr.mxu0 0.0
    %625 = vmatpush1.xpose.msra.mxu0 0.0
    %626 = vmatprep.subr.mxu0 0.0
    %627 = vmatpush1.xpose.msra.mxu0 0.0
    %628 = vmatprep.subr.mxu0 0.0
    %629 = vmatpush1.xpose.msra.mxu0 0.0
    %630 = vmatprep.subr.mxu0 0.0
    %631 = vmatpush1.xpose.msra.mxu0 0.0
    %632 = vmatprep.mubr.f32.mxu0 0.0
    %633 = vmatmul.mubr.f32.gmra.mrb[0].mxu0 %v563
    %v634 = vpop.f32.mrb[0].mxu0
    %v635 = vadd.f32 0.0, %v634
    %v636 = vpop.f32.mrb[0].mxu0
    %637 = vdwg.mxu0
    %v638 = vmul.f32 %v635, 0.35355338
    %v639 = vadd.f32 %v638, %v73
    %v640 = vsel %vm399, %v639, -inf
    %641 = vmax.xlane.f32.xlu0 %v640
    %v642 = vpop.xlane.xlu0 %641
    %v643 = vsub.f32 %v639, %v642
    %v644 = vmul.f32 %v643, 1.442695
    %v645 = vpow.pop %v644
    %v646 = vsel %vm399, %v645, 0.0
    %647 = vadd.xlane.f32.xlu0 %v646
    %v648 = vpop.xlane.xlu0 %647
    %v649 = vrcp.pop %v648
    %v650 = vmul.f32 %v645, %v649
    %v652 = vsel %vm399, %v650, 0
    %654 = vmatprep.subr.mxu0 0.0
    %655 = vmatpush1.msra.mxu0 %v396
    %656 = vmatprep.subr.mxu0 0.0
    %657 = vmatpush1.msra.mxu0 0.0
    %658 = vmatprep.subr.mxu0 0.0
    %659 = vmatpush1.msra.mxu0 0.0
    %660 = vmatprep.subr.mxu0 0.0
    %661 = vmatpush1.msra.mxu0 0.0
    %662 = vmatprep.subr.mxu0 0.0
    %663 = vmatpush1.msra.mxu0 0.0
    %664 = vmatprep.subr.mxu0 0.0
    %665 = vmatpush1.msra.mxu0 0.0
    %666 = vmatprep.subr.mxu0 0.0
    %667 = vmatpush1.msra.mxu0 0.0
    %668 = vmatprep.subr.mxu0 0.0
    %669 = vmatpush1.msra.mxu0 0.0
    %670 = vmatprep.subr.mxu0 0.0
    %671 = vmatpush1.msra.mxu0 0.0
    %672 = vmatprep.subr.mxu0 0.0
    %673 = vmatpush1.msra.mxu0 0.0
    %674 = vmatprep.subr.mxu0 0.0
    %675 = vmatpush1.msra.mxu0 0.0
    %676 = vmatprep.subr.mxu0 0.0
    %677 = vmatpush1.msra.mxu0 0.0
    %678 = vmatprep.subr.mxu0 0.0
    %679 = vmatpush1.msra.mxu0 0.0
    %680 = vmatprep.subr.mxu0 0.0
    %681 = vmatpush1.msra.mxu0 0.0
    %682 = vmatprep.subr.mxu0 0.0
    %683 = vmatpush1.msra.mxu0 0.0
    %684 = vmatprep.subr.mxu0 0.0
    %685 = vmatpush1.msra.mxu0 0.0
    %686 = vmatprep.subr.mxu0 0.0
    %687 = vmatpush1.msra.mxu0 0.0
    %688 = vmatprep.subr.mxu0 0.0
    %689 = vmatpush1.msra.mxu0 0.0
    %690 = vmatprep.subr.mxu0 0.0
    %691 = vmatpush1.msra.mxu0 0.0
    %692 = vmatprep.subr.mxu0 0.0
    %693 = vmatpush1.msra.mxu0 0.0
    %694 = vmatprep.subr.mxu0 0.0
    %695 = vmatpush1.msra.mxu0 0.0
    %696 = vmatprep.subr.mxu0 0.0
    %697 = vmatpush1.msra.mxu0 0.0
    %698 = vmatprep.subr.mxu0 0.0
    %699 = vmatpush1.msra.mxu0 0.0
    %700 = vmatprep.subr.mxu0 0.0
    %701 = vmatpush1.msra.mxu0 0.0
    %702 = vmatprep.subr.mxu0 0.0
    %703 = vmatpush1.msra.mxu0 0.0
    %704 = vmatprep.subr.mxu0 0.0
    %705 = vmatpush1.msra.mxu0 0.0
    %706 = vmatprep.subr.mxu0 0.0
    %707 = vmatpush1.msra.mxu0 0.0
    %708 = vmatprep.subr.mxu0 0.0
    %709 = vmatpush1.msra.mxu0 0.0
    %710 = vmatprep.subr.mxu0 0.0
    %711 = vmatpush1.msra.mxu0 0.0
    %712 = vmatprep.subr.mxu0 0.0
    %713 = vmatpush1.msra.mxu0 0.0
    %714 = vmatprep.subr.mxu0 0.0
    %715 = vmatpush1.msra.mxu0 0.0
    %716 = vmatprep.subr.mxu0 0.0
    %717 = vmatpush1.msra.mxu0 0.0
    %718 = vmatprep.mubr.f32.mxu0 0.0
    %719 = vmatmul.mubr.f32.gmra.mrb[0].mxu0 %v652
    %v720 = vpop.f32.mrb[0].mxu0
    %v721 = vadd.f32 0.0, %v720
    %v722 = vpop.f32.mrb[0].mxu0
    %723 = vdwg.mxu0
    %v724 = vld [vmem:[%s10] sm:$0xff]
    %s725 = scalar_lea.vmem %s4, 32
    %v726 = vld [vmem:[%s725] sm:$0xff]
    %v727 = vld [vmem:[%s725 + $0x8] sm:$0xff]
    %v728 = vld [vmem:[%s725 + $0x10] sm:$0xff]
    %v729 = vld [vmem:[%s725 + $0x18] sm:$0xff]
    %s730 = scalar_lea.vmem %s5, 1
    %v731 = vld [vmem:[%s730] sm:$0x1]
    %v733 = vlaneseq
    %v734 = vshrl.u32 %v733, 7
    %v735 = vsub.s32 0, %v734
    %v736 = vrot.slane %v731, %v735
    %738 = vmatprep.subr.mxu0 0.0
    %739 = vmatpush1.msra.mxu0 %v726
    %740 = vmatprep.subr.mxu0 0.0
    %741 = vmatpush1.msra.mxu0 %v727
    %742 = vmatprep.subr.mxu0 0.0
    %743 = vmatpush1.msra.mxu0 %v728
    %744 = vmatprep.subr.mxu0 0.0
    %745 = vmatpush1.msra.mxu0 %v729
    %746 = vmatprep.subr.mxu0 0.0
    %747 = vmatpush1.msra.mxu0 0.0
    %748 = vmatprep.subr.mxu0 0.0
    %749 = vmatpush1.msra.mxu0 0.0
    %750 = vmatprep.subr.mxu0 0.0
    %751 = vmatpush1.msra.mxu0 0.0
    %752 = vmatprep.subr.mxu0 0.0
    %753 = vmatpush1.msra.mxu0 0.0
    %754 = vmatprep.subr.mxu0 0.0
    %755 = vmatpush1.msra.mxu0 0.0
    %756 = vmatprep.subr.mxu0 0.0
    %757 = vmatpush1.msra.mxu0 0.0
    %758 = vmatprep.subr.mxu0 0.0
    %759 = vmatpush1.msra.mxu0 0.0
    %760 = vmatprep.subr.mxu0 0.0
    %761 = vmatpush1.msra.mxu0 0.0
    %762 = vmatprep.subr.mxu0 0.0
    %763 = vmatpush1.msra.mxu0 0.0
    %764 = vmatprep.subr.mxu0 0.0
    %765 = vmatpush1.msra.mxu0 0.0
    %766 = vmatprep.subr.mxu0 0.0
    %767 = vmatpush1.msra.mxu0 0.0
    %768 = vmatprep.subr.mxu0 0.0
    %769 = vmatpush1.msra.mxu0 0.0
    %770 = vmatprep.subr.mxu0 0.0
    %771 = vmatpush1.msra.mxu0 0.0
    %772 = vmatprep.subr.mxu0 0.0
    %773 = vmatpush1.msra.mxu0 0.0
    %774 = vmatprep.subr.mxu0 0.0
    %775 = vmatpush1.msra.mxu0 0.0
    %776 = vmatprep.subr.mxu0 0.0
    %777 = vmatpush1.msra.mxu0 0.0
    %778 = vmatprep.subr.mxu0 0.0
    %779 = vmatpush1.msra.mxu0 0.0
    %780 = vmatprep.subr.mxu0 0.0
    %781 = vmatpush1.msra.mxu0 0.0
    %782 = vmatprep.subr.mxu0 0.0
    %783 = vmatpush1.msra.mxu0 0.0
    %784 = vmatprep.subr.mxu0 0.0
    %785 = vmatpush1.msra.mxu0 0.0
    %786 = vmatprep.subr.mxu0 0.0
    %787 = vmatpush1.msra.mxu0 0.0
    %788 = vmatprep.subr.mxu0 0.0
    %789 = vmatpush1.msra.mxu0 0.0
    %790 = vmatprep.subr.mxu0 0.0
    %791 = vmatpush1.msra.mxu0 0.0
    %792 = vmatprep.subr.mxu0 0.0
    %793 = vmatpush1.msra.mxu0 0.0
    %794 = vmatprep.subr.mxu0 0.0
    %795 = vmatpush1.msra.mxu0 0.0
    %796 = vmatprep.subr.mxu0 0.0
    %797 = vmatpush1.msra.mxu0 0.0
    %798 = vmatprep.subr.mxu0 0.0
    %799 = vmatpush1.msra.mxu0 0.0
    %800 = vmatprep.subr.mxu0 0.0
    %801 = vmatpush1.msra.mxu0 0.0
    %802 = vmatprep.mubr.f32.mxu0 0.0
    %803 = vmatmul.mubr.f32.gmra.mrb[0].mxu0 %v147
    %v804 = vpop.f32.mrb[0].mxu0
    %v805 = vadd.f32 %v736, %v804
    %v806 = vpop.f32.mrb[0].mxu0
    %807 = vmatprep.mubr.f32.mxu0 0.0
    %808 = vmatmul.mubr.f32.gmra.mrb[0].mxu0 %v150
    %v809 = vpop.f32.mrb[0].mxu0
    %v810 = vadd.f32 %v736, %v809
    %v811 = vpop.f32.mrb[0].mxu0
    %812 = vdwg.mxu0
    %s813 = scalar_lea.vmem %s6, 32
    %v814 = vld [vmem:[%s813] sm:$0xff]
    %v815 = vld [vmem:[%s813 + $0x8] sm:$0xff]
    %v816 = vld [vmem:[%s813 + $0x10] sm:$0xff]
    %v817 = vld [vmem:[%s813 + $0x18] sm:$0xff]
    %s818 = scalar_lea.vmem %s7, 1
    %v819 = vld [vmem:[%s818] sm:$0x1]
    %v821 = vlaneseq
    %v822 = vshrl.u32 %v821, 7
    %v823 = vsub.s32 0, %v822
    %v824 = vrot.slane %v819, %v823
    %826 = vmatprep.subr.mxu0 0.0
    %827 = vmatpush1.msra.mxu0 %v814
    %828 = vmatprep.subr.mxu0 0.0
    %829 = vmatpush1.msra.mxu0 %v815
    %830 = vmatprep.subr.mxu0 0.0
    %831 = vmatpush1.msra.mxu0 %v816
    %832 = vmatprep.subr.mxu0 0.0
    %833 = vmatpush1.msra.mxu0 %v817
    %834 = vmatprep.subr.mxu0 0.0
    %835 = vmatpush1.msra.mxu0 0.0
    %836 = vmatprep.subr.mxu0 0.0
    %837 = vmatpush1.msra.mxu0 0.0
    %838 = vmatprep.subr.mxu0 0.0
    %839 = vmatpush1.msra.mxu0 0.0
    %840 = vmatprep.subr.mxu0 0.0
    %841 = vmatpush1.msra.mxu0 0.0
    %842 = vmatprep.subr.mxu0 0.0
    %843 = vmatpush1.msra.mxu0 0.0
    %844 = vmatprep.subr.mxu0 0.0
    %845 = vmatpush1.msra.mxu0 0.0
    %846 = vmatprep.subr.mxu0 0.0
    %847 = vmatpush1.msra.mxu0 0.0
    %848 = vmatprep.subr.mxu0 0.0
    %849 = vmatpush1.msra.mxu0 0.0
    %850 = vmatprep.subr.mxu0 0.0
    %851 = vmatpush1.msra.mxu0 0.0
    %852 = vmatprep.subr.mxu0 0.0
    %853 = vmatpush1.msra.mxu0 0.0
    %854 = vmatprep.subr.mxu0 0.0
    %855 = vmatpush1.msra.mxu0 0.0
    %856 = vmatprep.subr.mxu0 0.0
    %857 = vmatpush1.msra.mxu0 0.0
    %858 = vmatprep.subr.mxu0 0.0
    %859 = vmatpush1.msra.mxu0 0.0
    %860 = vmatprep.subr.mxu0 0.0
    %861 = vmatpush1.msra.mxu0 0.0
    %862 = vmatprep.subr.mxu0 0.0
    %863 = vmatpush1.msra.mxu0 0.0
    %864 = vmatprep.subr.mxu0 0.0
    %865 = vmatpush1.msra.mxu0 0.0
    %866 = vmatprep.subr.mxu0 0.0
    %867 = vmatpush1.msra.mxu0 0.0
    %868 = vmatprep.subr.mxu0 0.0
    %869 = vmatpush1.msra.mxu0 0.0
    %870 = vmatprep.subr.mxu0 0.0
    %871 = vmatpush1.msra.mxu0 0.0
    %872 = vmatprep.subr.mxu0 0.0
    %873 = vmatpush1.msra.mxu0 0.0
    %874 = vmatprep.subr.mxu0 0.0
    %875 = vmatpush1.msra.mxu0 0.0
    %876 = vmatprep.subr.mxu0 0.0
    %877 = vmatpush1.msra.mxu0 0.0
    %878 = vmatprep.subr.mxu0 0.0
    %879 = vmatpush1.msra.mxu0 0.0
    %880 = vmatprep.subr.mxu0 0.0
    %881 = vmatpush1.msra.mxu0 0.0
    %882 = vmatprep.subr.mxu0 0.0
    %883 = vmatpush1.msra.mxu0 0.0
    %884 = vmatprep.subr.mxu0 0.0
    %885 = vmatpush1.msra.mxu0 0.0
    %886 = vmatprep.subr.mxu0 0.0
    %887 = vmatpush1.msra.mxu0 0.0
    %888 = vmatprep.subr.mxu0 0.0
    %889 = vmatpush1.msra.mxu0 0.0
    %890 = vmatprep.mubr.f32.mxu0 0.0
    %891 = vmatmul.mubr.f32.gmra.mrb[0].mxu0 %v147
    %v892 = vpop.f32.mrb[0].mxu0
    %v893 = vadd.f32 %v824, %v892
    %v894 = vpop.f32.mrb[0].mxu0
    %895 = vmatprep.mubr.f32.mxu0 0.0
    %896 = vmatmul.mubr.f32.gmra.mrb[0].mxu0 %v150
    %v897 = vpop.f32.mrb[0].mxu0
    %v898 = vadd.f32 %v824, %v897
    %v899 = vpop.f32.mrb[0].mxu0
    %900 = vdwg.mxu0
    %s901 = scalar_lea.vmem %s8, 32
    %v902 = vld [vmem:[%s901] sm:$0xff]
    %v903 = vld [vmem:[%s901 + $0x8] sm:$0xff]
    %v904 = vld [vmem:[%s901 + $0x10] sm:$0xff]
    %v905 = vld [vmem:[%s901 + $0x18] sm:$0xff]
    %s906 = scalar_lea.vmem %s9, 1
    %v907 = vld [vmem:[%s906] sm:$0x1]
    %v909 = vlaneseq
    %v910 = vshrl.u32 %v909, 7
    %v911 = vsub.s32 0, %v910
    %v912 = vrot.slane %v907, %v911
    %914 = vmatprep.subr.mxu0 0.0
    %915 = vmatpush1.msra.mxu0 %v902
    %916 = vmatprep.subr.mxu0 0.0
    %917 = vmatpush1.msra.mxu0 %v903
    %918 = vmatprep.subr.mxu0 0.0
    %919 = vmatpush1.msra.mxu0 %v904
    %920 = vmatprep.subr.mxu0 0.0
    %921 = vmatpush1.msra.mxu0 %v905
    %922 = vmatprep.subr.mxu0 0.0
    %923 = vmatpush1.msra.mxu0 0.0
    %924 = vmatprep.subr.mxu0 0.0
    %925 = vmatpush1.msra.mxu0 0.0
    %926 = vmatprep.subr.mxu0 0.0
    %927 = vmatpush1.msra.mxu0 0.0
    %928 = vmatprep.subr.mxu0 0.0
    %929 = vmatpush1.msra.mxu0 0.0
    %930 = vmatprep.subr.mxu0 0.0
    %931 = vmatpush1.msra.mxu0 0.0
    %932 = vmatprep.subr.mxu0 0.0
    %933 = vmatpush1.msra.mxu0 0.0
    %934 = vmatprep.subr.mxu0 0.0
    %935 = vmatpush1.msra.mxu0 0.0
    %936 = vmatprep.subr.mxu0 0.0
    %937 = vmatpush1.msra.mxu0 0.0
    %938 = vmatprep.subr.mxu0 0.0
    %939 = vmatpush1.msra.mxu0 0.0
    %940 = vmatprep.subr.mxu0 0.0
    %941 = vmatpush1.msra.mxu0 0.0
    %942 = vmatprep.subr.mxu0 0.0
    %943 = vmatpush1.msra.mxu0 0.0
    %944 = vmatprep.subr.mxu0 0.0
    %945 = vmatpush1.msra.mxu0 0.0
    %946 = vmatprep.subr.mxu0 0.0
    %947 = vmatpush1.msra.mxu0 0.0
    %948 = vmatprep.subr.mxu0 0.0
    %949 = vmatpush1.msra.mxu0 0.0
    %950 = vmatprep.subr.mxu0 0.0
    %951 = vmatpush1.msra.mxu0 0.0
    %952 = vmatprep.subr.mxu0 0.0
    %953 = vmatpush1.msra.mxu0 0.0
    %954 = vmatprep.subr.mxu0 0.0
    %955 = vmatpush1.msra.mxu0 0.0
    %956 = vmatprep.subr.mxu0 0.0
    %957 = vmatpush1.msra.mxu0 0.0
    %958 = vmatprep.subr.mxu0 0.0
    %959 = vmatpush1.msra.mxu0 0.0
    %960 = vmatprep.subr.mxu0 0.0
    %961 = vmatpush1.msra.mxu0 0.0
    %962 = vmatprep.subr.mxu0 0.0
    %963 = vmatpush1.msra.mxu0 0.0
    %964 = vmatprep.subr.mxu0 0.0
    %965 = vmatpush1.msra.mxu0 0.0
    %966 = vmatprep.subr.mxu0 0.0
    %967 = vmatpush1.msra.mxu0 0.0
    %968 = vmatprep.subr.mxu0 0.0
    %969 = vmatpush1.msra.mxu0 0.0
    %970 = vmatprep.subr.mxu0 0.0
    %971 = vmatpush1.msra.mxu0 0.0
    %972 = vmatprep.subr.mxu0 0.0
    %973 = vmatpush1.msra.mxu0 0.0
    %974 = vmatprep.subr.mxu0 0.0
    %975 = vmatpush1.msra.mxu0 0.0
    %976 = vmatprep.subr.mxu0 0.0
    %977 = vmatpush1.msra.mxu0 0.0
    %978 = vmatprep.mubr.f32.mxu0 0.0
    %979 = vmatmul.mubr.f32.gmra.mrb[0].mxu0 %v147
    %v980 = vpop.f32.mrb[0].mxu0
    %v981 = vadd.f32 %v912, %v980
    %v982 = vpop.f32.mrb[0].mxu0
    %983 = vmatprep.mubr.f32.mxu0 0.0
    %984 = vmatmul.mubr.f32.gmra.mrb[0].mxu0 %v150
    %v985 = vpop.f32.mrb[0].mxu0
    %v986 = vadd.f32 %v912, %v985
    %v987 = vpop.f32.mrb[0].mxu0
    %988 = vdwg.mxu0
    %v990 = vsel %vm399, %v805, 0
    %v993 = vsel %vm399, %v893, 0
    %995 = vmatprep.subr.mxu0 0.0
    %996 = vmatpush1.xpose.msra.mxu0 %v993
    %997 = vmatprep.subr.mxu0 0.0
    %998 = vmatpush1.xpose.msra.mxu0 0.0
    %999 = vmatprep.subr.mxu0 0.0
    %1000 = vmatpush1.xpose.msra.mxu0 0.0
    %1001 = vmatprep.subr.mxu0 0.0
    %1002 = vmatpush1.xpose.msra.mxu0 0.0
    %1003 = vmatprep.subr.mxu0 0.0
    %1004 = vmatpush1.xpose.msra.mxu0 0.0
    %1005 = vmatprep.subr.mxu0 0.0
    %1006 = vmatpush1.xpose.msra.mxu0 0.0
    %1007 = vmatprep.subr.mxu0 0.0
    %1008 = vmatpush1.xpose.msra.mxu0 0.0
    %1009 = vmatprep.subr.mxu0 0.0
    %1010 = vmatpush1.xpose.msra.mxu0 0.0
    %1011 = vmatprep.subr.mxu0 0.0
    %1012 = vmatpush1.xpose.msra.mxu0 0.0
    %1013 = vmatprep.subr.mxu0 0.0
    %1014 = vmatpush1.xpose.msra.mxu0 0.0
    %1015 = vmatprep.subr.mxu0 0.0
    %1016 = vmatpush1.xpose.msra.mxu0 0.0
    %1017 = vmatprep.subr.mxu0 0.0
    %1018 = vmatpush1.xpose.msra.mxu0 0.0
    %1019 = vmatprep.subr.mxu0 0.0
    %1020 = vmatpush1.xpose.msra.mxu0 0.0
    %1021 = vmatprep.subr.mxu0 0.0
    %1022 = vmatpush1.xpose.msra.mxu0 0.0
    %1023 = vmatprep.subr.mxu0 0.0
    %1024 = vmatpush1.xpose.msra.mxu0 0.0
    %1025 = vmatprep.subr.mxu0 0.0
    %1026 = vmatpush1.xpose.msra.mxu0 0.0
    %1027 = vmatprep.subr.mxu0 0.0
    %1028 = vmatpush1.xpose.msra.mxu0 0.0
    %1029 = vmatprep.subr.mxu0 0.0
    %1030 = vmatpush1.xpose.msra.mxu0 0.0
    %1031 = vmatprep.subr.mxu0 0.0
    %1032 = vmatpush1.xpose.msra.mxu0 0.0
    %1033 = vmatprep.subr.mxu0 0.0
    %1034 = vmatpush1.xpose.msra.mxu0 0.0
    %1035 = vmatprep.subr.mxu0 0.0
    %1036 = vmatpush1.xpose.msra.mxu0 0.0
    %1037 = vmatprep.subr.mxu0 0.0
    %1038 = vmatpush1.xpose.msra.mxu0 0.0
    %1039 = vmatprep.subr.mxu0 0.0
    %1040 = vmatpush1.xpose.msra.mxu0 0.0
    %1041 = vmatprep.subr.mxu0 0.0
    %1042 = vmatpush1.xpose.msra.mxu0 0.0
    %1043 = vmatprep.subr.mxu0 0.0
    %1044 = vmatpush1.xpose.msra.mxu0 0.0
    %1045 = vmatprep.subr.mxu0 0.0
    %1046 = vmatpush1.xpose.msra.mxu0 0.0
    %1047 = vmatprep.subr.mxu0 0.0
    %1048 = vmatpush1.xpose.msra.mxu0 0.0
    %1049 = vmatprep.subr.mxu0 0.0
    %1050 = vmatpush1.xpose.msra.mxu0 0.0
    %1051 = vmatprep.subr.mxu0 0.0
    %1052 = vmatpush1.xpose.msra.mxu0 0.0
    %1053 = vmatprep.subr.mxu0 0.0
    %1054 = vmatpush1.xpose.msra.mxu0 0.0
    %1055 = vmatprep.subr.mxu0 0.0
    %1056 = vmatpush1.xpose.msra.mxu0 0.0
    %1057 = vmatprep.subr.mxu0 0.0
    %1058 = vmatpush1.xpose.msra.mxu0 0.0
    %1059 = vmatprep.mubr.f32.mxu0 0.0
    %1060 = vmatmul.mubr.f32.gmra.mrb[0].mxu0 %v990
    %v1061 = vpop.f32.mrb[0].mxu0
    %v1062 = vadd.f32 0.0, %v1061
    %v1063 = vpop.f32.mrb[0].mxu0
    %1064 = vdwg.mxu0
    %v1065 = vmul.f32 %v1062, 0.35355338
    %v1066 = vadd.f32 %v1065, %v72
    %v1067 = vsel %vm399, %v1066, -inf
    %1068 = vmax.xlane.f32.xlu0 %v1067
    %v1069 = vpop.xlane.xlu0 %1068
    %v1070 = vsub.f32 %v1066, %v1069
    %v1071 = vmul.f32 %v1070, 1.442695
    %v1072 = vpow.pop %v1071
    %v1073 = vsel %vm399, %v1072, 0.0
    %1074 = vadd.xlane.f32.xlu0 %v1073
    %v1075 = vpop.xlane.xlu0 %1074
    %v1076 = vrcp.pop %v1075
    %v1077 = vmul.f32 %v1072, %v1076
    %v1079 = vsel %vm399, %v1077, 0
    %1081 = vmatprep.subr.mxu0 0.0
    %1082 = vmatpush1.msra.mxu0 %v981
    %1083 = vmatprep.subr.mxu0 0.0
    %1084 = vmatpush1.msra.mxu0 0.0
    %1085 = vmatprep.subr.mxu0 0.0
    %1086 = vmatpush1.msra.mxu0 0.0
    %1087 = vmatprep.subr.mxu0 0.0
    %1088 = vmatpush1.msra.mxu0 0.0
    %1089 = vmatprep.subr.mxu0 0.0
    %1090 = vmatpush1.msra.mxu0 0.0
    %1091 = vmatprep.subr.mxu0 0.0
    %1092 = vmatpush1.msra.mxu0 0.0
    %1093 = vmatprep.subr.mxu0 0.0
    %1094 = vmatpush1.msra.mxu0 0.0
    %1095 = vmatprep.subr.mxu0 0.0
    %1096 = vmatpush1.msra.mxu0 0.0
    %1097 = vmatprep.subr.mxu0 0.0
    %1098 = vmatpush1.msra.mxu0 0.0
    %1099 = vmatprep.subr.mxu0 0.0
    %1100 = vmatpush1.msra.mxu0 0.0
    %1101 = vmatprep.subr.mxu0 0.0
    %1102 = vmatpush1.msra.mxu0 0.0
    %1103 = vmatprep.subr.mxu0 0.0
    %1104 = vmatpush1.msra.mxu0 0.0
    %1105 = vmatprep.subr.mxu0 0.0
    %1106 = vmatpush1.msra.mxu0 0.0
    %1107 = vmatprep.subr.mxu0 0.0
    %1108 = vmatpush1.msra.mxu0 0.0
    %1109 = vmatprep.subr.mxu0 0.0
    %1110 = vmatpush1.msra.mxu0 0.0
    %1111 = vmatprep.subr.mxu0 0.0
    %1112 = vmatpush1.msra.mxu0 0.0
    %1113 = vmatprep.subr.mxu0 0.0
    %1114 = vmatpush1.msra.mxu0 0.0
    %1115 = vmatprep.subr.mxu0 0.0
    %1116 = vmatpush1.msra.mxu0 0.0
    %1117 = vmatprep.subr.mxu0 0.0
    %1118 = vmatpush1.msra.mxu0 0.0
    %1119 = vmatprep.subr.mxu0 0.0
    %1120 = vmatpush1.msra.mxu0 0.0
    %1121 = vmatprep.subr.mxu0 0.0
    %1122 = vmatpush1.msra.mxu0 0.0
    %1123 = vmatprep.subr.mxu0 0.0
    %1124 = vmatpush1.msra.mxu0 0.0
    %1125 = vmatprep.subr.mxu0 0.0
    %1126 = vmatpush1.msra.mxu0 0.0
    %1127 = vmatprep.subr.mxu0 0.0
    %1128 = vmatpush1.msra.mxu0 0.0
    %1129 = vmatprep.subr.mxu0 0.0
    %1130 = vmatpush1.msra.mxu0 0.0
    %1131 = vmatprep.subr.mxu0 0.0
    %1132 = vmatpush1.msra.mxu0 0.0
    %1133 = vmatprep.subr.mxu0 0.0
    %1134 = vmatpush1.msra.mxu0 0.0
    %1135 = vmatprep.subr.mxu0 0.0
    %1136 = vmatpush1.msra.mxu0 0.0
    %1137 = vmatprep.subr.mxu0 0.0
    %1138 = vmatpush1.msra.mxu0 0.0
    %1139 = vmatprep.subr.mxu0 0.0
    %1140 = vmatpush1.msra.mxu0 0.0
    %1141 = vmatprep.subr.mxu0 0.0
    %1142 = vmatpush1.msra.mxu0 0.0
    %1143 = vmatprep.subr.mxu0 0.0
    %1144 = vmatpush1.msra.mxu0 0.0
    %1145 = vmatprep.mubr.f32.mxu0 0.0
    %1146 = vmatmul.mubr.f32.gmra.mrb[0].mxu0 %v1079
    %v1147 = vpop.f32.mrb[0].mxu0
    %v1148 = vadd.f32 0.0, %v1147
    %v1149 = vpop.f32.mrb[0].mxu0
    %1150 = vdwg.mxu0
    %v1152 = vsel %vm399, %v810, 0
    %v1155 = vsel %vm399, %v898, 0
    %1157 = vmatprep.subr.mxu0 0.0
    %1158 = vmatpush1.xpose.msra.mxu0 %v1155
    %1159 = vmatprep.subr.mxu0 0.0
    %1160 = vmatpush1.xpose.msra.mxu0 0.0
    %1161 = vmatprep.subr.mxu0 0.0
    %1162 = vmatpush1.xpose.msra.mxu0 0.0
    %1163 = vmatprep.subr.mxu0 0.0
    %1164 = vmatpush1.xpose.msra.mxu0 0.0
    %1165 = vmatprep.subr.mxu0 0.0
    %1166 = vmatpush1.xpose.msra.mxu0 0.0
    %1167 = vmatprep.subr.mxu0 0.0
    %1168 = vmatpush1.xpose.msra.mxu0 0.0
    %1169 = vmatprep.subr.mxu0 0.0
    %1170 = vmatpush1.xpose.msra.mxu0 0.0
    %1171 = vmatprep.subr.mxu0 0.0
    %1172 = vmatpush1.xpose.msra.mxu0 0.0
    %1173 = vmatprep.subr.mxu0 0.0
    %1174 = vmatpush1.xpose.msra.mxu0 0.0
    %1175 = vmatprep.subr.mxu0 0.0
    %1176 = vmatpush1.xpose.msra.mxu0 0.0
    %1177 = vmatprep.subr.mxu0 0.0
    %1178 = vmatpush1.xpose.msra.mxu0 0.0
    %1179 = vmatprep.subr.mxu0 0.0
    %1180 = vmatpush1.xpose.msra.mxu0 0.0
    %1181 = vmatprep.subr.mxu0 0.0
    %1182 = vmatpush1.xpose.msra.mxu0 0.0
    %1183 = vmatprep.subr.mxu0 0.0
    %1184 = vmatpush1.xpose.msra.mxu0 0.0
    %1185 = vmatprep.subr.mxu0 0.0
    %1186 = vmatpush1.xpose.msra.mxu0 0.0
    %1187 = vmatprep.subr.mxu0 0.0
    %1188 = vmatpush1.xpose.msra.mxu0 0.0
    %1189 = vmatprep.subr.mxu0 0.0
    %1190 = vmatpush1.xpose.msra.mxu0 0.0
    %1191 = vmatprep.subr.mxu0 0.0
    %1192 = vmatpush1.xpose.msra.mxu0 0.0
    %1193 = vmatprep.subr.mxu0 0.0
    %1194 = vmatpush1.xpose.msra.mxu0 0.0
    %1195 = vmatprep.subr.mxu0 0.0
    %1196 = vmatpush1.xpose.msra.mxu0 0.0
    %1197 = vmatprep.subr.mxu0 0.0
    %1198 = vmatpush1.xpose.msra.mxu0 0.0
    %1199 = vmatprep.subr.mxu0 0.0
    %1200 = vmatpush1.xpose.msra.mxu0 0.0
    %1201 = vmatprep.subr.mxu0 0.0
    %1202 = vmatpush1.xpose.msra.mxu0 0.0
    %1203 = vmatprep.subr.mxu0 0.0
    %1204 = vmatpush1.xpose.msra.mxu0 0.0
    %1205 = vmatprep.subr.mxu0 0.0
    %1206 = vmatpush1.xpose.msra.mxu0 0.0
    %1207 = vmatprep.subr.mxu0 0.0
    %1208 = vmatpush1.xpose.msra.mxu0 0.0
    %1209 = vmatprep.subr.mxu0 0.0
    %1210 = vmatpush1.xpose.msra.mxu0 0.0
    %1211 = vmatprep.subr.mxu0 0.0
    %1212 = vmatpush1.xpose.msra.mxu0 0.0
    %1213 = vmatprep.subr.mxu0 0.0
    %1214 = vmatpush1.xpose.msra.mxu0 0.0
    %1215 = vmatprep.subr.mxu0 0.0
    %1216 = vmatpush1.xpose.msra.mxu0 0.0
    %1217 = vmatprep.subr.mxu0 0.0
    %1218 = vmatpush1.xpose.msra.mxu0 0.0
    %1219 = vmatprep.subr.mxu0 0.0
    %1220 = vmatpush1.xpose.msra.mxu0 0.0
    %1221 = vmatprep.mubr.f32.mxu0 0.0
    %1222 = vmatmul.mubr.f32.gmra.mrb[0].mxu0 %v1152
    %v1223 = vpop.f32.mrb[0].mxu0
    %v1224 = vadd.f32 0.0, %v1223
    %v1225 = vpop.f32.mrb[0].mxu0
    %1226 = vdwg.mxu0
    %v1227 = vmul.f32 %v1224, 0.35355338
    %v1228 = vadd.f32 %v1227, %v73
    %v1229 = vsel %vm399, %v1228, -inf
    %1230 = vmax.xlane.f32.xlu0 %v1229
    %v1231 = vpop.xlane.xlu0 %1230
    %v1232 = vsub.f32 %v1228, %v1231
    %v1233 = vmul.f32 %v1232, 1.442695
    %v1234 = vpow.pop %v1233
    %v1235 = vsel %vm399, %v1234, 0.0
    %1236 = vadd.xlane.f32.xlu0 %v1235
    %v1237 = vpop.xlane.xlu0 %1236
    %v1238 = vrcp.pop %v1237
    %v1239 = vmul.f32 %v1234, %v1238
    %v1241 = vsel %vm399, %v1239, 0
    %1243 = vmatprep.subr.mxu0 0.0
    %1244 = vmatpush1.msra.mxu0 %v986
    %1245 = vmatprep.subr.mxu0 0.0
    %1246 = vmatpush1.msra.mxu0 0.0
    %1247 = vmatprep.subr.mxu0 0.0
    %1248 = vmatpush1.msra.mxu0 0.0
    %1249 = vmatprep.subr.mxu0 0.0
    %1250 = vmatpush1.msra.mxu0 0.0
    %1251 = vmatprep.subr.mxu0 0.0
    %1252 = vmatpush1.msra.mxu0 0.0
    %1253 = vmatprep.subr.mxu0 0.0
    %1254 = vmatpush1.msra.mxu0 0.0
    %1255 = vmatprep.subr.mxu0 0.0
    %1256 = vmatpush1.msra.mxu0 0.0
    %1257 = vmatprep.subr.mxu0 0.0
    %1258 = vmatpush1.msra.mxu0 0.0
    %1259 = vmatprep.subr.mxu0 0.0
    %1260 = vmatpush1.msra.mxu0 0.0
    %1261 = vmatprep.subr.mxu0 0.0
    %1262 = vmatpush1.msra.mxu0 0.0
    %1263 = vmatprep.subr.mxu0 0.0
    %1264 = vmatpush1.msra.mxu0 0.0
    %1265 = vmatprep.subr.mxu0 0.0
    %1266 = vmatpush1.msra.mxu0 0.0
    %1267 = vmatprep.subr.mxu0 0.0
    %1268 = vmatpush1.msra.mxu0 0.0
    %1269 = vmatprep.subr.mxu0 0.0
    %1270 = vmatpush1.msra.mxu0 0.0
    %1271 = vmatprep.subr.mxu0 0.0
    %1272 = vmatpush1.msra.mxu0 0.0
    %1273 = vmatprep.subr.mxu0 0.0
    %1274 = vmatpush1.msra.mxu0 0.0
    %1275 = vmatprep.subr.mxu0 0.0
    %1276 = vmatpush1.msra.mxu0 0.0
    %1277 = vmatprep.subr.mxu0 0.0
    %1278 = vmatpush1.msra.mxu0 0.0
    %1279 = vmatprep.subr.mxu0 0.0
    %1280 = vmatpush1.msra.mxu0 0.0
    %1281 = vmatprep.subr.mxu0 0.0
    %1282 = vmatpush1.msra.mxu0 0.0
    %1283 = vmatprep.subr.mxu0 0.0
    %1284 = vmatpush1.msra.mxu0 0.0
    %1285 = vmatprep.subr.mxu0 0.0
    %1286 = vmatpush1.msra.mxu0 0.0
    %1287 = vmatprep.subr.mxu0 0.0
    %1288 = vmatpush1.msra.mxu0 0.0
    %1289 = vmatprep.subr.mxu0 0.0
    %1290 = vmatpush1.msra.mxu0 0.0
    %1291 = vmatprep.subr.mxu0 0.0
    %1292 = vmatpush1.msra.mxu0 0.0
    %1293 = vmatprep.subr.mxu0 0.0
    %1294 = vmatpush1.msra.mxu0 0.0
    %1295 = vmatprep.subr.mxu0 0.0
    %1296 = vmatpush1.msra.mxu0 0.0
    %1297 = vmatprep.subr.mxu0 0.0
    %1298 = vmatpush1.msra.mxu0 0.0
    %1299 = vmatprep.subr.mxu0 0.0
    %1300 = vmatpush1.msra.mxu0 0.0
    %1301 = vmatprep.subr.mxu0 0.0
    %1302 = vmatpush1.msra.mxu0 0.0
    %1303 = vmatprep.subr.mxu0 0.0
    %1304 = vmatpush1.msra.mxu0 0.0
    %1305 = vmatprep.subr.mxu0 0.0
    %1306 = vmatpush1.msra.mxu0 0.0
    %1307 = vmatprep.mubr.f32.mxu0 0.0
    %1308 = vmatmul.mubr.f32.gmra.mrb[0].mxu0 %v1241
    %v1309 = vpop.f32.mrb[0].mxu0
    %v1310 = vadd.f32 0.0, %v1309
    %v1311 = vpop.f32.mrb[0].mxu0
    %1312 = vdwg.mxu0
    %s1313 = scalar_lea.vmem %s10, 8
    %v1314 = vld [vmem:[%s1313] sm:$0xff]
    %v1316 = vsel %vm399, %v1148, 0
    %v1319 = vsel %vm399, %v1310, 0
    %1321 = vmatprep.subr.mxu0 0.0
    %1322 = vmatpush1.msra.mxu0 %v1314
    %1323 = vmatprep.subr.mxu0 0.0
    %1324 = vmatpush1.msra.mxu0 0.0
    %1325 = vmatprep.subr.mxu0 0.0
    %1326 = vmatpush1.msra.mxu0 0.0
    %1327 = vmatprep.subr.mxu0 0.0
    %1328 = vmatpush1.msra.mxu0 0.0
    %1329 = vmatprep.subr.mxu0 0.0
    %1330 = vmatpush1.msra.mxu0 0.0
    %1331 = vmatprep.subr.mxu0 0.0
    %1332 = vmatpush1.msra.mxu0 0.0
    %1333 = vmatprep.subr.mxu0 0.0
    %1334 = vmatpush1.msra.mxu0 0.0
    %1335 = vmatprep.subr.mxu0 0.0
    %1336 = vmatpush1.msra.mxu0 0.0
    %1337 = vmatprep.subr.mxu0 0.0
    %1338 = vmatpush1.msra.mxu0 0.0
    %1339 = vmatprep.subr.mxu0 0.0
    %1340 = vmatpush1.msra.mxu0 0.0
    %1341 = vmatprep.subr.mxu0 0.0
    %1342 = vmatpush1.msra.mxu0 0.0
    %1343 = vmatprep.subr.mxu0 0.0
    %1344 = vmatpush1.msra.mxu0 0.0
    %1345 = vmatprep.subr.mxu0 0.0
    %1346 = vmatpush1.msra.mxu0 0.0
    %1347 = vmatprep.subr.mxu0 0.0
    %1348 = vmatpush1.msra.mxu0 0.0
    %1349 = vmatprep.subr.mxu0 0.0
    %1350 = vmatpush1.msra.mxu0 0.0
    %1351 = vmatprep.subr.mxu0 0.0
    %1352 = vmatpush1.msra.mxu0 0.0
    %1353 = vmatprep.subr.mxu0 0.0
    %1354 = vmatpush1.msra.mxu0 0.0
    %1355 = vmatprep.subr.mxu0 0.0
    %1356 = vmatpush1.msra.mxu0 0.0
    %1357 = vmatprep.subr.mxu0 0.0
    %1358 = vmatpush1.msra.mxu0 0.0
    %1359 = vmatprep.subr.mxu0 0.0
    %1360 = vmatpush1.msra.mxu0 0.0
    %1361 = vmatprep.subr.mxu0 0.0
    %1362 = vmatpush1.msra.mxu0 0.0
    %1363 = vmatprep.subr.mxu0 0.0
    %1364 = vmatpush1.msra.mxu0 0.0
    %1365 = vmatprep.subr.mxu0 0.0
    %1366 = vmatpush1.msra.mxu0 0.0
    %1367 = vmatprep.subr.mxu0 0.0
    %1368 = vmatpush1.msra.mxu0 0.0
    %1369 = vmatprep.subr.mxu0 0.0
    %1370 = vmatpush1.msra.mxu0 0.0
    %1371 = vmatprep.subr.mxu0 0.0
    %1372 = vmatpush1.msra.mxu0 0.0
    %1373 = vmatprep.subr.mxu0 0.0
    %1374 = vmatpush1.msra.mxu0 0.0
    %1375 = vmatprep.subr.mxu0 0.0
    %1376 = vmatpush1.msra.mxu0 0.0
    %1377 = vmatprep.subr.mxu0 0.0
    %1378 = vmatpush1.msra.mxu0 0.0
    %1379 = vmatprep.subr.mxu0 0.0
    %1380 = vmatpush1.msra.mxu0 0.0
    %1381 = vmatprep.subr.mxu0 0.0
    %1382 = vmatpush1.msra.mxu0 0.0
    %1383 = vmatprep.subr.mxu0 0.0
    %1384 = vmatpush1.msra.mxu0 0.0
    %1385 = vmatprep.mubr.f32.mxu0 0.0
    %1386 = vmatmul.mubr.f32.gmra.mrb[0].mxu0 %v1316
    %v1387 = vpop.f32.mrb[0].mxu0
    %v1388 = vadd.f32 0.0, %v1387
    %v1389 = vpop.f32.mrb[0].mxu0
    %1390 = vmatprep.mubr.f32.mxu0 0.0
    %1391 = vmatmul.mubr.f32.gmra.mrb[0].mxu0 %v1319
    %v1392 = vpop.f32.mrb[0].mxu0
    %v1393 = vadd.f32 0.0, %v1392
    %v1394 = vpop.f32.mrb[0].mxu0
    %1395 = vdwg.mxu0
    %v1397 = vsel %vm399, %v559, 0
    %v1400 = vsel %vm399, %v721, 0
    %1402 = vmatprep.subr.mxu0 0.0
    %1403 = vmatpush1.msra.mxu0 %v724
    %1404 = vmatprep.subr.mxu0 0.0
    %1405 = vmatpush1.msra.mxu0 0.0
    %1406 = vmatprep.subr.mxu0 0.0
    %1407 = vmatpush1.msra.mxu0 0.0
    %1408 = vmatprep.subr.mxu0 0.0
    %1409 = vmatpush1.msra.mxu0 0.0
    %1410 = vmatprep.subr.mxu0 0.0
    %1411 = vmatpush1.msra.mxu0 0.0
    %1412 = vmatprep.subr.mxu0 0.0
    %1413 = vmatpush1.msra.mxu0 0.0
    %1414 = vmatprep.subr.mxu0 0.0
    %1415 = vmatpush1.msra.mxu0 0.0
    %1416 = vmatprep.subr.mxu0 0.0
    %1417 = vmatpush1.msra.mxu0 0.0
    %1418 = vmatprep.subr.mxu0 0.0
    %1419 = vmatpush1.msra.mxu0 0.0
    %1420 = vmatprep.subr.mxu0 0.0
    %1421 = vmatpush1.msra.mxu0 0.0
    %1422 = vmatprep.subr.mxu0 0.0
    %1423 = vmatpush1.msra.mxu0 0.0
    %1424 = vmatprep.subr.mxu0 0.0
    %1425 = vmatpush1.msra.mxu0 0.0
    %1426 = vmatprep.subr.mxu0 0.0
    %1427 = vmatpush1.msra.mxu0 0.0
    %1428 = vmatprep.subr.mxu0 0.0
    %1429 = vmatpush1.msra.mxu0 0.0
    %1430 = vmatprep.subr.mxu0 0.0
    %1431 = vmatpush1.msra.mxu0 0.0
    %1432 = vmatprep.subr.mxu0 0.0
    %1433 = vmatpush1.msra.mxu0 0.0
    %1434 = vmatprep.subr.mxu0 0.0
    %1435 = vmatpush1.msra.mxu0 0.0
    %1436 = vmatprep.subr.mxu0 0.0
    %1437 = vmatpush1.msra.mxu0 0.0
    %1438 = vmatprep.subr.mxu0 0.0
    %1439 = vmatpush1.msra.mxu0 0.0
    %1440 = vmatprep.subr.mxu0 0.0
    %1441 = vmatpush1.msra.mxu0 0.0
    %1442 = vmatprep.subr.mxu0 0.0
    %1443 = vmatpush1.msra.mxu0 0.0
    %1444 = vmatprep.subr.mxu0 0.0
    %1445 = vmatpush1.msra.mxu0 0.0
    %1446 = vmatprep.subr.mxu0 0.0
    %1447 = vmatpush1.msra.mxu0 0.0
    %1448 = vmatprep.subr.mxu0 0.0
    %1449 = vmatpush1.msra.mxu0 0.0
    %1450 = vmatprep.subr.mxu0 0.0
    %1451 = vmatpush1.msra.mxu0 0.0
    %1452 = vmatprep.subr.mxu0 0.0
    %1453 = vmatpush1.msra.mxu0 0.0
    %1454 = vmatprep.subr.mxu0 0.0
    %1455 = vmatpush1.msra.mxu0 0.0
    %1456 = vmatprep.subr.mxu0 0.0
    %1457 = vmatpush1.msra.mxu0 0.0
    %1458 = vmatprep.subr.mxu0 0.0
    %1459 = vmatpush1.msra.mxu0 0.0
    %1460 = vmatprep.subr.mxu0 0.0
    %1461 = vmatpush1.msra.mxu0 0.0
    %1462 = vmatprep.subr.mxu0 0.0
    %1463 = vmatpush1.msra.mxu0 0.0
    %1464 = vmatprep.subr.mxu0 0.0
    %1465 = vmatpush1.msra.mxu0 0.0
    %1466 = vmatprep.mubr.f32.mxu0 0.0
    %1467 = vmatmul.mubr.f32.gmra.mrb[0].mxu0 %v1397
    %v1468 = vpop.f32.mrb[0].mxu0
    %v1469 = vadd.f32 %v1388, %v1468
    %v1470 = vpop.f32.mrb[0].mxu0
    %1471 = vmatprep.mubr.f32.mxu0 0.0
    %1472 = vmatmul.mubr.f32.gmra.mrb[0].mxu0 %v1400
    %v1473 = vpop.f32.mrb[0].mxu0
    %v1474 = vadd.f32 %v1393, %v1473
    %v1475 = vpop.f32.mrb[0].mxu0
    %1476 = vdwg.mxu0
    %s1477 = scalar_lea.vmem %s4, 64
    %v1478 = vld [vmem:[%s1477] sm:$0xff]
    %v1479 = vld [vmem:[%s1477 + $0x8] sm:$0xff]
    %v1480 = vld [vmem:[%s1477 + $0x10] sm:$0xff]
    %v1481 = vld [vmem:[%s1477 + $0x18] sm:$0xff]
    %s1482 = scalar_lea.vmem %s5, 2
    %v1483 = vld [vmem:[%s1482] sm:$0x1]
    %v1485 = vlaneseq
    %v1486 = vshrl.u32 %v1485, 7
    %v1487 = vsub.s32 0, %v1486
    %v1488 = vrot.slane %v1483, %v1487
    %1490 = vmatprep.subr.mxu0 0.0
    %1491 = vmatpush1.msra.mxu0 %v1478
    %1492 = vmatprep.subr.mxu0 0.0
    %1493 = vmatpush1.msra.mxu0 %v1479
    %1494 = vmatprep.subr.mxu0 0.0
    %1495 = vmatpush1.msra.mxu0 %v1480
    %1496 = vmatprep.subr.mxu0 0.0
    %1497 = vmatpush1.msra.mxu0 %v1481
    %1498 = vmatprep.subr.mxu0 0.0
    %1499 = vmatpush1.msra.mxu0 0.0
    %1500 = vmatprep.subr.mxu0 0.0
    %1501 = vmatpush1.msra.mxu0 0.0
    %1502 = vmatprep.subr.mxu0 0.0
    %1503 = vmatpush1.msra.mxu0 0.0
    %1504 = vmatprep.subr.mxu0 0.0
    %1505 = vmatpush1.msra.mxu0 0.0
    %1506 = vmatprep.subr.mxu0 0.0
    %1507 = vmatpush1.msra.mxu0 0.0
    %1508 = vmatprep.subr.mxu0 0.0
    %1509 = vmatpush1.msra.mxu0 0.0
    %1510 = vmatprep.subr.mxu0 0.0
    %1511 = vmatpush1.msra.mxu0 0.0
    %1512 = vmatprep.subr.mxu0 0.0
    %1513 = vmatpush1.msra.mxu0 0.0
    %1514 = vmatprep.subr.mxu0 0.0
    %1515 = vmatpush1.msra.mxu0 0.0
    %1516 = vmatprep.subr.mxu0 0.0
    %1517 = vmatpush1.msra.mxu0 0.0
    %1518 = vmatprep.subr.mxu0 0.0
    %1519 = vmatpush1.msra.mxu0 0.0
    %1520 = vmatprep.subr.mxu0 0.0
    %1521 = vmatpush1.msra.mxu0 0.0
    %1522 = vmatprep.subr.mxu0 0.0
    %1523 = vmatpush1.msra.mxu0 0.0
    %1524 = vmatprep.subr.mxu0 0.0
    %1525 = vmatpush1.msra.mxu0 0.0
    %1526 = vmatprep.subr.mxu0 0.0
    %1527 = vmatpush1.msra.mxu0 0.0
    %1528 = vmatprep.subr.mxu0 0.0
    %1529 = vmatpush1.msra.mxu0 0.0
    %1530 = vmatprep.subr.mxu0 0.0
    %1531 = vmatpush1.msra.mxu0 0.0
    %1532 = vmatprep.subr.mxu0 0.0
    %1533 = vmatpush1.msra.mxu0 0.0
    %1534 = vmatprep.subr.mxu0 0.0
    %1535 = vmatpush1.msra.mxu0 0.0
    %1536 = vmatprep.subr.mxu0 0.0
    %1537 = vmatpush1.msra.mxu0 0.0
    %1538 = vmatprep.subr.mxu0 0.0
    %1539 = vmatpush1.msra.mxu0 0.0
    %1540 = vmatprep.subr.mxu0 0.0
    %1541 = vmatpush1.msra.mxu0 0.0
    %1542 = vmatprep.subr.mxu0 0.0
    %1543 = vmatpush1.msra.mxu0 0.0
    %1544 = vmatprep.subr.mxu0 0.0
    %1545 = vmatpush1.msra.mxu0 0.0
    %1546 = vmatprep.subr.mxu0 0.0
    %1547 = vmatpush1.msra.mxu0 0.0
    %1548 = vmatprep.subr.mxu0 0.0
    %1549 = vmatpush1.msra.mxu0 0.0
    %1550 = vmatprep.subr.mxu0 0.0
    %1551 = vmatpush1.msra.mxu0 0.0
    %1552 = vmatprep.subr.mxu0 0.0
    %1553 = vmatpush1.msra.mxu0 0.0
    %1554 = vmatprep.mubr.f32.mxu0 0.0
    %1555 = vmatmul.mubr.f32.gmra.mrb[0].mxu0 %v147
    %v1556 = vpop.f32.mrb[0].mxu0
    %v1557 = vadd.f32 %v1488, %v1556
    %v1558 = vpop.f32.mrb[0].mxu0
    %1559 = vmatprep.mubr.f32.mxu0 0.0
    %1560 = vmatmul.mubr.f32.gmra.mrb[0].mxu0 %v150
    %v1561 = vpop.f32.mrb[0].mxu0
    %v1562 = vadd.f32 %v1488, %v1561
    %v1563 = vpop.f32.mrb[0].mxu0
    %1564 = vdwg.mxu0
    %s1565 = scalar_lea.vmem %s6, 64
    %v1566 = vld [vmem:[%s1565] sm:$0xff]
    %v1567 = vld [vmem:[%s1565 + $0x8] sm:$0xff]
    %v1568 = vld [vmem:[%s1565 + $0x10] sm:$0xff]
    %v1569 = vld [vmem:[%s1565 + $0x18] sm:$0xff]
    %s1570 = scalar_lea.vmem %s7, 2
    %v1571 = vld [vmem:[%s1570] sm:$0x1]
    %v1573 = vlaneseq
    %v1574 = vshrl.u32 %v1573, 7
    %v1575 = vsub.s32 0, %v1574
    %v1576 = vrot.slane %v1571, %v1575
    %1578 = vmatprep.subr.mxu0 0.0
    %1579 = vmatpush1.msra.mxu0 %v1566
    %1580 = vmatprep.subr.mxu0 0.0
    %1581 = vmatpush1.msra.mxu0 %v1567
    %1582 = vmatprep.subr.mxu0 0.0
    %1583 = vmatpush1.msra.mxu0 %v1568
    %1584 = vmatprep.subr.mxu0 0.0
    %1585 = vmatpush1.msra.mxu0 %v1569
    %1586 = vmatprep.subr.mxu0 0.0
    %1587 = vmatpush1.msra.mxu0 0.0
    %1588 = vmatprep.subr.mxu0 0.0
    %1589 = vmatpush1.msra.mxu0 0.0
    %1590 = vmatprep.subr.mxu0 0.0
    %1591 = vmatpush1.msra.mxu0 0.0
    %1592 = vmatprep.subr.mxu0 0.0
    %1593 = vmatpush1.msra.mxu0 0.0
    %1594 = vmatprep.subr.mxu0 0.0
    %1595 = vmatpush1.msra.mxu0 0.0
    %1596 = vmatprep.subr.mxu0 0.0
    %1597 = vmatpush1.msra.mxu0 0.0
    %1598 = vmatprep.subr.mxu0 0.0
    %1599 = vmatpush1.msra.mxu0 0.0
    %1600 = vmatprep.subr.mxu0 0.0
    %1601 = vmatpush1.msra.mxu0 0.0
    %1602 = vmatprep.subr.mxu0 0.0
    %1603 = vmatpush1.msra.mxu0 0.0
    %1604 = vmatprep.subr.mxu0 0.0
    %1605 = vmatpush1.msra.mxu0 0.0
    %1606 = vmatprep.subr.mxu0 0.0
    %1607 = vmatpush1.msra.mxu0 0.0
    %1608 = vmatprep.subr.mxu0 0.0
    %1609 = vmatpush1.msra.mxu0 0.0
    %1610 = vmatprep.subr.mxu0 0.0
    %1611 = vmatpush1.msra.mxu0 0.0
    %1612 = vmatprep.subr.mxu0 0.0
    %1613 = vmatpush1.msra.mxu0 0.0
    %1614 = vmatprep.subr.mxu0 0.0
    %1615 = vmatpush1.msra.mxu0 0.0
    %1616 = vmatprep.subr.mxu0 0.0
    %1617 = vmatpush1.msra.mxu0 0.0
    %1618 = vmatprep.subr.mxu0 0.0
    %1619 = vmatpush1.msra.mxu0 0.0
    %1620 = vmatprep.subr.mxu0 0.0
    %1621 = vmatpush1.msra.mxu0 0.0
    %1622 = vmatprep.subr.mxu0 0.0
    %1623 = vmatpush1.msra.mxu0 0.0
    %1624 = vmatprep.subr.mxu0 0.0
    %1625 = vmatpush1.msra.mxu0 0.0
    %1626 = vmatprep.subr.mxu0 0.0
    %1627 = vmatpush1.msra.mxu0 0.0
    %1628 = vmatprep.subr.mxu0 0.0
    %1629 = vmatpush1.msra.mxu0 0.0
    %1630 = vmatprep.subr.mxu0 0.0
    %1631 = vmatpush1.msra.mxu0 0.0
    %1632 = vmatprep.subr.mxu0 0.0
    %1633 = vmatpush1.msra.mxu0 0.0
    %1634 = vmatprep.subr.mxu0 0.0
    %1635 = vmatpush1.msra.mxu0 0.0
    %1636 = vmatprep.subr.mxu0 0.0
    %1637 = vmatpush1.msra.mxu0 0.0
    %1638 = vmatprep.subr.mxu0 0.0
    %1639 = vmatpush1.msra.mxu0 0.0
    %1640 = vmatprep.subr.mxu0 0.0
    %1641 = vmatpush1.msra.mxu0 0.0
    %1642 = vmatprep.mubr.f32.mxu0 0.0
    %1643 = vmatmul.mubr.f32.gmra.mrb[0].mxu0 %v147
    %v1644 = vpop.f32.mrb[0].mxu0
    %v1645 = vadd.f32 %v1576, %v1644
    %v1646 = vpop.f32.mrb[0].mxu0
    %1647 = vmatprep.mubr.f32.mxu0 0.0
    %1648 = vmatmul.mubr.f32.gmra.mrb[0].mxu0 %v150
    %v1649 = vpop.f32.mrb[0].mxu0
    %v1650 = vadd.f32 %v1576, %v1649
    %v1651 = vpop.f32.mrb[0].mxu0
    %1652 = vdwg.mxu0
    %s1653 = scalar_lea.vmem %s8, 64
    %v1654 = vld [vmem:[%s1653] sm:$0xff]
    %v1655 = vld [vmem:[%s1653 + $0x8] sm:$0xff]
    %v1656 = vld [vmem:[%s1653 + $0x10] sm:$0xff]
    %v1657 = vld [vmem:[%s1653 + $0x18] sm:$0xff]
    %s1658 = scalar_lea.vmem %s9, 2
    %v1659 = vld [vmem:[%s1658] sm:$0x1]
    %v1661 = vlaneseq
    %v1662 = vshrl.u32 %v1661, 7
    %v1663 = vsub.s32 0, %v1662
    %v1664 = vrot.slane %v1659, %v1663
    %1666 = vmatprep.subr.mxu0 0.0
    %1667 = vmatpush1.msra.mxu0 %v1654
    %1668 = vmatprep.subr.mxu0 0.0
    %1669 = vmatpush1.msra.mxu0 %v1655
    %1670 = vmatprep.subr.mxu0 0.0
    %1671 = vmatpush1.msra.mxu0 %v1656
    %1672 = vmatprep.subr.mxu0 0.0
    %1673 = vmatpush1.msra.mxu0 %v1657
    %1674 = vmatprep.subr.mxu0 0.0
    %1675 = vmatpush1.msra.mxu0 0.0
    %1676 = vmatprep.subr.mxu0 0.0
    %1677 = vmatpush1.msra.mxu0 0.0
    %1678 = vmatprep.subr.mxu0 0.0
    %1679 = vmatpush1.msra.mxu0 0.0
    %1680 = vmatprep.subr.mxu0 0.0
    %1681 = vmatpush1.msra.mxu0 0.0
    %1682 = vmatprep.subr.mxu0 0.0
    %1683 = vmatpush1.msra.mxu0 0.0
    %1684 = vmatprep.subr.mxu0 0.0
    %1685 = vmatpush1.msra.mxu0 0.0
    %1686 = vmatprep.subr.mxu0 0.0
    %1687 = vmatpush1.msra.mxu0 0.0
    %1688 = vmatprep.subr.mxu0 0.0
    %1689 = vmatpush1.msra.mxu0 0.0
    %1690 = vmatprep.subr.mxu0 0.0
    %1691 = vmatpush1.msra.mxu0 0.0
    %1692 = vmatprep.subr.mxu0 0.0
    %1693 = vmatpush1.msra.mxu0 0.0
    %1694 = vmatprep.subr.mxu0 0.0
    %1695 = vmatpush1.msra.mxu0 0.0
    %1696 = vmatprep.subr.mxu0 0.0
    %1697 = vmatpush1.msra.mxu0 0.0
    %1698 = vmatprep.subr.mxu0 0.0
    %1699 = vmatpush1.msra.mxu0 0.0
    %1700 = vmatprep.subr.mxu0 0.0
    %1701 = vmatpush1.msra.mxu0 0.0
    %1702 = vmatprep.subr.mxu0 0.0
    %1703 = vmatpush1.msra.mxu0 0.0
    %1704 = vmatprep.subr.mxu0 0.0
    %1705 = vmatpush1.msra.mxu0 0.0
    %1706 = vmatprep.subr.mxu0 0.0
    %1707 = vmatpush1.msra.mxu0 0.0
    %1708 = vmatprep.subr.mxu0 0.0
    %1709 = vmatpush1.msra.mxu0 0.0
    %1710 = vmatprep.subr.mxu0 0.0
    %1711 = vmatpush1.msra.mxu0 0.0
    %1712 = vmatprep.subr.mxu0 0.0
    %1713 = vmatpush1.msra.mxu0 0.0
    %1714 = vmatprep.subr.mxu0 0.0
    %1715 = vmatpush1.msra.mxu0 0.0
    %1716 = vmatprep.subr.mxu0 0.0
    %1717 = vmatpush1.msra.mxu0 0.0
    %1718 = vmatprep.subr.mxu0 0.0
    %1719 = vmatpush1.msra.mxu0 0.0
    %1720 = vmatprep.subr.mxu0 0.0
    %1721 = vmatpush1.msra.mxu0 0.0
    %1722 = vmatprep.subr.mxu0 0.0
    %1723 = vmatpush1.msra.mxu0 0.0
    %1724 = vmatprep.subr.mxu0 0.0
    %1725 = vmatpush1.msra.mxu0 0.0
    %1726 = vmatprep.subr.mxu0 0.0
    %1727 = vmatpush1.msra.mxu0 0.0
    %1728 = vmatprep.subr.mxu0 0.0
    %1729 = vmatpush1.msra.mxu0 0.0
    %1730 = vmatprep.mubr.f32.mxu0 0.0
    %1731 = vmatmul.mubr.f32.gmra.mrb[0].mxu0 %v147
    %v1732 = vpop.f32.mrb[0].mxu0
    %v1733 = vadd.f32 %v1664, %v1732
    %v1734 = vpop.f32.mrb[0].mxu0
    %1735 = vmatprep.mubr.f32.mxu0 0.0
    %1736 = vmatmul.mubr.f32.gmra.mrb[0].mxu0 %v150
    %v1737 = vpop.f32.mrb[0].mxu0
    %v1738 = vadd.f32 %v1664, %v1737
    %v1739 = vpop.f32.mrb[0].mxu0
    %1740 = vdwg.mxu0
    %v1742 = vsel %vm399, %v1557, 0
    %v1745 = vsel %vm399, %v1645, 0
    %1747 = vmatprep.subr.mxu0 0.0
    %1748 = vmatpush1.xpose.msra.mxu0 %v1745
    %1749 = vmatprep.subr.mxu0 0.0
    %1750 = vmatpush1.xpose.msra.mxu0 0.0
    %1751 = vmatprep.subr.mxu0 0.0
    %1752 = vmatpush1.xpose.msra.mxu0 0.0
    %1753 = vmatprep.subr.mxu0 0.0
    %1754 = vmatpush1.xpose.msra.mxu0 0.0
    %1755 = vmatprep.subr.mxu0 0.0
    %1756 = vmatpush1.xpose.msra.mxu0 0.0
    %1757 = vmatprep.subr.mxu0 0.0
    %1758 = vmatpush1.xpose.msra.mxu0 0.0
    %1759 = vmatprep.subr.mxu0 0.0
    %1760 = vmatpush1.xpose.msra.mxu0 0.0
    %1761 = vmatprep.subr.mxu0 0.0
    %1762 = vmatpush1.xpose.msra.mxu0 0.0
    %1763 = vmatprep.subr.mxu0 0.0
    %1764 = vmatpush1.xpose.msra.mxu0 0.0
    %1765 = vmatprep.subr.mxu0 0.0
    %1766 = vmatpush1.xpose.msra.mxu0 0.0
    %1767 = vmatprep.subr.mxu0 0.0
    %1768 = vmatpush1.xpose.msra.mxu0 0.0
    %1769 = vmatprep.subr.mxu0 0.0
    %1770 = vmatpush1.xpose.msra.mxu0 0.0
    %1771 = vmatprep.subr.mxu0 0.0
    %1772 = vmatpush1.xpose.msra.mxu0 0.0
    %1773 = vmatprep.subr.mxu0 0.0
    %1774 = vmatpush1.xpose.msra.mxu0 0.0
    %1775 = vmatprep.subr.mxu0 0.0
    %1776 = vmatpush1.xpose.msra.mxu0 0.0
    %1777 = vmatprep.subr.mxu0 0.0
    %1778 = vmatpush1.xpose.msra.mxu0 0.0
    %1779 = vmatprep.subr.mxu0 0.0
    %1780 = vmatpush1.xpose.msra.mxu0 0.0
    %1781 = vmatprep.subr.mxu0 0.0
    %1782 = vmatpush1.xpose.msra.mxu0 0.0
    %1783 = vmatprep.subr.mxu0 0.0
    %1784 = vmatpush1.xpose.msra.mxu0 0.0
    %1785 = vmatprep.subr.mxu0 0.0
    %1786 = vmatpush1.xpose.msra.mxu0 0.0
    %1787 = vmatprep.subr.mxu0 0.0
    %1788 = vmatpush1.xpose.msra.mxu0 0.0
    %1789 = vmatprep.subr.mxu0 0.0
    %1790 = vmatpush1.xpose.msra.mxu0 0.0
    %1791 = vmatprep.subr.mxu0 0.0
    %1792 = vmatpush1.xpose.msra.mxu0 0.0
    %1793 = vmatprep.subr.mxu0 0.0
    %1794 = vmatpush1.xpose.msra.mxu0 0.0
    %1795 = vmatprep.subr.mxu0 0.0
    %1796 = vmatpush1.xpose.msra.mxu0 0.0
    %1797 = vmatprep.subr.mxu0 0.0
    %1798 = vmatpush1.xpose.msra.mxu0 0.0
    %1799 = vmatprep.subr.mxu0 0.0
    %1800 = vmatpush1.xpose.msra.mxu0 0.0
    %1801 = vmatprep.subr.mxu0 0.0
    %1802 = vmatpush1.xpose.msra.mxu0 0.0
    %1803 = vmatprep.subr.mxu0 0.0
    %1804 = vmatpush1.xpose.msra.mxu0 0.0
    %1805 = vmatprep.subr.mxu0 0.0
    %1806 = vmatpush1.xpose.msra.mxu0 0.0
    %1807 = vmatprep.subr.mxu0 0.0
    %1808 = vmatpush1.xpose.msra.mxu0 0.0
    %1809 = vmatprep.subr.mxu0 0.0
    %1810 = vmatpush1.xpose.msra.mxu0 0.0
    %1811 = vmatprep.mubr.f32.mxu0 0.0
    %1812 = vmatmul.mubr.f32.gmra.mrb[0].mxu0 %v1742
    %v1813 = vpop.f32.mrb[0].mxu0
    %v1814 = vadd.f32 0.0, %v1813
    %v1815 = vpop.f32.mrb[0].mxu0
    %1816 = vdwg.mxu0
    %v1817 = vmul.f32 %v1814, 0.35355338
    %v1818 = vadd.f32 %v1817, %v72
    %v1819 = vsel %vm399, %v1818, -inf
    %1820 = vmax.xlane.f32.xlu0 %v1819
    %v1821 = vpop.xlane.xlu0 %1820
    %v1822 = vsub.f32 %v1818, %v1821
    %v1823 = vmul.f32 %v1822, 1.442695
    %v1824 = vpow.pop %v1823
    %v1825 = vsel %vm399, %v1824, 0.0
    %1826 = vadd.xlane.f32.xlu0 %v1825
    %v1827 = vpop.xlane.xlu0 %1826
    %v1828 = vrcp.pop %v1827
    %v1829 = vmul.f32 %v1824, %v1828
    %v1831 = vsel %vm399, %v1829, 0
    %1833 = vmatprep.subr.mxu0 0.0
    %1834 = vmatpush1.msra.mxu0 %v1733
    %1835 = vmatprep.subr.mxu0 0.0
    %1836 = vmatpush1.msra.mxu0 0.0
    %1837 = vmatprep.subr.mxu0 0.0
    %1838 = vmatpush1.msra.mxu0 0.0
    %1839 = vmatprep.subr.mxu0 0.0
    %1840 = vmatpush1.msra.mxu0 0.0
    %1841 = vmatprep.subr.mxu0 0.0
    %1842 = vmatpush1.msra.mxu0 0.0
    %1843 = vmatprep.subr.mxu0 0.0
    %1844 = vmatpush1.msra.mxu0 0.0
    %1845 = vmatprep.subr.mxu0 0.0
    %1846 = vmatpush1.msra.mxu0 0.0
    %1847 = vmatprep.subr.mxu0 0.0
    %1848 = vmatpush1.msra.mxu0 0.0
    %1849 = vmatprep.subr.mxu0 0.0
    %1850 = vmatpush1.msra.mxu0 0.0
    %1851 = vmatprep.subr.mxu0 0.0
    %1852 = vmatpush1.msra.mxu0 0.0
    %1853 = vmatprep.subr.mxu0 0.0
    %1854 = vmatpush1.msra.mxu0 0.0
    %1855 = vmatprep.subr.mxu0 0.0
    %1856 = vmatpush1.msra.mxu0 0.0
    %1857 = vmatprep.subr.mxu0 0.0
    %1858 = vmatpush1.msra.mxu0 0.0
    %1859 = vmatprep.subr.mxu0 0.0
    %1860 = vmatpush1.msra.mxu0 0.0
    %1861 = vmatprep.subr.mxu0 0.0
    %1862 = vmatpush1.msra.mxu0 0.0
    %1863 = vmatprep.subr.mxu0 0.0
    %1864 = vmatpush1.msra.mxu0 0.0
    %1865 = vmatprep.subr.mxu0 0.0
    %1866 = vmatpush1.msra.mxu0 0.0
    %1867 = vmatprep.subr.mxu0 0.0
    %1868 = vmatpush1.msra.mxu0 0.0
    %1869 = vmatprep.subr.mxu0 0.0
    %1870 = vmatpush1.msra.mxu0 0.0
    %1871 = vmatprep.subr.mxu0 0.0
    %1872 = vmatpush1.msra.mxu0 0.0
    %1873 = vmatprep.subr.mxu0 0.0
    %1874 = vmatpush1.msra.mxu0 0.0
    %1875 = vmatprep.subr.mxu0 0.0
    %1876 = vmatpush1.msra.mxu0 0.0
    %1877 = vmatprep.subr.mxu0 0.0
    %1878 = vmatpush1.msra.mxu0 0.0
    %1879 = vmatprep.subr.mxu0 0.0
    %1880 = vmatpush1.msra.mxu0 0.0
    %1881 = vmatprep.subr.mxu0 0.0
    %1882 = vmatpush1.msra.mxu0 0.0
    %1883 = vmatprep.subr.mxu0 0.0
    %1884 = vmatpush1.msra.mxu0 0.0
    %1885 = vmatprep.subr.mxu0 0.0
    %1886 = vmatpush1.msra.mxu0 0.0
    %1887 = vmatprep.subr.mxu0 0.0
    %1888 = vmatpush1.msra.mxu0 0.0
    %1889 = vmatprep.subr.mxu0 0.0
    %1890 = vmatpush1.msra.mxu0 0.0
    %1891 = vmatprep.subr.mxu0 0.0
    %1892 = vmatpush1.msra.mxu0 0.0
    %1893 = vmatprep.subr.mxu0 0.0
    %1894 = vmatpush1.msra.mxu0 0.0
    %1895 = vmatprep.subr.mxu0 0.0
    %1896 = vmatpush1.msra.mxu0 0.0
    %1897 = vmatprep.mubr.f32.mxu0 0.0
    %1898 = vmatmul.mubr.f32.gmra.mrb[0].mxu0 %v1831
    %v1899 = vpop.f32.mrb[0].mxu0
    %v1900 = vadd.f32 0.0, %v1899
    %v1901 = vpop.f32.mrb[0].mxu0
    %1902 = vdwg.mxu0
    %v1904 = vsel %vm399, %v1562, 0
    %v1907 = vsel %vm399, %v1650, 0
    %1909 = vmatprep.subr.mxu0 0.0
    %1910 = vmatpush1.xpose.msra.mxu0 %v1907
    %1911 = vmatprep.subr.mxu0 0.0
    %1912 = vmatpush1.xpose.msra.mxu0 0.0
    %1913 = vmatprep.subr.mxu0 0.0
    %1914 = vmatpush1.xpose.msra.mxu0 0.0
    %1915 = vmatprep.subr.mxu0 0.0
    %1916 = vmatpush1.xpose.msra.mxu0 0.0
    %1917 = vmatprep.subr.mxu0 0.0
    %1918 = vmatpush1.xpose.msra.mxu0 0.0
    %1919 = vmatprep.subr.mxu0 0.0
    %1920 = vmatpush1.xpose.msra.mxu0 0.0
    %1921 = vmatprep.subr.mxu0 0.0
    %1922 = vmatpush1.xpose.msra.mxu0 0.0
    %1923 = vmatprep.subr.mxu0 0.0
    %1924 = vmatpush1.xpose.msra.mxu0 0.0
    %1925 = vmatprep.subr.mxu0 0.0
    %1926 = vmatpush1.xpose.msra.mxu0 0.0
    %1927 = vmatprep.subr.mxu0 0.0
    %1928 = vmatpush1.xpose.msra.mxu0 0.0
    %1929 = vmatprep.subr.mxu0 0.0
    %1930 = vmatpush1.xpose.msra.mxu0 0.0
    %1931 = vmatprep.subr.mxu0 0.0
    %1932 = vmatpush1.xpose.msra.mxu0 0.0
    %1933 = vmatprep.subr.mxu0 0.0
    %1934 = vmatpush1.xpose.msra.mxu0 0.0
    %1935 = vmatprep.subr.mxu0 0.0
    %1936 = vmatpush1.xpose.msra.mxu0 0.0
    %1937 = vmatprep.subr.mxu0 0.0
    %1938 = vmatpush1.xpose.msra.mxu0 0.0
    %1939 = vmatprep.subr.mxu0 0.0
    %1940 = vmatpush1.xpose.msra.mxu0 0.0
    %1941 = vmatprep.subr.mxu0 0.0
    %1942 = vmatpush1.xpose.msra.mxu0 0.0
    %1943 = vmatprep.subr.mxu0 0.0
    %1944 = vmatpush1.xpose.msra.mxu0 0.0
    %1945 = vmatprep.subr.mxu0 0.0
    %1946 = vmatpush1.xpose.msra.mxu0 0.0
    %1947 = vmatprep.subr.mxu0 0.0
    %1948 = vmatpush1.xpose.msra.mxu0 0.0
    %1949 = vmatprep.subr.mxu0 0.0
    %1950 = vmatpush1.xpose.msra.mxu0 0.0
    %1951 = vmatprep.subr.mxu0 0.0
    %1952 = vmatpush1.xpose.msra.mxu0 0.0
    %1953 = vmatprep.subr.mxu0 0.0
    %1954 = vmatpush1.xpose.msra.mxu0 0.0
    %1955 = vmatprep.subr.mxu0 0.0
    %1956 = vmatpush1.xpose.msra.mxu0 0.0
    %1957 = vmatprep.subr.mxu0 0.0
    %1958 = vmatpush1.xpose.msra.mxu0 0.0
    %1959 = vmatprep.subr.mxu0 0.0
    %1960 = vmatpush1.xpose.msra.mxu0 0.0
    %1961 = vmatprep.subr.mxu0 0.0
    %1962 = vmatpush1.xpose.msra.mxu0 0.0
    %1963 = vmatprep.subr.mxu0 0.0
    %1964 = vmatpush1.xpose.msra.mxu0 0.0
    %1965 = vmatprep.subr.mxu0 0.0
    %1966 = vmatpush1.xpose.msra.mxu0 0.0
    %1967 = vmatprep.subr.mxu0 0.0
    %1968 = vmatpush1.xpose.msra.mxu0 0.0
    %1969 = vmatprep.subr.mxu0 0.0
    %1970 = vmatpush1.xpose.msra.mxu0 0.0
    %1971 = vmatprep.subr.mxu0 0.0
    %1972 = vmatpush1.xpose.msra.mxu0 0.0
    %1973 = vmatprep.mubr.f32.mxu0 0.0
    %1974 = vmatmul.mubr.f32.gmra.mrb[0].mxu0 %v1904
    %v1975 = vpop.f32.mrb[0].mxu0
    %v1976 = vadd.f32 0.0, %v1975
    %v1977 = vpop.f32.mrb[0].mxu0
    %1978 = vdwg.mxu0
    %v1979 = vmul.f32 %v1976, 0.35355338
    %v1980 = vadd.f32 %v1979, %v73
    %v1981 = vsel %vm399, %v1980, -inf
    %1982 = vmax.xlane.f32.xlu0 %v1981
    %v1983 = vpop.xlane.xlu0 %1982
    %v1984 = vsub.f32 %v1980, %v1983
    %v1985 = vmul.f32 %v1984, 1.442695
    %v1986 = vpow.pop %v1985
    %v1987 = vsel %vm399, %v1986, 0.0
    %1988 = vadd.xlane.f32.xlu0 %v1987
    %v1989 = vpop.xlane.xlu0 %1988
    %v1990 = vrcp.pop %v1989
    %v1991 = vmul.f32 %v1986, %v1990
    %v1993 = vsel %vm399, %v1991, 0
    %1995 = vmatprep.subr.mxu0 0.0
    %1996 = vmatpush1.msra.mxu0 %v1738
    %1997 = vmatprep.subr.mxu0 0.0
    %1998 = vmatpush1.msra.mxu0 0.0
    %1999 = vmatprep.subr.mxu0 0.0
    %2000 = vmatpush1.msra.mxu0 0.0
    %2001 = vmatprep.subr.mxu0 0.0
    %2002 = vmatpush1.msra.mxu0 0.0
    %2003 = vmatprep.subr.mxu0 0.0
    %2004 = vmatpush1.msra.mxu0 0.0
    %2005 = vmatprep.subr.mxu0 0.0
    %2006 = vmatpush1.msra.mxu0 0.0
    %2007 = vmatprep.subr.mxu0 0.0
    %2008 = vmatpush1.msra.mxu0 0.0
    %2009 = vmatprep.subr.mxu0 0.0
    %2010 = vmatpush1.msra.mxu0 0.0
    %2011 = vmatprep.subr.mxu0 0.0
    %2012 = vmatpush1.msra.mxu0 0.0
    %2013 = vmatprep.subr.mxu0 0.0
    %2014 = vmatpush1.msra.mxu0 0.0
    %2015 = vmatprep.subr.mxu0 0.0
    %2016 = vmatpush1.msra.mxu0 0.0
    %2017 = vmatprep.subr.mxu0 0.0
    %2018 = vmatpush1.msra.mxu0 0.0
    %2019 = vmatprep.subr.mxu0 0.0
    %2020 = vmatpush1.msra.mxu0 0.0
    %2021 = vmatprep.subr.mxu0 0.0
    %2022 = vmatpush1.msra.mxu0 0.0
    %2023 = vmatprep.subr.mxu0 0.0
    %2024 = vmatpush1.msra.mxu0 0.0
    %2025 = vmatprep.subr.mxu0 0.0
    %2026 = vmatpush1.msra.mxu0 0.0
    %2027 = vmatprep.subr.mxu0 0.0
    %2028 = vmatpush1.msra.mxu0 0.0
    %2029 = vmatprep.subr.mxu0 0.0
    %2030 = vmatpush1.msra.mxu0 0.0
    %2031 = vmatprep.subr.mxu0 0.0
    %2032 = vmatpush1.msra.mxu0 0.0
    %2033 = vmatprep.subr.mxu0 0.0
    %2034 = vmatpush1.msra.mxu0 0.0
    %2035 = vmatprep.subr.mxu0 0.0
    %2036 = vmatpush1.msra.mxu0 0.0
    %2037 = vmatprep.subr.mxu0 0.0
    %2038 = vmatpush1.msra.mxu0 0.0
    %2039 = vmatprep.subr.mxu0 0.0
    %2040 = vmatpush1.msra.mxu0 0.0
    %2041 = vmatprep.subr.mxu0 0.0
    %2042 = vmatpush1.msra.mxu0 0.0
    %2043 = vmatprep.subr.mxu0 0.0
    %2044 = vmatpush1.msra.mxu0 0.0
    %2045 = vmatprep.subr.mxu0 0.0
    %2046 = vmatpush1.msra.mxu0 0.0
    %2047 = vmatprep.subr.mxu0 0.0
    %2048 = vmatpush1.msra.mxu0 0.0
    %2049 = vmatprep.subr.mxu0 0.0
    %2050 = vmatpush1.msra.mxu0 0.0
    %2051 = vmatprep.subr.mxu0 0.0
    %2052 = vmatpush1.msra.mxu0 0.0
    %2053 = vmatprep.subr.mxu0 0.0
    %2054 = vmatpush1.msra.mxu0 0.0
    %2055 = vmatprep.subr.mxu0 0.0
    %2056 = vmatpush1.msra.mxu0 0.0
    %2057 = vmatprep.subr.mxu0 0.0
    %2058 = vmatpush1.msra.mxu0 0.0
    %2059 = vmatprep.mubr.f32.mxu0 0.0
    %2060 = vmatmul.mubr.f32.gmra.mrb[0].mxu0 %v1993
    %v2061 = vpop.f32.mrb[0].mxu0
    %v2062 = vadd.f32 0.0, %v2061
    %v2063 = vpop.f32.mrb[0].mxu0
    %2064 = vdwg.mxu0
    %s2065 = scalar_lea.vmem %s10, 16
    %v2066 = vld [vmem:[%s2065] sm:$0xff]
    %v2068 = vsel %vm399, %v1900, 0
    %v2071 = vsel %vm399, %v2062, 0
    %2073 = vmatprep.subr.mxu0 0.0
    %2074 = vmatpush1.msra.mxu0 %v2066
    %2075 = vmatprep.subr.mxu0 0.0
    %2076 = vmatpush1.msra.mxu0 0.0
    %2077 = vmatprep.subr.mxu0 0.0
    %2078 = vmatpush1.msra.mxu0 0.0
    %2079 = vmatprep.subr.mxu0 0.0
    %2080 = vmatpush1.msra.mxu0 0.0
    %2081 = vmatprep.subr.mxu0 0.0
    %2082 = vmatpush1.msra.mxu0 0.0
    %2083 = vmatprep.subr.mxu0 0.0
    %2084 = vmatpush1.msra.mxu0 0.0
    %2085 = vmatprep.subr.mxu0 0.0
    %2086 = vmatpush1.msra.mxu0 0.0
    %2087 = vmatprep.subr.mxu0 0.0
    %2088 = vmatpush1.msra.mxu0 0.0
    %2089 = vmatprep.subr.mxu0 0.0
    %2090 = vmatpush1.msra.mxu0 0.0
    %2091 = vmatprep.subr.mxu0 0.0
    %2092 = vmatpush1.msra.mxu0 0.0
    %2093 = vmatprep.subr.mxu0 0.0
    %2094 = vmatpush1.msra.mxu0 0.0
    %2095 = vmatprep.subr.mxu0 0.0
    %2096 = vmatpush1.msra.mxu0 0.0
    %2097 = vmatprep.subr.mxu0 0.0
    %2098 = vmatpush1.msra.mxu0 0.0
    %2099 = vmatprep.subr.mxu0 0.0
    %2100 = vmatpush1.msra.mxu0 0.0
    %2101 = vmatprep.subr.mxu0 0.0
    %2102 = vmatpush1.msra.mxu0 0.0
    %2103 = vmatprep.subr.mxu0 0.0
    %2104 = vmatpush1.msra.mxu0 0.0
    %2105 = vmatprep.subr.mxu0 0.0
    %2106 = vmatpush1.msra.mxu0 0.0
    %2107 = vmatprep.subr.mxu0 0.0
    %2108 = vmatpush1.msra.mxu0 0.0
    %2109 = vmatprep.subr.mxu0 0.0
    %2110 = vmatpush1.msra.mxu0 0.0
    %2111 = vmatprep.subr.mxu0 0.0
    %2112 = vmatpush1.msra.mxu0 0.0
    %2113 = vmatprep.subr.mxu0 0.0
    %2114 = vmatpush1.msra.mxu0 0.0
    %2115 = vmatprep.subr.mxu0 0.0
    %2116 = vmatpush1.msra.mxu0 0.0
    %2117 = vmatprep.subr.mxu0 0.0
    %2118 = vmatpush1.msra.mxu0 0.0
    %2119 = vmatprep.subr.mxu0 0.0
    %2120 = vmatpush1.msra.mxu0 0.0
    %2121 = vmatprep.subr.mxu0 0.0
    %2122 = vmatpush1.msra.mxu0 0.0
    %2123 = vmatprep.subr.mxu0 0.0
    %2124 = vmatpush1.msra.mxu0 0.0
    %2125 = vmatprep.subr.mxu0 0.0
    %2126 = vmatpush1.msra.mxu0 0.0
    %2127 = vmatprep.subr.mxu0 0.0
    %2128 = vmatpush1.msra.mxu0 0.0
    %2129 = vmatprep.subr.mxu0 0.0
    %2130 = vmatpush1.msra.mxu0 0.0
    %2131 = vmatprep.subr.mxu0 0.0
    %2132 = vmatpush1.msra.mxu0 0.0
    %2133 = vmatprep.subr.mxu0 0.0
    %2134 = vmatpush1.msra.mxu0 0.0
    %2135 = vmatprep.subr.mxu0 0.0
    %2136 = vmatpush1.msra.mxu0 0.0
    %2137 = vmatprep.mubr.f32.mxu0 0.0
    %2138 = vmatmul.mubr.f32.gmra.mrb[0].mxu0 %v2068
    %v2139 = vpop.f32.mrb[0].mxu0
    %v2140 = vadd.f32 0.0, %v2139
    %v2141 = vpop.f32.mrb[0].mxu0
    %2142 = vmatprep.mubr.f32.mxu0 0.0
    %2143 = vmatmul.mubr.f32.gmra.mrb[0].mxu0 %v2071
    %v2144 = vpop.f32.mrb[0].mxu0
    %v2145 = vadd.f32 0.0, %v2144
    %v2146 = vpop.f32.mrb[0].mxu0
    %2147 = vdwg.mxu0
    %v2148 = vadd.f32 %v1469, %v2140
    %v2149 = vadd.f32 %v1474, %v2145
    %s2150 = scalar_lea.vmem %s4, 96
    %v2151 = vld [vmem:[%s2150] sm:$0xff]
    %v2152 = vld [vmem:[%s2150 + $0x8] sm:$0xff]
    %v2153 = vld [vmem:[%s2150 + $0x10] sm:$0xff]
    %v2154 = vld [vmem:[%s2150 + $0x18] sm:$0xff]
    %s2155 = scalar_lea.vmem %s5, 3
    %v2156 = vld [vmem:[%s2155] sm:$0x1]
    %v2158 = vlaneseq
    %v2159 = vshrl.u32 %v2158, 7
    %v2160 = vsub.s32 0, %v2159
    %v2161 = vrot.slane %v2156, %v2160
    %2163 = vmatprep.subr.mxu0 0.0
    %2164 = vmatpush1.msra.mxu0 %v2151
    %2165 = vmatprep.subr.mxu0 0.0
    %2166 = vmatpush1.msra.mxu0 %v2152
    %2167 = vmatprep.subr.mxu0 0.0
    %2168 = vmatpush1.msra.mxu0 %v2153
    %2169 = vmatprep.subr.mxu0 0.0
    %2170 = vmatpush1.msra.mxu0 %v2154
    %2171 = vmatprep.subr.mxu0 0.0
    %2172 = vmatpush1.msra.mxu0 0.0
    %2173 = vmatprep.subr.mxu0 0.0
    %2174 = vmatpush1.msra.mxu0 0.0
    %2175 = vmatprep.subr.mxu0 0.0
    %2176 = vmatpush1.msra.mxu0 0.0
    %2177 = vmatprep.subr.mxu0 0.0
    %2178 = vmatpush1.msra.mxu0 0.0
    %2179 = vmatprep.subr.mxu0 0.0
    %2180 = vmatpush1.msra.mxu0 0.0
    %2181 = vmatprep.subr.mxu0 0.0
    %2182 = vmatpush1.msra.mxu0 0.0
    %2183 = vmatprep.subr.mxu0 0.0
    %2184 = vmatpush1.msra.mxu0 0.0
    %2185 = vmatprep.subr.mxu0 0.0
    %2186 = vmatpush1.msra.mxu0 0.0
    %2187 = vmatprep.subr.mxu0 0.0
    %2188 = vmatpush1.msra.mxu0 0.0
    %2189 = vmatprep.subr.mxu0 0.0
    %2190 = vmatpush1.msra.mxu0 0.0
    %2191 = vmatprep.subr.mxu0 0.0
    %2192 = vmatpush1.msra.mxu0 0.0
    %2193 = vmatprep.subr.mxu0 0.0
    %2194 = vmatpush1.msra.mxu0 0.0
    %2195 = vmatprep.subr.mxu0 0.0
    %2196 = vmatpush1.msra.mxu0 0.0
    %2197 = vmatprep.subr.mxu0 0.0
    %2198 = vmatpush1.msra.mxu0 0.0
    %2199 = vmatprep.subr.mxu0 0.0
    %2200 = vmatpush1.msra.mxu0 0.0
    %2201 = vmatprep.subr.mxu0 0.0
    %2202 = vmatpush1.msra.mxu0 0.0
    %2203 = vmatprep.subr.mxu0 0.0
    %2204 = vmatpush1.msra.mxu0 0.0
    %2205 = vmatprep.subr.mxu0 0.0
    %2206 = vmatpush1.msra.mxu0 0.0
    %2207 = vmatprep.subr.mxu0 0.0
    %2208 = vmatpush1.msra.mxu0 0.0
    %2209 = vmatprep.subr.mxu0 0.0
    %2210 = vmatpush1.msra.mxu0 0.0
    %2211 = vmatprep.subr.mxu0 0.0
    %2212 = vmatpush1.msra.mxu0 0.0
    %2213 = vmatprep.subr.mxu0 0.0
    %2214 = vmatpush1.msra.mxu0 0.0
    %2215 = vmatprep.subr.mxu0 0.0
    %2216 = vmatpush1.msra.mxu0 0.0
    %2217 = vmatprep.subr.mxu0 0.0
    %2218 = vmatpush1.msra.mxu0 0.0
    %2219 = vmatprep.subr.mxu0 0.0
    %2220 = vmatpush1.msra.mxu0 0.0
    %2221 = vmatprep.subr.mxu0 0.0
    %2222 = vmatpush1.msra.mxu0 0.0
    %2223 = vmatprep.subr.mxu0 0.0
    %2224 = vmatpush1.msra.mxu0 0.0
    %2225 = vmatprep.subr.mxu0 0.0
    %2226 = vmatpush1.msra.mxu0 0.0
    %2227 = vmatprep.mubr.f32.mxu0 0.0
    %2228 = vmatmul.mubr.f32.gmra.mrb[0].mxu0 %v147
    %v2229 = vpop.f32.mrb[0].mxu0
    %v2230 = vadd.f32 %v2161, %v2229
    %v2231 = vpop.f32.mrb[0].mxu0
    %2232 = vmatprep.mubr.f32.mxu0 0.0
    %2233 = vmatmul.mubr.f32.gmra.mrb[0].mxu0 %v150
    %v2234 = vpop.f32.mrb[0].mxu0
    %v2235 = vadd.f32 %v2161, %v2234
    %v2236 = vpop.f32.mrb[0].mxu0
    %2237 = vdwg.mxu0
    %s2238 = scalar_lea.vmem %s6, 96
    %v2239 = vld [vmem:[%s2238] sm:$0xff]
    %v2240 = vld [vmem:[%s2238 + $0x8] sm:$0xff]
    %v2241 = vld [vmem:[%s2238 + $0x10] sm:$0xff]
    %v2242 = vld [vmem:[%s2238 + $0x18] sm:$0xff]
    %s2243 = scalar_lea.vmem %s7, 3
    %v2244 = vld [vmem:[%s2243] sm:$0x1]
    %v2246 = vlaneseq
    %v2247 = vshrl.u32 %v2246, 7
    %v2248 = vsub.s32 0, %v2247
    %v2249 = vrot.slane %v2244, %v2248
    %2251 = vmatprep.subr.mxu0 0.0
    %2252 = vmatpush1.msra.mxu0 %v2239
    %2253 = vmatprep.subr.mxu0 0.0
    %2254 = vmatpush1.msra.mxu0 %v2240
    %2255 = vmatprep.subr.mxu0 0.0
    %2256 = vmatpush1.msra.mxu0 %v2241
    %2257 = vmatprep.subr.mxu0 0.0
    %2258 = vmatpush1.msra.mxu0 %v2242
    %2259 = vmatprep.subr.mxu0 0.0
    %2260 = vmatpush1.msra.mxu0 0.0
    %2261 = vmatprep.subr.mxu0 0.0
    %2262 = vmatpush1.msra.mxu0 0.0
    %2263 = vmatprep.subr.mxu0 0.0
    %2264 = vmatpush1.msra.mxu0 0.0
    %2265 = vmatprep.subr.mxu0 0.0
    %2266 = vmatpush1.msra.mxu0 0.0
    %2267 = vmatprep.subr.mxu0 0.0
    %2268 = vmatpush1.msra.mxu0 0.0
    %2269 = vmatprep.subr.mxu0 0.0
    %2270 = vmatpush1.msra.mxu0 0.0
    %2271 = vmatprep.subr.mxu0 0.0
    %2272 = vmatpush1.msra.mxu0 0.0
    %2273 = vmatprep.subr.mxu0 0.0
    %2274 = vmatpush1.msra.mxu0 0.0
    %2275 = vmatprep.subr.mxu0 0.0
    %2276 = vmatpush1.msra.mxu0 0.0
    %2277 = vmatprep.subr.mxu0 0.0
    %2278 = vmatpush1.msra.mxu0 0.0
    %2279 = vmatprep.subr.mxu0 0.0
    %2280 = vmatpush1.msra.mxu0 0.0
    %2281 = vmatprep.subr.mxu0 0.0
    %2282 = vmatpush1.msra.mxu0 0.0
    %2283 = vmatprep.subr.mxu0 0.0
    %2284 = vmatpush1.msra.mxu0 0.0
    %2285 = vmatprep.subr.mxu0 0.0
    %2286 = vmatpush1.msra.mxu0 0.0
    %2287 = vmatprep.subr.mxu0 0.0
    %2288 = vmatpush1.msra.mxu0 0.0
    %2289 = vmatprep.subr.mxu0 0.0
    %2290 = vmatpush1.msra.mxu0 0.0
    %2291 = vmatprep.subr.mxu0 0.0
    %2292 = vmatpush1.msra.mxu0 0.0
    %2293 = vmatprep.subr.mxu0 0.0
    %2294 = vmatpush1.msra.mxu0 0.0
    %2295 = vmatprep.subr.mxu0 0.0
    %2296 = vmatpush1.msra.mxu0 0.0
    %2297 = vmatprep.subr.mxu0 0.0
    %2298 = vmatpush1.msra.mxu0 0.0
    %2299 = vmatprep.subr.mxu0 0.0
    %2300 = vmatpush1.msra.mxu0 0.0
    %2301 = vmatprep.subr.mxu0 0.0
    %2302 = vmatpush1.msra.mxu0 0.0
    %2303 = vmatprep.subr.mxu0 0.0
    %2304 = vmatpush1.msra.mxu0 0.0
    %2305 = vmatprep.subr.mxu0 0.0
    %2306 = vmatpush1.msra.mxu0 0.0
    %2307 = vmatprep.subr.mxu0 0.0
    %2308 = vmatpush1.msra.mxu0 0.0
    %2309 = vmatprep.subr.mxu0 0.0
    %2310 = vmatpush1.msra.mxu0 0.0
    %2311 = vmatprep.subr.mxu0 0.0
    %2312 = vmatpush1.msra.mxu0 0.0
    %2313 = vmatprep.subr.mxu0 0.0
    %2314 = vmatpush1.msra.mxu0 0.0
    %2315 = vmatprep.mubr.f32.mxu0 0.0
    %2316 = vmatmul.mubr.f32.gmra.mrb[0].mxu0 %v147
    %v2317 = vpop.f32.mrb[0].mxu0
    %v2318 = vadd.f32 %v2249, %v2317
    %v2319 = vpop.f32.mrb[0].mxu0
    %2320 = vmatprep.mubr.f32.mxu0 0.0
    %2321 = vmatmul.mubr.f32.gmra.mrb[0].mxu0 %v150
    %v2322 = vpop.f32.mrb[0].mxu0
    %v2323 = vadd.f32 %v2249, %v2322
    %v2324 = vpop.f32.mrb[0].mxu0
    %2325 = vdwg.mxu0
    %s2326 = scalar_lea.vmem %s8, 96
    %v2327 = vld [vmem:[%s2326] sm:$0xff]
    %v2328 = vld [vmem:[%s2326 + $0x8] sm:$0xff]
    %v2329 = vld [vmem:[%s2326 + $0x10] sm:$0xff]
    %v2330 = vld [vmem:[%s2326 + $0x18] sm:$0xff]
    %s2331 = scalar_lea.vmem %s9, 3
    %v2332 = vld [vmem:[%s2331] sm:$0x1]
    %v2334 = vlaneseq
    %v2335 = vshrl.u32 %v2334, 7
    %v2336 = vsub.s32 0, %v2335
    %v2337 = vrot.slane %v2332, %v2336
    %2339 = vmatprep.subr.mxu0 0.0
    %2340 = vmatpush1.msra.mxu0 %v2327
    %2341 = vmatprep.subr.mxu0 0.0
    %2342 = vmatpush1.msra.mxu0 %v2328
    %2343 = vmatprep.subr.mxu0 0.0
    %2344 = vmatpush1.msra.mxu0 %v2329
    %2345 = vmatprep.subr.mxu0 0.0
    %2346 = vmatpush1.msra.mxu0 %v2330
    %2347 = vmatprep.subr.mxu0 0.0
    %2348 = vmatpush1.msra.mxu0 0.0
    %2349 = vmatprep.subr.mxu0 0.0
    %2350 = vmatpush1.msra.mxu0 0.0
    %2351 = vmatprep.subr.mxu0 0.0
    %2352 = vmatpush1.msra.mxu0 0.0
    %2353 = vmatprep.subr.mxu0 0.0
    %2354 = vmatpush1.msra.mxu0 0.0
    %2355 = vmatprep.subr.mxu0 0.0
    %2356 = vmatpush1.msra.mxu0 0.0
    %2357 = vmatprep.subr.mxu0 0.0
    %2358 = vmatpush1.msra.mxu0 0.0
    %2359 = vmatprep.subr.mxu0 0.0
    %2360 = vmatpush1.msra.mxu0 0.0
    %2361 = vmatprep.subr.mxu0 0.0
    %2362 = vmatpush1.msra.mxu0 0.0
    %2363 = vmatprep.subr.mxu0 0.0
    %2364 = vmatpush1.msra.mxu0 0.0
    %2365 = vmatprep.subr.mxu0 0.0
    %2366 = vmatpush1.msra.mxu0 0.0
    %2367 = vmatprep.subr.mxu0 0.0
    %2368 = vmatpush1.msra.mxu0 0.0
    %2369 = vmatprep.subr.mxu0 0.0
    %2370 = vmatpush1.msra.mxu0 0.0
    %2371 = vmatprep.subr.mxu0 0.0
    %2372 = vmatpush1.msra.mxu0 0.0
    %2373 = vmatprep.subr.mxu0 0.0
    %2374 = vmatpush1.msra.mxu0 0.0
    %2375 = vmatprep.subr.mxu0 0.0
    %2376 = vmatpush1.msra.mxu0 0.0
    %2377 = vmatprep.subr.mxu0 0.0
    %2378 = vmatpush1.msra.mxu0 0.0
    %2379 = vmatprep.subr.mxu0 0.0
    %2380 = vmatpush1.msra.mxu0 0.0
    %2381 = vmatprep.subr.mxu0 0.0
    %2382 = vmatpush1.msra.mxu0 0.0
    %2383 = vmatprep.subr.mxu0 0.0
    %2384 = vmatpush1.msra.mxu0 0.0
    %2385 = vmatprep.subr.mxu0 0.0
    %2386 = vmatpush1.msra.mxu0 0.0
    %2387 = vmatprep.subr.mxu0 0.0
    %2388 = vmatpush1.msra.mxu0 0.0
    %2389 = vmatprep.subr.mxu0 0.0
    %2390 = vmatpush1.msra.mxu0 0.0
    %2391 = vmatprep.subr.mxu0 0.0
    %2392 = vmatpush1.msra.mxu0 0.0
    %2393 = vmatprep.subr.mxu0 0.0
    %2394 = vmatpush1.msra.mxu0 0.0
    %2395 = vmatprep.subr.mxu0 0.0
    %2396 = vmatpush1.msra.mxu0 0.0
    %2397 = vmatprep.subr.mxu0 0.0
    %2398 = vmatpush1.msra.mxu0 0.0
    %2399 = vmatprep.subr.mxu0 0.0
    %2400 = vmatpush1.msra.mxu0 0.0
    %2401 = vmatprep.subr.mxu0 0.0
    %2402 = vmatpush1.msra.mxu0 0.0
    %2403 = vmatprep.mubr.f32.mxu0 0.0
    %2404 = vmatmul.mubr.f32.gmra.mrb[0].mxu0 %v147
    %v2405 = vpop.f32.mrb[0].mxu0
    %v2406 = vadd.f32 %v2337, %v2405
    %v2407 = vpop.f32.mrb[0].mxu0
    %2408 = vmatprep.mubr.f32.mxu0 0.0
    %2409 = vmatmul.mubr.f32.gmra.mrb[0].mxu0 %v150
    %v2410 = vpop.f32.mrb[0].mxu0
    %v2411 = vadd.f32 %v2337, %v2410
    %v2412 = vpop.f32.mrb[0].mxu0
    %2413 = vdwg.mxu0
    %v2415 = vsel %vm399, %v2230, 0
    %v2418 = vsel %vm399, %v2318, 0
    %2420 = vmatprep.subr.mxu0 0.0
    %2421 = vmatpush1.xpose.msra.mxu0 %v2418
    %2422 = vmatprep.subr.mxu0 0.0
    %2423 = vmatpush1.xpose.msra.mxu0 0.0
    %2424 = vmatprep.subr.mxu0 0.0
    %2425 = vmatpush1.xpose.msra.mxu0 0.0
    %2426 = vmatprep.subr.mxu0 0.0
    %2427 = vmatpush1.xpose.msra.mxu0 0.0
    %2428 = vmatprep.subr.mxu0 0.0
    %2429 = vmatpush1.xpose.msra.mxu0 0.0
    %2430 = vmatprep.subr.mxu0 0.0
    %2431 = vmatpush1.xpose.msra.mxu0 0.0
    %2432 = vmatprep.subr.mxu0 0.0
    %2433 = vmatpush1.xpose.msra.mxu0 0.0
    %2434 = vmatprep.subr.mxu0 0.0
    %2435 = vmatpush1.xpose.msra.mxu0 0.0
    %2436 = vmatprep.subr.mxu0 0.0
    %2437 = vmatpush1.xpose.msra.mxu0 0.0
    %2438 = vmatprep.subr.mxu0 0.0
    %2439 = vmatpush1.xpose.msra.mxu0 0.0
    %2440 = vmatprep.subr.mxu0 0.0
    %2441 = vmatpush1.xpose.msra.mxu0 0.0
    %2442 = vmatprep.subr.mxu0 0.0
    %2443 = vmatpush1.xpose.msra.mxu0 0.0
    %2444 = vmatprep.subr.mxu0 0.0
    %2445 = vmatpush1.xpose.msra.mxu0 0.0
    %2446 = vmatprep.subr.mxu0 0.0
    %2447 = vmatpush1.xpose.msra.mxu0 0.0
    %2448 = vmatprep.subr.mxu0 0.0
    %2449 = vmatpush1.xpose.msra.mxu0 0.0
    %2450 = vmatprep.subr.mxu0 0.0
    %2451 = vmatpush1.xpose.msra.mxu0 0.0
    %2452 = vmatprep.subr.mxu0 0.0
    %2453 = vmatpush1.xpose.msra.mxu0 0.0
    %2454 = vmatprep.subr.mxu0 0.0
    %2455 = vmatpush1.xpose.msra.mxu0 0.0
    %2456 = vmatprep.subr.mxu0 0.0
    %2457 = vmatpush1.xpose.msra.mxu0 0.0
    %2458 = vmatprep.subr.mxu0 0.0
    %2459 = vmatpush1.xpose.msra.mxu0 0.0
    %2460 = vmatprep.subr.mxu0 0.0
    %2461 = vmatpush1.xpose.msra.mxu0 0.0
    %2462 = vmatprep.subr.mxu0 0.0
    %2463 = vmatpush1.xpose.msra.mxu0 0.0
    %2464 = vmatprep.subr.mxu0 0.0
    %2465 = vmatpush1.xpose.msra.mxu0 0.0
    %2466 = vmatprep.subr.mxu0 0.0
    %2467 = vmatpush1.xpose.msra.mxu0 0.0
    %2468 = vmatprep.subr.mxu0 0.0
    %2469 = vmatpush1.xpose.msra.mxu0 0.0
    %2470 = vmatprep.subr.mxu0 0.0
    %2471 = vmatpush1.xpose.msra.mxu0 0.0
    %2472 = vmatprep.subr.mxu0 0.0
    %2473 = vmatpush1.xpose.msra.mxu0 0.0
    %2474 = vmatprep.subr.mxu0 0.0
    %2475 = vmatpush1.xpose.msra.mxu0 0.0
    %2476 = vmatprep.subr.mxu0 0.0
    %2477 = vmatpush1.xpose.msra.mxu0 0.0
    %2478 = vmatprep.subr.mxu0 0.0
    %2479 = vmatpush1.xpose.msra.mxu0 0.0
    %2480 = vmatprep.subr.mxu0 0.0
    %2481 = vmatpush1.xpose.msra.mxu0 0.0
    %2482 = vmatprep.subr.mxu0 0.0
    %2483 = vmatpush1.xpose.msra.mxu0 0.0
    %2484 = vmatprep.mubr.f32.mxu0 0.0
    %2485 = vmatmul.mubr.f32.gmra.mrb[0].mxu0 %v2415
    %v2486 = vpop.f32.mrb[0].mxu0
    %v2487 = vadd.f32 0.0, %v2486
    %v2488 = vpop.f32.mrb[0].mxu0
    %2489 = vdwg.mxu0
    %v2490 = vmul.f32 %v2487, 0.35355338
    %v2491 = vadd.f32 %v2490, %v72
    %v2492 = vsel %vm399, %v2491, -inf
    %2493 = vmax.xlane.f32.xlu0 %v2492
    %v2494 = vpop.xlane.xlu0 %2493
    %v2495 = vsub.f32 %v2491, %v2494
    %v2496 = vmul.f32 %v2495, 1.442695
    %v2497 = vpow.pop %v2496
    %v2498 = vsel %vm399, %v2497, 0.0
    %2499 = vadd.xlane.f32.xlu0 %v2498
    %v2500 = vpop.xlane.xlu0 %2499
    %v2501 = vrcp.pop %v2500
    %v2502 = vmul.f32 %v2497, %v2501
    %v2504 = vsel %vm399, %v2502, 0
    %2506 = vmatprep.subr.mxu0 0.0
    %2507 = vmatpush1.msra.mxu0 %v2406
    %2508 = vmatprep.subr.mxu0 0.0
    %2509 = vmatpush1.msra.mxu0 0.0
    %2510 = vmatprep.subr.mxu0 0.0
    %2511 = vmatpush1.msra.mxu0 0.0
    %2512 = vmatprep.subr.mxu0 0.0
    %2513 = vmatpush1.msra.mxu0 0.0
    %2514 = vmatprep.subr.mxu0 0.0
    %2515 = vmatpush1.msra.mxu0 0.0
    %2516 = vmatprep.subr.mxu0 0.0
    %2517 = vmatpush1.msra.mxu0 0.0
    %2518 = vmatprep.subr.mxu0 0.0
    %2519 = vmatpush1.msra.mxu0 0.0
    %2520 = vmatprep.subr.mxu0 0.0
    %2521 = vmatpush1.msra.mxu0 0.0
    %2522 = vmatprep.subr.mxu0 0.0
    %2523 = vmatpush1.msra.mxu0 0.0
    %2524 = vmatprep.subr.mxu0 0.0
    %2525 = vmatpush1.msra.mxu0 0.0
    %2526 = vmatprep.subr.mxu0 0.0
    %2527 = vmatpush1.msra.mxu0 0.0
    %2528 = vmatprep.subr.mxu0 0.0
    %2529 = vmatpush1.msra.mxu0 0.0
    %2530 = vmatprep.subr.mxu0 0.0
    %2531 = vmatpush1.msra.mxu0 0.0
    %2532 = vmatprep.subr.mxu0 0.0
    %2533 = vmatpush1.msra.mxu0 0.0
    %2534 = vmatprep.subr.mxu0 0.0
    %2535 = vmatpush1.msra.mxu0 0.0
    %2536 = vmatprep.subr.mxu0 0.0
    %2537 = vmatpush1.msra.mxu0 0.0
    %2538 = vmatprep.subr.mxu0 0.0
    %2539 = vmatpush1.msra.mxu0 0.0
    %2540 = vmatprep.subr.mxu0 0.0
    %2541 = vmatpush1.msra.mxu0 0.0
    %2542 = vmatprep.subr.mxu0 0.0
    %2543 = vmatpush1.msra.mxu0 0.0
    %2544 = vmatprep.subr.mxu0 0.0
    %2545 = vmatpush1.msra.mxu0 0.0
    %2546 = vmatprep.subr.mxu0 0.0
    %2547 = vmatpush1.msra.mxu0 0.0
    %2548 = vmatprep.subr.mxu0 0.0
    %2549 = vmatpush1.msra.mxu0 0.0
    %2550 = vmatprep.subr.mxu0 0.0
    %2551 = vmatpush1.msra.mxu0 0.0
    %2552 = vmatprep.subr.mxu0 0.0
    %2553 = vmatpush1.msra.mxu0 0.0
    %2554 = vmatprep.subr.mxu0 0.0
    %2555 = vmatpush1.msra.mxu0 0.0
    %2556 = vmatprep.subr.mxu0 0.0
    %2557 = vmatpush1.msra.mxu0 0.0
    %2558 = vmatprep.subr.mxu0 0.0
    %2559 = vmatpush1.msra.mxu0 0.0
    %2560 = vmatprep.subr.mxu0 0.0
    %2561 = vmatpush1.msra.mxu0 0.0
    %2562 = vmatprep.subr.mxu0 0.0
    %2563 = vmatpush1.msra.mxu0 0.0
    %2564 = vmatprep.subr.mxu0 0.0
    %2565 = vmatpush1.msra.mxu0 0.0
    %2566 = vmatprep.subr.mxu0 0.0
    %2567 = vmatpush1.msra.mxu0 0.0
    %2568 = vmatprep.subr.mxu0 0.0
    %2569 = vmatpush1.msra.mxu0 0.0
    %2570 = vmatprep.mubr.f32.mxu0 0.0
    %2571 = vmatmul.mubr.f32.gmra.mrb[0].mxu0 %v2504
    %v2572 = vpop.f32.mrb[0].mxu0
    %v2573 = vadd.f32 0.0, %v2572
    %v2574 = vpop.f32.mrb[0].mxu0
    %2575 = vdwg.mxu0
    %v2577 = vsel %vm399, %v2235, 0
    %v2580 = vsel %vm399, %v2323, 0
    %2582 = vmatprep.subr.mxu0 0.0
    %2583 = vmatpush1.xpose.msra.mxu0 %v2580
    %2584 = vmatprep.subr.mxu0 0.0
    %2585 = vmatpush1.xpose.msra.mxu0 0.0
    %2586 = vmatprep.subr.mxu0 0.0
    %2587 = vmatpush1.xpose.msra.mxu0 0.0
    %2588 = vmatprep.subr.mxu0 0.0
    %2589 = vmatpush1.xpose.msra.mxu0 0.0
    %2590 = vmatprep.subr.mxu0 0.0
    %2591 = vmatpush1.xpose.msra.mxu0 0.0
    %2592 = vmatprep.subr.mxu0 0.0
    %2593 = vmatpush1.xpose.msra.mxu0 0.0
    %2594 = vmatprep.subr.mxu0 0.0
    %2595 = vmatpush1.xpose.msra.mxu0 0.0
    %2596 = vmatprep.subr.mxu0 0.0
    %2597 = vmatpush1.xpose.msra.mxu0 0.0
    %2598 = vmatprep.subr.mxu0 0.0
    %2599 = vmatpush1.xpose.msra.mxu0 0.0
    %2600 = vmatprep.subr.mxu0 0.0
    %2601 = vmatpush1.xpose.msra.mxu0 0.0
    %2602 = vmatprep.subr.mxu0 0.0
    %2603 = vmatpush1.xpose.msra.mxu0 0.0
    %2604 = vmatprep.subr.mxu0 0.0
    %2605 = vmatpush1.xpose.msra.mxu0 0.0
    %2606 = vmatprep.subr.mxu0 0.0
    %2607 = vmatpush1.xpose.msra.mxu0 0.0
    %2608 = vmatprep.subr.mxu0 0.0
    %2609 = vmatpush1.xpose.msra.mxu0 0.0
    %2610 = vmatprep.subr.mxu0 0.0
    %2611 = vmatpush1.xpose.msra.mxu0 0.0
    %2612 = vmatprep.subr.mxu0 0.0
    %2613 = vmatpush1.xpose.msra.mxu0 0.0
    %2614 = vmatprep.subr.mxu0 0.0
    %2615 = vmatpush1.xpose.msra.mxu0 0.0
    %2616 = vmatprep.subr.mxu0 0.0
    %2617 = vmatpush1.xpose.msra.mxu0 0.0
    %2618 = vmatprep.subr.mxu0 0.0
    %2619 = vmatpush1.xpose.msra.mxu0 0.0
    %2620 = vmatprep.subr.mxu0 0.0
    %2621 = vmatpush1.xpose.msra.mxu0 0.0
    %2622 = vmatprep.subr.mxu0 0.0
    %2623 = vmatpush1.xpose.msra.mxu0 0.0
    %2624 = vmatprep.subr.mxu0 0.0
    %2625 = vmatpush1.xpose.msra.mxu0 0.0
    %2626 = vmatprep.subr.mxu0 0.0
    %2627 = vmatpush1.xpose.msra.mxu0 0.0
    %2628 = vmatprep.subr.mxu0 0.0
    %2629 = vmatpush1.xpose.msra.mxu0 0.0
    %2630 = vmatprep.subr.mxu0 0.0
    %2631 = vmatpush1.xpose.msra.mxu0 0.0
    %2632 = vmatprep.subr.mxu0 0.0
    %2633 = vmatpush1.xpose.msra.mxu0 0.0
    %2634 = vmatprep.subr.mxu0 0.0
    %2635 = vmatpush1.xpose.msra.mxu0 0.0
    %2636 = vmatprep.subr.mxu0 0.0
    %2637 = vmatpush1.xpose.msra.mxu0 0.0
    %2638 = vmatprep.subr.mxu0 0.0
    %2639 = vmatpush1.xpose.msra.mxu0 0.0
    %2640 = vmatprep.subr.mxu0 0.0
    %2641 = vmatpush1.xpose.msra.mxu0 0.0
    %2642 = vmatprep.subr.mxu0 0.0
    %2643 = vmatpush1.xpose.msra.mxu0 0.0
    %2644 = vmatprep.subr.mxu0 0.0
    %2645 = vmatpush1.xpose.msra.mxu0 0.0
    %2646 = vmatprep.mubr.f32.mxu0 0.0
    %2647 = vmatmul.mubr.f32.gmra.mrb[0].mxu0 %v2577
    %v2648 = vpop.f32.mrb[0].mxu0
    %v2649 = vadd.f32 0.0, %v2648
    %v2650 = vpop.f32.mrb[0].mxu0
    %2651 = vdwg.mxu0
    %v2652 = vmul.f32 %v2649, 0.35355338
    %v2653 = vadd.f32 %v2652, %v73
    %v2654 = vsel %vm399, %v2653, -inf
    %2655 = vmax.xlane.f32.xlu0 %v2654
    %v2656 = vpop.xlane.xlu0 %2655
    %v2657 = vsub.f32 %v2653, %v2656
    %v2658 = vmul.f32 %v2657, 1.442695
    %v2659 = vpow.pop %v2658
    %v2660 = vsel %vm399, %v2659, 0.0
    %2661 = vadd.xlane.f32.xlu0 %v2660
    %v2662 = vpop.xlane.xlu0 %2661
    %v2663 = vrcp.pop %v2662
    %v2664 = vmul.f32 %v2659, %v2663
    %v2666 = vsel %vm399, %v2664, 0
    %2668 = vmatprep.subr.mxu0 0.0
    %2669 = vmatpush1.msra.mxu0 %v2411
    %2670 = vmatprep.subr.mxu0 0.0
    %2671 = vmatpush1.msra.mxu0 0.0
    %2672 = vmatprep.subr.mxu0 0.0
    %2673 = vmatpush1.msra.mxu0 0.0
    %2674 = vmatprep.subr.mxu0 0.0
    %2675 = vmatpush1.msra.mxu0 0.0
    %2676 = vmatprep.subr.mxu0 0.0
    %2677 = vmatpush1.msra.mxu0 0.0
    %2678 = vmatprep.subr.mxu0 0.0
    %2679 = vmatpush1.msra.mxu0 0.0
    %2680 = vmatprep.subr.mxu0 0.0
    %2681 = vmatpush1.msra.mxu0 0.0
    %2682 = vmatprep.subr.mxu0 0.0
    %2683 = vmatpush1.msra.mxu0 0.0
    %2684 = vmatprep.subr.mxu0 0.0
    %2685 = vmatpush1.msra.mxu0 0.0
    %2686 = vmatprep.subr.mxu0 0.0
    %2687 = vmatpush1.msra.mxu0 0.0
    %2688 = vmatprep.subr.mxu0 0.0
    %2689 = vmatpush1.msra.mxu0 0.0
    %2690 = vmatprep.subr.mxu0 0.0
    %2691 = vmatpush1.msra.mxu0 0.0
    %2692 = vmatprep.subr.mxu0 0.0
    %2693 = vmatpush1.msra.mxu0 0.0
    %2694 = vmatprep.subr.mxu0 0.0
    %2695 = vmatpush1.msra.mxu0 0.0
    %2696 = vmatprep.subr.mxu0 0.0
    %2697 = vmatpush1.msra.mxu0 0.0
    %2698 = vmatprep.subr.mxu0 0.0
    %2699 = vmatpush1.msra.mxu0 0.0
    %2700 = vmatprep.subr.mxu0 0.0
    %2701 = vmatpush1.msra.mxu0 0.0
    %2702 = vmatprep.subr.mxu0 0.0
    %2703 = vmatpush1.msra.mxu0 0.0
    %2704 = vmatprep.subr.mxu0 0.0
    %2705 = vmatpush1.msra.mxu0 0.0
    %2706 = vmatprep.subr.mxu0 0.0
    %2707 = vmatpush1.msra.mxu0 0.0
    %2708 = vmatprep.subr.mxu0 0.0
    %2709 = vmatpush1.msra.mxu0 0.0
    %2710 = vmatprep.subr.mxu0 0.0
    %2711 = vmatpush1.msra.mxu0 0.0
    %2712 = vmatprep.subr.mxu0 0.0
    %2713 = vmatpush1.msra.mxu0 0.0
    %2714 = vmatprep.subr.mxu0 0.0
    %2715 = vmatpush1.msra.mxu0 0.0
    %2716 = vmatprep.subr.mxu0 0.0
    %2717 = vmatpush1.msra.mxu0 0.0
    %2718 = vmatprep.subr.mxu0 0.0
    %2719 = vmatpush1.msra.mxu0 0.0
    %2720 = vmatprep.subr.mxu0 0.0
    %2721 = vmatpush1.msra.mxu0 0.0
    %2722 = vmatprep.subr.mxu0 0.0
    %2723 = vmatpush1.msra.mxu0 0.0
    %2724 = vmatprep.subr.mxu0 0.0
    %2725 = vmatpush1.msra.mxu0 0.0
    %2726 = vmatprep.subr.mxu0 0.0
    %2727 = vmatpush1.msra.mxu0 0.0
    %2728 = vmatprep.subr.mxu0 0.0
    %2729 = vmatpush1.msra.mxu0 0.0
    %2730 = vmatprep.subr.mxu0 0.0
    %2731 = vmatpush1.msra.mxu0 0.0
    %2732 = vmatprep.mubr.f32.mxu0 0.0
    %2733 = vmatmul.mubr.f32.gmra.mrb[0].mxu0 %v2666
    %v2734 = vpop.f32.mrb[0].mxu0
    %v2735 = vadd.f32 0.0, %v2734
    %v2736 = vpop.f32.mrb[0].mxu0
    %2737 = vdwg.mxu0
    %s2738 = scalar_lea.vmem %s10, 24
    %v2739 = vld [vmem:[%s2738] sm:$0xff]
    %v2741 = vsel %vm399, %v2573, 0
    %v2744 = vsel %vm399, %v2735, 0
    %2746 = vmatprep.subr.mxu0 0.0
    %2747 = vmatpush1.msra.mxu0 %v2739
    %2748 = vmatprep.subr.mxu0 0.0
    %2749 = vmatpush1.msra.mxu0 0.0
    %2750 = vmatprep.subr.mxu0 0.0
    %2751 = vmatpush1.msra.mxu0 0.0
    %2752 = vmatprep.subr.mxu0 0.0
    %2753 = vmatpush1.msra.mxu0 0.0
    %2754 = vmatprep.subr.mxu0 0.0
    %2755 = vmatpush1.msra.mxu0 0.0
    %2756 = vmatprep.subr.mxu0 0.0
    %2757 = vmatpush1.msra.mxu0 0.0
    %2758 = vmatprep.subr.mxu0 0.0
    %2759 = vmatpush1.msra.mxu0 0.0
    %2760 = vmatprep.subr.mxu0 0.0
    %2761 = vmatpush1.msra.mxu0 0.0
    %2762 = vmatprep.subr.mxu0 0.0
    %2763 = vmatpush1.msra.mxu0 0.0
    %2764 = vmatprep.subr.mxu0 0.0
    %2765 = vmatpush1.msra.mxu0 0.0
    %2766 = vmatprep.subr.mxu0 0.0
    %2767 = vmatpush1.msra.mxu0 0.0
    %2768 = vmatprep.subr.mxu0 0.0
    %2769 = vmatpush1.msra.mxu0 0.0
    %2770 = vmatprep.subr.mxu0 0.0
    %2771 = vmatpush1.msra.mxu0 0.0
    %2772 = vmatprep.subr.mxu0 0.0
    %2773 = vmatpush1.msra.mxu0 0.0
    %2774 = vmatprep.subr.mxu0 0.0
    %2775 = vmatpush1.msra.mxu0 0.0
    %2776 = vmatprep.subr.mxu0 0.0
    %2777 = vmatpush1.msra.mxu0 0.0
    %2778 = vmatprep.subr.mxu0 0.0
    %2779 = vmatpush1.msra.mxu0 0.0
    %2780 = vmatprep.subr.mxu0 0.0
    %2781 = vmatpush1.msra.mxu0 0.0
    %2782 = vmatprep.subr.mxu0 0.0
    %2783 = vmatpush1.msra.mxu0 0.0
    %2784 = vmatprep.subr.mxu0 0.0
    %2785 = vmatpush1.msra.mxu0 0.0
    %2786 = vmatprep.subr.mxu0 0.0
    %2787 = vmatpush1.msra.mxu0 0.0
    %2788 = vmatprep.subr.mxu0 0.0
    %2789 = vmatpush1.msra.mxu0 0.0
    %2790 = vmatprep.subr.mxu0 0.0
    %2791 = vmatpush1.msra.mxu0 0.0
    %2792 = vmatprep.subr.mxu0 0.0
    %2793 = vmatpush1.msra.mxu0 0.0
    %2794 = vmatprep.subr.mxu0 0.0
    %2795 = vmatpush1.msra.mxu0 0.0
    %2796 = vmatprep.subr.mxu0 0.0
    %2797 = vmatpush1.msra.mxu0 0.0
    %2798 = vmatprep.subr.mxu0 0.0
    %2799 = vmatpush1.msra.mxu0 0.0
    %2800 = vmatprep.subr.mxu0 0.0
    %2801 = vmatpush1.msra.mxu0 0.0
    %2802 = vmatprep.subr.mxu0 0.0
    %2803 = vmatpush1.msra.mxu0 0.0
    %2804 = vmatprep.subr.mxu0 0.0
    %2805 = vmatpush1.msra.mxu0 0.0
    %2806 = vmatprep.subr.mxu0 0.0
    %2807 = vmatpush1.msra.mxu0 0.0
    %2808 = vmatprep.subr.mxu0 0.0
    %2809 = vmatpush1.msra.mxu0 0.0
    %2810 = vmatprep.mubr.f32.mxu0 0.0
    %2811 = vmatmul.mubr.f32.gmra.mrb[0].mxu0 %v2741
    %v2812 = vpop.f32.mrb[0].mxu0
    %v2813 = vadd.f32 0.0, %v2812
    %v2814 = vpop.f32.mrb[0].mxu0
    %2815 = vmatprep.mubr.f32.mxu0 0.0
    %2816 = vmatmul.mubr.f32.gmra.mrb[0].mxu0 %v2744
    %v2817 = vpop.f32.mrb[0].mxu0
    %v2818 = vadd.f32 0.0, %v2817
    %v2819 = vpop.f32.mrb[0].mxu0
    %2820 = vdwg.mxu0
    %v2821 = vadd.f32 %v2148, %v2813
    %v2822 = vadd.f32 %v2149, %v2818
    %v2823 = vadd.f32 %v66, %v2821
    %v2824 = vadd.f32 %v67, %v2822
    %v2825 = vld [vmem:[%s11] sm:$0x1]
    %v2827 = vlaneseq
    %v2828 = vshrl.u32 %v2827, 7
    %v2829 = vsub.s32 0, %v2828
    %v2830 = vrot.slane %v2825, %v2829
    %v2832 = vadd.f32 %v2823, %v2830
    %v2833 = vadd.f32 %v2824, %v2830
    %v2834 = vld [vmem:[%s12] sm:$0x1]
    %v2835 = vld [vmem:[%s13] sm:$0x1]
    %v2836 = vsel %vm76, %v2832, 0.0
    %2837 = vadd.xlane.f32.xlu0 %v2836
    %v2838 = vpop.xlane.xlu0 %2837
    %v2839 = vsel %vm76, %v2833, 0.0
    %2840 = vadd.xlane.f32.xlu0 %v2839
    %v2841 = vpop.xlane.xlu0 %2840
    %v2842 = vmul.f32 %v2838, %v83
    %v2843 = vmul.f32 %v2841, %v83
    %v2844 = vsub.f32 %v2832, %v2842
    %v2845 = vsub.f32 %v2833, %v2843
    %v2846 = vmul.f32 %v2844, %v2844
    %v2847 = vmul.f32 %v2845, %v2845
    %v2848 = vsel %vm76, %v2846, 0.0
    %2849 = vadd.xlane.f32.xlu0 %v2848
    %v2850 = vpop.xlane.xlu0 %2849
    %v2851 = vsel %vm76, %v2847, 0.0
    %2852 = vadd.xlane.f32.xlu0 %v2851
    %v2853 = vpop.xlane.xlu0 %2852
    %v2854 = vmul.f32 %v2850, %v96
    %v2855 = vmul.f32 %v2853, %v96
    %v2857 = vlaneseq
    %v2858 = vshrl.u32 %v2857, 7
    %v2859 = vsub.s32 0, %v2858
    %v2860 = vrot.slane %v2834, %v2859
    %v2862 = vmul.f32 %v2860, %v2844
    %v2863 = vmul.f32 %v2860, %v2845
    %v2864 = vrsqrt.pop %v2854
    %v2865 = vmul.f32 %v2854, %v2864
    %vm2866 = vcmp.eq.f32.partialorder %v2854, inf
    %v2867 = vsel %vm2866, %v2854, %v2865
    %vm2868 = vcmp.eq.f32.partialorder %v2854, 0.0
    %v2869 = vand.u32 %v2854, 2147483648
    %v2870 = vsel %vm2868, %v2869, %v2867
    %v2871 = vrsqrt.pop %v2855
    %v2872 = vmul.f32 %v2855, %v2871
    %vm2873 = vcmp.eq.f32.partialorder %v2855, inf
    %v2874 = vsel %vm2873, %v2855, %v2872
    %vm2875 = vcmp.eq.f32.partialorder %v2855, 0.0
    %v2876 = vand.u32 %v2855, 2147483648
    %v2877 = vsel %vm2875, %v2876, %v2874
    %v2878 = vadd.f32 %v2870, 1e-06
    %v2879 = vadd.f32 %v2877, 1e-06
    %v2880 = vrcp.pop %v2878
    %v2881 = vmul.f32 %v2862, %v2880
    %v2882 = vrcp.pop %v2879
    %v2883 = vmul.f32 %v2863, %v2882
    %v2885 = vlaneseq
    %v2886 = vshrl.u32 %v2885, 7
    %v2887 = vsub.s32 0, %v2886
    %v2888 = vrot.slane %v2835, %v2887
    %v2890 = vadd.f32 %v2881, %v2888
    %v2891 = vadd.f32 %v2883, %v2888
    %v2892 = vld [vmem:[%s14] sm:$0xff]
    %v2893 = vld [vmem:[%s14 + $0x8] sm:$0xff]
    %v2894 = vld [vmem:[%s14 + $0x10] sm:$0xff]
    %v2895 = vld [vmem:[%s14 + $0x18] sm:$0xff]
    %v2896 = vld [vmem:[%s15] sm:$0x1]
    %v2898 = vlaneseq
    %v2899 = vshrl.u32 %v2898, 7
    %v2900 = vsub.s32 0, %v2899
    %v2901 = vrot.slane %v2896, %v2900
    %v2904 = vsel %vm76, %v2890, 0
    %v2907 = vsel %vm76, %v2891, 0
    %2909 = vmatprep.subr.mxu0 0.0
    %2910 = vmatpush1.msra.mxu0 %v2892
    %2911 = vmatprep.subr.mxu0 0.0
    %2912 = vmatpush1.msra.mxu0 %v2893
    %2913 = vmatprep.subr.mxu0 0.0
    %2914 = vmatpush1.msra.mxu0 %v2894
    %2915 = vmatprep.subr.mxu0 0.0
    %2916 = vmatpush1.msra.mxu0 %v2895
    %2917 = vmatprep.subr.mxu0 0.0
    %2918 = vmatpush1.msra.mxu0 0.0
    %2919 = vmatprep.subr.mxu0 0.0
    %2920 = vmatpush1.msra.mxu0 0.0
    %2921 = vmatprep.subr.mxu0 0.0
    %2922 = vmatpush1.msra.mxu0 0.0
    %2923 = vmatprep.subr.mxu0 0.0
    %2924 = vmatpush1.msra.mxu0 0.0
    %2925 = vmatprep.subr.mxu0 0.0
    %2926 = vmatpush1.msra.mxu0 0.0
    %2927 = vmatprep.subr.mxu0 0.0
    %2928 = vmatpush1.msra.mxu0 0.0
    %2929 = vmatprep.subr.mxu0 0.0
    %2930 = vmatpush1.msra.mxu0 0.0
    %2931 = vmatprep.subr.mxu0 0.0
    %2932 = vmatpush1.msra.mxu0 0.0
    %2933 = vmatprep.subr.mxu0 0.0
    %2934 = vmatpush1.msra.mxu0 0.0
    %2935 = vmatprep.subr.mxu0 0.0
    %2936 = vmatpush1.msra.mxu0 0.0
    %2937 = vmatprep.subr.mxu0 0.0
    %2938 = vmatpush1.msra.mxu0 0.0
    %2939 = vmatprep.subr.mxu0 0.0
    %2940 = vmatpush1.msra.mxu0 0.0
    %2941 = vmatprep.subr.mxu0 0.0
    %2942 = vmatpush1.msra.mxu0 0.0
    %2943 = vmatprep.subr.mxu0 0.0
    %2944 = vmatpush1.msra.mxu0 0.0
    %2945 = vmatprep.subr.mxu0 0.0
    %2946 = vmatpush1.msra.mxu0 0.0
    %2947 = vmatprep.subr.mxu0 0.0
    %2948 = vmatpush1.msra.mxu0 0.0
    %2949 = vmatprep.subr.mxu0 0.0
    %2950 = vmatpush1.msra.mxu0 0.0
    %2951 = vmatprep.subr.mxu0 0.0
    %2952 = vmatpush1.msra.mxu0 0.0
    %2953 = vmatprep.subr.mxu0 0.0
    %2954 = vmatpush1.msra.mxu0 0.0
    %2955 = vmatprep.subr.mxu0 0.0
    %2956 = vmatpush1.msra.mxu0 0.0
    %2957 = vmatprep.subr.mxu0 0.0
    %2958 = vmatpush1.msra.mxu0 0.0
    %2959 = vmatprep.subr.mxu0 0.0
    %2960 = vmatpush1.msra.mxu0 0.0
    %2961 = vmatprep.subr.mxu0 0.0
    %2962 = vmatpush1.msra.mxu0 0.0
    %2963 = vmatprep.subr.mxu0 0.0
    %2964 = vmatpush1.msra.mxu0 0.0
    %2965 = vmatprep.subr.mxu0 0.0
    %2966 = vmatpush1.msra.mxu0 0.0
    %2967 = vmatprep.subr.mxu0 0.0
    %2968 = vmatpush1.msra.mxu0 0.0
    %2969 = vmatprep.subr.mxu0 0.0
    %2970 = vmatpush1.msra.mxu0 0.0
    %2971 = vmatprep.subr.mxu0 0.0
    %2972 = vmatpush1.msra.mxu0 0.0
    %2973 = vmatprep.mubr.f32.mxu0 0.0
    %2974 = vmatmul.mubr.f32.gmra.mrb[0].mxu0 %v2904
    %v2975 = vpop.f32.mrb[0].mxu0
    %v2976 = vadd.f32 %v2901, %v2975
    %v2977 = vpop.f32.mrb[0].mxu0
    %2978 = vmatprep.mubr.f32.mxu0 0.0
    %2979 = vmatmul.mubr.f32.gmra.mrb[0].mxu0 %v2907
    %v2980 = vpop.f32.mrb[0].mxu0
    %v2981 = vadd.f32 %v2901, %v2980
    %v2982 = vpop.f32.mrb[0].mxu0
    %2983 = vdwg.mxu0
    %v2984 = vmax.f32 %v2976, 0.0
    %v2985 = vmax.f32 %v2981, 0.0
    %v2986 = vld [vmem:[%s16] sm:$0xff]
    %v2987 = vld [vmem:[%s16 + $0x8] sm:$0xff]
    %v2988 = vld [vmem:[%s16 + $0x10] sm:$0xff]
    %v2989 = vld [vmem:[%s16 + $0x18] sm:$0xff]
    %v2990 = vld [vmem:[%s16 + $0x20] sm:$0xff]
    %v2991 = vld [vmem:[%s16 + $0x28] sm:$0xff]
    %v2992 = vld [vmem:[%s16 + $0x30] sm:$0xff]
    %v2993 = vld [vmem:[%s16 + $0x38] sm:$0xff]
    %vm2994 = vcmask 523264
    %v2996 = vsel %vm2994, %v2984, 0
    %v2999 = vsel %vm2994, %v2985, 0
    %3001 = vmatprep.subr.mxu0 0.0
    %3002 = vmatpush1.msra.mxu0 %v2986
    %3003 = vmatprep.subr.mxu0 0.0
    %3004 = vmatpush1.msra.mxu0 %v2987
    %3005 = vmatprep.subr.mxu0 0.0
    %3006 = vmatpush1.msra.mxu0 %v2988
    %3007 = vmatprep.subr.mxu0 0.0
    %3008 = vmatpush1.msra.mxu0 %v2989
    %3009 = vmatprep.subr.mxu0 0.0
    %3010 = vmatpush1.msra.mxu0 %v2990
    %3011 = vmatprep.subr.mxu0 0.0
    %3012 = vmatpush1.msra.mxu0 %v2991
    %3013 = vmatprep.subr.mxu0 0.0
    %3014 = vmatpush1.msra.mxu0 %v2992
    %3015 = vmatprep.subr.mxu0 0.0
    %3016 = vmatpush1.msra.mxu0 %v2993
    %3017 = vmatprep.subr.mxu0 0.0
    %3018 = vmatpush1.msra.mxu0 0.0
    %3019 = vmatprep.subr.mxu0 0.0
    %3020 = vmatpush1.msra.mxu0 0.0
    %3021 = vmatprep.subr.mxu0 0.0
    %3022 = vmatpush1.msra.mxu0 0.0
    %3023 = vmatprep.subr.mxu0 0.0
    %3024 = vmatpush1.msra.mxu0 0.0
    %3025 = vmatprep.subr.mxu0 0.0
    %3026 = vmatpush1.msra.mxu0 0.0
    %3027 = vmatprep.subr.mxu0 0.0
    %3028 = vmatpush1.msra.mxu0 0.0
    %3029 = vmatprep.subr.mxu0 0.0
    %3030 = vmatpush1.msra.mxu0 0.0
    %3031 = vmatprep.subr.mxu0 0.0
    %3032 = vmatpush1.msra.mxu0 0.0
    %3033 = vmatprep.subr.mxu0 0.0
    %3034 = vmatpush1.msra.mxu0 0.0
    %3035 = vmatprep.subr.mxu0 0.0
    %3036 = vmatpush1.msra.mxu0 0.0
    %3037 = vmatprep.subr.mxu0 0.0
    %3038 = vmatpush1.msra.mxu0 0.0
    %3039 = vmatprep.subr.mxu0 0.0
    %3040 = vmatpush1.msra.mxu0 0.0
    %3041 = vmatprep.subr.mxu0 0.0
    %3042 = vmatpush1.msra.mxu0 0.0
    %3043 = vmatprep.subr.mxu0 0.0
    %3044 = vmatpush1.msra.mxu0 0.0
    %3045 = vmatprep.subr.mxu0 0.0
    %3046 = vmatpush1.msra.mxu0 0.0
    %3047 = vmatprep.subr.mxu0 0.0
    %3048 = vmatpush1.msra.mxu0 0.0
    %3049 = vmatprep.subr.mxu0 0.0
    %3050 = vmatpush1.msra.mxu0 0.0
    %3051 = vmatprep.subr.mxu0 0.0
    %3052 = vmatpush1.msra.mxu0 0.0
    %3053 = vmatprep.subr.mxu0 0.0
    %3054 = vmatpush1.msra.mxu0 0.0
    %3055 = vmatprep.subr.mxu0 0.0
    %3056 = vmatpush1.msra.mxu0 0.0
    %3057 = vmatprep.subr.mxu0 0.0
    %3058 = vmatpush1.msra.mxu0 0.0
    %3059 = vmatprep.subr.mxu0 0.0
    %3060 = vmatpush1.msra.mxu0 0.0
    %3061 = vmatprep.subr.mxu0 0.0
    %3062 = vmatpush1.msra.mxu0 0.0
    %3063 = vmatprep.subr.mxu0 0.0
    %3064 = vmatpush1.msra.mxu0 0.0
    %3065 = vmatprep.mubr.f32.mxu0 0.0
    %3066 = vmatmul.mubr.f32.gmra.mrb[0].mxu0 %v2996
    %v3067 = vpop.f32.mrb[0].mxu0
    %v3068 = vadd.f32 0.0, %v3067
    %v3069 = vpop.f32.mrb[0].mxu0
    %3070 = vmatprep.mubr.f32.mxu0 0.0
    %3071 = vmatmul.mubr.f32.gmra.mrb[0].mxu0 %v2999
    %v3072 = vpop.f32.mrb[0].mxu0
    %v3073 = vadd.f32 0.0, %v3072
    %v3074 = vpop.f32.mrb[0].mxu0
    %3075 = vdwg.mxu0
    %v3076 = vadd.f32 %v2832, %v3068
    %v3077 = vadd.f32 %v2833, %v3073
    %v3078 = vld [vmem:[%s17] sm:$0x1]
    %v3080 = vlaneseq
    %v3081 = vshrl.u32 %v3080, 7
    %v3082 = vsub.s32 0, %v3081
    %v3083 = vrot.slane %v3078, %v3082
    %v3085 = vadd.f32 %v3076, %v3083
    %v3086 = vadd.f32 %v3077, %v3083
    %s3087 = scalar_lea.vmem %s2, 1
    %v3088 = vld [vmem:[%s3087] sm:$0x1]
    %s3089 = scalar_lea.vmem %s3, 1
    %v3090 = vld [vmem:[%s3089] sm:$0x1]
    %v3091 = vsel %vm76, %v3085, 0.0
    %3092 = vadd.xlane.f32.xlu0 %v3091
    %v3093 = vpop.xlane.xlu0 %3092
    %v3094 = vsel %vm76, %v3086, 0.0
    %3095 = vadd.xlane.f32.xlu0 %v3094
    %v3096 = vpop.xlane.xlu0 %3095
    %v3097 = vmul.f32 %v3093, %v83
    %v3098 = vmul.f32 %v3096, %v83
    %v3099 = vsub.f32 %v3085, %v3097
    %v3100 = vsub.f32 %v3086, %v3098
    %v3101 = vmul.f32 %v3099, %v3099
    %v3102 = vmul.f32 %v3100, %v3100
    %v3103 = vsel %vm76, %v3101, 0.0
    %3104 = vadd.xlane.f32.xlu0 %v3103
    %v3105 = vpop.xlane.xlu0 %3104
    %v3106 = vsel %vm76, %v3102, 0.0
    %3107 = vadd.xlane.f32.xlu0 %v3106
    %v3108 = vpop.xlane.xlu0 %3107
    %v3109 = vmul.f32 %v3105, %v96
    %v3110 = vmul.f32 %v3108, %v96
    %v3112 = vlaneseq
    %v3113 = vshrl.u32 %v3112, 7
    %v3114 = vsub.s32 0, %v3113
    %v3115 = vrot.slane %v3088, %v3114
    %v3117 = vmul.f32 %v3115, %v3099
    %v3118 = vmul.f32 %v3115, %v3100
    %v3119 = vrsqrt.pop %v3109
    %v3120 = vmul.f32 %v3109, %v3119
    %vm3121 = vcmp.eq.f32.partialorder %v3109, inf
    %v3122 = vsel %vm3121, %v3109, %v3120
    %vm3123 = vcmp.eq.f32.partialorder %v3109, 0.0
    %v3124 = vand.u32 %v3109, 2147483648
    %v3125 = vsel %vm3123, %v3124, %v3122
    %v3126 = vrsqrt.pop %v3110
    %v3127 = vmul.f32 %v3110, %v3126
    %vm3128 = vcmp.eq.f32.partialorder %v3110, inf
    %v3129 = vsel %vm3128, %v3110, %v3127
    %vm3130 = vcmp.eq.f32.partialorder %v3110, 0.0
    %v3131 = vand.u32 %v3110, 2147483648
    %v3132 = vsel %vm3130, %v3131, %v3129
    %v3133 = vadd.f32 %v3125, 1e-06
    %v3134 = vadd.f32 %v3132, 1e-06
    %v3135 = vrcp.pop %v3133
    %v3136 = vmul.f32 %v3117, %v3135
    %v3137 = vrcp.pop %v3134
    %v3138 = vmul.f32 %v3118, %v3137
    %v3140 = vlaneseq
    %v3141 = vshrl.u32 %v3140, 7
    %v3142 = vsub.s32 0, %v3141
    %v3143 = vrot.slane %v3090, %v3142
    %v3145 = vadd.f32 %v3136, %v3143
    %v3146 = vadd.f32 %v3138, %v3143
    %s3147 = scalar_lea.vmem %s4, 128
    %v3148 = vld [vmem:[%s3147] sm:$0xff]
    %v3149 = vld [vmem:[%s3147 + $0x8] sm:$0xff]
    %v3150 = vld [vmem:[%s3147 + $0x10] sm:$0xff]
    %v3151 = vld [vmem:[%s3147 + $0x18] sm:$0xff]
    %s3152 = scalar_lea.vmem %s5, 4
    %v3153 = vld [vmem:[%s3152] sm:$0x1]
    %v3155 = vlaneseq
    %v3156 = vshrl.u32 %v3155, 7
    %v3157 = vsub.s32 0, %v3156
    %v3158 = vrot.slane %v3153, %v3157
    %v3161 = vsel %vm76, %v3145, 0
    %v3164 = vsel %vm76, %v3146, 0
    %3166 = vmatprep.subr.mxu0 0.0
    %3167 = vmatpush1.msra.mxu0 %v3148
    %3168 = vmatprep.subr.mxu0 0.0
    %3169 = vmatpush1.msra.mxu0 %v3149
    %3170 = vmatprep.subr.mxu0 0.0
    %3171 = vmatpush1.msra.mxu0 %v3150
    %3172 = vmatprep.subr.mxu0 0.0
    %3173 = vmatpush1.msra.mxu0 %v3151
    %3174 = vmatprep.subr.mxu0 0.0
    %3175 = vmatpush1.msra.mxu0 0.0
    %3176 = vmatprep.subr.mxu0 0.0
    %3177 = vmatpush1.msra.mxu0 0.0
    %3178 = vmatprep.subr.mxu0 0.0
    %3179 = vmatpush1.msra.mxu0 0.0
    %3180 = vmatprep.subr.mxu0 0.0
    %3181 = vmatpush1.msra.mxu0 0.0
    %3182 = vmatprep.subr.mxu0 0.0
    %3183 = vmatpush1.msra.mxu0 0.0
    %3184 = vmatprep.subr.mxu0 0.0
    %3185 = vmatpush1.msra.mxu0 0.0
    %3186 = vmatprep.subr.mxu0 0.0
    %3187 = vmatpush1.msra.mxu0 0.0
    %3188 = vmatprep.subr.mxu0 0.0
    %3189 = vmatpush1.msra.mxu0 0.0
    %3190 = vmatprep.subr.mxu0 0.0
    %3191 = vmatpush1.msra.mxu0 0.0
    %3192 = vmatprep.subr.mxu0 0.0
    %3193 = vmatpush1.msra.mxu0 0.0
    %3194 = vmatprep.subr.mxu0 0.0
    %3195 = vmatpush1.msra.mxu0 0.0
    %3196 = vmatprep.subr.mxu0 0.0
    %3197 = vmatpush1.msra.mxu0 0.0
    %3198 = vmatprep.subr.mxu0 0.0
    %3199 = vmatpush1.msra.mxu0 0.0
    %3200 = vmatprep.subr.mxu0 0.0
    %3201 = vmatpush1.msra.mxu0 0.0
    %3202 = vmatprep.subr.mxu0 0.0
    %3203 = vmatpush1.msra.mxu0 0.0
    %3204 = vmatprep.subr.mxu0 0.0
    %3205 = vmatpush1.msra.mxu0 0.0
    %3206 = vmatprep.subr.mxu0 0.0
    %3207 = vmatpush1.msra.mxu0 0.0
    %3208 = vmatprep.subr.mxu0 0.0
    %3209 = vmatpush1.msra.mxu0 0.0
    %3210 = vmatprep.subr.mxu0 0.0
    %3211 = vmatpush1.msra.mxu0 0.0
    %3212 = vmatprep.subr.mxu0 0.0
    %3213 = vmatpush1.msra.mxu0 0.0
    %3214 = vmatprep.subr.mxu0 0.0
    %3215 = vmatpush1.msra.mxu0 0.0
    %3216 = vmatprep.subr.mxu0 0.0
    %3217 = vmatpush1.msra.mxu0 0.0
    %3218 = vmatprep.subr.mxu0 0.0
    %3219 = vmatpush1.msra.mxu0 0.0
    %3220 = vmatprep.subr.mxu0 0.0
    %3221 = vmatpush1.msra.mxu0 0.0
    %3222 = vmatprep.subr.mxu0 0.0
    %3223 = vmatpush1.msra.mxu0 0.0
    %3224 = vmatprep.subr.mxu0 0.0
    %3225 = vmatpush1.msra.mxu0 0.0
    %3226 = vmatprep.subr.mxu0 0.0
    %3227 = vmatpush1.msra.mxu0 0.0
    %3228 = vmatprep.subr.mxu0 0.0
    %3229 = vmatpush1.msra.mxu0 0.0
    %3230 = vmatprep.mubr.f32.mxu0 0.0
    %3231 = vmatmul.mubr.f32.gmra.mrb[0].mxu0 %v3161
    %v3232 = vpop.f32.mrb[0].mxu0
    %v3233 = vadd.f32 %v3158, %v3232
    %v3234 = vpop.f32.mrb[0].mxu0
    %3235 = vmatprep.mubr.f32.mxu0 0.0
    %3236 = vmatmul.mubr.f32.gmra.mrb[0].mxu0 %v3164
    %v3237 = vpop.f32.mrb[0].mxu0
    %v3238 = vadd.f32 %v3158, %v3237
    %v3239 = vpop.f32.mrb[0].mxu0
    %3240 = vdwg.mxu0
    %s3241 = scalar_lea.vmem %s6, 128
    %v3242 = vld [vmem:[%s3241] sm:$0xff]
    %v3243 = vld [vmem:[%s3241 + $0x8] sm:$0xff]
    %v3244 = vld [vmem:[%s3241 + $0x10] sm:$0xff]
    %v3245 = vld [vmem:[%s3241 + $0x18] sm:$0xff]
    %s3246 = scalar_lea.vmem %s7, 4
    %v3247 = vld [vmem:[%s3246] sm:$0x1]
    %v3249 = vlaneseq
    %v3250 = vshrl.u32 %v3249, 7
    %v3251 = vsub.s32 0, %v3250
    %v3252 = vrot.slane %v3247, %v3251
    %3254 = vmatprep.subr.mxu0 0.0
    %3255 = vmatpush1.msra.mxu0 %v3242
    %3256 = vmatprep.subr.mxu0 0.0
    %3257 = vmatpush1.msra.mxu0 %v3243
    %3258 = vmatprep.subr.mxu0 0.0
    %3259 = vmatpush1.msra.mxu0 %v3244
    %3260 = vmatprep.subr.mxu0 0.0
    %3261 = vmatpush1.msra.mxu0 %v3245
    %3262 = vmatprep.subr.mxu0 0.0
    %3263 = vmatpush1.msra.mxu0 0.0
    %3264 = vmatprep.subr.mxu0 0.0
    %3265 = vmatpush1.msra.mxu0 0.0
    %3266 = vmatprep.subr.mxu0 0.0
    %3267 = vmatpush1.msra.mxu0 0.0
    %3268 = vmatprep.subr.mxu0 0.0
    %3269 = vmatpush1.msra.mxu0 0.0
    %3270 = vmatprep.subr.mxu0 0.0
    %3271 = vmatpush1.msra.mxu0 0.0
    %3272 = vmatprep.subr.mxu0 0.0
    %3273 = vmatpush1.msra.mxu0 0.0
    %3274 = vmatprep.subr.mxu0 0.0
    %3275 = vmatpush1.msra.mxu0 0.0
    %3276 = vmatprep.subr.mxu0 0.0
    %3277 = vmatpush1.msra.mxu0 0.0
    %3278 = vmatprep.subr.mxu0 0.0
    %3279 = vmatpush1.msra.mxu0 0.0
    %3280 = vmatprep.subr.mxu0 0.0
    %3281 = vmatpush1.msra.mxu0 0.0
    %3282 = vmatprep.subr.mxu0 0.0
    %3283 = vmatpush1.msra.mxu0 0.0
    %3284 = vmatprep.subr.mxu0 0.0
    %3285 = vmatpush1.msra.mxu0 0.0
    %3286 = vmatprep.subr.mxu0 0.0
    %3287 = vmatpush1.msra.mxu0 0.0
    %3288 = vmatprep.subr.mxu0 0.0
    %3289 = vmatpush1.msra.mxu0 0.0
    %3290 = vmatprep.subr.mxu0 0.0
    %3291 = vmatpush1.msra.mxu0 0.0
    %3292 = vmatprep.subr.mxu0 0.0
    %3293 = vmatpush1.msra.mxu0 0.0
    %3294 = vmatprep.subr.mxu0 0.0
    %3295 = vmatpush1.msra.mxu0 0.0
    %3296 = vmatprep.subr.mxu0 0.0
    %3297 = vmatpush1.msra.mxu0 0.0
    %3298 = vmatprep.subr.mxu0 0.0
    %3299 = vmatpush1.msra.mxu0 0.0
    %3300 = vmatprep.subr.mxu0 0.0
    %3301 = vmatpush1.msra.mxu0 0.0
    %3302 = vmatprep.subr.mxu0 0.0
    %3303 = vmatpush1.msra.mxu0 0.0
    %3304 = vmatprep.subr.mxu0 0.0
    %3305 = vmatpush1.msra.mxu0 0.0
    %3306 = vmatprep.subr.mxu0 0.0
    %3307 = vmatpush1.msra.mxu0 0.0
    %3308 = vmatprep.subr.mxu0 0.0
    %3309 = vmatpush1.msra.mxu0 0.0
    %3310 = vmatprep.subr.mxu0 0.0
    %3311 = vmatpush1.msra.mxu0 0.0
    %3312 = vmatprep.subr.mxu0 0.0
    %3313 = vmatpush1.msra.mxu0 0.0
    %3314 = vmatprep.subr.mxu0 0.0
    %3315 = vmatpush1.msra.mxu0 0.0
    %3316 = vmatprep.subr.mxu0 0.0
    %3317 = vmatpush1.msra.mxu0 0.0
    %3318 = vmatprep.mubr.f32.mxu0 0.0
    %3319 = vmatmul.mubr.f32.gmra.mrb[0].mxu0 %v3161
    %v3320 = vpop.f32.mrb[0].mxu0
    %v3321 = vadd.f32 %v3252, %v3320
    %v3322 = vpop.f32.mrb[0].mxu0
    %3323 = vmatprep.mubr.f32.mxu0 0.0
    %3324 = vmatmul.mubr.f32.gmra.mrb[0].mxu0 %v3164
    %v3325 = vpop.f32.mrb[0].mxu0
    %v3326 = vadd.f32 %v3252, %v3325
    %v3327 = vpop.f32.mrb[0].mxu0
    %3328 = vdwg.mxu0
    %s3329 = scalar_lea.vmem %s8, 128
    %v3330 = vld [vmem:[%s3329] sm:$0xff]
    %v3331 = vld [vmem:[%s3329 + $0x8] sm:$0xff]
    %v3332 = vld [vmem:[%s3329 + $0x10] sm:$0xff]
    %v3333 = vld [vmem:[%s3329 + $0x18] sm:$0xff]
    %s3334 = scalar_lea.vmem %s9, 4
    %v3335 = vld [vmem:[%s3334] sm:$0x1]
    %v3337 = vlaneseq
    %v3338 = vshrl.u32 %v3337, 7
    %v3339 = vsub.s32 0, %v3338
    %v3340 = vrot.slane %v3335, %v3339
    %3342 = vmatprep.subr.mxu0 0.0
    %3343 = vmatpush1.msra.mxu0 %v3330
    %3344 = vmatprep.subr.mxu0 0.0
    %3345 = vmatpush1.msra.mxu0 %v3331
    %3346 = vmatprep.subr.mxu0 0.0
    %3347 = vmatpush1.msra.mxu0 %v3332
    %3348 = vmatprep.subr.mxu0 0.0
    %3349 = vmatpush1.msra.mxu0 %v3333
    %3350 = vmatprep.subr.mxu0 0.0
    %3351 = vmatpush1.msra.mxu0 0.0
    %3352 = vmatprep.subr.mxu0 0.0
    %3353 = vmatpush1.msra.mxu0 0.0
    %3354 = vmatprep.subr.mxu0 0.0
    %3355 = vmatpush1.msra.mxu0 0.0
    %3356 = vmatprep.subr.mxu0 0.0
    %3357 = vmatpush1.msra.mxu0 0.0
    %3358 = vmatprep.subr.mxu0 0.0
    %3359 = vmatpush1.msra.mxu0 0.0
    %3360 = vmatprep.subr.mxu0 0.0
    %3361 = vmatpush1.msra.mxu0 0.0
    %3362 = vmatprep.subr.mxu0 0.0
    %3363 = vmatpush1.msra.mxu0 0.0
    %3364 = vmatprep.subr.mxu0 0.0
    %3365 = vmatpush1.msra.mxu0 0.0
    %3366 = vmatprep.subr.mxu0 0.0
    %3367 = vmatpush1.msra.mxu0 0.0
    %3368 = vmatprep.subr.mxu0 0.0
    %3369 = vmatpush1.msra.mxu0 0.0
    %3370 = vmatprep.subr.mxu0 0.0
    %3371 = vmatpush1.msra.mxu0 0.0
    %3372 = vmatprep.subr.mxu0 0.0
    %3373 = vmatpush1.msra.mxu0 0.0
    %3374 = vmatprep.subr.mxu0 0.0
    %3375 = vmatpush1.msra.mxu0 0.0
    %3376 = vmatprep.subr.mxu0 0.0
    %3377 = vmatpush1.msra.mxu0 0.0
    %3378 = vmatprep.subr.mxu0 0.0
    %3379 = vmatpush1.msra.mxu0 0.0
    %3380 = vmatprep.subr.mxu0 0.0
    %3381 = vmatpush1.msra.mxu0 0.0
    %3382 = vmatprep.subr.mxu0 0.0
    %3383 = vmatpush1.msra.mxu0 0.0
    %3384 = vmatprep.subr.mxu0 0.0
    %3385 = vmatpush1.msra.mxu0 0.0
    %3386 = vmatprep.subr.mxu0 0.0
    %3387 = vmatpush1.msra.mxu0 0.0
    %3388 = vmatprep.subr.mxu0 0.0
    %3389 = vmatpush1.msra.mxu0 0.0
    %3390 = vmatprep.subr.mxu0 0.0
    %3391 = vmatpush1.msra.mxu0 0.0
    %3392 = vmatprep.subr.mxu0 0.0
    %3393 = vmatpush1.msra.mxu0 0.0
    %3394 = vmatprep.subr.mxu0 0.0
    %3395 = vmatpush1.msra.mxu0 0.0
    %3396 = vmatprep.subr.mxu0 0.0
    %3397 = vmatpush1.msra.mxu0 0.0
    %3398 = vmatprep.subr.mxu0 0.0
    %3399 = vmatpush1.msra.mxu0 0.0
    %3400 = vmatprep.subr.mxu0 0.0
    %3401 = vmatpush1.msra.mxu0 0.0
    %3402 = vmatprep.subr.mxu0 0.0
    %3403 = vmatpush1.msra.mxu0 0.0
    %3404 = vmatprep.subr.mxu0 0.0
    %3405 = vmatpush1.msra.mxu0 0.0
    %3406 = vmatprep.mubr.f32.mxu0 0.0
    %3407 = vmatmul.mubr.f32.gmra.mrb[0].mxu0 %v3161
    %v3408 = vpop.f32.mrb[0].mxu0
    %v3409 = vadd.f32 %v3340, %v3408
    %v3410 = vpop.f32.mrb[0].mxu0
    %3411 = vmatprep.mubr.f32.mxu0 0.0
    %3412 = vmatmul.mubr.f32.gmra.mrb[0].mxu0 %v3164
    %v3413 = vpop.f32.mrb[0].mxu0
    %v3414 = vadd.f32 %v3340, %v3413
    %v3415 = vpop.f32.mrb[0].mxu0
    %3416 = vdwg.mxu0
    %v3418 = vsel %vm399, %v3233, 0
    %v3421 = vsel %vm399, %v3321, 0
    %3423 = vmatprep.subr.mxu0 0.0
    %3424 = vmatpush1.xpose.msra.mxu0 %v3421
    %3425 = vmatprep.subr.mxu0 0.0
    %3426 = vmatpush1.xpose.msra.mxu0 0.0
    %3427 = vmatprep.subr.mxu0 0.0
    %3428 = vmatpush1.xpose.msra.mxu0 0.0
    %3429 = vmatprep.subr.mxu0 0.0
    %3430 = vmatpush1.xpose.msra.mxu0 0.0
    %3431 = vmatprep.subr.mxu0 0.0
    %3432 = vmatpush1.xpose.msra.mxu0 0.0
    %3433 = vmatprep.subr.mxu0 0.0
    %3434 = vmatpush1.xpose.msra.mxu0 0.0
    %3435 = vmatprep.subr.mxu0 0.0
    %3436 = vmatpush1.xpose.msra.mxu0 0.0
    %3437 = vmatprep.subr.mxu0 0.0
    %3438 = vmatpush1.xpose.msra.mxu0 0.0
    %3439 = vmatprep.subr.mxu0 0.0
    %3440 = vmatpush1.xpose.msra.mxu0 0.0
    %3441 = vmatprep.subr.mxu0 0.0
    %3442 = vmatpush1.xpose.msra.mxu0 0.0
    %3443 = vmatprep.subr.mxu0 0.0
    %3444 = vmatpush1.xpose.msra.mxu0 0.0
    %3445 = vmatprep.subr.mxu0 0.0
    %3446 = vmatpush1.xpose.msra.mxu0 0.0
    %3447 = vmatprep.subr.mxu0 0.0
    %3448 = vmatpush1.xpose.msra.mxu0 0.0
    %3449 = vmatprep.subr.mxu0 0.0
    %3450 = vmatpush1.xpose.msra.mxu0 0.0
    %3451 = vmatprep.subr.mxu0 0.0
    %3452 = vmatpush1.xpose.msra.mxu0 0.0
    %3453 = vmatprep.subr.mxu0 0.0
    %3454 = vmatpush1.xpose.msra.mxu0 0.0
    %3455 = vmatprep.subr.mxu0 0.0
    %3456 = vmatpush1.xpose.msra.mxu0 0.0
    %3457 = vmatprep.subr.mxu0 0.0
    %3458 = vmatpush1.xpose.msra.mxu0 0.0
    %3459 = vmatprep.subr.mxu0 0.0
    %3460 = vmatpush1.xpose.msra.mxu0 0.0
    %3461 = vmatprep.subr.mxu0 0.0
    %3462 = vmatpush1.xpose.msra.mxu0 0.0
    %3463 = vmatprep.subr.mxu0 0.0
    %3464 = vmatpush1.xpose.msra.mxu0 0.0
    %3465 = vmatprep.subr.mxu0 0.0
    %3466 = vmatpush1.xpose.msra.mxu0 0.0
    %3467 = vmatprep.subr.mxu0 0.0
    %3468 = vmatpush1.xpose.msra.mxu0 0.0
    %3469 = vmatprep.subr.mxu0 0.0
    %3470 = vmatpush1.xpose.msra.mxu0 0.0
    %3471 = vmatprep.subr.mxu0 0.0
    %3472 = vmatpush1.xpose.msra.mxu0 0.0
    %3473 = vmatprep.subr.mxu0 0.0
    %3474 = vmatpush1.xpose.msra.mxu0 0.0
    %3475 = vmatprep.subr.mxu0 0.0
    %3476 = vmatpush1.xpose.msra.mxu0 0.0
    %3477 = vmatprep.subr.mxu0 0.0
    %3478 = vmatpush1.xpose.msra.mxu0 0.0
    %3479 = vmatprep.subr.mxu0 0.0
    %3480 = vmatpush1.xpose.msra.mxu0 0.0
    %3481 = vmatprep.subr.mxu0 0.0
    %3482 = vmatpush1.xpose.msra.mxu0 0.0
    %3483 = vmatprep.subr.mxu0 0.0
    %3484 = vmatpush1.xpose.msra.mxu0 0.0
    %3485 = vmatprep.subr.mxu0 0.0
    %3486 = vmatpush1.xpose.msra.mxu0 0.0
    %3487 = vmatprep.mubr.f32.mxu0 0.0
    %3488 = vmatmul.mubr.f32.gmra.mrb[0].mxu0 %v3418
    %v3489 = vpop.f32.mrb[0].mxu0
    %v3490 = vadd.f32 0.0, %v3489
    %v3491 = vpop.f32.mrb[0].mxu0
    %3492 = vdwg.mxu0
    %v3493 = vmul.f32 %v3490, 0.35355338
    %v3494 = vadd.f32 %v3493, %v72
    %v3495 = vsel %vm399, %v3494, -inf
    %3496 = vmax.xlane.f32.xlu0 %v3495
    %v3497 = vpop.xlane.xlu0 %3496
    %v3498 = vsub.f32 %v3494, %v3497
    %v3499 = vmul.f32 %v3498, 1.442695
    %v3500 = vpow.pop %v3499
    %v3501 = vsel %vm399, %v3500, 0.0
    %3502 = vadd.xlane.f32.xlu0 %v3501
    %v3503 = vpop.xlane.xlu0 %3502
    %v3504 = vrcp.pop %v3503
    %v3505 = vmul.f32 %v3500, %v3504
    %v3507 = vsel %vm399, %v3505, 0
    %3509 = vmatprep.subr.mxu0 0.0
    %3510 = vmatpush1.msra.mxu0 %v3409
    %3511 = vmatprep.subr.mxu0 0.0
    %3512 = vmatpush1.msra.mxu0 0.0
    %3513 = vmatprep.subr.mxu0 0.0
    %3514 = vmatpush1.msra.mxu0 0.0
    %3515 = vmatprep.subr.mxu0 0.0
    %3516 = vmatpush1.msra.mxu0 0.0
    %3517 = vmatprep.subr.mxu0 0.0
    %3518 = vmatpush1.msra.mxu0 0.0
    %3519 = vmatprep.subr.mxu0 0.0
    %3520 = vmatpush1.msra.mxu0 0.0
    %3521 = vmatprep.subr.mxu0 0.0
    %3522 = vmatpush1.msra.mxu0 0.0
    %3523 = vmatprep.subr.mxu0 0.0
    %3524 = vmatpush1.msra.mxu0 0.0
    %3525 = vmatprep.subr.mxu0 0.0
    %3526 = vmatpush1.msra.mxu0 0.0
    %3527 = vmatprep.subr.mxu0 0.0
    %3528 = vmatpush1.msra.mxu0 0.0
    %3529 = vmatprep.subr.mxu0 0.0
    %3530 = vmatpush1.msra.mxu0 0.0
    %3531 = vmatprep.subr.mxu0 0.0
    %3532 = vmatpush1.msra.mxu0 0.0
    %3533 = vmatprep.subr.mxu0 0.0
    %3534 = vmatpush1.msra.mxu0 0.0
    %3535 = vmatprep.subr.mxu0 0.0
    %3536 = vmatpush1.msra.mxu0 0.0
    %3537 = vmatprep.subr.mxu0 0.0
    %3538 = vmatpush1.msra.mxu0 0.0
    %3539 = vmatprep.subr.mxu0 0.0
    %3540 = vmatpush1.msra.mxu0 0.0
    %3541 = vmatprep.subr.mxu0 0.0
    %3542 = vmatpush1.msra.mxu0 0.0
    %3543 = vmatprep.subr.mxu0 0.0
    %3544 = vmatpush1.msra.mxu0 0.0
    %3545 = vmatprep.subr.mxu0 0.0
    %3546 = vmatpush1.msra.mxu0 0.0
    %3547 = vmatprep.subr.mxu0 0.0
    %3548 = vmatpush1.msra.mxu0 0.0
    %3549 = vmatprep.subr.mxu0 0.0
    %3550 = vmatpush1.msra.mxu0 0.0
    %3551 = vmatprep.subr.mxu0 0.0
    %3552 = vmatpush1.msra.mxu0 0.0
    %3553 = vmatprep.subr.mxu0 0.0
    %3554 = vmatpush1.msra.mxu0 0.0
    %3555 = vmatprep.subr.mxu0 0.0
    %3556 = vmatpush1.msra.mxu0 0.0
    %3557 = vmatprep.subr.mxu0 0.0
    %3558 = vmatpush1.msra.mxu0 0.0
    %3559 = vmatprep.subr.mxu0 0.0
    %3560 = vmatpush1.msra.mxu0 0.0
    %3561 = vmatprep.subr.mxu0 0.0
    %3562 = vmatpush1.msra.mxu0 0.0
    %3563 = vmatprep.subr.mxu0 0.0
    %3564 = vmatpush1.msra.mxu0 0.0
    %3565 = vmatprep.subr.mxu0 0.0
    %3566 = vmatpush1.msra.mxu0 0.0
    %3567 = vmatprep.subr.mxu0 0.0
    %3568 = vmatpush1.msra.mxu0 0.0
    %3569 = vmatprep.subr.mxu0 0.0
    %3570 = vmatpush1.msra.mxu0 0.0
    %3571 = vmatprep.subr.mxu0 0.0
    %3572 = vmatpush1.msra.mxu0 0.0
    %3573 = vmatprep.mubr.f32.mxu0 0.0
    %3574 = vmatmul.mubr.f32.gmra.mrb[0].mxu0 %v3507
    %v3575 = vpop.f32.mrb[0].mxu0
    %v3576 = vadd.f32 0.0, %v3575
    %v3577 = vpop.f32.mrb[0].mxu0
    %3578 = vdwg.mxu0
    %v3580 = vsel %vm399, %v3238, 0
    %v3583 = vsel %vm399, %v3326, 0
    %3585 = vmatprep.subr.mxu0 0.0
    %3586 = vmatpush1.xpose.msra.mxu0 %v3583
    %3587 = vmatprep.subr.mxu0 0.0
    %3588 = vmatpush1.xpose.msra.mxu0 0.0
    %3589 = vmatprep.subr.mxu0 0.0
    %3590 = vmatpush1.xpose.msra.mxu0 0.0
    %3591 = vmatprep.subr.mxu0 0.0
    %3592 = vmatpush1.xpose.msra.mxu0 0.0
    %3593 = vmatprep.subr.mxu0 0.0
    %3594 = vmatpush1.xpose.msra.mxu0 0.0
    %3595 = vmatprep.subr.mxu0 0.0
    %3596 = vmatpush1.xpose.msra.mxu0 0.0
    %3597 = vmatprep.subr.mxu0 0.0
    %3598 = vmatpush1.xpose.msra.mxu0 0.0
    %3599 = vmatprep.subr.mxu0 0.0
    %3600 = vmatpush1.xpose.msra.mxu0 0.0
    %3601 = vmatprep.subr.mxu0 0.0
    %3602 = vmatpush1.xpose.msra.mxu0 0.0
    %3603 = vmatprep.subr.mxu0 0.0
    %3604 = vmatpush1.xpose.msra.mxu0 0.0
    %3605 = vmatprep.subr.mxu0 0.0
    %3606 = vmatpush1.xpose.msra.mxu0 0.0
    %3607 = vmatprep.subr.mxu0 0.0
    %3608 = vmatpush1.xpose.msra.mxu0 0.0
    %3609 = vmatprep.subr.mxu0 0.0
    %3610 = vmatpush1.xpose.msra.mxu0 0.0
    %3611 = vmatprep.subr.mxu0 0.0
    %3612 = vmatpush1.xpose.msra.mxu0 0.0
    %3613 = vmatprep.subr.mxu0 0.0
    %3614 = vmatpush1.xpose.msra.mxu0 0.0
    %3615 = vmatprep.subr.mxu0 0.0
    %3616 = vmatpush1.xpose.msra.mxu0 0.0
    %3617 = vmatprep.subr.mxu0 0.0
    %3618 = vmatpush1.xpose.msra.mxu0 0.0
    %3619 = vmatprep.subr.mxu0 0.0
    %3620 = vmatpush1.xpose.msra.mxu0 0.0
    %3621 = vmatprep.subr.mxu0 0.0
    %3622 = vmatpush1.xpose.msra.mxu0 0.0
    %3623 = vmatprep.subr.mxu0 0.0
    %3624 = vmatpush1.xpose.msra.mxu0 0.0
    %3625 = vmatprep.subr.mxu0 0.0
    %3626 = vmatpush1.xpose.msra.mxu0 0.0
    %3627 = vmatprep.subr.mxu0 0.0
    %3628 = vmatpush1.xpose.msra.mxu0 0.0
    %3629 = vmatprep.subr.mxu0 0.0
    %3630 = vmatpush1.xpose.msra.mxu0 0.0
    %3631 = vmatprep.subr.mxu0 0.0
    %3632 = vmatpush1.xpose.msra.mxu0 0.0
    %3633 = vmatprep.subr.mxu0 0.0
    %3634 = vmatpush1.xpose.msra.mxu0 0.0
    %3635 = vmatprep.subr.mxu0 0.0
    %3636 = vmatpush1.xpose.msra.mxu0 0.0
    %3637 = vmatprep.subr.mxu0 0.0
    %3638 = vmatpush1.xpose.msra.mxu0 0.0
    %3639 = vmatprep.subr.mxu0 0.0
    %3640 = vmatpush1.xpose.msra.mxu0 0.0
    %3641 = vmatprep.subr.mxu0 0.0
    %3642 = vmatpush1.xpose.msra.mxu0 0.0
    %3643 = vmatprep.subr.mxu0 0.0
    %3644 = vmatpush1.xpose.msra.mxu0 0.0
    %3645 = vmatprep.subr.mxu0 0.0
    %3646 = vmatpush1.xpose.msra.mxu0 0.0
    %3647 = vmatprep.subr.mxu0 0.0
    %3648 = vmatpush1.xpose.msra.mxu0 0.0
    %3649 = vmatprep.mubr.f32.mxu0 0.0
    %3650 = vmatmul.mubr.f32.gmra.mrb[0].mxu0 %v3580
    %v3651 = vpop.f32.mrb[0].mxu0
    %v3652 = vadd.f32 0.0, %v3651
    %v3653 = vpop.f32.mrb[0].mxu0
    %3654 = vdwg.mxu0
    %v3655 = vmul.f32 %v3652, 0.35355338
    %v3656 = vadd.f32 %v3655, %v73
    %v3657 = vsel %vm399, %v3656, -inf
    %3658 = vmax.xlane.f32.xlu0 %v3657
    %v3659 = vpop.xlane.xlu0 %3658
    %v3660 = vsub.f32 %v3656, %v3659
    %v3661 = vmul.f32 %v3660, 1.442695
    %v3662 = vpow.pop %v3661
    %v3663 = vsel %vm399, %v3662, 0.0
    %3664 = vadd.xlane.f32.xlu0 %v3663
    %v3665 = vpop.xlane.xlu0 %3664
    %v3666 = vrcp.pop %v3665
    %v3667 = vmul.f32 %v3662, %v3666
    %v3669 = vsel %vm399, %v3667, 0
    %3671 = vmatprep.subr.mxu0 0.0
    %3672 = vmatpush1.msra.mxu0 %v3414
    %3673 = vmatprep.subr.mxu0 0.0
    %3674 = vmatpush1.msra.mxu0 0.0
    %3675 = vmatprep.subr.mxu0 0.0
    %3676 = vmatpush1.msra.mxu0 0.0
    %3677 = vmatprep.subr.mxu0 0.0
    %3678 = vmatpush1.msra.mxu0 0.0
    %3679 = vmatprep.subr.mxu0 0.0
    %3680 = vmatpush1.msra.mxu0 0.0
    %3681 = vmatprep.subr.mxu0 0.0
    %3682 = vmatpush1.msra.mxu0 0.0
    %3683 = vmatprep.subr.mxu0 0.0
    %3684 = vmatpush1.msra.mxu0 0.0
    %3685 = vmatprep.subr.mxu0 0.0
    %3686 = vmatpush1.msra.mxu0 0.0
    %3687 = vmatprep.subr.mxu0 0.0
    %3688 = vmatpush1.msra.mxu0 0.0
    %3689 = vmatprep.subr.mxu0 0.0
    %3690 = vmatpush1.msra.mxu0 0.0
    %3691 = vmatprep.subr.mxu0 0.0
    %3692 = vmatpush1.msra.mxu0 0.0
    %3693 = vmatprep.subr.mxu0 0.0
    %3694 = vmatpush1.msra.mxu0 0.0
    %3695 = vmatprep.subr.mxu0 0.0
    %3696 = vmatpush1.msra.mxu0 0.0
    %3697 = vmatprep.subr.mxu0 0.0
    %3698 = vmatpush1.msra.mxu0 0.0
    %3699 = vmatprep.subr.mxu0 0.0
    %3700 = vmatpush1.msra.mxu0 0.0
    %3701 = vmatprep.subr.mxu0 0.0
    %3702 = vmatpush1.msra.mxu0 0.0
    %3703 = vmatprep.subr.mxu0 0.0
    %3704 = vmatpush1.msra.mxu0 0.0
    %3705 = vmatprep.subr.mxu0 0.0
    %3706 = vmatpush1.msra.mxu0 0.0
    %3707 = vmatprep.subr.mxu0 0.0
    %3708 = vmatpush1.msra.mxu0 0.0
    %3709 = vmatprep.subr.mxu0 0.0
    %3710 = vmatpush1.msra.mxu0 0.0
    %3711 = vmatprep.subr.mxu0 0.0
    %3712 = vmatpush1.msra.mxu0 0.0
    %3713 = vmatprep.subr.mxu0 0.0
    %3714 = vmatpush1.msra.mxu0 0.0
    %3715 = vmatprep.subr.mxu0 0.0
    %3716 = vmatpush1.msra.mxu0 0.0
    %3717 = vmatprep.subr.mxu0 0.0
    %3718 = vmatpush1.msra.mxu0 0.0
    %3719 = vmatprep.subr.mxu0 0.0
    %3720 = vmatpush1.msra.mxu0 0.0
    %3721 = vmatprep.subr.mxu0 0.0
    %3722 = vmatpush1.msra.mxu0 0.0
    %3723 = vmatprep.subr.mxu0 0.0
    %3724 = vmatpush1.msra.mxu0 0.0
    %3725 = vmatprep.subr.mxu0 0.0
    %3726 = vmatpush1.msra.mxu0 0.0
    %3727 = vmatprep.subr.mxu0 0.0
    %3728 = vmatpush1.msra.mxu0 0.0
    %3729 = vmatprep.subr.mxu0 0.0
    %3730 = vmatpush1.msra.mxu0 0.0
    %3731 = vmatprep.subr.mxu0 0.0
    %3732 = vmatpush1.msra.mxu0 0.0
    %3733 = vmatprep.subr.mxu0 0.0
    %3734 = vmatpush1.msra.mxu0 0.0
    %3735 = vmatprep.mubr.f32.mxu0 0.0
    %3736 = vmatmul.mubr.f32.gmra.mrb[0].mxu0 %v3669
    %v3737 = vpop.f32.mrb[0].mxu0
    %v3738 = vadd.f32 0.0, %v3737
    %v3739 = vpop.f32.mrb[0].mxu0
    %3740 = vdwg.mxu0
    %s3741 = scalar_lea.vmem %s10, 32
    %v3742 = vld [vmem:[%s3741] sm:$0xff]
    %s3743 = scalar_lea.vmem %s4, 160
    %v3744 = vld [vmem:[%s3743] sm:$0xff]
    %v3745 = vld [vmem:[%s3743 + $0x8] sm:$0xff]
    %v3746 = vld [vmem:[%s3743 + $0x10] sm:$0xff]
    %v3747 = vld [vmem:[%s3743 + $0x18] sm:$0xff]
    %s3748 = scalar_lea.vmem %s5, 5
    %v3749 = vld [vmem:[%s3748] sm:$0x1]
    %v3751 = vlaneseq
    %v3752 = vshrl.u32 %v3751, 7
    %v3753 = vsub.s32 0, %v3752
    %v3754 = vrot.slane %v3749, %v3753
    %3756 = vmatprep.subr.mxu0 0.0
    %3757 = vmatpush1.msra.mxu0 %v3744
    %3758 = vmatprep.subr.mxu0 0.0
    %3759 = vmatpush1.msra.mxu0 %v3745
    %3760 = vmatprep.subr.mxu0 0.0
    %3761 = vmatpush1.msra.mxu0 %v3746
    %3762 = vmatprep.subr.mxu0 0.0
    %3763 = vmatpush1.msra.mxu0 %v3747
    %3764 = vmatprep.subr.mxu0 0.0
    %3765 = vmatpush1.msra.mxu0 0.0
    %3766 = vmatprep.subr.mxu0 0.0
    %3767 = vmatpush1.msra.mxu0 0.0
    %3768 = vmatprep.subr.mxu0 0.0
    %3769 = vmatpush1.msra.mxu0 0.0
    %3770 = vmatprep.subr.mxu0 0.0
    %3771 = vmatpush1.msra.mxu0 0.0
    %3772 = vmatprep.subr.mxu0 0.0
    %3773 = vmatpush1.msra.mxu0 0.0
    %3774 = vmatprep.subr.mxu0 0.0
    %3775 = vmatpush1.msra.mxu0 0.0
    %3776 = vmatprep.subr.mxu0 0.0
    %3777 = vmatpush1.msra.mxu0 0.0
    %3778 = vmatprep.subr.mxu0 0.0
    %3779 = vmatpush1.msra.mxu0 0.0
    %3780 = vmatprep.subr.mxu0 0.0
    %3781 = vmatpush1.msra.mxu0 0.0
    %3782 = vmatprep.subr.mxu0 0.0
    %3783 = vmatpush1.msra.mxu0 0.0
    %3784 = vmatprep.subr.mxu0 0.0
    %3785 = vmatpush1.msra.mxu0 0.0
    %3786 = vmatprep.subr.mxu0 0.0
    %3787 = vmatpush1.msra.mxu0 0.0
    %3788 = vmatprep.subr.mxu0 0.0
    %3789 = vmatpush1.msra.mxu0 0.0
    %3790 = vmatprep.subr.mxu0 0.0
    %3791 = vmatpush1.msra.mxu0 0.0
    %3792 = vmatprep.subr.mxu0 0.0
    %3793 = vmatpush1.msra.mxu0 0.0
    %3794 = vmatprep.subr.mxu0 0.0
    %3795 = vmatpush1.msra.mxu0 0.0
    %3796 = vmatprep.subr.mxu0 0.0
    %3797 = vmatpush1.msra.mxu0 0.0
    %3798 = vmatprep.subr.mxu0 0.0
    %3799 = vmatpush1.msra.mxu0 0.0
    %3800 = vmatprep.subr.mxu0 0.0
    %3801 = vmatpush1.msra.mxu0 0.0
    %3802 = vmatprep.subr.mxu0 0.0
    %3803 = vmatpush1.msra.mxu0 0.0
    %3804 = vmatprep.subr.mxu0 0.0
    %3805 = vmatpush1.msra.mxu0 0.0
    %3806 = vmatprep.subr.mxu0 0.0
    %3807 = vmatpush1.msra.mxu0 0.0
    %3808 = vmatprep.subr.mxu0 0.0
    %3809 = vmatpush1.msra.mxu0 0.0
    %3810 = vmatprep.subr.mxu0 0.0
    %3811 = vmatpush1.msra.mxu0 0.0
    %3812 = vmatprep.subr.mxu0 0.0
    %3813 = vmatpush1.msra.mxu0 0.0
    %3814 = vmatprep.subr.mxu0 0.0
    %3815 = vmatpush1.msra.mxu0 0.0
    %3816 = vmatprep.subr.mxu0 0.0
    %3817 = vmatpush1.msra.mxu0 0.0
    %3818 = vmatprep.subr.mxu0 0.0
    %3819 = vmatpush1.msra.mxu0 0.0
    %3820 = vmatprep.mubr.f32.mxu0 0.0
    %3821 = vmatmul.mubr.f32.gmra.mrb[0].mxu0 %v3161
    %v3822 = vpop.f32.mrb[0].mxu0
    %v3823 = vadd.f32 %v3754, %v3822
    %v3824 = vpop.f32.mrb[0].mxu0
    %3825 = vmatprep.mubr.f32.mxu0 0.0
    %3826 = vmatmul.mubr.f32.gmra.mrb[0].mxu0 %v3164
    %v3827 = vpop.f32.mrb[0].mxu0
    %v3828 = vadd.f32 %v3754, %v3827
    %v3829 = vpop.f32.mrb[0].mxu0
    %3830 = vdwg.mxu0
    %s3831 = scalar_lea.vmem %s6, 160
    %v3832 = vld [vmem:[%s3831] sm:$0xff]
    %v3833 = vld [vmem:[%s3831 + $0x8] sm:$0xff]
    %v3834 = vld [vmem:[%s3831 + $0x10] sm:$0xff]
    %v3835 = vld [vmem:[%s3831 + $0x18] sm:$0xff]
    %s3836 = scalar_lea.vmem %s7, 5
    %v3837 = vld [vmem:[%s3836] sm:$0x1]
    %v3839 = vlaneseq
    %v3840 = vshrl.u32 %v3839, 7
    %v3841 = vsub.s32 0, %v3840
    %v3842 = vrot.slane %v3837, %v3841
    %3844 = vmatprep.subr.mxu0 0.0
    %3845 = vmatpush1.msra.mxu0 %v3832
    %3846 = vmatprep.subr.mxu0 0.0
    %3847 = vmatpush1.msra.mxu0 %v3833
    %3848 = vmatprep.subr.mxu0 0.0
    %3849 = vmatpush1.msra.mxu0 %v3834
    %3850 = vmatprep.subr.mxu0 0.0
    %3851 = vmatpush1.msra.mxu0 %v3835
    %3852 = vmatprep.subr.mxu0 0.0
    %3853 = vmatpush1.msra.mxu0 0.0
    %3854 = vmatprep.subr.mxu0 0.0
    %3855 = vmatpush1.msra.mxu0 0.0
    %3856 = vmatprep.subr.mxu0 0.0
    %3857 = vmatpush1.msra.mxu0 0.0
    %3858 = vmatprep.subr.mxu0 0.0
    %3859 = vmatpush1.msra.mxu0 0.0
    %3860 = vmatprep.subr.mxu0 0.0
    %3861 = vmatpush1.msra.mxu0 0.0
    %3862 = vmatprep.subr.mxu0 0.0
    %3863 = vmatpush1.msra.mxu0 0.0
    %3864 = vmatprep.subr.mxu0 0.0
    %3865 = vmatpush1.msra.mxu0 0.0
    %3866 = vmatprep.subr.mxu0 0.0
    %3867 = vmatpush1.msra.mxu0 0.0
    %3868 = vmatprep.subr.mxu0 0.0
    %3869 = vmatpush1.msra.mxu0 0.0
    %3870 = vmatprep.subr.mxu0 0.0
    %3871 = vmatpush1.msra.mxu0 0.0
    %3872 = vmatprep.subr.mxu0 0.0
    %3873 = vmatpush1.msra.mxu0 0.0
    %3874 = vmatprep.subr.mxu0 0.0
    %3875 = vmatpush1.msra.mxu0 0.0
    %3876 = vmatprep.subr.mxu0 0.0
    %3877 = vmatpush1.msra.mxu0 0.0
    %3878 = vmatprep.subr.mxu0 0.0
    %3879 = vmatpush1.msra.mxu0 0.0
    %3880 = vmatprep.subr.mxu0 0.0
    %3881 = vmatpush1.msra.mxu0 0.0
    %3882 = vmatprep.subr.mxu0 0.0
    %3883 = vmatpush1.msra.mxu0 0.0
    %3884 = vmatprep.subr.mxu0 0.0
    %3885 = vmatpush1.msra.mxu0 0.0
    %3886 = vmatprep.subr.mxu0 0.0
    %3887 = vmatpush1.msra.mxu0 0.0
    %3888 = vmatprep.subr.mxu0 0.0
    %3889 = vmatpush1.msra.mxu0 0.0
    %3890 = vmatprep.subr.mxu0 0.0
    %3891 = vmatpush1.msra.mxu0 0.0
    %3892 = vmatprep.subr.mxu0 0.0
    %3893 = vmatpush1.msra.mxu0 0.0
    %3894 = vmatprep.subr.mxu0 0.0
    %3895 = vmatpush1.msra.mxu0 0.0
    %3896 = vmatprep.subr.mxu0 0.0
    %3897 = vmatpush1.msra.mxu0 0.0
    %3898 = vmatprep.subr.mxu0 0.0
    %3899 = vmatpush1.msra.mxu0 0.0
    %3900 = vmatprep.subr.mxu0 0.0
    %3901 = vmatpush1.msra.mxu0 0.0
    %3902 = vmatprep.subr.mxu0 0.0
    %3903 = vmatpush1.msra.mxu0 0.0
    %3904 = vmatprep.subr.mxu0 0.0
    %3905 = vmatpush1.msra.mxu0 0.0
    %3906 = vmatprep.subr.mxu0 0.0
    %3907 = vmatpush1.msra.mxu0 0.0
    %3908 = vmatprep.mubr.f32.mxu0 0.0
    %3909 = vmatmul.mubr.f32.gmra.mrb[0].mxu0 %v3161
    %v3910 = vpop.f32.mrb[0].mxu0
    %v3911 = vadd.f32 %v3842, %v3910
    %v3912 = vpop.f32.mrb[0].mxu0
    %3913 = vmatprep.mubr.f32.mxu0 0.0
    %3914 = vmatmul.mubr.f32.gmra.mrb[0].mxu0 %v3164
    %v3915 = vpop.f32.mrb[0].mxu0
    %v3916 = vadd.f32 %v3842, %v3915
    %v3917 = vpop.f32.mrb[0].mxu0
    %3918 = vdwg.mxu0
    %s3919 = scalar_lea.vmem %s8, 160
    %v3920 = vld [vmem:[%s3919] sm:$0xff]
    %v3921 = vld [vmem:[%s3919 + $0x8] sm:$0xff]
    %v3922 = vld [vmem:[%s3919 + $0x10] sm:$0xff]
    %v3923 = vld [vmem:[%s3919 + $0x18] sm:$0xff]
    %s3924 = scalar_lea.vmem %s9, 5
    %v3925 = vld [vmem:[%s3924] sm:$0x1]
    %v3927 = vlaneseq
    %v3928 = vshrl.u32 %v3927, 7
    %v3929 = vsub.s32 0, %v3928
    %v3930 = vrot.slane %v3925, %v3929
    %3932 = vmatprep.subr.mxu0 0.0
    %3933 = vmatpush1.msra.mxu0 %v3920
    %3934 = vmatprep.subr.mxu0 0.0
    %3935 = vmatpush1.msra.mxu0 %v3921
    %3936 = vmatprep.subr.mxu0 0.0
    %3937 = vmatpush1.msra.mxu0 %v3922
    %3938 = vmatprep.subr.mxu0 0.0
    %3939 = vmatpush1.msra.mxu0 %v3923
    %3940 = vmatprep.subr.mxu0 0.0
    %3941 = vmatpush1.msra.mxu0 0.0
    %3942 = vmatprep.subr.mxu0 0.0
    %3943 = vmatpush1.msra.mxu0 0.0
    %3944 = vmatprep.subr.mxu0 0.0
    %3945 = vmatpush1.msra.mxu0 0.0
    %3946 = vmatprep.subr.mxu0 0.0
    %3947 = vmatpush1.msra.mxu0 0.0
    %3948 = vmatprep.subr.mxu0 0.0
    %3949 = vmatpush1.msra.mxu0 0.0
    %3950 = vmatprep.subr.mxu0 0.0
    %3951 = vmatpush1.msra.mxu0 0.0
    %3952 = vmatprep.subr.mxu0 0.0
    %3953 = vmatpush1.msra.mxu0 0.0
    %3954 = vmatprep.subr.mxu0 0.0
    %3955 = vmatpush1.msra.mxu0 0.0
    %3956 = vmatprep.subr.mxu0 0.0
    %3957 = vmatpush1.msra.mxu0 0.0
    %3958 = vmatprep.subr.mxu0 0.0
    %3959 = vmatpush1.msra.mxu0 0.0
    %3960 = vmatprep.subr.mxu0 0.0
    %3961 = vmatpush1.msra.mxu0 0.0
    %3962 = vmatprep.subr.mxu0 0.0
    %3963 = vmatpush1.msra.mxu0 0.0
    %3964 = vmatprep.subr.mxu0 0.0
    %3965 = vmatpush1.msra.mxu0 0.0
    %3966 = vmatprep.subr.mxu0 0.0
    %3967 = vmatpush1.msra.mxu0 0.0
    %3968 = vmatprep.subr.mxu0 0.0
    %3969 = vmatpush1.msra.mxu0 0.0
    %3970 = vmatprep.subr.mxu0 0.0
    %3971 = vmatpush1.msra.mxu0 0.0
    %3972 = vmatprep.subr.mxu0 0.0
    %3973 = vmatpush1.msra.mxu0 0.0
    %3974 = vmatprep.subr.mxu0 0.0
    %3975 = vmatpush1.msra.mxu0 0.0
    %3976 = vmatprep.subr.mxu0 0.0
    %3977 = vmatpush1.msra.mxu0 0.0
    %3978 = vmatprep.subr.mxu0 0.0
    %3979 = vmatpush1.msra.mxu0 0.0
    %3980 = vmatprep.subr.mxu0 0.0
    %3981 = vmatpush1.msra.mxu0 0.0
    %3982 = vmatprep.subr.mxu0 0.0
    %3983 = vmatpush1.msra.mxu0 0.0
    %3984 = vmatprep.subr.mxu0 0.0
    %3985 = vmatpush1.msra.mxu0 0.0
    %3986 = vmatprep.subr.mxu0 0.0
    %3987 = vmatpush1.msra.mxu0 0.0
    %3988 = vmatprep.subr.mxu0 0.0
    %3989 = vmatpush1.msra.mxu0 0.0
    %3990 = vmatprep.subr.mxu0 0.0
    %3991 = vmatpush1.msra.mxu0 0.0
    %3992 = vmatprep.subr.mxu0 0.0
    %3993 = vmatpush1.msra.mxu0 0.0
    %3994 = vmatprep.subr.mxu0 0.0
    %3995 = vmatpush1.msra.mxu0 0.0
    %3996 = vmatprep.mubr.f32.mxu0 0.0
    %3997 = vmatmul.mubr.f32.gmra.mrb[0].mxu0 %v3161
    %v3998 = vpop.f32.mrb[0].mxu0
    %v3999 = vadd.f32 %v3930, %v3998
    %v4000 = vpop.f32.mrb[0].mxu0
    %4001 = vmatprep.mubr.f32.mxu0 0.0
    %4002 = vmatmul.mubr.f32.gmra.mrb[0].mxu0 %v3164
    %v4003 = vpop.f32.mrb[0].mxu0
    %v4004 = vadd.f32 %v3930, %v4003
    %v4005 = vpop.f32.mrb[0].mxu0
    %4006 = vdwg.mxu0
    %v4008 = vsel %vm399, %v3823, 0
    %v4011 = vsel %vm399, %v3911, 0
    %4013 = vmatprep.subr.mxu0 0.0
    %4014 = vmatpush1.xpose.msra.mxu0 %v4011
    %4015 = vmatprep.subr.mxu0 0.0
    %4016 = vmatpush1.xpose.msra.mxu0 0.0
    %4017 = vmatprep.subr.mxu0 0.0
    %4018 = vmatpush1.xpose.msra.mxu0 0.0
    %4019 = vmatprep.subr.mxu0 0.0
    %4020 = vmatpush1.xpose.msra.mxu0 0.0
    %4021 = vmatprep.subr.mxu0 0.0
    %4022 = vmatpush1.xpose.msra.mxu0 0.0
    %4023 = vmatprep.subr.mxu0 0.0
    %4024 = vmatpush1.xpose.msra.mxu0 0.0
    %4025 = vmatprep.subr.mxu0 0.0
    %4026 = vmatpush1.xpose.msra.mxu0 0.0
    %4027 = vmatprep.subr.mxu0 0.0
    %4028 = vmatpush1.xpose.msra.mxu0 0.0
    %4029 = vmatprep.subr.mxu0 0.0
    %4030 = vmatpush1.xpose.msra.mxu0 0.0
    %4031 = vmatprep.subr.mxu0 0.0
    %4032 = vmatpush1.xpose.msra.mxu0 0.0
    %4033 = vmatprep.subr.mxu0 0.0
    %4034 = vmatpush1.xpose.msra.mxu0 0.0
    %4035 = vmatprep.subr.mxu0 0.0
    %4036 = vmatpush1.xpose.msra.mxu0 0.0
    %4037 = vmatprep.subr.mxu0 0.0
    %4038 = vmatpush1.xpose.msra.mxu0 0.0
    %4039 = vmatprep.subr.mxu0 0.0
    %4040 = vmatpush1.xpose.msra.mxu0 0.0
    %4041 = vmatprep.subr.mxu0 0.0
    %4042 = vmatpush1.xpose.msra.mxu0 0.0
    %4043 = vmatprep.subr.mxu0 0.0
    %4044 = vmatpush1.xpose.msra.mxu0 0.0
    %4045 = vmatprep.subr.mxu0 0.0
    %4046 = vmatpush1.xpose.msra.mxu0 0.0
    %4047 = vmatprep.subr.mxu0 0.0
    %4048 = vmatpush1.xpose.msra.mxu0 0.0
    %4049 = vmatprep.subr.mxu0 0.0
    %4050 = vmatpush1.xpose.msra.mxu0 0.0
    %4051 = vmatprep.subr.mxu0 0.0
    %4052 = vmatpush1.xpose.msra.mxu0 0.0
    %4053 = vmatprep.subr.mxu0 0.0
    %4054 = vmatpush1.xpose.msra.mxu0 0.0
    %4055 = vmatprep.subr.mxu0 0.0
    %4056 = vmatpush1.xpose.msra.mxu0 0.0
    %4057 = vmatprep.subr.mxu0 0.0
    %4058 = vmatpush1.xpose.msra.mxu0 0.0
    %4059 = vmatprep.subr.mxu0 0.0
    %4060 = vmatpush1.xpose.msra.mxu0 0.0
    %4061 = vmatprep.subr.mxu0 0.0
    %4062 = vmatpush1.xpose.msra.mxu0 0.0
    %4063 = vmatprep.subr.mxu0 0.0
    %4064 = vmatpush1.xpose.msra.mxu0 0.0
    %4065 = vmatprep.subr.mxu0 0.0
    %4066 = vmatpush1.xpose.msra.mxu0 0.0
    %4067 = vmatprep.subr.mxu0 0.0
    %4068 = vmatpush1.xpose.msra.mxu0 0.0
    %4069 = vmatprep.subr.mxu0 0.0
    %4070 = vmatpush1.xpose.msra.mxu0 0.0
    %4071 = vmatprep.subr.mxu0 0.0
    %4072 = vmatpush1.xpose.msra.mxu0 0.0
    %4073 = vmatprep.subr.mxu0 0.0
    %4074 = vmatpush1.xpose.msra.mxu0 0.0
    %4075 = vmatprep.subr.mxu0 0.0
    %4076 = vmatpush1.xpose.msra.mxu0 0.0
    %4077 = vmatprep.mubr.f32.mxu0 0.0
    %4078 = vmatmul.mubr.f32.gmra.mrb[0].mxu0 %v4008
    %v4079 = vpop.f32.mrb[0].mxu0
    %v4080 = vadd.f32 0.0, %v4079
    %v4081 = vpop.f32.mrb[0].mxu0
    %4082 = vdwg.mxu0
    %v4083 = vmul.f32 %v4080, 0.35355338
    %v4084 = vadd.f32 %v4083, %v72
    %v4085 = vsel %vm399, %v4084, -inf
    %4086 = vmax.xlane.f32.xlu0 %v4085
    %v4087 = vpop.xlane.xlu0 %4086
    %v4088 = vsub.f32 %v4084, %v4087
    %v4089 = vmul.f32 %v4088, 1.442695
    %v4090 = vpow.pop %v4089
    %v4091 = vsel %vm399, %v4090, 0.0
    %4092 = vadd.xlane.f32.xlu0 %v4091
    %v4093 = vpop.xlane.xlu0 %4092
    %v4094 = vrcp.pop %v4093
    %v4095 = vmul.f32 %v4090, %v4094
    %v4097 = vsel %vm399, %v4095, 0
    %4099 = vmatprep.subr.mxu0 0.0
    %4100 = vmatpush1.msra.mxu0 %v3999
    %4101 = vmatprep.subr.mxu0 0.0
    %4102 = vmatpush1.msra.mxu0 0.0
    %4103 = vmatprep.subr.mxu0 0.0
    %4104 = vmatpush1.msra.mxu0 0.0
    %4105 = vmatprep.subr.mxu0 0.0
    %4106 = vmatpush1.msra.mxu0 0.0
    %4107 = vmatprep.subr.mxu0 0.0
    %4108 = vmatpush1.msra.mxu0 0.0
    %4109 = vmatprep.subr.mxu0 0.0
    %4110 = vmatpush1.msra.mxu0 0.0
    %4111 = vmatprep.subr.mxu0 0.0
    %4112 = vmatpush1.msra.mxu0 0.0
    %4113 = vmatprep.subr.mxu0 0.0
    %4114 = vmatpush1.msra.mxu0 0.0
    %4115 = vmatprep.subr.mxu0 0.0
    %4116 = vmatpush1.msra.mxu0 0.0
    %4117 = vmatprep.subr.mxu0 0.0
    %4118 = vmatpush1.msra.mxu0 0.0
    %4119 = vmatprep.subr.mxu0 0.0
    %4120 = vmatpush1.msra.mxu0 0.0
    %4121 = vmatprep.subr.mxu0 0.0
    %4122 = vmatpush1.msra.mxu0 0.0
    %4123 = vmatprep.subr.mxu0 0.0
    %4124 = vmatpush1.msra.mxu0 0.0
    %4125 = vmatprep.subr.mxu0 0.0
    %4126 = vmatpush1.msra.mxu0 0.0
    %4127 = vmatprep.subr.mxu0 0.0
    %4128 = vmatpush1.msra.mxu0 0.0
    %4129 = vmatprep.subr.mxu0 0.0
    %4130 = vmatpush1.msra.mxu0 0.0
    %4131 = vmatprep.subr.mxu0 0.0
    %4132 = vmatpush1.msra.mxu0 0.0
    %4133 = vmatprep.subr.mxu0 0.0
    %4134 = vmatpush1.msra.mxu0 0.0
    %4135 = vmatprep.subr.mxu0 0.0
    %4136 = vmatpush1.msra.mxu0 0.0
    %4137 = vmatprep.subr.mxu0 0.0
    %4138 = vmatpush1.msra.mxu0 0.0
    %4139 = vmatprep.subr.mxu0 0.0
    %4140 = vmatpush1.msra.mxu0 0.0
    %4141 = vmatprep.subr.mxu0 0.0
    %4142 = vmatpush1.msra.mxu0 0.0
    %4143 = vmatprep.subr.mxu0 0.0
    %4144 = vmatpush1.msra.mxu0 0.0
    %4145 = vmatprep.subr.mxu0 0.0
    %4146 = vmatpush1.msra.mxu0 0.0
    %4147 = vmatprep.subr.mxu0 0.0
    %4148 = vmatpush1.msra.mxu0 0.0
    %4149 = vmatprep.subr.mxu0 0.0
    %4150 = vmatpush1.msra.mxu0 0.0
    %4151 = vmatprep.subr.mxu0 0.0
    %4152 = vmatpush1.msra.mxu0 0.0
    %4153 = vmatprep.subr.mxu0 0.0
    %4154 = vmatpush1.msra.mxu0 0.0
    %4155 = vmatprep.subr.mxu0 0.0
    %4156 = vmatpush1.msra.mxu0 0.0
    %4157 = vmatprep.subr.mxu0 0.0
    %4158 = vmatpush1.msra.mxu0 0.0
    %4159 = vmatprep.subr.mxu0 0.0
    %4160 = vmatpush1.msra.mxu0 0.0
    %4161 = vmatprep.subr.mxu0 0.0
    %4162 = vmatpush1.msra.mxu0 0.0
    %4163 = vmatprep.mubr.f32.mxu0 0.0
    %4164 = vmatmul.mubr.f32.gmra.mrb[0].mxu0 %v4097
    %v4165 = vpop.f32.mrb[0].mxu0
    %v4166 = vadd.f32 0.0, %v4165
    %v4167 = vpop.f32.mrb[0].mxu0
    %4168 = vdwg.mxu0
    %v4170 = vsel %vm399, %v3828, 0
    %v4173 = vsel %vm399, %v3916, 0
    %4175 = vmatprep.subr.mxu0 0.0
    %4176 = vmatpush1.xpose.msra.mxu0 %v4173
    %4177 = vmatprep.subr.mxu0 0.0
    %4178 = vmatpush1.xpose.msra.mxu0 0.0
    %4179 = vmatprep.subr.mxu0 0.0
    %4180 = vmatpush1.xpose.msra.mxu0 0.0
    %4181 = vmatprep.subr.mxu0 0.0
    %4182 = vmatpush1.xpose.msra.mxu0 0.0
    %4183 = vmatprep.subr.mxu0 0.0
    %4184 = vmatpush1.xpose.msra.mxu0 0.0
    %4185 = vmatprep.subr.mxu0 0.0
    %4186 = vmatpush1.xpose.msra.mxu0 0.0
    %4187 = vmatprep.subr.mxu0 0.0
    %4188 = vmatpush1.xpose.msra.mxu0 0.0
    %4189 = vmatprep.subr.mxu0 0.0
    %4190 = vmatpush1.xpose.msra.mxu0 0.0
    %4191 = vmatprep.subr.mxu0 0.0
    %4192 = vmatpush1.xpose.msra.mxu0 0.0
    %4193 = vmatprep.subr.mxu0 0.0
    %4194 = vmatpush1.xpose.msra.mxu0 0.0
    %4195 = vmatprep.subr.mxu0 0.0
    %4196 = vmatpush1.xpose.msra.mxu0 0.0
    %4197 = vmatprep.subr.mxu0 0.0
    %4198 = vmatpush1.xpose.msra.mxu0 0.0
    %4199 = vmatprep.subr.mxu0 0.0
    %4200 = vmatpush1.xpose.msra.mxu0 0.0
    %4201 = vmatprep.subr.mxu0 0.0
    %4202 = vmatpush1.xpose.msra.mxu0 0.0
    %4203 = vmatprep.subr.mxu0 0.0
    %4204 = vmatpush1.xpose.msra.mxu0 0.0
    %4205 = vmatprep.subr.mxu0 0.0
    %4206 = vmatpush1.xpose.msra.mxu0 0.0
    %4207 = vmatprep.subr.mxu0 0.0
    %4208 = vmatpush1.xpose.msra.mxu0 0.0
    %4209 = vmatprep.subr.mxu0 0.0
    %4210 = vmatpush1.xpose.msra.mxu0 0.0
    %4211 = vmatprep.subr.mxu0 0.0
    %4212 = vmatpush1.xpose.msra.mxu0 0.0
    %4213 = vmatprep.subr.mxu0 0.0
    %4214 = vmatpush1.xpose.msra.mxu0 0.0
    %4215 = vmatprep.subr.mxu0 0.0
    %4216 = vmatpush1.xpose.msra.mxu0 0.0
    %4217 = vmatprep.subr.mxu0 0.0
    %4218 = vmatpush1.xpose.msra.mxu0 0.0
    %4219 = vmatprep.subr.mxu0 0.0
    %4220 = vmatpush1.xpose.msra.mxu0 0.0
    %4221 = vmatprep.subr.mxu0 0.0
    %4222 = vmatpush1.xpose.msra.mxu0 0.0
    %4223 = vmatprep.subr.mxu0 0.0
    %4224 = vmatpush1.xpose.msra.mxu0 0.0
    %4225 = vmatprep.subr.mxu0 0.0
    %4226 = vmatpush1.xpose.msra.mxu0 0.0
    %4227 = vmatprep.subr.mxu0 0.0
    %4228 = vmatpush1.xpose.msra.mxu0 0.0
    %4229 = vmatprep.subr.mxu0 0.0
    %4230 = vmatpush1.xpose.msra.mxu0 0.0
    %4231 = vmatprep.subr.mxu0 0.0
    %4232 = vmatpush1.xpose.msra.mxu0 0.0
    %4233 = vmatprep.subr.mxu0 0.0
    %4234 = vmatpush1.xpose.msra.mxu0 0.0
    %4235 = vmatprep.subr.mxu0 0.0
    %4236 = vmatpush1.xpose.msra.mxu0 0.0
    %4237 = vmatprep.subr.mxu0 0.0
    %4238 = vmatpush1.xpose.msra.mxu0 0.0
    %4239 = vmatprep.mubr.f32.mxu0 0.0
    %4240 = vmatmul.mubr.f32.gmra.mrb[0].mxu0 %v4170
    %v4241 = vpop.f32.mrb[0].mxu0
    %v4242 = vadd.f32 0.0, %v4241
    %v4243 = vpop.f32.mrb[0].mxu0
    %4244 = vdwg.mxu0
    %v4245 = vmul.f32 %v4242, 0.35355338
    %v4246 = vadd.f32 %v4245, %v73
    %v4247 = vsel %vm399, %v4246, -inf
    %4248 = vmax.xlane.f32.xlu0 %v4247
    %v4249 = vpop.xlane.xlu0 %4248
    %v4250 = vsub.f32 %v4246, %v4249
    %v4251 = vmul.f32 %v4250, 1.442695
    %v4252 = vpow.pop %v4251
    %v4253 = vsel %vm399, %v4252, 0.0
    %4254 = vadd.xlane.f32.xlu0 %v4253
    %v4255 = vpop.xlane.xlu0 %4254
    %v4256 = vrcp.pop %v4255
    %v4257 = vmul.f32 %v4252, %v4256
    %v4259 = vsel %vm399, %v4257, 0
    %4261 = vmatprep.subr.mxu0 0.0
    %4262 = vmatpush1.msra.mxu0 %v4004
    %4263 = vmatprep.subr.mxu0 0.0
    %4264 = vmatpush1.msra.mxu0 0.0
    %4265 = vmatprep.subr.mxu0 0.0
    %4266 = vmatpush1.msra.mxu0 0.0
    %4267 = vmatprep.subr.mxu0 0.0
    %4268 = vmatpush1.msra.mxu0 0.0
    %4269 = vmatprep.subr.mxu0 0.0
    %4270 = vmatpush1.msra.mxu0 0.0
    %4271 = vmatprep.subr.mxu0 0.0
    %4272 = vmatpush1.msra.mxu0 0.0
    %4273 = vmatprep.subr.mxu0 0.0
    %4274 = vmatpush1.msra.mxu0 0.0
    %4275 = vmatprep.subr.mxu0 0.0
    %4276 = vmatpush1.msra.mxu0 0.0
    %4277 = vmatprep.subr.mxu0 0.0
    %4278 = vmatpush1.msra.mxu0 0.0
    %4279 = vmatprep.subr.mxu0 0.0
    %4280 = vmatpush1.msra.mxu0 0.0
    %4281 = vmatprep.subr.mxu0 0.0
    %4282 = vmatpush1.msra.mxu0 0.0
    %4283 = vmatprep.subr.mxu0 0.0
    %4284 = vmatpush1.msra.mxu0 0.0
    %4285 = vmatprep.subr.mxu0 0.0
    %4286 = vmatpush1.msra.mxu0 0.0
    %4287 = vmatprep.subr.mxu0 0.0
    %4288 = vmatpush1.msra.mxu0 0.0
    %4289 = vmatprep.subr.mxu0 0.0
    %4290 = vmatpush1.msra.mxu0 0.0
    %4291 = vmatprep.subr.mxu0 0.0
    %4292 = vmatpush1.msra.mxu0 0.0
    %4293 = vmatprep.subr.mxu0 0.0
    %4294 = vmatpush1.msra.mxu0 0.0
    %4295 = vmatprep.subr.mxu0 0.0
    %4296 = vmatpush1.msra.mxu0 0.0
    %4297 = vmatprep.subr.mxu0 0.0
    %4298 = vmatpush1.msra.mxu0 0.0
    %4299 = vmatprep.subr.mxu0 0.0
    %4300 = vmatpush1.msra.mxu0 0.0
    %4301 = vmatprep.subr.mxu0 0.0
    %4302 = vmatpush1.msra.mxu0 0.0
    %4303 = vmatprep.subr.mxu0 0.0
    %4304 = vmatpush1.msra.mxu0 0.0
    %4305 = vmatprep.subr.mxu0 0.0
    %4306 = vmatpush1.msra.mxu0 0.0
    %4307 = vmatprep.subr.mxu0 0.0
    %4308 = vmatpush1.msra.mxu0 0.0
    %4309 = vmatprep.subr.mxu0 0.0
    %4310 = vmatpush1.msra.mxu0 0.0
    %4311 = vmatprep.subr.mxu0 0.0
    %4312 = vmatpush1.msra.mxu0 0.0
    %4313 = vmatprep.subr.mxu0 0.0
    %4314 = vmatpush1.msra.mxu0 0.0
    %4315 = vmatprep.subr.mxu0 0.0
    %4316 = vmatpush1.msra.mxu0 0.0
    %4317 = vmatprep.subr.mxu0 0.0
    %4318 = vmatpush1.msra.mxu0 0.0
    %4319 = vmatprep.subr.mxu0 0.0
    %4320 = vmatpush1.msra.mxu0 0.0
    %4321 = vmatprep.subr.mxu0 0.0
    %4322 = vmatpush1.msra.mxu0 0.0
    %4323 = vmatprep.subr.mxu0 0.0
    %4324 = vmatpush1.msra.mxu0 0.0
    %4325 = vmatprep.mubr.f32.mxu0 0.0
    %4326 = vmatmul.mubr.f32.gmra.mrb[0].mxu0 %v4259
    %v4327 = vpop.f32.mrb[0].mxu0
    %v4328 = vadd.f32 0.0, %v4327
    %v4329 = vpop.f32.mrb[0].mxu0
    %4330 = vdwg.mxu0
    %s4331 = scalar_lea.vmem %s10, 40
    %v4332 = vld [vmem:[%s4331] sm:$0xff]
    %v4334 = vsel %vm399, %v4166, 0
    %v4337 = vsel %vm399, %v4328, 0
    %4339 = vmatprep.subr.mxu0 0.0
    %4340 = vmatpush1.msra.mxu0 %v4332
    %4341 = vmatprep.subr.mxu0 0.0
    %4342 = vmatpush1.msra.mxu0 0.0
    %4343 = vmatprep.subr.mxu0 0.0
    %4344 = vmatpush1.msra.mxu0 0.0
    %4345 = vmatprep.subr.mxu0 0.0
    %4346 = vmatpush1.msra.mxu0 0.0
    %4347 = vmatprep.subr.mxu0 0.0
    %4348 = vmatpush1.msra.mxu0 0.0
    %4349 = vmatprep.subr.mxu0 0.0
    %4350 = vmatpush1.msra.mxu0 0.0
    %4351 = vmatprep.subr.mxu0 0.0
    %4352 = vmatpush1.msra.mxu0 0.0
    %4353 = vmatprep.subr.mxu0 0.0
    %4354 = vmatpush1.msra.mxu0 0.0
    %4355 = vmatprep.subr.mxu0 0.0
    %4356 = vmatpush1.msra.mxu0 0.0
    %4357 = vmatprep.subr.mxu0 0.0
    %4358 = vmatpush1.msra.mxu0 0.0
    %4359 = vmatprep.subr.mxu0 0.0
    %4360 = vmatpush1.msra.mxu0 0.0
    %4361 = vmatprep.subr.mxu0 0.0
    %4362 = vmatpush1.msra.mxu0 0.0
    %4363 = vmatprep.subr.mxu0 0.0
    %4364 = vmatpush1.msra.mxu0 0.0
    %4365 = vmatprep.subr.mxu0 0.0
    %4366 = vmatpush1.msra.mxu0 0.0
    %4367 = vmatprep.subr.mxu0 0.0
    %4368 = vmatpush1.msra.mxu0 0.0
    %4369 = vmatprep.subr.mxu0 0.0
    %4370 = vmatpush1.msra.mxu0 0.0
    %4371 = vmatprep.subr.mxu0 0.0
    %4372 = vmatpush1.msra.mxu0 0.0
    %4373 = vmatprep.subr.mxu0 0.0
    %4374 = vmatpush1.msra.mxu0 0.0
    %4375 = vmatprep.subr.mxu0 0.0
    %4376 = vmatpush1.msra.mxu0 0.0
    %4377 = vmatprep.subr.mxu0 0.0
    %4378 = vmatpush1.msra.mxu0 0.0
    %4379 = vmatprep.subr.mxu0 0.0
    %4380 = vmatpush1.msra.mxu0 0.0
    %4381 = vmatprep.subr.mxu0 0.0
    %4382 = vmatpush1.msra.mxu0 0.0
    %4383 = vmatprep.subr.mxu0 0.0
    %4384 = vmatpush1.msra.mxu0 0.0
    %4385 = vmatprep.subr.mxu0 0.0
    %4386 = vmatpush1.msra.mxu0 0.0
    %4387 = vmatprep.subr.mxu0 0.0
    %4388 = vmatpush1.msra.mxu0 0.0
    %4389 = vmatprep.subr.mxu0 0.0
    %4390 = vmatpush1.msra.mxu0 0.0
    %4391 = vmatprep.subr.mxu0 0.0
    %4392 = vmatpush1.msra.mxu0 0.0
    %4393 = vmatprep.subr.mxu0 0.0
    %4394 = vmatpush1.msra.mxu0 0.0
    %4395 = vmatprep.subr.mxu0 0.0
    %4396 = vmatpush1.msra.mxu0 0.0
    %4397 = vmatprep.subr.mxu0 0.0
    %4398 = vmatpush1.msra.mxu0 0.0
    %4399 = vmatprep.subr.mxu0 0.0
    %4400 = vmatpush1.msra.mxu0 0.0
    %4401 = vmatprep.subr.mxu0 0.0
    %4402 = vmatpush1.msra.mxu0 0.0
    %4403 = vmatprep.mubr.f32.mxu0 0.0
    %4404 = vmatmul.mubr.f32.gmra.mrb[0].mxu0 %v4334
    %v4405 = vpop.f32.mrb[0].mxu0
    %v4406 = vadd.f32 0.0, %v4405
    %v4407 = vpop.f32.mrb[0].mxu0
    %4408 = vmatprep.mubr.f32.mxu0 0.0
    %4409 = vmatmul.mubr.f32.gmra.mrb[0].mxu0 %v4337
    %v4410 = vpop.f32.mrb[0].mxu0
    %v4411 = vadd.f32 0.0, %v4410
    %v4412 = vpop.f32.mrb[0].mxu0
    %4413 = vdwg.mxu0
    %v4415 = vsel %vm399, %v3576, 0
    %v4418 = vsel %vm399, %v3738, 0
    %4420 = vmatprep.subr.mxu0 0.0
    %4421 = vmatpush1.msra.mxu0 %v3742
    %4422 = vmatprep.subr.mxu0 0.0
    %4423 = vmatpush1.msra.mxu0 0.0
    %4424 = vmatprep.subr.mxu0 0.0
    %4425 = vmatpush1.msra.mxu0 0.0
    %4426 = vmatprep.subr.mxu0 0.0
    %4427 = vmatpush1.msra.mxu0 0.0
    %4428 = vmatprep.subr.mxu0 0.0
    %4429 = vmatpush1.msra.mxu0 0.0
    %4430 = vmatprep.subr.mxu0 0.0
    %4431 = vmatpush1.msra.mxu0 0.0
    %4432 = vmatprep.subr.mxu0 0.0
    %4433 = vmatpush1.msra.mxu0 0.0
    %4434 = vmatprep.subr.mxu0 0.0
    %4435 = vmatpush1.msra.mxu0 0.0
    %4436 = vmatprep.subr.mxu0 0.0
    %4437 = vmatpush1.msra.mxu0 0.0
    %4438 = vmatprep.subr.mxu0 0.0
    %4439 = vmatpush1.msra.mxu0 0.0
    %4440 = vmatprep.subr.mxu0 0.0
    %4441 = vmatpush1.msra.mxu0 0.0
    %4442 = vmatprep.subr.mxu0 0.0
    %4443 = vmatpush1.msra.mxu0 0.0
    %4444 = vmatprep.subr.mxu0 0.0
    %4445 = vmatpush1.msra.mxu0 0.0
    %4446 = vmatprep.subr.mxu0 0.0
    %4447 = vmatpush1.msra.mxu0 0.0
    %4448 = vmatprep.subr.mxu0 0.0
    %4449 = vmatpush1.msra.mxu0 0.0
    %4450 = vmatprep.subr.mxu0 0.0
    %4451 = vmatpush1.msra.mxu0 0.0
    %4452 = vmatprep.subr.mxu0 0.0
    %4453 = vmatpush1.msra.mxu0 0.0
    %4454 = vmatprep.subr.mxu0 0.0
    %4455 = vmatpush1.msra.mxu0 0.0
    %4456 = vmatprep.subr.mxu0 0.0
    %4457 = vmatpush1.msra.mxu0 0.0
    %4458 = vmatprep.subr.mxu0 0.0
    %4459 = vmatpush1.msra.mxu0 0.0
    %4460 = vmatprep.subr.mxu0 0.0
    %4461 = vmatpush1.msra.mxu0 0.0
    %4462 = vmatprep.subr.mxu0 0.0
    %4463 = vmatpush1.msra.mxu0 0.0
    %4464 = vmatprep.subr.mxu0 0.0
    %4465 = vmatpush1.msra.mxu0 0.0
    %4466 = vmatprep.subr.mxu0 0.0
    %4467 = vmatpush1.msra.mxu0 0.0
    %4468 = vmatprep.subr.mxu0 0.0
    %4469 = vmatpush1.msra.mxu0 0.0
    %4470 = vmatprep.subr.mxu0 0.0
    %4471 = vmatpush1.msra.mxu0 0.0
    %4472 = vmatprep.subr.mxu0 0.0
    %4473 = vmatpush1.msra.mxu0 0.0
    %4474 = vmatprep.subr.mxu0 0.0
    %4475 = vmatpush1.msra.mxu0 0.0
    %4476 = vmatprep.subr.mxu0 0.0
    %4477 = vmatpush1.msra.mxu0 0.0
    %4478 = vmatprep.subr.mxu0 0.0
    %4479 = vmatpush1.msra.mxu0 0.0
    %4480 = vmatprep.subr.mxu0 0.0
    %4481 = vmatpush1.msra.mxu0 0.0
    %4482 = vmatprep.subr.mxu0 0.0
    %4483 = vmatpush1.msra.mxu0 0.0
    %4484 = vmatprep.mubr.f32.mxu0 0.0
    %4485 = vmatmul.mubr.f32.gmra.mrb[0].mxu0 %v4415
    %v4486 = vpop.f32.mrb[0].mxu0
    %v4487 = vadd.f32 %v4406, %v4486
    %v4488 = vpop.f32.mrb[0].mxu0
    %4489 = vmatprep.mubr.f32.mxu0 0.0
    %4490 = vmatmul.mubr.f32.gmra.mrb[0].mxu0 %v4418
    %v4491 = vpop.f32.mrb[0].mxu0
    %v4492 = vadd.f32 %v4411, %v4491
    %v4493 = vpop.f32.mrb[0].mxu0
    %4494 = vdwg.mxu0
    %s4495 = scalar_lea.vmem %s4, 192
    %v4496 = vld [vmem:[%s4495] sm:$0xff]
    %v4497 = vld [vmem:[%s4495 + $0x8] sm:$0xff]
    %v4498 = vld [vmem:[%s4495 + $0x10] sm:$0xff]
    %v4499 = vld [vmem:[%s4495 + $0x18] sm:$0xff]
    %s4500 = scalar_lea.vmem %s5, 6
    %v4501 = vld [vmem:[%s4500] sm:$0x1]
    %v4503 = vlaneseq
    %v4504 = vshrl.u32 %v4503, 7
    %v4505 = vsub.s32 0, %v4504
    %v4506 = vrot.slane %v4501, %v4505
    %4508 = vmatprep.subr.mxu0 0.0
    %4509 = vmatpush1.msra.mxu0 %v4496
    %4510 = vmatprep.subr.mxu0 0.0
    %4511 = vmatpush1.msra.mxu0 %v4497
    %4512 = vmatprep.subr.mxu0 0.0
    %4513 = vmatpush1.msra.mxu0 %v4498
    %4514 = vmatprep.subr.mxu0 0.0
    %4515 = vmatpush1.msra.mxu0 %v4499
    %4516 = vmatprep.subr.mxu0 0.0
    %4517 = vmatpush1.msra.mxu0 0.0
    %4518 = vmatprep.subr.mxu0 0.0
    %4519 = vmatpush1.msra.mxu0 0.0
    %4520 = vmatprep.subr.mxu0 0.0
    %4521 = vmatpush1.msra.mxu0 0.0
    %4522 = vmatprep.subr.mxu0 0.0
    %4523 = vmatpush1.msra.mxu0 0.0
    %4524 = vmatprep.subr.mxu0 0.0
    %4525 = vmatpush1.msra.mxu0 0.0
    %4526 = vmatprep.subr.mxu0 0.0
    %4527 = vmatpush1.msra.mxu0 0.0
    %4528 = vmatprep.subr.mxu0 0.0
    %4529 = vmatpush1.msra.mxu0 0.0
    %4530 = vmatprep.subr.mxu0 0.0
    %4531 = vmatpush1.msra.mxu0 0.0
    %4532 = vmatprep.subr.mxu0 0.0
    %4533 = vmatpush1.msra.mxu0 0.0
    %4534 = vmatprep.subr.mxu0 0.0
    %4535 = vmatpush1.msra.mxu0 0.0
    %4536 = vmatprep.subr.mxu0 0.0
    %4537 = vmatpush1.msra.mxu0 0.0
    %4538 = vmatprep.subr.mxu0 0.0
    %4539 = vmatpush1.msra.mxu0 0.0
    %4540 = vmatprep.subr.mxu0 0.0
    %4541 = vmatpush1.msra.mxu0 0.0
    %4542 = vmatprep.subr.mxu0 0.0
    %4543 = vmatpush1.msra.mxu0 0.0
    %4544 = vmatprep.subr.mxu0 0.0
    %4545 = vmatpush1.msra.mxu0 0.0
    %4546 = vmatprep.subr.mxu0 0.0
    %4547 = vmatpush1.msra.mxu0 0.0
    %4548 = vmatprep.subr.mxu0 0.0
    %4549 = vmatpush1.msra.mxu0 0.0
    %4550 = vmatprep.subr.mxu0 0.0
    %4551 = vmatpush1.msra.mxu0 0.0
    %4552 = vmatprep.subr.mxu0 0.0
    %4553 = vmatpush1.msra.mxu0 0.0
    %4554 = vmatprep.subr.mxu0 0.0
    %4555 = vmatpush1.msra.mxu0 0.0
    %4556 = vmatprep.subr.mxu0 0.0
    %4557 = vmatpush1.msra.mxu0 0.0
    %4558 = vmatprep.subr.mxu0 0.0
    %4559 = vmatpush1.msra.mxu0 0.0
    %4560 = vmatprep.subr.mxu0 0.0
    %4561 = vmatpush1.msra.mxu0 0.0
    %4562 = vmatprep.subr.mxu0 0.0
    %4563 = vmatpush1.msra.mxu0 0.0
    %4564 = vmatprep.subr.mxu0 0.0
    %4565 = vmatpush1.msra.mxu0 0.0
    %4566 = vmatprep.subr.mxu0 0.0
    %4567 = vmatpush1.msra.mxu0 0.0
    %4568 = vmatprep.subr.mxu0 0.0
    %4569 = vmatpush1.msra.mxu0 0.0
    %4570 = vmatprep.subr.mxu0 0.0
    %4571 = vmatpush1.msra.mxu0 0.0
    %4572 = vmatprep.mubr.f32.mxu0 0.0
    %4573 = vmatmul.mubr.f32.gmra.mrb[0].mxu0 %v3161
    %v4574 = vpop.f32.mrb[0].mxu0
    %v4575 = vadd.f32 %v4506, %v4574
    %v4576 = vpop.f32.mrb[0].mxu0
    %4577 = vmatprep.mubr.f32.mxu0 0.0
    %4578 = vmatmul.mubr.f32.gmra.mrb[0].mxu0 %v3164
    %v4579 = vpop.f32.mrb[0].mxu0
    %v4580 = vadd.f32 %v4506, %v4579
    %v4581 = vpop.f32.mrb[0].mxu0
    %4582 = vdwg.mxu0
    %s4583 = scalar_lea.vmem %s6, 192
    %v4584 = vld [vmem:[%s4583] sm:$0xff]
    %v4585 = vld [vmem:[%s4583 + $0x8] sm:$0xff]
    %v4586 = vld [vmem:[%s4583 + $0x10] sm:$0xff]
    %v4587 = vld [vmem:[%s4583 + $0x18] sm:$0xff]
    %s4588 = scalar_lea.vmem %s7, 6
    %v4589 = vld [vmem:[%s4588] sm:$0x1]
    %v4591 = vlaneseq
    %v4592 = vshrl.u32 %v4591, 7
    %v4593 = vsub.s32 0, %v4592
    %v4594 = vrot.slane %v4589, %v4593
    %4596 = vmatprep.subr.mxu0 0.0
    %4597 = vmatpush1.msra.mxu0 %v4584
    %4598 = vmatprep.subr.mxu0 0.0
    %4599 = vmatpush1.msra.mxu0 %v4585
    %4600 = vmatprep.subr.mxu0 0.0
    %4601 = vmatpush1.msra.mxu0 %v4586
    %4602 = vmatprep.subr.mxu0 0.0
    %4603 = vmatpush1.msra.mxu0 %v4587
    %4604 = vmatprep.subr.mxu0 0.0
    %4605 = vmatpush1.msra.mxu0 0.0
    %4606 = vmatprep.subr.mxu0 0.0
    %4607 = vmatpush1.msra.mxu0 0.0
    %4608 = vmatprep.subr.mxu0 0.0
    %4609 = vmatpush1.msra.mxu0 0.0
    %4610 = vmatprep.subr.mxu0 0.0
    %4611 = vmatpush1.msra.mxu0 0.0
    %4612 = vmatprep.subr.mxu0 0.0
    %4613 = vmatpush1.msra.mxu0 0.0
    %4614 = vmatprep.subr.mxu0 0.0
    %4615 = vmatpush1.msra.mxu0 0.0
    %4616 = vmatprep.subr.mxu0 0.0
    %4617 = vmatpush1.msra.mxu0 0.0
    %4618 = vmatprep.subr.mxu0 0.0
    %4619 = vmatpush1.msra.mxu0 0.0
    %4620 = vmatprep.subr.mxu0 0.0
    %4621 = vmatpush1.msra.mxu0 0.0
    %4622 = vmatprep.subr.mxu0 0.0
    %4623 = vmatpush1.msra.mxu0 0.0
    %4624 = vmatprep.subr.mxu0 0.0
    %4625 = vmatpush1.msra.mxu0 0.0
    %4626 = vmatprep.subr.mxu0 0.0
    %4627 = vmatpush1.msra.mxu0 0.0
    %4628 = vmatprep.subr.mxu0 0.0
    %4629 = vmatpush1.msra.mxu0 0.0
    %4630 = vmatprep.subr.mxu0 0.0
    %4631 = vmatpush1.msra.mxu0 0.0
    %4632 = vmatprep.subr.mxu0 0.0
    %4633 = vmatpush1.msra.mxu0 0.0
    %4634 = vmatprep.subr.mxu0 0.0
    %4635 = vmatpush1.msra.mxu0 0.0
    %4636 = vmatprep.subr.mxu0 0.0
    %4637 = vmatpush1.msra.mxu0 0.0
    %4638 = vmatprep.subr.mxu0 0.0
    %4639 = vmatpush1.msra.mxu0 0.0
    %4640 = vmatprep.subr.mxu0 0.0
    %4641 = vmatpush1.msra.mxu0 0.0
    %4642 = vmatprep.subr.mxu0 0.0
    %4643 = vmatpush1.msra.mxu0 0.0
    %4644 = vmatprep.subr.mxu0 0.0
    %4645 = vmatpush1.msra.mxu0 0.0
    %4646 = vmatprep.subr.mxu0 0.0
    %4647 = vmatpush1.msra.mxu0 0.0
    %4648 = vmatprep.subr.mxu0 0.0
    %4649 = vmatpush1.msra.mxu0 0.0
    %4650 = vmatprep.subr.mxu0 0.0
    %4651 = vmatpush1.msra.mxu0 0.0
    %4652 = vmatprep.subr.mxu0 0.0
    %4653 = vmatpush1.msra.mxu0 0.0
    %4654 = vmatprep.subr.mxu0 0.0
    %4655 = vmatpush1.msra.mxu0 0.0
    %4656 = vmatprep.subr.mxu0 0.0
    %4657 = vmatpush1.msra.mxu0 0.0
    %4658 = vmatprep.subr.mxu0 0.0
    %4659 = vmatpush1.msra.mxu0 0.0
    %4660 = vmatprep.mubr.f32.mxu0 0.0
    %4661 = vmatmul.mubr.f32.gmra.mrb[0].mxu0 %v3161
    %v4662 = vpop.f32.mrb[0].mxu0
    %v4663 = vadd.f32 %v4594, %v4662
    %v4664 = vpop.f32.mrb[0].mxu0
    %4665 = vmatprep.mubr.f32.mxu0 0.0
    %4666 = vmatmul.mubr.f32.gmra.mrb[0].mxu0 %v3164
    %v4667 = vpop.f32.mrb[0].mxu0
    %v4668 = vadd.f32 %v4594, %v4667
    %v4669 = vpop.f32.mrb[0].mxu0
    %4670 = vdwg.mxu0
    %s4671 = scalar_lea.vmem %s8, 192
    %v4672 = vld [vmem:[%s4671] sm:$0xff]
    %v4673 = vld [vmem:[%s4671 + $0x8] sm:$0xff]
    %v4674 = vld [vmem:[%s4671 + $0x10] sm:$0xff]
    %v4675 = vld [vmem:[%s4671 + $0x18] sm:$0xff]
    %s4676 = scalar_lea.vmem %s9, 6
    %v4677 = vld [vmem:[%s4676] sm:$0x1]
    %v4679 = vlaneseq
    %v4680 = vshrl.u32 %v4679, 7
    %v4681 = vsub.s32 0, %v4680
    %v4682 = vrot.slane %v4677, %v4681
    %4684 = vmatprep.subr.mxu0 0.0
    %4685 = vmatpush1.msra.mxu0 %v4672
    %4686 = vmatprep.subr.mxu0 0.0
    %4687 = vmatpush1.msra.mxu0 %v4673
    %4688 = vmatprep.subr.mxu0 0.0
    %4689 = vmatpush1.msra.mxu0 %v4674
    %4690 = vmatprep.subr.mxu0 0.0
    %4691 = vmatpush1.msra.mxu0 %v4675
    %4692 = vmatprep.subr.mxu0 0.0
    %4693 = vmatpush1.msra.mxu0 0.0
    %4694 = vmatprep.subr.mxu0 0.0
    %4695 = vmatpush1.msra.mxu0 0.0
    %4696 = vmatprep.subr.mxu0 0.0
    %4697 = vmatpush1.msra.mxu0 0.0
    %4698 = vmatprep.subr.mxu0 0.0
    %4699 = vmatpush1.msra.mxu0 0.0
    %4700 = vmatprep.subr.mxu0 0.0
    %4701 = vmatpush1.msra.mxu0 0.0
    %4702 = vmatprep.subr.mxu0 0.0
    %4703 = vmatpush1.msra.mxu0 0.0
    %4704 = vmatprep.subr.mxu0 0.0
    %4705 = vmatpush1.msra.mxu0 0.0
    %4706 = vmatprep.subr.mxu0 0.0
    %4707 = vmatpush1.msra.mxu0 0.0
    %4708 = vmatprep.subr.mxu0 0.0
    %4709 = vmatpush1.msra.mxu0 0.0
    %4710 = vmatprep.subr.mxu0 0.0
    %4711 = vmatpush1.msra.mxu0 0.0
    %4712 = vmatprep.subr.mxu0 0.0
    %4713 = vmatpush1.msra.mxu0 0.0
    %4714 = vmatprep.subr.mxu0 0.0
    %4715 = vmatpush1.msra.mxu0 0.0
    %4716 = vmatprep.subr.mxu0 0.0
    %4717 = vmatpush1.msra.mxu0 0.0
    %4718 = vmatprep.subr.mxu0 0.0
    %4719 = vmatpush1.msra.mxu0 0.0
    %4720 = vmatprep.subr.mxu0 0.0
    %4721 = vmatpush1.msra.mxu0 0.0
    %4722 = vmatprep.subr.mxu0 0.0
    %4723 = vmatpush1.msra.mxu0 0.0
    %4724 = vmatprep.subr.mxu0 0.0
    %4725 = vmatpush1.msra.mxu0 0.0
    %4726 = vmatprep.subr.mxu0 0.0
    %4727 = vmatpush1.msra.mxu0 0.0
    %4728 = vmatprep.subr.mxu0 0.0
    %4729 = vmatpush1.msra.mxu0 0.0
    %4730 = vmatprep.subr.mxu0 0.0
    %4731 = vmatpush1.msra.mxu0 0.0
    %4732 = vmatprep.subr.mxu0 0.0
    %4733 = vmatpush1.msra.mxu0 0.0
    %4734 = vmatprep.subr.mxu0 0.0
    %4735 = vmatpush1.msra.mxu0 0.0
    %4736 = vmatprep.subr.mxu0 0.0
    %4737 = vmatpush1.msra.mxu0 0.0
    %4738 = vmatprep.subr.mxu0 0.0
    %4739 = vmatpush1.msra.mxu0 0.0
    %4740 = vmatprep.subr.mxu0 0.0
    %4741 = vmatpush1.msra.mxu0 0.0
    %4742 = vmatprep.subr.mxu0 0.0
    %4743 = vmatpush1.msra.mxu0 0.0
    %4744 = vmatprep.subr.mxu0 0.0
    %4745 = vmatpush1.msra.mxu0 0.0
    %4746 = vmatprep.subr.mxu0 0.0
    %4747 = vmatpush1.msra.mxu0 0.0
    %4748 = vmatprep.mubr.f32.mxu0 0.0
    %4749 = vmatmul.mubr.f32.gmra.mrb[0].mxu0 %v3161
    %v4750 = vpop.f32.mrb[0].mxu0
    %v4751 = vadd.f32 %v4682, %v4750
    %v4752 = vpop.f32.mrb[0].mxu0
    %4753 = vmatprep.mubr.f32.mxu0 0.0
    %4754 = vmatmul.mubr.f32.gmra.mrb[0].mxu0 %v3164
    %v4755 = vpop.f32.mrb[0].mxu0
    %v4756 = vadd.f32 %v4682, %v4755
    %v4757 = vpop.f32.mrb[0].mxu0
    %4758 = vdwg.mxu0
    %v4760 = vsel %vm399, %v4575, 0
    %v4763 = vsel %vm399, %v4663, 0
    %4765 = vmatprep.subr.mxu0 0.0
    %4766 = vmatpush1.xpose.msra.mxu0 %v4763
    %4767 = vmatprep.subr.mxu0 0.0
    %4768 = vmatpush1.xpose.msra.mxu0 0.0
    %4769 = vmatprep.subr.mxu0 0.0
    %4770 = vmatpush1.xpose.msra.mxu0 0.0
    %4771 = vmatprep.subr.mxu0 0.0
    %4772 = vmatpush1.xpose.msra.mxu0 0.0
    %4773 = vmatprep.subr.mxu0 0.0
    %4774 = vmatpush1.xpose.msra.mxu0 0.0
    %4775 = vmatprep.subr.mxu0 0.0
    %4776 = vmatpush1.xpose.msra.mxu0 0.0
    %4777 = vmatprep.subr.mxu0 0.0
    %4778 = vmatpush1.xpose.msra.mxu0 0.0
    %4779 = vmatprep.subr.mxu0 0.0
    %4780 = vmatpush1.xpose.msra.mxu0 0.0
    %4781 = vmatprep.subr.mxu0 0.0
    %4782 = vmatpush1.xpose.msra.mxu0 0.0
    %4783 = vmatprep.subr.mxu0 0.0
    %4784 = vmatpush1.xpose.msra.mxu0 0.0
    %4785 = vmatprep.subr.mxu0 0.0
    %4786 = vmatpush1.xpose.msra.mxu0 0.0
    %4787 = vmatprep.subr.mxu0 0.0
    %4788 = vmatpush1.xpose.msra.mxu0 0.0
    %4789 = vmatprep.subr.mxu0 0.0
    %4790 = vmatpush1.xpose.msra.mxu0 0.0
    %4791 = vmatprep.subr.mxu0 0.0
    %4792 = vmatpush1.xpose.msra.mxu0 0.0
    %4793 = vmatprep.subr.mxu0 0.0
    %4794 = vmatpush1.xpose.msra.mxu0 0.0
    %4795 = vmatprep.subr.mxu0 0.0
    %4796 = vmatpush1.xpose.msra.mxu0 0.0
    %4797 = vmatprep.subr.mxu0 0.0
    %4798 = vmatpush1.xpose.msra.mxu0 0.0
    %4799 = vmatprep.subr.mxu0 0.0
    %4800 = vmatpush1.xpose.msra.mxu0 0.0
    %4801 = vmatprep.subr.mxu0 0.0
    %4802 = vmatpush1.xpose.msra.mxu0 0.0
    %4803 = vmatprep.subr.mxu0 0.0
    %4804 = vmatpush1.xpose.msra.mxu0 0.0
    %4805 = vmatprep.subr.mxu0 0.0
    %4806 = vmatpush1.xpose.msra.mxu0 0.0
    %4807 = vmatprep.subr.mxu0 0.0
    %4808 = vmatpush1.xpose.msra.mxu0 0.0
    %4809 = vmatprep.subr.mxu0 0.0
    %4810 = vmatpush1.xpose.msra.mxu0 0.0
    %4811 = vmatprep.subr.mxu0 0.0
    %4812 = vmatpush1.xpose.msra.mxu0 0.0
    %4813 = vmatprep.subr.mxu0 0.0
    %4814 = vmatpush1.xpose.msra.mxu0 0.0
    %4815 = vmatprep.subr.mxu0 0.0
    %4816 = vmatpush1.xpose.msra.mxu0 0.0
    %4817 = vmatprep.subr.mxu0 0.0
    %4818 = vmatpush1.xpose.msra.mxu0 0.0
    %4819 = vmatprep.subr.mxu0 0.0
    %4820 = vmatpush1.xpose.msra.mxu0 0.0
    %4821 = vmatprep.subr.mxu0 0.0
    %4822 = vmatpush1.xpose.msra.mxu0 0.0
    %4823 = vmatprep.subr.mxu0 0.0
    %4824 = vmatpush1.xpose.msra.mxu0 0.0
    %4825 = vmatprep.subr.mxu0 0.0
    %4826 = vmatpush1.xpose.msra.mxu0 0.0
    %4827 = vmatprep.subr.mxu0 0.0
    %4828 = vmatpush1.xpose.msra.mxu0 0.0
    %4829 = vmatprep.mubr.f32.mxu0 0.0
    %4830 = vmatmul.mubr.f32.gmra.mrb[0].mxu0 %v4760
    %v4831 = vpop.f32.mrb[0].mxu0
    %v4832 = vadd.f32 0.0, %v4831
    %v4833 = vpop.f32.mrb[0].mxu0
    %4834 = vdwg.mxu0
    %v4835 = vmul.f32 %v4832, 0.35355338
    %v4836 = vadd.f32 %v4835, %v72
    %v4837 = vsel %vm399, %v4836, -inf
    %4838 = vmax.xlane.f32.xlu0 %v4837
    %v4839 = vpop.xlane.xlu0 %4838
    %v4840 = vsub.f32 %v4836, %v4839
    %v4841 = vmul.f32 %v4840, 1.442695
    %v4842 = vpow.pop %v4841
    %v4843 = vsel %vm399, %v4842, 0.0
    %4844 = vadd.xlane.f32.xlu0 %v4843
    %v4845 = vpop.xlane.xlu0 %4844
    %v4846 = vrcp.pop %v4845
    %v4847 = vmul.f32 %v4842, %v4846
    %v4849 = vsel %vm399, %v4847, 0
    %4851 = vmatprep.subr.mxu0 0.0
    %4852 = vmatpush1.msra.mxu0 %v4751
    %4853 = vmatprep.subr.mxu0 0.0
    %4854 = vmatpush1.msra.mxu0 0.0
    %4855 = vmatprep.subr.mxu0 0.0
    %4856 = vmatpush1.msra.mxu0 0.0
    %4857 = vmatprep.subr.mxu0 0.0
    %4858 = vmatpush1.msra.mxu0 0.0
    %4859 = vmatprep.subr.mxu0 0.0
    %4860 = vmatpush1.msra.mxu0 0.0
    %4861 = vmatprep.subr.mxu0 0.0
    %4862 = vmatpush1.msra.mxu0 0.0
    %4863 = vmatprep.subr.mxu0 0.0
    %4864 = vmatpush1.msra.mxu0 0.0
    %4865 = vmatprep.subr.mxu0 0.0
    %4866 = vmatpush1.msra.mxu0 0.0
    %4867 = vmatprep.subr.mxu0 0.0
    %4868 = vmatpush1.msra.mxu0 0.0
    %4869 = vmatprep.subr.mxu0 0.0
    %4870 = vmatpush1.msra.mxu0 0.0
    %4871 = vmatprep.subr.mxu0 0.0
    %4872 = vmatpush1.msra.mxu0 0.0
    %4873 = vmatprep.subr.mxu0 0.0
    %4874 = vmatpush1.msra.mxu0 0.0
    %4875 = vmatprep.subr.mxu0 0.0
    %4876 = vmatpush1.msra.mxu0 0.0
    %4877 = vmatprep.subr.mxu0 0.0
    %4878 = vmatpush1.msra.mxu0 0.0
    %4879 = vmatprep.subr.mxu0 0.0
    %4880 = vmatpush1.msra.mxu0 0.0
    %4881 = vmatprep.subr.mxu0 0.0
    %4882 = vmatpush1.msra.mxu0 0.0
    %4883 = vmatprep.subr.mxu0 0.0
    %4884 = vmatpush1.msra.mxu0 0.0
    %4885 = vmatprep.subr.mxu0 0.0
    %4886 = vmatpush1.msra.mxu0 0.0
    %4887 = vmatprep.subr.mxu0 0.0
    %4888 = vmatpush1.msra.mxu0 0.0
    %4889 = vmatprep.subr.mxu0 0.0
    %4890 = vmatpush1.msra.mxu0 0.0
    %4891 = vmatprep.subr.mxu0 0.0
    %4892 = vmatpush1.msra.mxu0 0.0
    %4893 = vmatprep.subr.mxu0 0.0
    %4894 = vmatpush1.msra.mxu0 0.0
    %4895 = vmatprep.subr.mxu0 0.0
    %4896 = vmatpush1.msra.mxu0 0.0
    %4897 = vmatprep.subr.mxu0 0.0
    %4898 = vmatpush1.msra.mxu0 0.0
    %4899 = vmatprep.subr.mxu0 0.0
    %4900 = vmatpush1.msra.mxu0 0.0
    %4901 = vmatprep.subr.mxu0 0.0
    %4902 = vmatpush1.msra.mxu0 0.0
    %4903 = vmatprep.subr.mxu0 0.0
    %4904 = vmatpush1.msra.mxu0 0.0
    %4905 = vmatprep.subr.mxu0 0.0
    %4906 = vmatpush1.msra.mxu0 0.0
    %4907 = vmatprep.subr.mxu0 0.0
    %4908 = vmatpush1.msra.mxu0 0.0
    %4909 = vmatprep.subr.mxu0 0.0
    %4910 = vmatpush1.msra.mxu0 0.0
    %4911 = vmatprep.subr.mxu0 0.0
    %4912 = vmatpush1.msra.mxu0 0.0
    %4913 = vmatprep.subr.mxu0 0.0
    %4914 = vmatpush1.msra.mxu0 0.0
    %4915 = vmatprep.mubr.f32.mxu0 0.0
    %4916 = vmatmul.mubr.f32.gmra.mrb[0].mxu0 %v4849
    %v4917 = vpop.f32.mrb[0].mxu0
    %v4918 = vadd.f32 0.0, %v4917
    %v4919 = vpop.f32.mrb[0].mxu0
    %4920 = vdwg.mxu0
    %v4922 = vsel %vm399, %v4580, 0
    %v4925 = vsel %vm399, %v4668, 0
    %4927 = vmatprep.subr.mxu0 0.0
    %4928 = vmatpush1.xpose.msra.mxu0 %v4925
    %4929 = vmatprep.subr.mxu0 0.0
    %4930 = vmatpush1.xpose.msra.mxu0 0.0
    %4931 = vmatprep.subr.mxu0 0.0
    %4932 = vmatpush1.xpose.msra.mxu0 0.0
    %4933 = vmatprep.subr.mxu0 0.0
    %4934 = vmatpush1.xpose.msra.mxu0 0.0
    %4935 = vmatprep.subr.mxu0 0.0
    %4936 = vmatpush1.xpose.msra.mxu0 0.0
    %4937 = vmatprep.subr.mxu0 0.0
    %4938 = vmatpush1.xpose.msra.mxu0 0.0
    %4939 = vmatprep.subr.mxu0 0.0
    %4940 = vmatpush1.xpose.msra.mxu0 0.0
    %4941 = vmatprep.subr.mxu0 0.0
    %4942 = vmatpush1.xpose.msra.mxu0 0.0
    %4943 = vmatprep.subr.mxu0 0.0
    %4944 = vmatpush1.xpose.msra.mxu0 0.0
    %4945 = vmatprep.subr.mxu0 0.0
    %4946 = vmatpush1.xpose.msra.mxu0 0.0
    %4947 = vmatprep.subr.mxu0 0.0
    %4948 = vmatpush1.xpose.msra.mxu0 0.0
    %4949 = vmatprep.subr.mxu0 0.0
    %4950 = vmatpush1.xpose.msra.mxu0 0.0
    %4951 = vmatprep.subr.mxu0 0.0
    %4952 = vmatpush1.xpose.msra.mxu0 0.0
    %4953 = vmatprep.subr.mxu0 0.0
    %4954 = vmatpush1.xpose.msra.mxu0 0.0
    %4955 = vmatprep.subr.mxu0 0.0
    %4956 = vmatpush1.xpose.msra.mxu0 0.0
    %4957 = vmatprep.subr.mxu0 0.0
    %4958 = vmatpush1.xpose.msra.mxu0 0.0
    %4959 = vmatprep.subr.mxu0 0.0
    %4960 = vmatpush1.xpose.msra.mxu0 0.0
    %4961 = vmatprep.subr.mxu0 0.0
    %4962 = vmatpush1.xpose.msra.mxu0 0.0
    %4963 = vmatprep.subr.mxu0 0.0
    %4964 = vmatpush1.xpose.msra.mxu0 0.0
    %4965 = vmatprep.subr.mxu0 0.0
    %4966 = vmatpush1.xpose.msra.mxu0 0.0
    %4967 = vmatprep.subr.mxu0 0.0
    %4968 = vmatpush1.xpose.msra.mxu0 0.0
    %4969 = vmatprep.subr.mxu0 0.0
    %4970 = vmatpush1.xpose.msra.mxu0 0.0
    %4971 = vmatprep.subr.mxu0 0.0
    %4972 = vmatpush1.xpose.msra.mxu0 0.0
    %4973 = vmatprep.subr.mxu0 0.0
    %4974 = vmatpush1.xpose.msra.mxu0 0.0
    %4975 = vmatprep.subr.mxu0 0.0
    %4976 = vmatpush1.xpose.msra.mxu0 0.0
    %4977 = vmatprep.subr.mxu0 0.0
    %4978 = vmatpush1.xpose.msra.mxu0 0.0
    %4979 = vmatprep.subr.mxu0 0.0
    %4980 = vmatpush1.xpose.msra.mxu0 0.0
    %4981 = vmatprep.subr.mxu0 0.0
    %4982 = vmatpush1.xpose.msra.mxu0 0.0
    %4983 = vmatprep.subr.mxu0 0.0
    %4984 = vmatpush1.xpose.msra.mxu0 0.0
    %4985 = vmatprep.subr.mxu0 0.0
    %4986 = vmatpush1.xpose.msra.mxu0 0.0
    %4987 = vmatprep.subr.mxu0 0.0
    %4988 = vmatpush1.xpose.msra.mxu0 0.0
    %4989 = vmatprep.subr.mxu0 0.0
    %4990 = vmatpush1.xpose.msra.mxu0 0.0
    %4991 = vmatprep.mubr.f32.mxu0 0.0
    %4992 = vmatmul.mubr.f32.gmra.mrb[0].mxu0 %v4922
    %v4993 = vpop.f32.mrb[0].mxu0
    %v4994 = vadd.f32 0.0, %v4993
    %v4995 = vpop.f32.mrb[0].mxu0
    %4996 = vdwg.mxu0
    %v4997 = vmul.f32 %v4994, 0.35355338
    %v4998 = vadd.f32 %v4997, %v73
    %v4999 = vsel %vm399, %v4998, -inf
    %5000 = vmax.xlane.f32.xlu0 %v4999
    %v5001 = vpop.xlane.xlu0 %5000
    %v5002 = vsub.f32 %v4998, %v5001
    %v5003 = vmul.f32 %v5002, 1.442695
    %v5004 = vpow.pop %v5003
    %v5005 = vsel %vm399, %v5004, 0.0
    %5006 = vadd.xlane.f32.xlu0 %v5005
    %v5007 = vpop.xlane.xlu0 %5006
    %v5008 = vrcp.pop %v5007
    %v5009 = vmul.f32 %v5004, %v5008
    %v5011 = vsel %vm399, %v5009, 0
    %5013 = vmatprep.subr.mxu0 0.0
    %5014 = vmatpush1.msra.mxu0 %v4756
    %5015 = vmatprep.subr.mxu0 0.0
    %5016 = vmatpush1.msra.mxu0 0.0
    %5017 = vmatprep.subr.mxu0 0.0
    %5018 = vmatpush1.msra.mxu0 0.0
    %5019 = vmatprep.subr.mxu0 0.0
    %5020 = vmatpush1.msra.mxu0 0.0
    %5021 = vmatprep.subr.mxu0 0.0
    %5022 = vmatpush1.msra.mxu0 0.0
    %5023 = vmatprep.subr.mxu0 0.0
    %5024 = vmatpush1.msra.mxu0 0.0
    %5025 = vmatprep.subr.mxu0 0.0
    %5026 = vmatpush1.msra.mxu0 0.0
    %5027 = vmatprep.subr.mxu0 0.0
    %5028 = vmatpush1.msra.mxu0 0.0
    %5029 = vmatprep.subr.mxu0 0.0
    %5030 = vmatpush1.msra.mxu0 0.0
    %5031 = vmatprep.subr.mxu0 0.0
    %5032 = vmatpush1.msra.mxu0 0.0
    %5033 = vmatprep.subr.mxu0 0.0
    %5034 = vmatpush1.msra.mxu0 0.0
    %5035 = vmatprep.subr.mxu0 0.0
    %5036 = vmatpush1.msra.mxu0 0.0
    %5037 = vmatprep.subr.mxu0 0.0
    %5038 = vmatpush1.msra.mxu0 0.0
    %5039 = vmatprep.subr.mxu0 0.0
    %5040 = vmatpush1.msra.mxu0 0.0
    %5041 = vmatprep.subr.mxu0 0.0
    %5042 = vmatpush1.msra.mxu0 0.0
    %5043 = vmatprep.subr.mxu0 0.0
    %5044 = vmatpush1.msra.mxu0 0.0
    %5045 = vmatprep.subr.mxu0 0.0
    %5046 = vmatpush1.msra.mxu0 0.0
    %5047 = vmatprep.subr.mxu0 0.0
    %5048 = vmatpush1.msra.mxu0 0.0
    %5049 = vmatprep.subr.mxu0 0.0
    %5050 = vmatpush1.msra.mxu0 0.0
    %5051 = vmatprep.subr.mxu0 0.0
    %5052 = vmatpush1.msra.mxu0 0.0
    %5053 = vmatprep.subr.mxu0 0.0
    %5054 = vmatpush1.msra.mxu0 0.0
    %5055 = vmatprep.subr.mxu0 0.0
    %5056 = vmatpush1.msra.mxu0 0.0
    %5057 = vmatprep.subr.mxu0 0.0
    %5058 = vmatpush1.msra.mxu0 0.0
    %5059 = vmatprep.subr.mxu0 0.0
    %5060 = vmatpush1.msra.mxu0 0.0
    %5061 = vmatprep.subr.mxu0 0.0
    %5062 = vmatpush1.msra.mxu0 0.0
    %5063 = vmatprep.subr.mxu0 0.0
    %5064 = vmatpush1.msra.mxu0 0.0
    %5065 = vmatprep.subr.mxu0 0.0
    %5066 = vmatpush1.msra.mxu0 0.0
    %5067 = vmatprep.subr.mxu0 0.0
    %5068 = vmatpush1.msra.mxu0 0.0
    %5069 = vmatprep.subr.mxu0 0.0
    %5070 = vmatpush1.msra.mxu0 0.0
    %5071 = vmatprep.subr.mxu0 0.0
    %5072 = vmatpush1.msra.mxu0 0.0
    %5073 = vmatprep.subr.mxu0 0.0
    %5074 = vmatpush1.msra.mxu0 0.0
    %5075 = vmatprep.subr.mxu0 0.0
    %5076 = vmatpush1.msra.mxu0 0.0
    %5077 = vmatprep.mubr.f32.mxu0 0.0
    %5078 = vmatmul.mubr.f32.gmra.mrb[0].mxu0 %v5011
    %v5079 = vpop.f32.mrb[0].mxu0
    %v5080 = vadd.f32 0.0, %v5079
    %v5081 = vpop.f32.mrb[0].mxu0
    %5082 = vdwg.mxu0
    %s5083 = scalar_lea.vmem %s10, 48
    %v5084 = vld [vmem:[%s5083] sm:$0xff]
    %v5086 = vsel %vm399, %v4918, 0
    %v5089 = vsel %vm399, %v5080, 0
    %5091 = vmatprep.subr.mxu0 0.0
    %5092 = vmatpush1.msra.mxu0 %v5084
    %5093 = vmatprep.subr.mxu0 0.0
    %5094 = vmatpush1.msra.mxu0 0.0
    %5095 = vmatprep.subr.mxu0 0.0
    %5096 = vmatpush1.msra.mxu0 0.0
    %5097 = vmatprep.subr.mxu0 0.0
    %5098 = vmatpush1.msra.mxu0 0.0
    %5099 = vmatprep.subr.mxu0 0.0
    %5100 = vmatpush1.msra.mxu0 0.0
    %5101 = vmatprep.subr.mxu0 0.0
    %5102 = vmatpush1.msra.mxu0 0.0
    %5103 = vmatprep.subr.mxu0 0.0
    %5104 = vmatpush1.msra.mxu0 0.0
    %5105 = vmatprep.subr.mxu0 0.0
    %5106 = vmatpush1.msra.mxu0 0.0
    %5107 = vmatprep.subr.mxu0 0.0
    %5108 = vmatpush1.msra.mxu0 0.0
    %5109 = vmatprep.subr.mxu0 0.0
    %5110 = vmatpush1.msra.mxu0 0.0
    %5111 = vmatprep.subr.mxu0 0.0
    %5112 = vmatpush1.msra.mxu0 0.0
    %5113 = vmatprep.subr.mxu0 0.0
    %5114 = vmatpush1.msra.mxu0 0.0
    %5115 = vmatprep.subr.mxu0 0.0
    %5116 = vmatpush1.msra.mxu0 0.0
    %5117 = vmatprep.subr.mxu0 0.0
    %5118 = vmatpush1.msra.mxu0 0.0
    %5119 = vmatprep.subr.mxu0 0.0
    %5120 = vmatpush1.msra.mxu0 0.0
    %5121 = vmatprep.subr.mxu0 0.0
    %5122 = vmatpush1.msra.mxu0 0.0
    %5123 = vmatprep.subr.mxu0 0.0
    %5124 = vmatpush1.msra.mxu0 0.0
    %5125 = vmatprep.subr.mxu0 0.0
    %5126 = vmatpush1.msra.mxu0 0.0
    %5127 = vmatprep.subr.mxu0 0.0
    %5128 = vmatpush1.msra.mxu0 0.0
    %5129 = vmatprep.subr.mxu0 0.0
    %5130 = vmatpush1.msra.mxu0 0.0
    %5131 = vmatprep.subr.mxu0 0.0
    %5132 = vmatpush1.msra.mxu0 0.0
    %5133 = vmatprep.subr.mxu0 0.0
    %5134 = vmatpush1.msra.mxu0 0.0
    %5135 = vmatprep.subr.mxu0 0.0
    %5136 = vmatpush1.msra.mxu0 0.0
    %5137 = vmatprep.subr.mxu0 0.0
    %5138 = vmatpush1.msra.mxu0 0.0
    %5139 = vmatprep.subr.mxu0 0.0
    %5140 = vmatpush1.msra.mxu0 0.0
    %5141 = vmatprep.subr.mxu0 0.0
    %5142 = vmatpush1.msra.mxu0 0.0
    %5143 = vmatprep.subr.mxu0 0.0
    %5144 = vmatpush1.msra.mxu0 0.0
    %5145 = vmatprep.subr.mxu0 0.0
    %5146 = vmatpush1.msra.mxu0 0.0
    %5147 = vmatprep.subr.mxu0 0.0
    %5148 = vmatpush1.msra.mxu0 0.0
    %5149 = vmatprep.subr.mxu0 0.0
    %5150 = vmatpush1.msra.mxu0 0.0
    %5151 = vmatprep.subr.mxu0 0.0
    %5152 = vmatpush1.msra.mxu0 0.0
    %5153 = vmatprep.subr.mxu0 0.0
    %5154 = vmatpush1.msra.mxu0 0.0
    %5155 = vmatprep.mubr.f32.mxu0 0.0
    %5156 = vmatmul.mubr.f32.gmra.mrb[0].mxu0 %v5086
    %v5157 = vpop.f32.mrb[0].mxu0
    %v5158 = vadd.f32 0.0, %v5157
    %v5159 = vpop.f32.mrb[0].mxu0
    %5160 = vmatprep.mubr.f32.mxu0 0.0
    %5161 = vmatmul.mubr.f32.gmra.mrb[0].mxu0 %v5089
    %v5162 = vpop.f32.mrb[0].mxu0
    %v5163 = vadd.f32 0.0, %v5162
    %v5164 = vpop.f32.mrb[0].mxu0
    %5165 = vdwg.mxu0
    %v5166 = vadd.f32 %v4487, %v5158
    %v5167 = vadd.f32 %v4492, %v5163
    %s5168 = scalar_lea.vmem %s4, 224
    %v5169 = vld [vmem:[%s5168] sm:$0xff]
    %v5170 = vld [vmem:[%s5168 + $0x8] sm:$0xff]
    %v5171 = vld [vmem:[%s5168 + $0x10] sm:$0xff]
    %v5172 = vld [vmem:[%s5168 + $0x18] sm:$0xff]
    %s5173 = scalar_lea.vmem %s5, 7
    %v5174 = vld [vmem:[%s5173] sm:$0x1]
    %v5176 = vlaneseq
    %v5177 = vshrl.u32 %v5176, 7
    %v5178 = vsub.s32 0, %v5177
    %v5179 = vrot.slane %v5174, %v5178
    %5181 = vmatprep.subr.mxu0 0.0
    %5182 = vmatpush1.msra.mxu0 %v5169
    %5183 = vmatprep.subr.mxu0 0.0
    %5184 = vmatpush1.msra.mxu0 %v5170
    %5185 = vmatprep.subr.mxu0 0.0
    %5186 = vmatpush1.msra.mxu0 %v5171
    %5187 = vmatprep.subr.mxu0 0.0
    %5188 = vmatpush1.msra.mxu0 %v5172
    %5189 = vmatprep.subr.mxu0 0.0
    %5190 = vmatpush1.msra.mxu0 0.0
    %5191 = vmatprep.subr.mxu0 0.0
    %5192 = vmatpush1.msra.mxu0 0.0
    %5193 = vmatprep.subr.mxu0 0.0
    %5194 = vmatpush1.msra.mxu0 0.0
    %5195 = vmatprep.subr.mxu0 0.0
    %5196 = vmatpush1.msra.mxu0 0.0
    %5197 = vmatprep.subr.mxu0 0.0
    %5198 = vmatpush1.msra.mxu0 0.0
    %5199 = vmatprep.subr.mxu0 0.0
    %5200 = vmatpush1.msra.mxu0 0.0
    %5201 = vmatprep.subr.mxu0 0.0
    %5202 = vmatpush1.msra.mxu0 0.0
    %5203 = vmatprep.subr.mxu0 0.0
    %5204 = vmatpush1.msra.mxu0 0.0
    %5205 = vmatprep.subr.mxu0 0.0
    %5206 = vmatpush1.msra.mxu0 0.0
    %5207 = vmatprep.subr.mxu0 0.0
    %5208 = vmatpush1.msra.mxu0 0.0
    %5209 = vmatprep.subr.mxu0 0.0
    %5210 = vmatpush1.msra.mxu0 0.0
    %5211 = vmatprep.subr.mxu0 0.0
    %5212 = vmatpush1.msra.mxu0 0.0
    %5213 = vmatprep.subr.mxu0 0.0
    %5214 = vmatpush1.msra.mxu0 0.0
    %5215 = vmatprep.subr.mxu0 0.0
    %5216 = vmatpush1.msra.mxu0 0.0
    %5217 = vmatprep.subr.mxu0 0.0
    %5218 = vmatpush1.msra.mxu0 0.0
    %5219 = vmatprep.subr.mxu0 0.0
    %5220 = vmatpush1.msra.mxu0 0.0
    %5221 = vmatprep.subr.mxu0 0.0
    %5222 = vmatpush1.msra.mxu0 0.0
    %5223 = vmatprep.subr.mxu0 0.0
    %5224 = vmatpush1.msra.mxu0 0.0
    %5225 = vmatprep.subr.mxu0 0.0
    %5226 = vmatpush1.msra.mxu0 0.0
    %5227 = vmatprep.subr.mxu0 0.0
    %5228 = vmatpush1.msra.mxu0 0.0
    %5229 = vmatprep.subr.mxu0 0.0
    %5230 = vmatpush1.msra.mxu0 0.0
    %5231 = vmatprep.subr.mxu0 0.0
    %5232 = vmatpush1.msra.mxu0 0.0
    %5233 = vmatprep.subr.mxu0 0.0
    %5234 = vmatpush1.msra.mxu0 0.0
    %5235 = vmatprep.subr.mxu0 0.0
    %5236 = vmatpush1.msra.mxu0 0.0
    %5237 = vmatprep.subr.mxu0 0.0
    %5238 = vmatpush1.msra.mxu0 0.0
    %5239 = vmatprep.subr.mxu0 0.0
    %5240 = vmatpush1.msra.mxu0 0.0
    %5241 = vmatprep.subr.mxu0 0.0
    %5242 = vmatpush1.msra.mxu0 0.0
    %5243 = vmatprep.subr.mxu0 0.0
    %5244 = vmatpush1.msra.mxu0 0.0
    %5245 = vmatprep.mubr.f32.mxu0 0.0
    %5246 = vmatmul.mubr.f32.gmra.mrb[0].mxu0 %v3161
    %v5247 = vpop.f32.mrb[0].mxu0
    %v5248 = vadd.f32 %v5179, %v5247
    %v5249 = vpop.f32.mrb[0].mxu0
    %5250 = vmatprep.mubr.f32.mxu0 0.0
    %5251 = vmatmul.mubr.f32.gmra.mrb[0].mxu0 %v3164
    %v5252 = vpop.f32.mrb[0].mxu0
    %v5253 = vadd.f32 %v5179, %v5252
    %v5254 = vpop.f32.mrb[0].mxu0
    %5255 = vdwg.mxu0
    %s5256 = scalar_lea.vmem %s6, 224
    %v5257 = vld [vmem:[%s5256] sm:$0xff]
    %v5258 = vld [vmem:[%s5256 + $0x8] sm:$0xff]
    %v5259 = vld [vmem:[%s5256 + $0x10] sm:$0xff]
    %v5260 = vld [vmem:[%s5256 + $0x18] sm:$0xff]
    %s5261 = scalar_lea.vmem %s7, 7
    %v5262 = vld [vmem:[%s5261] sm:$0x1]
    %v5264 = vlaneseq
    %v5265 = vshrl.u32 %v5264, 7
    %v5266 = vsub.s32 0, %v5265
    %v5267 = vrot.slane %v5262, %v5266
    %5269 = vmatprep.subr.mxu0 0.0
    %5270 = vmatpush1.msra.mxu0 %v5257
    %5271 = vmatprep.subr.mxu0 0.0
    %5272 = vmatpush1.msra.mxu0 %v5258
    %5273 = vmatprep.subr.mxu0 0.0
    %5274 = vmatpush1.msra.mxu0 %v5259
    %5275 = vmatprep.subr.mxu0 0.0
    %5276 = vmatpush1.msra.mxu0 %v5260
    %5277 = vmatprep.subr.mxu0 0.0
    %5278 = vmatpush1.msra.mxu0 0.0
    %5279 = vmatprep.subr.mxu0 0.0
    %5280 = vmatpush1.msra.mxu0 0.0
    %5281 = vmatprep.subr.mxu0 0.0
    %5282 = vmatpush1.msra.mxu0 0.0
    %5283 = vmatprep.subr.mxu0 0.0
    %5284 = vmatpush1.msra.mxu0 0.0
    %5285 = vmatprep.subr.mxu0 0.0
    %5286 = vmatpush1.msra.mxu0 0.0
    %5287 = vmatprep.subr.mxu0 0.0
    %5288 = vmatpush1.msra.mxu0 0.0
    %5289 = vmatprep.subr.mxu0 0.0
    %5290 = vmatpush1.msra.mxu0 0.0
    %5291 = vmatprep.subr.mxu0 0.0
    %5292 = vmatpush1.msra.mxu0 0.0
    %5293 = vmatprep.subr.mxu0 0.0
    %5294 = vmatpush1.msra.mxu0 0.0
    %5295 = vmatprep.subr.mxu0 0.0
    %5296 = vmatpush1.msra.mxu0 0.0
    %5297 = vmatprep.subr.mxu0 0.0
    %5298 = vmatpush1.msra.mxu0 0.0
    %5299 = vmatprep.subr.mxu0 0.0
    %5300 = vmatpush1.msra.mxu0 0.0
    %5301 = vmatprep.subr.mxu0 0.0
    %5302 = vmatpush1.msra.mxu0 0.0
    %5303 = vmatprep.subr.mxu0 0.0
    %5304 = vmatpush1.msra.mxu0 0.0
    %5305 = vmatprep.subr.mxu0 0.0
    %5306 = vmatpush1.msra.mxu0 0.0
    %5307 = vmatprep.subr.mxu0 0.0
    %5308 = vmatpush1.msra.mxu0 0.0
    %5309 = vmatprep.subr.mxu0 0.0
    %5310 = vmatpush1.msra.mxu0 0.0
    %5311 = vmatprep.subr.mxu0 0.0
    %5312 = vmatpush1.msra.mxu0 0.0
    %5313 = vmatprep.subr.mxu0 0.0
    %5314 = vmatpush1.msra.mxu0 0.0
    %5315 = vmatprep.subr.mxu0 0.0
    %5316 = vmatpush1.msra.mxu0 0.0
    %5317 = vmatprep.subr.mxu0 0.0
    %5318 = vmatpush1.msra.mxu0 0.0
    %5319 = vmatprep.subr.mxu0 0.0
    %5320 = vmatpush1.msra.mxu0 0.0
    %5321 = vmatprep.subr.mxu0 0.0
    %5322 = vmatpush1.msra.mxu0 0.0
    %5323 = vmatprep.subr.mxu0 0.0
    %5324 = vmatpush1.msra.mxu0 0.0
    %5325 = vmatprep.subr.mxu0 0.0
    %5326 = vmatpush1.msra.mxu0 0.0
    %5327 = vmatprep.subr.mxu0 0.0
    %5328 = vmatpush1.msra.mxu0 0.0
    %5329 = vmatprep.subr.mxu0 0.0
    %5330 = vmatpush1.msra.mxu0 0.0
    %5331 = vmatprep.subr.mxu0 0.0
    %5332 = vmatpush1.msra.mxu0 0.0
    %5333 = vmatprep.mubr.f32.mxu0 0.0
    %5334 = vmatmul.mubr.f32.gmra.mrb[0].mxu0 %v3161
    %v5335 = vpop.f32.mrb[0].mxu0
    %v5336 = vadd.f32 %v5267, %v5335
    %v5337 = vpop.f32.mrb[0].mxu0
    %5338 = vmatprep.mubr.f32.mxu0 0.0
    %5339 = vmatmul.mubr.f32.gmra.mrb[0].mxu0 %v3164
    %v5340 = vpop.f32.mrb[0].mxu0
    %v5341 = vadd.f32 %v5267, %v5340
    %v5342 = vpop.f32.mrb[0].mxu0
    %5343 = vdwg.mxu0
    %s5344 = scalar_lea.vmem %s8, 224
    %v5345 = vld [vmem:[%s5344] sm:$0xff]
    %v5346 = vld [vmem:[%s5344 + $0x8] sm:$0xff]
    %v5347 = vld [vmem:[%s5344 + $0x10] sm:$0xff]
    %v5348 = vld [vmem:[%s5344 + $0x18] sm:$0xff]
    %s5349 = scalar_lea.vmem %s9, 7
    %v5350 = vld [vmem:[%s5349] sm:$0x1]
    %v5352 = vlaneseq
    %v5353 = vshrl.u32 %v5352, 7
    %v5354 = vsub.s32 0, %v5353
    %v5355 = vrot.slane %v5350, %v5354
    %5357 = vmatprep.subr.mxu0 0.0
    %5358 = vmatpush1.msra.mxu0 %v5345
    %5359 = vmatprep.subr.mxu0 0.0
    %5360 = vmatpush1.msra.mxu0 %v5346
    %5361 = vmatprep.subr.mxu0 0.0
    %5362 = vmatpush1.msra.mxu0 %v5347
    %5363 = vmatprep.subr.mxu0 0.0
    %5364 = vmatpush1.msra.mxu0 %v5348
    %5365 = vmatprep.subr.mxu0 0.0
    %5366 = vmatpush1.msra.mxu0 0.0
    %5367 = vmatprep.subr.mxu0 0.0
    %5368 = vmatpush1.msra.mxu0 0.0
    %5369 = vmatprep.subr.mxu0 0.0
    %5370 = vmatpush1.msra.mxu0 0.0
    %5371 = vmatprep.subr.mxu0 0.0
    %5372 = vmatpush1.msra.mxu0 0.0
    %5373 = vmatprep.subr.mxu0 0.0
    %5374 = vmatpush1.msra.mxu0 0.0
    %5375 = vmatprep.subr.mxu0 0.0
    %5376 = vmatpush1.msra.mxu0 0.0
    %5377 = vmatprep.subr.mxu0 0.0
    %5378 = vmatpush1.msra.mxu0 0.0
    %5379 = vmatprep.subr.mxu0 0.0
    %5380 = vmatpush1.msra.mxu0 0.0
    %5381 = vmatprep.subr.mxu0 0.0
    %5382 = vmatpush1.msra.mxu0 0.0
    %5383 = vmatprep.subr.mxu0 0.0
    %5384 = vmatpush1.msra.mxu0 0.0
    %5385 = vmatprep.subr.mxu0 0.0
    %5386 = vmatpush1.msra.mxu0 0.0
    %5387 = vmatprep.subr.mxu0 0.0
    %5388 = vmatpush1.msra.mxu0 0.0
    %5389 = vmatprep.subr.mxu0 0.0
    %5390 = vmatpush1.msra.mxu0 0.0
    %5391 = vmatprep.subr.mxu0 0.0
    %5392 = vmatpush1.msra.mxu0 0.0
    %5393 = vmatprep.subr.mxu0 0.0
    %5394 = vmatpush1.msra.mxu0 0.0
    %5395 = vmatprep.subr.mxu0 0.0
    %5396 = vmatpush1.msra.mxu0 0.0
    %5397 = vmatprep.subr.mxu0 0.0
    %5398 = vmatpush1.msra.mxu0 0.0
    %5399 = vmatprep.subr.mxu0 0.0
    %5400 = vmatpush1.msra.mxu0 0.0
    %5401 = vmatprep.subr.mxu0 0.0
    %5402 = vmatpush1.msra.mxu0 0.0
    %5403 = vmatprep.subr.mxu0 0.0
    %5404 = vmatpush1.msra.mxu0 0.0
    %5405 = vmatprep.subr.mxu0 0.0
    %5406 = vmatpush1.msra.mxu0 0.0
    %5407 = vmatprep.subr.mxu0 0.0
    %5408 = vmatpush1.msra.mxu0 0.0
    %5409 = vmatprep.subr.mxu0 0.0
    %5410 = vmatpush1.msra.mxu0 0.0
    %5411 = vmatprep.subr.mxu0 0.0
    %5412 = vmatpush1.msra.mxu0 0.0
    %5413 = vmatprep.subr.mxu0 0.0
    %5414 = vmatpush1.msra.mxu0 0.0
    %5415 = vmatprep.subr.mxu0 0.0
    %5416 = vmatpush1.msra.mxu0 0.0
    %5417 = vmatprep.subr.mxu0 0.0
    %5418 = vmatpush1.msra.mxu0 0.0
    %5419 = vmatprep.subr.mxu0 0.0
    %5420 = vmatpush1.msra.mxu0 0.0
    %5421 = vmatprep.mubr.f32.mxu0 0.0
    %5422 = vmatmul.mubr.f32.gmra.mrb[0].mxu0 %v3161
    %v5423 = vpop.f32.mrb[0].mxu0
    %v5424 = vadd.f32 %v5355, %v5423
    %v5425 = vpop.f32.mrb[0].mxu0
    %5426 = vmatprep.mubr.f32.mxu0 0.0
    %5427 = vmatmul.mubr.f32.gmra.mrb[0].mxu0 %v3164
    %v5428 = vpop.f32.mrb[0].mxu0
    %v5429 = vadd.f32 %v5355, %v5428
    %v5430 = vpop.f32.mrb[0].mxu0
    %5431 = vdwg.mxu0
    %v5433 = vsel %vm399, %v5248, 0
    %v5436 = vsel %vm399, %v5336, 0
    %5438 = vmatprep.subr.mxu0 0.0
    %5439 = vmatpush1.xpose.msra.mxu0 %v5436
    %5440 = vmatprep.subr.mxu0 0.0
    %5441 = vmatpush1.xpose.msra.mxu0 0.0
    %5442 = vmatprep.subr.mxu0 0.0
    %5443 = vmatpush1.xpose.msra.mxu0 0.0
    %5444 = vmatprep.subr.mxu0 0.0
    %5445 = vmatpush1.xpose.msra.mxu0 0.0
    %5446 = vmatprep.subr.mxu0 0.0
    %5447 = vmatpush1.xpose.msra.mxu0 0.0
    %5448 = vmatprep.subr.mxu0 0.0
    %5449 = vmatpush1.xpose.msra.mxu0 0.0
    %5450 = vmatprep.subr.mxu0 0.0
    %5451 = vmatpush1.xpose.msra.mxu0 0.0
    %5452 = vmatprep.subr.mxu0 0.0
    %5453 = vmatpush1.xpose.msra.mxu0 0.0
    %5454 = vmatprep.subr.mxu0 0.0
    %5455 = vmatpush1.xpose.msra.mxu0 0.0
    %5456 = vmatprep.subr.mxu0 0.0
    %5457 = vmatpush1.xpose.msra.mxu0 0.0
    %5458 = vmatprep.subr.mxu0 0.0
    %5459 = vmatpush1.xpose.msra.mxu0 0.0
    %5460 = vmatprep.subr.mxu0 0.0
    %5461 = vmatpush1.xpose.msra.mxu0 0.0
    %5462 = vmatprep.subr.mxu0 0.0
    %5463 = vmatpush1.xpose.msra.mxu0 0.0
    %5464 = vmatprep.subr.mxu0 0.0
    %5465 = vmatpush1.xpose.msra.mxu0 0.0
    %5466 = vmatprep.subr.mxu0 0.0
    %5467 = vmatpush1.xpose.msra.mxu0 0.0
    %5468 = vmatprep.subr.mxu0 0.0
    %5469 = vmatpush1.xpose.msra.mxu0 0.0
    %5470 = vmatprep.subr.mxu0 0.0
    %5471 = vmatpush1.xpose.msra.mxu0 0.0
    %5472 = vmatprep.subr.mxu0 0.0
    %5473 = vmatpush1.xpose.msra.mxu0 0.0
    %5474 = vmatprep.subr.mxu0 0.0
    %5475 = vmatpush1.xpose.msra.mxu0 0.0
    %5476 = vmatprep.subr.mxu0 0.0
    %5477 = vmatpush1.xpose.msra.mxu0 0.0
    %5478 = vmatprep.subr.mxu0 0.0
    %5479 = vmatpush1.xpose.msra.mxu0 0.0
    %5480 = vmatprep.subr.mxu0 0.0
    %5481 = vmatpush1.xpose.msra.mxu0 0.0
    %5482 = vmatprep.subr.mxu0 0.0
    %5483 = vmatpush1.xpose.msra.mxu0 0.0
    %5484 = vmatprep.subr.mxu0 0.0
    %5485 = vmatpush1.xpose.msra.mxu0 0.0
    %5486 = vmatprep.subr.mxu0 0.0
    %5487 = vmatpush1.xpose.msra.mxu0 0.0
    %5488 = vmatprep.subr.mxu0 0.0
    %5489 = vmatpush1.xpose.msra.mxu0 0.0
    %5490 = vmatprep.subr.mxu0 0.0
    %5491 = vmatpush1.xpose.msra.mxu0 0.0
    %5492 = vmatprep.subr.mxu0 0.0
    %5493 = vmatpush1.xpose.msra.mxu0 0.0
    %5494 = vmatprep.subr.mxu0 0.0
    %5495 = vmatpush1.xpose.msra.mxu0 0.0
    %5496 = vmatprep.subr.mxu0 0.0
    %5497 = vmatpush1.xpose.msra.mxu0 0.0
    %5498 = vmatprep.subr.mxu0 0.0
    %5499 = vmatpush1.xpose.msra.mxu0 0.0
    %5500 = vmatprep.subr.mxu0 0.0
    %5501 = vmatpush1.xpose.msra.mxu0 0.0
    %5502 = vmatprep.mubr.f32.mxu0 0.0
    %5503 = vmatmul.mubr.f32.gmra.mrb[0].mxu0 %v5433
    %v5504 = vpop.f32.mrb[0].mxu0
    %v5505 = vadd.f32 0.0, %v5504
    %v5506 = vpop.f32.mrb[0].mxu0
    %5507 = vdwg.mxu0
    %v5508 = vmul.f32 %v5505, 0.35355338
    %v5509 = vadd.f32 %v5508, %v72
    %v5510 = vsel %vm399, %v5509, -inf
    %5511 = vmax.xlane.f32.xlu0 %v5510
    %v5512 = vpop.xlane.xlu0 %5511
    %v5513 = vsub.f32 %v5509, %v5512
    %v5514 = vmul.f32 %v5513, 1.442695
    %v5515 = vpow.pop %v5514
    %v5516 = vsel %vm399, %v5515, 0.0
    %5517 = vadd.xlane.f32.xlu0 %v5516
    %v5518 = vpop.xlane.xlu0 %5517
    %v5519 = vrcp.pop %v5518
    %v5520 = vmul.f32 %v5515, %v5519
    %v5522 = vsel %vm399, %v5520, 0
    %5524 = vmatprep.subr.mxu0 0.0
    %5525 = vmatpush1.msra.mxu0 %v5424
    %5526 = vmatprep.subr.mxu0 0.0
    %5527 = vmatpush1.msra.mxu0 0.0
    %5528 = vmatprep.subr.mxu0 0.0
    %5529 = vmatpush1.msra.mxu0 0.0
    %5530 = vmatprep.subr.mxu0 0.0
    %5531 = vmatpush1.msra.mxu0 0.0
    %5532 = vmatprep.subr.mxu0 0.0
    %5533 = vmatpush1.msra.mxu0 0.0
    %5534 = vmatprep.subr.mxu0 0.0
    %5535 = vmatpush1.msra.mxu0 0.0
    %5536 = vmatprep.subr.mxu0 0.0
    %5537 = vmatpush1.msra.mxu0 0.0
    %5538 = vmatprep.subr.mxu0 0.0
    %5539 = vmatpush1.msra.mxu0 0.0
    %5540 = vmatprep.subr.mxu0 0.0
    %5541 = vmatpush1.msra.mxu0 0.0
    %5542 = vmatprep.subr.mxu0 0.0
    %5543 = vmatpush1.msra.mxu0 0.0
    %5544 = vmatprep.subr.mxu0 0.0
    %5545 = vmatpush1.msra.mxu0 0.0
    %5546 = vmatprep.subr.mxu0 0.0
    %5547 = vmatpush1.msra.mxu0 0.0
    %5548 = vmatprep.subr.mxu0 0.0
    %5549 = vmatpush1.msra.mxu0 0.0
    %5550 = vmatprep.subr.mxu0 0.0
    %5551 = vmatpush1.msra.mxu0 0.0
    %5552 = vmatprep.subr.mxu0 0.0
    %5553 = vmatpush1.msra.mxu0 0.0
    %5554 = vmatprep.subr.mxu0 0.0
    %5555 = vmatpush1.msra.mxu0 0.0
    %5556 = vmatprep.subr.mxu0 0.0
    %5557 = vmatpush1.msra.mxu0 0.0
    %5558 = vmatprep.subr.mxu0 0.0
    %5559 = vmatpush1.msra.mxu0 0.0
    %5560 = vmatprep.subr.mxu0 0.0
    %5561 = vmatpush1.msra.mxu0 0.0
    %5562 = vmatprep.subr.mxu0 0.0
    %5563 = vmatpush1.msra.mxu0 0.0
    %5564 = vmatprep.subr.mxu0 0.0
    %5565 = vmatpush1.msra.mxu0 0.0
    %5566 = vmatprep.subr.mxu0 0.0
    %5567 = vmatpush1.msra.mxu0 0.0
    %5568 = vmatprep.subr.mxu0 0.0
    %5569 = vmatpush1.msra.mxu0 0.0
    %5570 = vmatprep.subr.mxu0 0.0
    %5571 = vmatpush1.msra.mxu0 0.0
    %5572 = vmatprep.subr.mxu0 0.0
    %5573 = vmatpush1.msra.mxu0 0.0
    %5574 = vmatprep.subr.mxu0 0.0
    %5575 = vmatpush1.msra.mxu0 0.0
    %5576 = vmatprep.subr.mxu0 0.0
    %5577 = vmatpush1.msra.mxu0 0.0
    %5578 = vmatprep.subr.mxu0 0.0
    %5579 = vmatpush1.msra.mxu0 0.0
    %5580 = vmatprep.subr.mxu0 0.0
    %5581 = vmatpush1.msra.mxu0 0.0
    %5582 = vmatprep.subr.mxu0 0.0
    %5583 = vmatpush1.msra.mxu0 0.0
    %5584 = vmatprep.subr.mxu0 0.0
    %5585 = vmatpush1.msra.mxu0 0.0
    %5586 = vmatprep.subr.mxu0 0.0
    %5587 = vmatpush1.msra.mxu0 0.0
    %5588 = vmatprep.mubr.f32.mxu0 0.0
    %5589 = vmatmul.mubr.f32.gmra.mrb[0].mxu0 %v5522
    %v5590 = vpop.f32.mrb[0].mxu0
    %v5591 = vadd.f32 0.0, %v5590
    %v5592 = vpop.f32.mrb[0].mxu0
    %5593 = vdwg.mxu0
    %v5595 = vsel %vm399, %v5253, 0
    %v5598 = vsel %vm399, %v5341, 0
    %5600 = vmatprep.subr.mxu0 0.0
    %5601 = vmatpush1.xpose.msra.mxu0 %v5598
    %5602 = vmatprep.subr.mxu0 0.0
    %5603 = vmatpush1.xpose.msra.mxu0 0.0
    %5604 = vmatprep.subr.mxu0 0.0
    %5605 = vmatpush1.xpose.msra.mxu0 0.0
    %5606 = vmatprep.subr.mxu0 0.0
    %5607 = vmatpush1.xpose.msra.mxu0 0.0
    %5608 = vmatprep.subr.mxu0 0.0
    %5609 = vmatpush1.xpose.msra.mxu0 0.0
    %5610 = vmatprep.subr.mxu0 0.0
    %5611 = vmatpush1.xpose.msra.mxu0 0.0
    %5612 = vmatprep.subr.mxu0 0.0
    %5613 = vmatpush1.xpose.msra.mxu0 0.0
    %5614 = vmatprep.subr.mxu0 0.0
    %5615 = vmatpush1.xpose.msra.mxu0 0.0
    %5616 = vmatprep.subr.mxu0 0.0
    %5617 = vmatpush1.xpose.msra.mxu0 0.0
    %5618 = vmatprep.subr.mxu0 0.0
    %5619 = vmatpush1.xpose.msra.mxu0 0.0
    %5620 = vmatprep.subr.mxu0 0.0
    %5621 = vmatpush1.xpose.msra.mxu0 0.0
    %5622 = vmatprep.subr.mxu0 0.0
    %5623 = vmatpush1.xpose.msra.mxu0 0.0
    %5624 = vmatprep.subr.mxu0 0.0
    %5625 = vmatpush1.xpose.msra.mxu0 0.0
    %5626 = vmatprep.subr.mxu0 0.0
    %5627 = vmatpush1.xpose.msra.mxu0 0.0
    %5628 = vmatprep.subr.mxu0 0.0
    %5629 = vmatpush1.xpose.msra.mxu0 0.0
    %5630 = vmatprep.subr.mxu0 0.0
    %5631 = vmatpush1.xpose.msra.mxu0 0.0
    %5632 = vmatprep.subr.mxu0 0.0
    %5633 = vmatpush1.xpose.msra.mxu0 0.0
    %5634 = vmatprep.subr.mxu0 0.0
    %5635 = vmatpush1.xpose.msra.mxu0 0.0
    %5636 = vmatprep.subr.mxu0 0.0
    %5637 = vmatpush1.xpose.msra.mxu0 0.0
    %5638 = vmatprep.subr.mxu0 0.0
    %5639 = vmatpush1.xpose.msra.mxu0 0.0
    %5640 = vmatprep.subr.mxu0 0.0
    %5641 = vmatpush1.xpose.msra.mxu0 0.0
    %5642 = vmatprep.subr.mxu0 0.0
    %5643 = vmatpush1.xpose.msra.mxu0 0.0
    %5644 = vmatprep.subr.mxu0 0.0
    %5645 = vmatpush1.xpose.msra.mxu0 0.0
    %5646 = vmatprep.subr.mxu0 0.0
    %5647 = vmatpush1.xpose.msra.mxu0 0.0
    %5648 = vmatprep.subr.mxu0 0.0
    %5649 = vmatpush1.xpose.msra.mxu0 0.0
    %5650 = vmatprep.subr.mxu0 0.0
    %5651 = vmatpush1.xpose.msra.mxu0 0.0
    %5652 = vmatprep.subr.mxu0 0.0
    %5653 = vmatpush1.xpose.msra.mxu0 0.0
    %5654 = vmatprep.subr.mxu0 0.0
    %5655 = vmatpush1.xpose.msra.mxu0 0.0
    %5656 = vmatprep.subr.mxu0 0.0
    %5657 = vmatpush1.xpose.msra.mxu0 0.0
    %5658 = vmatprep.subr.mxu0 0.0
    %5659 = vmatpush1.xpose.msra.mxu0 0.0
    %5660 = vmatprep.subr.mxu0 0.0
    %5661 = vmatpush1.xpose.msra.mxu0 0.0
    %5662 = vmatprep.subr.mxu0 0.0
    %5663 = vmatpush1.xpose.msra.mxu0 0.0
    %5664 = vmatprep.mubr.f32.mxu0 0.0
    %5665 = vmatmul.mubr.f32.gmra.mrb[0].mxu0 %v5595
    %v5666 = vpop.f32.mrb[0].mxu0
    %v5667 = vadd.f32 0.0, %v5666
    %v5668 = vpop.f32.mrb[0].mxu0
    %5669 = vdwg.mxu0
    %v5670 = vmul.f32 %v5667, 0.35355338
    %v5671 = vadd.f32 %v5670, %v73
    %v5672 = vsel %vm399, %v5671, -inf
    %5673 = vmax.xlane.f32.xlu0 %v5672
    %v5674 = vpop.xlane.xlu0 %5673
    %v5675 = vsub.f32 %v5671, %v5674
    %v5676 = vmul.f32 %v5675, 1.442695
    %v5677 = vpow.pop %v5676
    %v5678 = vsel %vm399, %v5677, 0.0
    %5679 = vadd.xlane.f32.xlu0 %v5678
    %v5680 = vpop.xlane.xlu0 %5679
    %v5681 = vrcp.pop %v5680
    %v5682 = vmul.f32 %v5677, %v5681
    %v5684 = vsel %vm399, %v5682, 0
    %5686 = vmatprep.subr.mxu0 0.0
    %5687 = vmatpush1.msra.mxu0 %v5429
    %5688 = vmatprep.subr.mxu0 0.0
    %5689 = vmatpush1.msra.mxu0 0.0
    %5690 = vmatprep.subr.mxu0 0.0
    %5691 = vmatpush1.msra.mxu0 0.0
    %5692 = vmatprep.subr.mxu0 0.0
    %5693 = vmatpush1.msra.mxu0 0.0
    %5694 = vmatprep.subr.mxu0 0.0
    %5695 = vmatpush1.msra.mxu0 0.0
    %5696 = vmatprep.subr.mxu0 0.0
    %5697 = vmatpush1.msra.mxu0 0.0
    %5698 = vmatprep.subr.mxu0 0.0
    %5699 = vmatpush1.msra.mxu0 0.0
    %5700 = vmatprep.subr.mxu0 0.0
    %5701 = vmatpush1.msra.mxu0 0.0
    %5702 = vmatprep.subr.mxu0 0.0
    %5703 = vmatpush1.msra.mxu0 0.0
    %5704 = vmatprep.subr.mxu0 0.0
    %5705 = vmatpush1.msra.mxu0 0.0
    %5706 = vmatprep.subr.mxu0 0.0
    %5707 = vmatpush1.msra.mxu0 0.0
    %5708 = vmatprep.subr.mxu0 0.0
    %5709 = vmatpush1.msra.mxu0 0.0
    %5710 = vmatprep.subr.mxu0 0.0
    %5711 = vmatpush1.msra.mxu0 0.0
    %5712 = vmatprep.subr.mxu0 0.0
    %5713 = vmatpush1.msra.mxu0 0.0
    %5714 = vmatprep.subr.mxu0 0.0
    %5715 = vmatpush1.msra.mxu0 0.0
    %5716 = vmatprep.subr.mxu0 0.0
    %5717 = vmatpush1.msra.mxu0 0.0
    %5718 = vmatprep.subr.mxu0 0.0
    %5719 = vmatpush1.msra.mxu0 0.0
    %5720 = vmatprep.subr.mxu0 0.0
    %5721 = vmatpush1.msra.mxu0 0.0
    %5722 = vmatprep.subr.mxu0 0.0
    %5723 = vmatpush1.msra.mxu0 0.0
    %5724 = vmatprep.subr.mxu0 0.0
    %5725 = vmatpush1.msra.mxu0 0.0
    %5726 = vmatprep.subr.mxu0 0.0
    %5727 = vmatpush1.msra.mxu0 0.0
    %5728 = vmatprep.subr.mxu0 0.0
    %5729 = vmatpush1.msra.mxu0 0.0
    %5730 = vmatprep.subr.mxu0 0.0
    %5731 = vmatpush1.msra.mxu0 0.0
    %5732 = vmatprep.subr.mxu0 0.0
    %5733 = vmatpush1.msra.mxu0 0.0
    %5734 = vmatprep.subr.mxu0 0.0
    %5735 = vmatpush1.msra.mxu0 0.0
    %5736 = vmatprep.subr.mxu0 0.0
    %5737 = vmatpush1.msra.mxu0 0.0
    %5738 = vmatprep.subr.mxu0 0.0
    %5739 = vmatpush1.msra.mxu0 0.0
    %5740 = vmatprep.subr.mxu0 0.0
    %5741 = vmatpush1.msra.mxu0 0.0
    %5742 = vmatprep.subr.mxu0 0.0
    %5743 = vmatpush1.msra.mxu0 0.0
    %5744 = vmatprep.subr.mxu0 0.0
    %5745 = vmatpush1.msra.mxu0 0.0
    %5746 = vmatprep.subr.mxu0 0.0
    %5747 = vmatpush1.msra.mxu0 0.0
    %5748 = vmatprep.subr.mxu0 0.0
    %5749 = vmatpush1.msra.mxu0 0.0
    %5750 = vmatprep.mubr.f32.mxu0 0.0
    %5751 = vmatmul.mubr.f32.gmra.mrb[0].mxu0 %v5684
    %v5752 = vpop.f32.mrb[0].mxu0
    %v5753 = vadd.f32 0.0, %v5752
    %v5754 = vpop.f32.mrb[0].mxu0
    %5755 = vdwg.mxu0
    %s5756 = scalar_lea.vmem %s10, 56
    %v5757 = vld [vmem:[%s5756] sm:$0xff]
    %v5759 = vsel %vm399, %v5591, 0
    %v5762 = vsel %vm399, %v5753, 0
    %5764 = vmatprep.subr.mxu0 0.0
    %5765 = vmatpush1.msra.mxu0 %v5757
    %5766 = vmatprep.subr.mxu0 0.0
    %5767 = vmatpush1.msra.mxu0 0.0
    %5768 = vmatprep.subr.mxu0 0.0
    %5769 = vmatpush1.msra.mxu0 0.0
    %5770 = vmatprep.subr.mxu0 0.0
    %5771 = vmatpush1.msra.mxu0 0.0
    %5772 = vmatprep.subr.mxu0 0.0
    %5773 = vmatpush1.msra.mxu0 0.0
    %5774 = vmatprep.subr.mxu0 0.0
    %5775 = vmatpush1.msra.mxu0 0.0
    %5776 = vmatprep.subr.mxu0 0.0
    %5777 = vmatpush1.msra.mxu0 0.0
    %5778 = vmatprep.subr.mxu0 0.0
    %5779 = vmatpush1.msra.mxu0 0.0
    %5780 = vmatprep.subr.mxu0 0.0
    %5781 = vmatpush1.msra.mxu0 0.0
    %5782 = vmatprep.subr.mxu0 0.0
    %5783 = vmatpush1.msra.mxu0 0.0
    %5784 = vmatprep.subr.mxu0 0.0
    %5785 = vmatpush1.msra.mxu0 0.0
    %5786 = vmatprep.subr.mxu0 0.0
    %5787 = vmatpush1.msra.mxu0 0.0
    %5788 = vmatprep.subr.mxu0 0.0
    %5789 = vmatpush1.msra.mxu0 0.0
    %5790 = vmatprep.subr.mxu0 0.0
    %5791 = vmatpush1.msra.mxu0 0.0
    %5792 = vmatprep.subr.mxu0 0.0
    %5793 = vmatpush1.msra.mxu0 0.0
    %5794 = vmatprep.subr.mxu0 0.0
    %5795 = vmatpush1.msra.mxu0 0.0
    %5796 = vmatprep.subr.mxu0 0.0
    %5797 = vmatpush1.msra.mxu0 0.0
    %5798 = vmatprep.subr.mxu0 0.0
    %5799 = vmatpush1.msra.mxu0 0.0
    %5800 = vmatprep.subr.mxu0 0.0
    %5801 = vmatpush1.msra.mxu0 0.0
    %5802 = vmatprep.subr.mxu0 0.0
    %5803 = vmatpush1.msra.mxu0 0.0
    %5804 = vmatprep.subr.mxu0 0.0
    %5805 = vmatpush1.msra.mxu0 0.0
    %5806 = vmatprep.subr.mxu0 0.0
    %5807 = vmatpush1.msra.mxu0 0.0
    %5808 = vmatprep.subr.mxu0 0.0
    %5809 = vmatpush1.msra.mxu0 0.0
    %5810 = vmatprep.subr.mxu0 0.0
    %5811 = vmatpush1.msra.mxu0 0.0
    %5812 = vmatprep.subr.mxu0 0.0
    %5813 = vmatpush1.msra.mxu0 0.0
    %5814 = vmatprep.subr.mxu0 0.0
    %5815 = vmatpush1.msra.mxu0 0.0
    %5816 = vmatprep.subr.mxu0 0.0
    %5817 = vmatpush1.msra.mxu0 0.0
    %5818 = vmatprep.subr.mxu0 0.0
    %5819 = vmatpush1.msra.mxu0 0.0
    %5820 = vmatprep.subr.mxu0 0.0
    %5821 = vmatpush1.msra.mxu0 0.0
    %5822 = vmatprep.subr.mxu0 0.0
    %5823 = vmatpush1.msra.mxu0 0.0
    %5824 = vmatprep.subr.mxu0 0.0
    %5825 = vmatpush1.msra.mxu0 0.0
    %5826 = vmatprep.subr.mxu0 0.0
    %5827 = vmatpush1.msra.mxu0 0.0
    %5828 = vmatprep.mubr.f32.mxu0 0.0
    %5829 = vmatmul.mubr.f32.gmra.mrb[0].mxu0 %v5759
    %v5830 = vpop.f32.mrb[0].mxu0
    %v5831 = vadd.f32 0.0, %v5830
    %v5832 = vpop.f32.mrb[0].mxu0
    %5833 = vmatprep.mubr.f32.mxu0 0.0
    %5834 = vmatmul.mubr.f32.gmra.mrb[0].mxu0 %v5762
    %v5835 = vpop.f32.mrb[0].mxu0
    %v5836 = vadd.f32 0.0, %v5835
    %v5837 = vpop.f32.mrb[0].mxu0
    %5838 = vdwg.mxu0
    %v5839 = vadd.f32 %v5166, %v5831
    %v5840 = vadd.f32 %v5167, %v5836
    %v5841 = vadd.f32 %v3085, %v5839
    %v5842 = vadd.f32 %v3086, %v5840
    %s5843 = scalar_lea.vmem %s11, 1
    %v5844 = vld [vmem:[%s5843] sm:$0x1]
    %v5846 = vlaneseq
    %v5847 = vshrl.u32 %v5846, 7
    %v5848 = vsub.s32 0, %v5847
    %v5849 = vrot.slane %v5844, %v5848
    %v5851 = vadd.f32 %v5841, %v5849
    %v5852 = vadd.f32 %v5842, %v5849
    %s5853 = scalar_lea.vmem %s12, 1
    %v5854 = vld [vmem:[%s5853] sm:$0x1]
    %s5855 = scalar_lea.vmem %s13, 1
    %v5856 = vld [vmem:[%s5855] sm:$0x1]
    %v5857 = vsel %vm76, %v5851, 0.0
    %5858 = vadd.xlane.f32.xlu0 %v5857
    %v5859 = vpop.xlane.xlu0 %5858
    %v5860 = vsel %vm76, %v5852, 0.0
    %5861 = vadd.xlane.f32.xlu0 %v5860
    %v5862 = vpop.xlane.xlu0 %5861
    %v5863 = vmul.f32 %v5859, %v83
    %v5864 = vmul.f32 %v5862, %v83
    %v5865 = vsub.f32 %v5851, %v5863
    %v5866 = vsub.f32 %v5852, %v5864
    %v5867 = vmul.f32 %v5865, %v5865
    %v5868 = vmul.f32 %v5866, %v5866
    %v5869 = vsel %vm76, %v5867, 0.0
    %5870 = vadd.xlane.f32.xlu0 %v5869
    %v5871 = vpop.xlane.xlu0 %5870
    %v5872 = vsel %vm76, %v5868, 0.0
    %5873 = vadd.xlane.f32.xlu0 %v5872
    %v5874 = vpop.xlane.xlu0 %5873
    %v5875 = vmul.f32 %v5871, %v96
    %v5876 = vmul.f32 %v5874, %v96
    %v5878 = vlaneseq
    %v5879 = vshrl.u32 %v5878, 7
    %v5880 = vsub.s32 0, %v5879
    %v5881 = vrot.slane %v5854, %v5880
    %v5883 = vmul.f32 %v5881, %v5865
    %v5884 = vmul.f32 %v5881, %v5866
    %v5885 = vrsqrt.pop %v5875
    %v5886 = vmul.f32 %v5875, %v5885
    %vm5887 = vcmp.eq.f32.partialorder %v5875, inf
    %v5888 = vsel %vm5887, %v5875, %v5886
    %vm5889 = vcmp.eq.f32.partialorder %v5875, 0.0
    %v5890 = vand.u32 %v5875, 2147483648
    %v5891 = vsel %vm5889, %v5890, %v5888
    %v5892 = vrsqrt.pop %v5876
    %v5893 = vmul.f32 %v5876, %v5892
    %vm5894 = vcmp.eq.f32.partialorder %v5876, inf
    %v5895 = vsel %vm5894, %v5876, %v5893
    %vm5896 = vcmp.eq.f32.partialorder %v5876, 0.0
    %v5897 = vand.u32 %v5876, 2147483648
    %v5898 = vsel %vm5896, %v5897, %v5895
    %v5899 = vadd.f32 %v5891, 1e-06
    %v5900 = vadd.f32 %v5898, 1e-06
    %v5901 = vrcp.pop %v5899
    %v5902 = vmul.f32 %v5883, %v5901
    %v5903 = vrcp.pop %v5900
    %v5904 = vmul.f32 %v5884, %v5903
    %v5906 = vlaneseq
    %v5907 = vshrl.u32 %v5906, 7
    %v5908 = vsub.s32 0, %v5907
    %v5909 = vrot.slane %v5856, %v5908
    %v5911 = vadd.f32 %v5902, %v5909
    %v5912 = vadd.f32 %v5904, %v5909
    %s5913 = scalar_lea.vmem %s14, 32
    %v5914 = vld [vmem:[%s5913] sm:$0xff]
    %v5915 = vld [vmem:[%s5913 + $0x8] sm:$0xff]
    %v5916 = vld [vmem:[%s5913 + $0x10] sm:$0xff]
    %v5917 = vld [vmem:[%s5913 + $0x18] sm:$0xff]
    %s5918 = scalar_lea.vmem %s15, 1
    %v5919 = vld [vmem:[%s5918] sm:$0x1]
    %v5921 = vlaneseq
    %v5922 = vshrl.u32 %v5921, 7
    %v5923 = vsub.s32 0, %v5922
    %v5924 = vrot.slane %v5919, %v5923
    %v5927 = vsel %vm76, %v5911, 0
    %v5930 = vsel %vm76, %v5912, 0
    %5932 = vmatprep.subr.mxu0 0.0
    %5933 = vmatpush1.msra.mxu0 %v5914
    %5934 = vmatprep.subr.mxu0 0.0
    %5935 = vmatpush1.msra.mxu0 %v5915
    %5936 = vmatprep.subr.mxu0 0.0
    %5937 = vmatpush1.msra.mxu0 %v5916
    %5938 = vmatprep.subr.mxu0 0.0
    %5939 = vmatpush1.msra.mxu0 %v5917
    %5940 = vmatprep.subr.mxu0 0.0
    %5941 = vmatpush1.msra.mxu0 0.0
    %5942 = vmatprep.subr.mxu0 0.0
    %5943 = vmatpush1.msra.mxu0 0.0
    %5944 = vmatprep.subr.mxu0 0.0
    %5945 = vmatpush1.msra.mxu0 0.0
    %5946 = vmatprep.subr.mxu0 0.0
    %5947 = vmatpush1.msra.mxu0 0.0
    %5948 = vmatprep.subr.mxu0 0.0
    %5949 = vmatpush1.msra.mxu0 0.0
    %5950 = vmatprep.subr.mxu0 0.0
    %5951 = vmatpush1.msra.mxu0 0.0
    %5952 = vmatprep.subr.mxu0 0.0
    %5953 = vmatpush1.msra.mxu0 0.0
    %5954 = vmatprep.subr.mxu0 0.0
    %5955 = vmatpush1.msra.mxu0 0.0
    %5956 = vmatprep.subr.mxu0 0.0
    %5957 = vmatpush1.msra.mxu0 0.0
    %5958 = vmatprep.subr.mxu0 0.0
    %5959 = vmatpush1.msra.mxu0 0.0
    %5960 = vmatprep.subr.mxu0 0.0
    %5961 = vmatpush1.msra.mxu0 0.0
    %5962 = vmatprep.subr.mxu0 0.0
    %5963 = vmatpush1.msra.mxu0 0.0
    %5964 = vmatprep.subr.mxu0 0.0
    %5965 = vmatpush1.msra.mxu0 0.0
    %5966 = vmatprep.subr.mxu0 0.0
    %5967 = vmatpush1.msra.mxu0 0.0
    %5968 = vmatprep.subr.mxu0 0.0
    %5969 = vmatpush1.msra.mxu0 0.0
    %5970 = vmatprep.subr.mxu0 0.0
    %5971 = vmatpush1.msra.mxu0 0.0
    %5972 = vmatprep.subr.mxu0 0.0
    %5973 = vmatpush1.msra.mxu0 0.0
    %5974 = vmatprep.subr.mxu0 0.0
    %5975 = vmatpush1.msra.mxu0 0.0
    %5976 = vmatprep.subr.mxu0 0.0
    %5977 = vmatpush1.msra.mxu0 0.0
    %5978 = vmatprep.subr.mxu0 0.0
    %5979 = vmatpush1.msra.mxu0 0.0
    %5980 = vmatprep.subr.mxu0 0.0
    %5981 = vmatpush1.msra.mxu0 0.0
    %5982 = vmatprep.subr.mxu0 0.0
    %5983 = vmatpush1.msra.mxu0 0.0
    %5984 = vmatprep.subr.mxu0 0.0
    %5985 = vmatpush1.msra.mxu0 0.0
    %5986 = vmatprep.subr.mxu0 0.0
    %5987 = vmatpush1.msra.mxu0 0.0
    %5988 = vmatprep.subr.mxu0 0.0
    %5989 = vmatpush1.msra.mxu0 0.0
    %5990 = vmatprep.subr.mxu0 0.0
    %5991 = vmatpush1.msra.mxu0 0.0
    %5992 = vmatprep.subr.mxu0 0.0
    %5993 = vmatpush1.msra.mxu0 0.0
    %5994 = vmatprep.subr.mxu0 0.0
    %5995 = vmatpush1.msra.mxu0 0.0
    %5996 = vmatprep.mubr.f32.mxu0 0.0
    %5997 = vmatmul.mubr.f32.gmra.mrb[0].mxu0 %v5927
    %v5998 = vpop.f32.mrb[0].mxu0
    %v5999 = vadd.f32 %v5924, %v5998
    %v6000 = vpop.f32.mrb[0].mxu0
    %6001 = vmatprep.mubr.f32.mxu0 0.0
    %6002 = vmatmul.mubr.f32.gmra.mrb[0].mxu0 %v5930
    %v6003 = vpop.f32.mrb[0].mxu0
    %v6004 = vadd.f32 %v5924, %v6003
    %v6005 = vpop.f32.mrb[0].mxu0
    %6006 = vdwg.mxu0
    %v6007 = vmax.f32 %v5999, 0.0
    %v6008 = vmax.f32 %v6004, 0.0
    %s6009 = scalar_lea.vmem %s16, 64
    %v6010 = vld [vmem:[%s6009] sm:$0xff]
    %v6011 = vld [vmem:[%s6009 + $0x8] sm:$0xff]
    %v6012 = vld [vmem:[%s6009 + $0x10] sm:$0xff]
    %v6013 = vld [vmem:[%s6009 + $0x18] sm:$0xff]
    %v6014 = vld [vmem:[%s6009 + $0x20] sm:$0xff]
    %v6015 = vld [vmem:[%s6009 + $0x28] sm:$0xff]
    %v6016 = vld [vmem:[%s6009 + $0x30] sm:$0xff]
    %v6017 = vld [vmem:[%s6009 + $0x38] sm:$0xff]
    %v6019 = vsel %vm2994, %v6007, 0
    %v6022 = vsel %vm2994, %v6008, 0
    %6024 = vmatprep.subr.mxu0 0.0
    %6025 = vmatpush1.msra.mxu0 %v6010
    %6026 = vmatprep.subr.mxu0 0.0
    %6027 = vmatpush1.msra.mxu0 %v6011
    %6028 = vmatprep.subr.mxu0 0.0
    %6029 = vmatpush1.msra.mxu0 %v6012
    %6030 = vmatprep.subr.mxu0 0.0
    %6031 = vmatpush1.msra.mxu0 %v6013
    %6032 = vmatprep.subr.mxu0 0.0
    %6033 = vmatpush1.msra.mxu0 %v6014
    %6034 = vmatprep.subr.mxu0 0.0
    %6035 = vmatpush1.msra.mxu0 %v6015
    %6036 = vmatprep.subr.mxu0 0.0
    %6037 = vmatpush1.msra.mxu0 %v6016
    %6038 = vmatprep.subr.mxu0 0.0
    %6039 = vmatpush1.msra.mxu0 %v6017
    %6040 = vmatprep.subr.mxu0 0.0
    %6041 = vmatpush1.msra.mxu0 0.0
    %6042 = vmatprep.subr.mxu0 0.0
    %6043 = vmatpush1.msra.mxu0 0.0
    %6044 = vmatprep.subr.mxu0 0.0
    %6045 = vmatpush1.msra.mxu0 0.0
    %6046 = vmatprep.subr.mxu0 0.0
    %6047 = vmatpush1.msra.mxu0 0.0
    %6048 = vmatprep.subr.mxu0 0.0
    %6049 = vmatpush1.msra.mxu0 0.0
    %6050 = vmatprep.subr.mxu0 0.0
    %6051 = vmatpush1.msra.mxu0 0.0
    %6052 = vmatprep.subr.mxu0 0.0
    %6053 = vmatpush1.msra.mxu0 0.0
    %6054 = vmatprep.subr.mxu0 0.0
    %6055 = vmatpush1.msra.mxu0 0.0
    %6056 = vmatprep.subr.mxu0 0.0
    %6057 = vmatpush1.msra.mxu0 0.0
    %6058 = vmatprep.subr.mxu0 0.0
    %6059 = vmatpush1.msra.mxu0 0.0
    %6060 = vmatprep.subr.mxu0 0.0
    %6061 = vmatpush1.msra.mxu0 0.0
    %6062 = vmatprep.subr.mxu0 0.0
    %6063 = vmatpush1.msra.mxu0 0.0
    %6064 = vmatprep.subr.mxu0 0.0
    %6065 = vmatpush1.msra.mxu0 0.0
    %6066 = vmatprep.subr.mxu0 0.0
    %6067 = vmatpush1.msra.mxu0 0.0
    %6068 = vmatprep.subr.mxu0 0.0
    %6069 = vmatpush1.msra.mxu0 0.0
    %6070 = vmatprep.subr.mxu0 0.0
    %6071 = vmatpush1.msra.mxu0 0.0
    %6072 = vmatprep.subr.mxu0 0.0
    %6073 = vmatpush1.msra.mxu0 0.0
    %6074 = vmatprep.subr.mxu0 0.0
    %6075 = vmatpush1.msra.mxu0 0.0
    %6076 = vmatprep.subr.mxu0 0.0
    %6077 = vmatpush1.msra.mxu0 0.0
    %6078 = vmatprep.subr.mxu0 0.0
    %6079 = vmatpush1.msra.mxu0 0.0
    %6080 = vmatprep.subr.mxu0 0.0
    %6081 = vmatpush1.msra.mxu0 0.0
    %6082 = vmatprep.subr.mxu0 0.0
    %6083 = vmatpush1.msra.mxu0 0.0
    %6084 = vmatprep.subr.mxu0 0.0
    %6085 = vmatpush1.msra.mxu0 0.0
    %6086 = vmatprep.subr.mxu0 0.0
    %6087 = vmatpush1.msra.mxu0 0.0
    %6088 = vmatprep.mubr.f32.mxu0 0.0
    %6089 = vmatmul.mubr.f32.gmra.mrb[0].mxu0 %v6019
    %v6090 = vpop.f32.mrb[0].mxu0
    %v6091 = vadd.f32 0.0, %v6090
    %v6092 = vpop.f32.mrb[0].mxu0
    %6093 = vmatprep.mubr.f32.mxu0 0.0
    %6094 = vmatmul.mubr.f32.gmra.mrb[0].mxu0 %v6022
    %v6095 = vpop.f32.mrb[0].mxu0
    %v6096 = vadd.f32 0.0, %v6095
    %v6097 = vpop.f32.mrb[0].mxu0
    %6098 = vdwg.mxu0
    %v6099 = vadd.f32 %v5851, %v6091
    %v6100 = vadd.f32 %v5852, %v6096
    %s6101 = scalar_lea.vmem %s17, 1
    %v6102 = vld [vmem:[%s6101] sm:$0x1]
    %v6104 = vlaneseq
    %v6105 = vshrl.u32 %v6104, 7
    %v6106 = vsub.s32 0, %v6105
    %v6107 = vrot.slane %v6102, %v6106
    %v6109 = vadd.f32 %v6099, %v6107
    %v6110 = vadd.f32 %v6100, %v6107
    %v6111 = vld [vmem:[%s18] sm:$0x1]
    %v6112 = vld [vmem:[%s19] sm:$0x1]
    %v6113 = vsel %vm76, %v6109, 0.0
    %6114 = vadd.xlane.f32.xlu0 %v6113
    %v6115 = vpop.xlane.xlu0 %6114
    %v6116 = vsel %vm76, %v6110, 0.0
    %6117 = vadd.xlane.f32.xlu0 %v6116
    %v6118 = vpop.xlane.xlu0 %6117
    %v6119 = vmul.f32 %v6115, %v83
    %v6120 = vmul.f32 %v6118, %v83
    %v6121 = vsub.f32 %v6109, %v6119
    %v6122 = vsub.f32 %v6110, %v6120
    %v6123 = vmul.f32 %v6121, %v6121
    %v6124 = vmul.f32 %v6122, %v6122
    %v6125 = vsel %vm76, %v6123, 0.0
    %6126 = vadd.xlane.f32.xlu0 %v6125
    %v6127 = vpop.xlane.xlu0 %6126
    %v6128 = vsel %vm76, %v6124, 0.0
    %6129 = vadd.xlane.f32.xlu0 %v6128
    %v6130 = vpop.xlane.xlu0 %6129
    %v6131 = vmul.f32 %v6127, %v96
    %v6132 = vmul.f32 %v6130, %v96
    %v6134 = vlaneseq
    %v6135 = vshrl.u32 %v6134, 7
    %v6136 = vsub.s32 0, %v6135
    %v6137 = vrot.slane %v6111, %v6136
    %v6139 = vmul.f32 %v6137, %v6121
    %v6140 = vmul.f32 %v6137, %v6122
    %v6141 = vrsqrt.pop %v6131
    %v6142 = vmul.f32 %v6131, %v6141
    %vm6143 = vcmp.eq.f32.partialorder %v6131, inf
    %v6144 = vsel %vm6143, %v6131, %v6142
    %vm6145 = vcmp.eq.f32.partialorder %v6131, 0.0
    %v6146 = vand.u32 %v6131, 2147483648
    %v6147 = vsel %vm6145, %v6146, %v6144
    %v6148 = vrsqrt.pop %v6132
    %v6149 = vmul.f32 %v6132, %v6148
    %vm6150 = vcmp.eq.f32.partialorder %v6132, inf
    %v6151 = vsel %vm6150, %v6132, %v6149
    %vm6152 = vcmp.eq.f32.partialorder %v6132, 0.0
    %v6153 = vand.u32 %v6132, 2147483648
    %v6154 = vsel %vm6152, %v6153, %v6151
    %v6155 = vadd.f32 %v6147, 1e-06
    %v6156 = vadd.f32 %v6154, 1e-06
    %v6157 = vrcp.pop %v6155
    %v6158 = vmul.f32 %v6139, %v6157
    %v6159 = vrcp.pop %v6156
    %v6160 = vmul.f32 %v6140, %v6159
    %v6162 = vlaneseq
    %v6163 = vshrl.u32 %v6162, 7
    %v6164 = vsub.s32 0, %v6163
    %v6165 = vrot.slane %v6112, %v6164
    %v6167 = vadd.f32 %v6158, %v6165
    %v6168 = vadd.f32 %v6160, %v6165
    %6169 = vst.msk [vmem:[#allocation2] sm:$0xff] %vm76, %v6167
    %6170 = vst.msk [vmem:[#allocation2 + $0x8] sm:$0xff] %vm76, %v6168
    // Predicated region
    $region82: #{encoder_forward.1} parent=1 // pred_check
      _
    $region83: #{encoder_forward.1} parent=1 // pred_check_branch
      %6172 = sbr.rel (0) target = $region85
    $region84: #{encoder_forward.1} parent=1 // pred_region
      %s6174 = ssub.s32 256, 256
      %6175 = vsyncadd [#allocation3], %s6174
      %s6176 = sshll.u32 [#allocation2], 4
      %s6177 = int_to_ptr.vmem [resolvable:$true] %s6176
      %6182 = dma.vmem_to_hbm [thread:$0]  %s6177, 256, %s20, [#allocation3], 128, 128, 8
    $region85: #{encoder_forward.1} parent=1 // pred_fallthru
      _
    // Predicated region
    $region86: #{encoder_forward.1} parent=1 // pred_check
      _
    $region87: #{encoder_forward.1} parent=1 // pred_check_branch
      %6184 = sbr.rel (0) target = $region89
    $region88: #{encoder_forward.1} parent=1 // pred_region
      %6185 = dma.done [#allocation3], 256
    $region89: #{encoder_forward.1} parent=1 // pred_fallthru
      _
    %6186 = vsyncpa [#allocation3], 1

</llo_original>
